<compile_context>
chip_gen: v7x
topology: tpu7x:2x2x1
jax: 0.10.0
libtpu: 0.0.40
codegen_flags: <defaults>
</compile_context>

<pallas_src>
import functools

import jax
import jax.numpy as jnp
from jax.experimental import pallas as pl
from jax.experimental.pallas import tpu as pltpu


# ---------------------------------------------------------------------------
# Fused kernel: all layers, all timesteps, grid=(1,).
# Row convention for the 2D slabs: row = t * B + b.
# ---------------------------------------------------------------------------
def _adtfm_fused_kernel(*refs, num_layers, hidden_size, seq_len, batch):
    H, S, B = hidden_size, seq_len, batch
    x_ref = refs[0]
    w_refs = refs[1:1 + 7 * num_layers]
    out_ref = refs[1 + 7 * num_layers]          # (S*B, H) output slab
    seq_scr = refs[2 + 7 * num_layers]          # (S*B, H) VMEM inter-layer slab

    cur = x_ref[...]                            # (S*B, D_in) f32

    for layer in range(num_layers):
        wx, uh, bg, wab, bab, wout, bout = w_refs[7 * layer:7 * (layer + 1)]

        # ---- Hoisted input projection for the whole sequence (one MXU pass).
        gates_x = (jnp.dot(cur.astype(jnp.bfloat16), wx[...],
                           preferred_element_type=jnp.float32)
                   + bg[...])                   # (S*B, 6H) f32

        # Stage weights / pre-broadcast biases once (outside the time loop).
        uh_w, wab_w, wout_w = uh[...], wab[...], wout[...]
        bab_b = jnp.broadcast_to(bab[...], (B, 2 * H))
        bout_b = jnp.broadcast_to(bout[...], (B, H))

        # Last layer writes the real output slab; earlier layers write the
        # VMEM scratch slab that feeds the next layer.
        dst = out_ref if layer == num_layers - 1 else seq_scr

        h = jnp.zeros((B, H), jnp.float32)
        c = jnp.zeros((B, H), jnp.float32)

        # Fully-unrolled recurrence (S is small & static): no per-step grid
        # overhead, only the unavoidable serial h-dependence remains.
        for t in range(S):
            g_x = gates_x[t * B:(t + 1) * B, :]              # (B, 6H)
            gates = g_x + jnp.dot(h.astype(jnp.bfloat16), uh_w,
                                  preferred_element_type=jnp.float32)

            # gate order: [i, o, f_ste, f_tim, f_fre | g]
            sig = jax.nn.sigmoid(gates[:, :5 * H])           # one EUP pass
            g_g = jnp.tanh(gates[:, 5 * H:])                 # one EUP pass
            i_g   = sig[:, 0 * H:1 * H]
            o_g   = sig[:, 1 * H:2 * H]
            f_ste = sig[:, 2 * H:3 * H]
            f_tim = sig[:, 3 * H:4 * H]
            f_fre = sig[:, 4 * H:5 * H]

            ig = i_g * g_g

            ab = jnp.dot(ig.astype(jnp.bfloat16), wab_w,
                         preferred_element_type=jnp.float32) + bab_b
            a_v = jnp.clip(jnp.tanh(ab[:, :H]), 0.1, 0.9)
            b_v = jnp.clip(jnp.tanh(ab[:, H:]), -0.9, 0.9)

            # t_val = 0.0 in the reference forward.
            term1 = jnp.cos(5.0 * a_v * b_v)
            term2 = jnp.exp(-pl.reciprocal(a_v + 1e-8, approx=True)
                            * (b_v * b_v))
            amp = jnp.abs(term1 * term2)

            c = jnp.clip(f_ste * f_tim * f_fre * c + ig * amp, -10.0, 10.0)

            h_proj = jnp.dot(c.astype(jnp.bfloat16), wout_w,
                             preferred_element_type=jnp.float32) + bout_b
            h = o_g * jnp.tanh(h_proj)

            dst[t * B:(t + 1) * B, :] = h

        if layer < num_layers - 1:
            cur = seq_scr[...]                  # layer output feeds next layer


# ---------------------------------------------------------------------------
# Wrapper
# ---------------------------------------------------------------------------
def adtfm_rnn_forward(x, layer_params, hidden_size):
    """x: (batch, seq, input_size) f32 -> (batch, seq, hidden_size) f32."""
    B, S, D_in = x.shape
    H = hidden_size
    num_layers = len(layer_params)

    # Time-major 2D slab: row index = t * B + b (done in XLA, trivially cheap).
    x2d = jnp.transpose(x, (1, 0, 2)).reshape(S * B, D_in).astype(jnp.float32)

    flat_w = [w for p in layer_params for w in p]

    kernel = functools.partial(_adtfm_fused_kernel, num_layers=num_layers,
                               hidden_size=H, seq_len=S, batch=B)

    in_specs = [pl.BlockSpec((S * B, D_in), lambda i: (0, 0))]
    for w in flat_w:
        in_specs.append(pl.BlockSpec(w.shape, lambda i: (0, 0)))

    grid_spec = pltpu.PrefetchScalarGridSpec(
        num_scalar_prefetch=0,
        grid=(1,),
        in_specs=in_specs,
        out_specs=pl.BlockSpec((S * B, H), lambda i: (0, 0)),
        scratch_shapes=[pltpu.VMEM((S * B, H), jnp.float32)],
    )

    out2d = pl.pallas_call(
        kernel,
        out_shape=jax.ShapeDtypeStruct((S * B, H), jnp.float32),
        grid_spec=grid_spec,
        compiler_params=pltpu.CompilerParams(
            dimension_semantics=("arbitrary",)),
    )(x2d, *flat_w)

    return out2d.reshape(S, B, H).transpose(1, 0, 2)        # (B, S, H)


# ---------------------------------------------------------------------------
# Parameter construction (deterministic; matches nn.init.xavier_normal_ with
# zero biases).  PyTorch Linear stores weight as (out, in); we store the
# transpose (in, out) so the kernel does x @ W.  Weights are kept in bf16
# (MXU operands); biases stay f32 (added into the f32 accumulator).
# ---------------------------------------------------------------------------
def _xavier_normal_t(key, in_size, out_size):
    std = (2.0 / (in_size + out_size)) ** 0.5
    w = jax.random.normal(key, (out_size, in_size), dtype=jnp.float32) * std
    return w.T                                    # (in, out)


def make_cell_params(key, input_size, hidden_size):
    H = hidden_size
    keys = jax.random.split(key, 16)
    k = iter(keys)
    # Gate order: i, o, f_ste, f_tim, f_fre (sigmoid block), then g (tanh).
    # (W_f / U_f of the reference never affects the output -> omitted.)
    wx = jnp.concatenate(
        [_xavier_normal_t(next(k), input_size, H) for _ in range(6)], axis=1)
    uh = jnp.concatenate(
        [_xavier_normal_t(next(k), H, H) for _ in range(6)], axis=1)
    bg = jnp.zeros((1, 6 * H), jnp.float32)       # b_W + b_U, both zero
    wab = jnp.concatenate(
        [_xavier_normal_t(next(k), H, H) for _ in range(2)], axis=1)
    bab = jnp.zeros((1, 2 * H), jnp.float32)
    wout = _xavier_normal_t(next(k), H, H)
    bout = jnp.zeros((1, H), jnp.float32)
    return (wx.astype(jnp.bfloat16), uh.astype(jnp.bfloat16), bg,
            wab.astype(jnp.bfloat16), bab, wout.astype(jnp.bfloat16), bout)


if __name__ == "__main__":
    batch, seq_len, input_size, hidden_size, num_layers = 2, 8, 16, 32, 2

    root = jax.random.PRNGKey(0)
    k_x, k_p = jax.random.split(root)
    x = jax.random.normal(k_x, (batch, seq_len, input_size), dtype=jnp.float32)

    layer_keys = jax.random.split(k_p, num_layers)
    layer_params = [
        make_cell_params(layer_keys[i],
                         input_size if i == 0 else hidden_size,
                         hidden_size)
        for i in range(num_layers)
    ]

    out = adtfm_rnn_forward(x, layer_params, hidden_size)
    out = jax.block_until_ready(out)
    assert out.shape == (batch, seq_len, hidden_size)
    assert bool(jnp.all(jnp.isfinite(out)))
    print("KERNEL_OK")
</pallas_src>

<mosaic_0001>
module attributes {stable_mosaic.version = 11 : i64} {
  func.func @_adtfm_fused_kernel(%arg0: i32, %arg1: memref<16x16xf32, #tpu.memory_space<vmem>>, %arg2: memref<16x192xbf16, #tpu.memory_space<vmem>>, %arg3: memref<32x192xbf16, #tpu.memory_space<vmem>>, %arg4: memref<1x192xf32, #tpu.memory_space<vmem>>, %arg5: memref<32x64xbf16, #tpu.memory_space<vmem>>, %arg6: memref<1x64xf32, #tpu.memory_space<vmem>>, %arg7: memref<32x32xbf16, #tpu.memory_space<vmem>>, %arg8: memref<1x32xf32, #tpu.memory_space<vmem>>, %arg9: memref<32x192xbf16, #tpu.memory_space<vmem>>, %arg10: memref<32x192xbf16, #tpu.memory_space<vmem>>, %arg11: memref<1x192xf32, #tpu.memory_space<vmem>>, %arg12: memref<32x64xbf16, #tpu.memory_space<vmem>>, %arg13: memref<1x64xf32, #tpu.memory_space<vmem>>, %arg14: memref<32x32xbf16, #tpu.memory_space<vmem>>, %arg15: memref<1x32xf32, #tpu.memory_space<vmem>>, %arg16: memref<16x32xf32, #tpu.memory_space<vmem>>, %arg17: memref<16x32xf32, #tpu.memory_space<vmem>>) attributes {dimension_semantics = [#tpu.dimension_semantics<arbitrary>], iteration_bounds = array<i64: 1>, scalar_prefetch = 0 : i64, scratch_operands = 1 : i64, tpu.core_type = #tpu.core_type<tc>, window_params = [{pipeline_mode = #tpu.pipeline_mode<synchronous>, transform_indices = @transform_0, window_bounds = array<i64: 16, 16>}, {pipeline_mode = #tpu.pipeline_mode<synchronous>, transform_indices = @transform_1, window_bounds = array<i64: 16, 192>}, {pipeline_mode = #tpu.pipeline_mode<synchronous>, transform_indices = @transform_2, window_bounds = array<i64: 32, 192>}, {pipeline_mode = #tpu.pipeline_mode<synchronous>, transform_indices = @transform_3, window_bounds = array<i64: 1, 192>}, {pipeline_mode = #tpu.pipeline_mode<synchronous>, transform_indices = @transform_4, window_bounds = array<i64: 32, 64>}, {pipeline_mode = #tpu.pipeline_mode<synchronous>, transform_indices = @transform_5, window_bounds = array<i64: 1, 64>}, {pipeline_mode = #tpu.pipeline_mode<synchronous>, transform_indices = @transform_6, window_bounds = array<i64: 32, 32>}, {pipeline_mode = #tpu.pipeline_mode<synchronous>, transform_indices = @transform_7, window_bounds = array<i64: 1, 32>}, {pipeline_mode = #tpu.pipeline_mode<synchronous>, transform_indices = @transform_8, window_bounds = array<i64: 32, 192>}, {pipeline_mode = #tpu.pipeline_mode<synchronous>, transform_indices = @transform_9, window_bounds = array<i64: 32, 192>}, {pipeline_mode = #tpu.pipeline_mode<synchronous>, transform_indices = @transform_10, window_bounds = array<i64: 1, 192>}, {pipeline_mode = #tpu.pipeline_mode<synchronous>, transform_indices = @transform_11, window_bounds = array<i64: 32, 64>}, {pipeline_mode = #tpu.pipeline_mode<synchronous>, transform_indices = @transform_12, window_bounds = array<i64: 1, 64>}, {pipeline_mode = #tpu.pipeline_mode<synchronous>, transform_indices = @transform_13, window_bounds = array<i64: 32, 32>}, {pipeline_mode = #tpu.pipeline_mode<synchronous>, transform_indices = @transform_14, window_bounds = array<i64: 1, 32>}, {pipeline_mode = #tpu.pipeline_mode<synchronous>, transform_indices = @transform_15, window_bounds = array<i64: 16, 32>}]} {
    %c0 = arith.constant 0 : index
    %c0_0 = arith.constant 0 : index
    %0 = vector.load %arg1[%c0, %c0_0] : memref<16x16xf32, #tpu.memory_space<vmem>>, vector<16x16xf32>
    %1 = arith.truncf %0 : vector<16x16xf32> to vector<16x16xbf16>
    %c0_1 = arith.constant 0 : index
    %c0_2 = arith.constant 0 : index
    %2 = vector.load %arg2[%c0_1, %c0_2] : memref<16x192xbf16, #tpu.memory_space<vmem>>, vector<16x192xbf16>
    %cst = arith.constant dense<0.000000e+00> : vector<16x192xf32>
    %3 = tpu.matmul %1, %2, %cst {dimension_numbers = #tpu.dot_dimension_numbers<[1], [0], [0], [1], [0, 0, 1, 1], [], []>} : vector<16x16xbf16>, vector<16x192xbf16>, vector<16x192xf32> -> vector<16x192xf32>
    %c0_3 = arith.constant 0 : index
    %c0_4 = arith.constant 0 : index
    %4 = vector.load %arg4[%c0_3, %c0_4] : memref<1x192xf32, #tpu.memory_space<vmem>>, vector<1x192xf32>
    %5 = vector.broadcast %4 : vector<1x192xf32> to vector<16x192xf32>
    %6 = arith.addf %3, %5 : vector<16x192xf32>
    %c0_5 = arith.constant 0 : index
    %c0_6 = arith.constant 0 : index
    %7 = vector.load %arg3[%c0_5, %c0_6] : memref<32x192xbf16, #tpu.memory_space<vmem>>, vector<32x192xbf16>
    %c0_7 = arith.constant 0 : index
    %c0_8 = arith.constant 0 : index
    %8 = vector.load %arg5[%c0_7, %c0_8] : memref<32x64xbf16, #tpu.memory_space<vmem>>, vector<32x64xbf16>
    %c0_9 = arith.constant 0 : index
    %c0_10 = arith.constant 0 : index
    %9 = vector.load %arg7[%c0_9, %c0_10] : memref<32x32xbf16, #tpu.memory_space<vmem>>, vector<32x32xbf16>
    %c0_11 = arith.constant 0 : index
    %c0_12 = arith.constant 0 : index
    %10 = vector.load %arg6[%c0_11, %c0_12] : memref<1x64xf32, #tpu.memory_space<vmem>>, vector<1x64xf32>
    %11 = vector.shape_cast %10 : vector<1x64xf32> to vector<1x64xf32>
    %12 = vector.broadcast %11 : vector<1x64xf32> to vector<2x64xf32>
    %c0_13 = arith.constant 0 : index
    %c0_14 = arith.constant 0 : index
    %13 = vector.load %arg8[%c0_13, %c0_14] : memref<1x32xf32, #tpu.memory_space<vmem>>, vector<1x32xf32>
    %14 = vector.shape_cast %13 : vector<1x32xf32> to vector<1x32xf32>
    %15 = vector.broadcast %14 : vector<1x32xf32> to vector<2x32xf32>
    %cst_15 = arith.constant 0.000000e+00 : f32
    %16 = vector.broadcast %cst_15 : f32 to vector<2x32xf32>
    %cst_16 = arith.constant 0.000000e+00 : f32
    %17 = vector.broadcast %cst_16 : f32 to vector<2x32xf32>
    %18 = vector.extract_strided_slice %6 {offsets = [0, 0], sizes = [2, 192], strides = [1, 1]} : vector<16x192xf32> to vector<2x192xf32>
    %19 = arith.truncf %16 : vector<2x32xf32> to vector<2x32xbf16>
    %cst_17 = arith.constant dense<0.000000e+00> : vector<2x192xf32>
    %20 = tpu.matmul %19, %7, %cst_17 {dimension_numbers = #tpu.dot_dimension_numbers<[1], [0], [0], [1], [0, 0, 1, 1], [], []>} : vector<2x32xbf16>, vector<32x192xbf16>, vector<2x192xf32> -> vector<2x192xf32>
    %21 = arith.addf %18, %20 : vector<2x192xf32>
    %22 = vector.extract_strided_slice %21 {offsets = [0, 0], sizes = [2, 160], strides = [1, 1]} : vector<2x192xf32> to vector<2x160xf32>
    %23 = arith.negf %22 : vector<2x160xf32>
    %24 = math.exp %23 : vector<2x160xf32>
    %cst_18 = arith.constant 1.000000e+00 : f32
    %25 = vector.broadcast %cst_18 : f32 to vector<2x160xf32>
    %26 = arith.addf %25, %24 : vector<2x160xf32>
    %27 = arith.divf %25, %26 : vector<2x160xf32>
    %28 = vector.extract_strided_slice %21 {offsets = [0, 160], sizes = [2, 32], strides = [1, 1]} : vector<2x192xf32> to vector<2x32xf32>
    %29 = math.tanh %28 : vector<2x32xf32>
    %30 = vector.extract_strided_slice %27 {offsets = [0, 0], sizes = [2, 32], strides = [1, 1]} : vector<2x160xf32> to vector<2x32xf32>
    %31 = vector.extract_strided_slice %27 {offsets = [0, 32], sizes = [2, 32], strides = [1, 1]} : vector<2x160xf32> to vector<2x32xf32>
    %32 = vector.extract_strided_slice %27 {offsets = [0, 64], sizes = [2, 32], strides = [1, 1]} : vector<2x160xf32> to vector<2x32xf32>
    %33 = vector.extract_strided_slice %27 {offsets = [0, 96], sizes = [2, 32], strides = [1, 1]} : vector<2x160xf32> to vector<2x32xf32>
    %34 = vector.extract_strided_slice %27 {offsets = [0, 128], sizes = [2, 32], strides = [1, 1]} : vector<2x160xf32> to vector<2x32xf32>
    %35 = arith.mulf %30, %29 : vector<2x32xf32>
    %36 = arith.truncf %35 : vector<2x32xf32> to vector<2x32xbf16>
    %cst_19 = arith.constant dense<0.000000e+00> : vector<2x64xf32>
    %37 = tpu.matmul %36, %8, %cst_19 {dimension_numbers = #tpu.dot_dimension_numbers<[1], [0], [0], [1], [0, 0, 1, 1], [], []>} : vector<2x32xbf16>, vector<32x64xbf16>, vector<2x64xf32> -> vector<2x64xf32>
    %38 = arith.addf %37, %12 : vector<2x64xf32>
    %39 = vector.extract_strided_slice %38 {offsets = [0, 0], sizes = [2, 32], strides = [1, 1]} : vector<2x64xf32> to vector<2x32xf32>
    %40 = math.tanh %39 : vector<2x32xf32>
    %cst_20 = arith.constant 1.000000e-01 : f32
    %cst_21 = arith.constant 0.899999976 : f32
    %41 = vector.broadcast %cst_20 : f32 to vector<2x32xf32>
    %42 = arith.maximumf %41, %40 : vector<2x32xf32>
    %43 = vector.broadcast %cst_21 : f32 to vector<2x32xf32>
    %44 = arith.minimumf %43, %42 : vector<2x32xf32>
    %45 = vector.extract_strided_slice %38 {offsets = [0, 32], sizes = [2, 32], strides = [1, 1]} : vector<2x64xf32> to vector<2x32xf32>
    %46 = math.tanh %45 : vector<2x32xf32>
    %cst_22 = arith.constant -0.899999976 : f32
    %cst_23 = arith.constant 0.899999976 : f32
    %47 = vector.broadcast %cst_22 : f32 to vector<2x32xf32>
    %48 = arith.maximumf %47, %46 : vector<2x32xf32>
    %49 = vector.broadcast %cst_23 : f32 to vector<2x32xf32>
    %50 = arith.minimumf %49, %48 : vector<2x32xf32>
    %cst_24 = arith.constant 5.000000e+00 : f32
    %51 = vector.broadcast %cst_24 : f32 to vector<2x32xf32>
    %52 = arith.mulf %51, %44 : vector<2x32xf32>
    %53 = arith.mulf %52, %50 : vector<2x32xf32>
    %54 = math.cos %53 : vector<2x32xf32>
    %cst_25 = arith.constant 9.99999993E-9 : f32
    %55 = vector.broadcast %cst_25 : f32 to vector<2x32xf32>
    %56 = arith.addf %44, %55 : vector<2x32xf32>
    %57 = tpu.reciprocal %56 {approx = true} : vector<2x32xf32> -> vector<2x32xf32>
    %cst_26 = arith.constant 0.000000e+00 : f32
    %58 = vector.broadcast %cst_26 : f32 to vector<2x32xf32>
    %59 = arith.subf %58, %57 : vector<2x32xf32>
    %60 = arith.mulf %50, %50 : vector<2x32xf32>
    %61 = arith.mulf %59, %60 : vector<2x32xf32>
    %62 = math.exp %61 : vector<2x32xf32>
    %63 = arith.mulf %54, %62 : vector<2x32xf32>
    %64 = math.absf %63 : vector<2x32xf32>
    %65 = arith.mulf %32, %33 : vector<2x32xf32>
    %66 = arith.mulf %65, %34 : vector<2x32xf32>
    %67 = arith.mulf %66, %17 : vector<2x32xf32>
    %68 = arith.mulf %35, %64 : vector<2x32xf32>
    %69 = arith.addf %67, %68 : vector<2x32xf32>
    %cst_27 = arith.constant -1.000000e+01 : f32
    %cst_28 = arith.constant 1.000000e+01 : f32
    %70 = vector.broadcast %cst_27 : f32 to vector<2x32xf32>
    %71 = arith.maximumf %70, %69 : vector<2x32xf32>
    %72 = vector.broadcast %cst_28 : f32 to vector<2x32xf32>
    %73 = arith.minimumf %72, %71 : vector<2x32xf32>
    %74 = arith.truncf %73 : vector<2x32xf32> to vector<2x32xbf16>
    %cst_29 = arith.constant dense<0.000000e+00> : vector<2x32xf32>
    %75 = tpu.matmul %74, %9, %cst_29 {dimension_numbers = #tpu.dot_dimension_numbers<[1], [0], [0], [1], [0, 0, 1, 1], [], []>} : vector<2x32xbf16>, vector<32x32xbf16>, vector<2x32xf32> -> vector<2x32xf32>
    %76 = arith.addf %75, %15 : vector<2x32xf32>
    %77 = math.tanh %76 : vector<2x32xf32>
    %78 = arith.mulf %31, %77 : vector<2x32xf32>
    %c0_30 = arith.constant 0 : index
    %c0_31 = arith.constant 0 : index
    %79 = vector.load %arg17[%c0_30, %c0_31] : memref<16x32xf32, #tpu.memory_space<vmem>>, vector<2x32xf32>
    tpu.vector_store %arg17[%c0_30, %c0_31], %78 {strides = array<i32>} : memref<16x32xf32, #tpu.memory_space<vmem>>, vector<2x32xf32>,
    %80 = vector.extract_strided_slice %6 {offsets = [2, 0], sizes = [2, 192], strides = [1, 1]} : vector<16x192xf32> to vector<2x192xf32>
    %81 = arith.truncf %78 : vector<2x32xf32> to vector<2x32xbf16>
    %cst_32 = arith.constant dense<0.000000e+00> : vector<2x192xf32>
    %82 = tpu.matmul %81, %7, %cst_32 {dimension_numbers = #tpu.dot_dimension_numbers<[1], [0], [0], [1], [0, 0, 1, 1], [], []>} : vector<2x32xbf16>, vector<32x192xbf16>, vector<2x192xf32> -> vector<2x192xf32>
    %83 = arith.addf %80, %82 : vector<2x192xf32>
    %84 = vector.extract_strided_slice %83 {offsets = [0, 0], sizes = [2, 160], strides = [1, 1]} : vector<2x192xf32> to vector<2x160xf32>
    %85 = arith.negf %84 : vector<2x160xf32>
    %86 = math.exp %85 : vector<2x160xf32>
    %cst_33 = arith.constant 1.000000e+00 : f32
    %87 = vector.broadcast %cst_33 : f32 to vector<2x160xf32>
    %88 = arith.addf %87, %86 : vector<2x160xf32>
    %89 = arith.divf %87, %88 : vector<2x160xf32>
    %90 = vector.extract_strided_slice %83 {offsets = [0, 160], sizes = [2, 32], strides = [1, 1]} : vector<2x192xf32> to vector<2x32xf32>
    %91 = math.tanh %90 : vector<2x32xf32>
    %92 = vector.extract_strided_slice %89 {offsets = [0, 0], sizes = [2, 32], strides = [1, 1]} : vector<2x160xf32> to vector<2x32xf32>
    %93 = vector.extract_strided_slice %89 {offsets = [0, 32], sizes = [2, 32], strides = [1, 1]} : vector<2x160xf32> to vector<2x32xf32>
    %94 = vector.extract_strided_slice %89 {offsets = [0, 64], sizes = [2, 32], strides = [1, 1]} : vector<2x160xf32> to vector<2x32xf32>
    %95 = vector.extract_strided_slice %89 {offsets = [0, 96], sizes = [2, 32], strides = [1, 1]} : vector<2x160xf32> to vector<2x32xf32>
    %96 = vector.extract_strided_slice %89 {offsets = [0, 128], sizes = [2, 32], strides = [1, 1]} : vector<2x160xf32> to vector<2x32xf32>
    %97 = arith.mulf %92, %91 : vector<2x32xf32>
    %98 = arith.truncf %97 : vector<2x32xf32> to vector<2x32xbf16>
    %cst_34 = arith.constant dense<0.000000e+00> : vector<2x64xf32>
    %99 = tpu.matmul %98, %8, %cst_34 {dimension_numbers = #tpu.dot_dimension_numbers<[1], [0], [0], [1], [0, 0, 1, 1], [], []>} : vector<2x32xbf16>, vector<32x64xbf16>, vector<2x64xf32> -> vector<2x64xf32>
    %100 = arith.addf %99, %12 : vector<2x64xf32>
    %101 = vector.extract_strided_slice %100 {offsets = [0, 0], sizes = [2, 32], strides = [1, 1]} : vector<2x64xf32> to vector<2x32xf32>
    %102 = math.tanh %101 : vector<2x32xf32>
    %cst_35 = arith.constant 1.000000e-01 : f32
    %cst_36 = arith.constant 0.899999976 : f32
    %103 = vector.broadcast %cst_35 : f32 to vector<2x32xf32>
    %104 = arith.maximumf %103, %102 : vector<2x32xf32>
    %105 = vector.broadcast %cst_36 : f32 to vector<2x32xf32>
    %106 = arith.minimumf %105, %104 : vector<2x32xf32>
    %107 = vector.extract_strided_slice %100 {offsets = [0, 32], sizes = [2, 32], strides = [1, 1]} : vector<2x64xf32> to vector<2x32xf32>
    %108 = math.tanh %107 : vector<2x32xf32>
    %cst_37 = arith.constant -0.899999976 : f32
    %cst_38 = arith.constant 0.899999976 : f32
    %109 = vector.broadcast %cst_37 : f32 to vector<2x32xf32>
    %110 = arith.maximumf %109, %108 : vector<2x32xf32>
    %111 = vector.broadcast %cst_38 : f32 to vector<2x32xf32>
    %112 = arith.minimumf %111, %110 : vector<2x32xf32>
    %cst_39 = arith.constant 5.000000e+00 : f32
    %113 = vector.broadcast %cst_39 : f32 to vector<2x32xf32>
    %114 = arith.mulf %113, %106 : vector<2x32xf32>
    %115 = arith.mulf %114, %112 : vector<2x32xf32>
    %116 = math.cos %115 : vector<2x32xf32>
    %cst_40 = arith.constant 9.99999993E-9 : f32
    %117 = vector.broadcast %cst_40 : f32 to vector<2x32xf32>
    %118 = arith.addf %106, %117 : vector<2x32xf32>
    %119 = tpu.reciprocal %118 {approx = true} : vector<2x32xf32> -> vector<2x32xf32>
    %cst_41 = arith.constant 0.000000e+00 : f32
    %120 = vector.broadcast %cst_41 : f32 to vector<2x32xf32>
    %121 = arith.subf %120, %119 : vector<2x32xf32>
    %122 = arith.mulf %112, %112 : vector<2x32xf32>
    %123 = arith.mulf %121, %122 : vector<2x32xf32>
    %124 = math.exp %123 : vector<2x32xf32>
    %125 = arith.mulf %116, %124 : vector<2x32xf32>
    %126 = math.absf %125 : vector<2x32xf32>
    %127 = arith.mulf %94, %95 : vector<2x32xf32>
    %128 = arith.mulf %127, %96 : vector<2x32xf32>
    %129 = arith.mulf %128, %73 : vector<2x32xf32>
    %130 = arith.mulf %97, %126 : vector<2x32xf32>
    %131 = arith.addf %129, %130 : vector<2x32xf32>
    %cst_42 = arith.constant -1.000000e+01 : f32
    %cst_43 = arith.constant 1.000000e+01 : f32
    %132 = vector.broadcast %cst_42 : f32 to vector<2x32xf32>
    %133 = arith.maximumf %132, %131 : vector<2x32xf32>
    %134 = vector.broadcast %cst_43 : f32 to vector<2x32xf32>
    %135 = arith.minimumf %134, %133 : vector<2x32xf32>
    %136 = arith.truncf %135 : vector<2x32xf32> to vector<2x32xbf16>
    %cst_44 = arith.constant dense<0.000000e+00> : vector<2x32xf32>
    %137 = tpu.matmul %136, %9, %cst_44 {dimension_numbers = #tpu.dot_dimension_numbers<[1], [0], [0], [1], [0, 0, 1, 1], [], []>} : vector<2x32xbf16>, vector<32x32xbf16>, vector<2x32xf32> -> vector<2x32xf32>
    %138 = arith.addf %137, %15 : vector<2x32xf32>
    %139 = math.tanh %138 : vector<2x32xf32>
    %140 = arith.mulf %93, %139 : vector<2x32xf32>
    %c2 = arith.constant 2 : index
    %c0_45 = arith.constant 0 : index
    %141 = vector.load %arg17[%c2, %c0_45] : memref<16x32xf32, #tpu.memory_space<vmem>>, vector<2x32xf32>
    tpu.vector_store %arg17[%c2, %c0_45], %140 {strides = array<i32>} : memref<16x32xf32, #tpu.memory_space<vmem>>, vector<2x32xf32>,
    %142 = vector.extract_strided_slice %6 {offsets = [4, 0], sizes = [2, 192], strides = [1, 1]} : vector<16x192xf32> to vector<2x192xf32>
    %143 = arith.truncf %140 : vector<2x32xf32> to vector<2x32xbf16>
    %cst_46 = arith.constant dense<0.000000e+00> : vector<2x192xf32>
    %144 = tpu.matmul %143, %7, %cst_46 {dimension_numbers = #tpu.dot_dimension_numbers<[1], [0], [0], [1], [0, 0, 1, 1], [], []>} : vector<2x32xbf16>, vector<32x192xbf16>, vector<2x192xf32> -> vector<2x192xf32>
    %145 = arith.addf %142, %144 : vector<2x192xf32>
    %146 = vector.extract_strided_slice %145 {offsets = [0, 0], sizes = [2, 160], strides = [1, 1]} : vector<2x192xf32> to vector<2x160xf32>
    %147 = arith.negf %146 : vector<2x160xf32>
    %148 = math.exp %147 : vector<2x160xf32>
    %cst_47 = arith.constant 1.000000e+00 : f32
    %149 = vector.broadcast %cst_47 : f32 to vector<2x160xf32>
    %150 = arith.addf %149, %148 : vector<2x160xf32>
    %151 = arith.divf %149, %150 : vector<2x160xf32>
    %152 = vector.extract_strided_slice %145 {offsets = [0, 160], sizes = [2, 32], strides = [1, 1]} : vector<2x192xf32> to vector<2x32xf32>
    %153 = math.tanh %152 : vector<2x32xf32>
    %154 = vector.extract_strided_slice %151 {offsets = [0, 0], sizes = [2, 32], strides = [1, 1]} : vector<2x160xf32> to vector<2x32xf32>
    %155 = vector.extract_strided_slice %151 {offsets = [0, 32], sizes = [2, 32], strides = [1, 1]} : vector<2x160xf32> to vector<2x32xf32>
    %156 = vector.extract_strided_slice %151 {offsets = [0, 64], sizes = [2, 32], strides = [1, 1]} : vector<2x160xf32> to vector<2x32xf32>
    %157 = vector.extract_strided_slice %151 {offsets = [0, 96], sizes = [2, 32], strides = [1, 1]} : vector<2x160xf32> to vector<2x32xf32>
    %158 = vector.extract_strided_slice %151 {offsets = [0, 128], sizes = [2, 32], strides = [1, 1]} : vector<2x160xf32> to vector<2x32xf32>
    %159 = arith.mulf %154, %153 : vector<2x32xf32>
    %160 = arith.truncf %159 : vector<2x32xf32> to vector<2x32xbf16>
    %cst_48 = arith.constant dense<0.000000e+00> : vector<2x64xf32>
    %161 = tpu.matmul %160, %8, %cst_48 {dimension_numbers = #tpu.dot_dimension_numbers<[1], [0], [0], [1], [0, 0, 1, 1], [], []>} : vector<2x32xbf16>, vector<32x64xbf16>, vector<2x64xf32> -> vector<2x64xf32>
    %162 = arith.addf %161, %12 : vector<2x64xf32>
    %163 = vector.extract_strided_slice %162 {offsets = [0, 0], sizes = [2, 32], strides = [1, 1]} : vector<2x64xf32> to vector<2x32xf32>
    %164 = math.tanh %163 : vector<2x32xf32>
    %cst_49 = arith.constant 1.000000e-01 : f32
    %cst_50 = arith.constant 0.899999976 : f32
    %165 = vector.broadcast %cst_49 : f32 to vector<2x32xf32>
    %166 = arith.maximumf %165, %164 : vector<2x32xf32>
    %167 = vector.broadcast %cst_50 : f32 to vector<2x32xf32>
    %168 = arith.minimumf %167, %166 : vector<2x32xf32>
    %169 = vector.extract_strided_slice %162 {offsets = [0, 32], sizes = [2, 32], strides = [1, 1]} : vector<2x64xf32> to vector<2x32xf32>
    %170 = math.tanh %169 : vector<2x32xf32>
    %cst_51 = arith.constant -0.899999976 : f32
    %cst_52 = arith.constant 0.899999976 : f32
    %171 = vector.broadcast %cst_51 : f32 to vector<2x32xf32>
    %172 = arith.maximumf %171, %170 : vector<2x32xf32>
    %173 = vector.broadcast %cst_52 : f32 to vector<2x32xf32>
    %174 = arith.minimumf %173, %172 : vector<2x32xf32>
    %cst_53 = arith.constant 5.000000e+00 : f32
    %175 = vector.broadcast %cst_53 : f32 to vector<2x32xf32>
    %176 = arith.mulf %175, %168 : vector<2x32xf32>
    %177 = arith.mulf %176, %174 : vector<2x32xf32>
    %178 = math.cos %177 : vector<2x32xf32>
    %cst_54 = arith.constant 9.99999993E-9 : f32
    %179 = vector.broadcast %cst_54 : f32 to vector<2x32xf32>
    %180 = arith.addf %168, %179 : vector<2x32xf32>
    %181 = tpu.reciprocal %180 {approx = true} : vector<2x32xf32> -> vector<2x32xf32>
    %cst_55 = arith.constant 0.000000e+00 : f32
    %182 = vector.broadcast %cst_55 : f32 to vector<2x32xf32>
    %183 = arith.subf %182, %181 : vector<2x32xf32>
    %184 = arith.mulf %174, %174 : vector<2x32xf32>
    %185 = arith.mulf %183, %184 : vector<2x32xf32>
    %186 = math.exp %185 : vector<2x32xf32>
    %187 = arith.mulf %178, %186 : vector<2x32xf32>
    %188 = math.absf %187 : vector<2x32xf32>
    %189 = arith.mulf %156, %157 : vector<2x32xf32>
    %190 = arith.mulf %189, %158 : vector<2x32xf32>
    %191 = arith.mulf %190, %135 : vector<2x32xf32>
    %192 = arith.mulf %159, %188 : vector<2x32xf32>
    %193 = arith.addf %191, %192 : vector<2x32xf32>
    %cst_56 = arith.constant -1.000000e+01 : f32
    %cst_57 = arith.constant 1.000000e+01 : f32
    %194 = vector.broadcast %cst_56 : f32 to vector<2x32xf32>
    %195 = arith.maximumf %194, %193 : vector<2x32xf32>
    %196 = vector.broadcast %cst_57 : f32 to vector<2x32xf32>
    %197 = arith.minimumf %196, %195 : vector<2x32xf32>
    %198 = arith.truncf %197 : vector<2x32xf32> to vector<2x32xbf16>
    %cst_58 = arith.constant dense<0.000000e+00> : vector<2x32xf32>
    %199 = tpu.matmul %198, %9, %cst_58 {dimension_numbers = #tpu.dot_dimension_numbers<[1], [0], [0], [1], [0, 0, 1, 1], [], []>} : vector<2x32xbf16>, vector<32x32xbf16>, vector<2x32xf32> -> vector<2x32xf32>
    %200 = arith.addf %199, %15 : vector<2x32xf32>
    %201 = math.tanh %200 : vector<2x32xf32>
    %202 = arith.mulf %155, %201 : vector<2x32xf32>
    %c4 = arith.constant 4 : index
    %c0_59 = arith.constant 0 : index
    %203 = vector.load %arg17[%c4, %c0_59] : memref<16x32xf32, #tpu.memory_space<vmem>>, vector<2x32xf32>
    tpu.vector_store %arg17[%c4, %c0_59], %202 {strides = array<i32>} : memref<16x32xf32, #tpu.memory_space<vmem>>, vector<2x32xf32>,
    %204 = vector.extract_strided_slice %6 {offsets = [6, 0], sizes = [2, 192], strides = [1, 1]} : vector<16x192xf32> to vector<2x192xf32>
    %205 = arith.truncf %202 : vector<2x32xf32> to vector<2x32xbf16>
    %cst_60 = arith.constant dense<0.000000e+00> : vector<2x192xf32>
    %206 = tpu.matmul %205, %7, %cst_60 {dimension_numbers = #tpu.dot_dimension_numbers<[1], [0], [0], [1], [0, 0, 1, 1], [], []>} : vector<2x32xbf16>, vector<32x192xbf16>, vector<2x192xf32> -> vector<2x192xf32>
    %207 = arith.addf %204, %206 : vector<2x192xf32>
    %208 = vector.extract_strided_slice %207 {offsets = [0, 0], sizes = [2, 160], strides = [1, 1]} : vector<2x192xf32> to vector<2x160xf32>
    %209 = arith.negf %208 : vector<2x160xf32>
    %210 = math.exp %209 : vector<2x160xf32>
    %cst_61 = arith.constant 1.000000e+00 : f32
    %211 = vector.broadcast %cst_61 : f32 to vector<2x160xf32>
    %212 = arith.addf %211, %210 : vector<2x160xf32>
    %213 = arith.divf %211, %212 : vector<2x160xf32>
    %214 = vector.extract_strided_slice %207 {offsets = [0, 160], sizes = [2, 32], strides = [1, 1]} : vector<2x192xf32> to vector<2x32xf32>
    %215 = math.tanh %214 : vector<2x32xf32>
    %216 = vector.extract_strided_slice %213 {offsets = [0, 0], sizes = [2, 32], strides = [1, 1]} : vector<2x160xf32> to vector<2x32xf32>
    %217 = vector.extract_strided_slice %213 {offsets = [0, 32], sizes = [2, 32], strides = [1, 1]} : vector<2x160xf32> to vector<2x32xf32>
    %218 = vector.extract_strided_slice %213 {offsets = [0, 64], sizes = [2, 32], strides = [1, 1]} : vector<2x160xf32> to vector<2x32xf32>
    %219 = vector.extract_strided_slice %213 {offsets = [0, 96], sizes = [2, 32], strides = [1, 1]} : vector<2x160xf32> to vector<2x32xf32>
    %220 = vector.extract_strided_slice %213 {offsets = [0, 128], sizes = [2, 32], strides = [1, 1]} : vector<2x160xf32> to vector<2x32xf32>
    %221 = arith.mulf %216, %215 : vector<2x32xf32>
    %222 = arith.truncf %221 : vector<2x32xf32> to vector<2x32xbf16>
    %cst_62 = arith.constant dense<0.000000e+00> : vector<2x64xf32>
    %223 = tpu.matmul %222, %8, %cst_62 {dimension_numbers = #tpu.dot_dimension_numbers<[1], [0], [0], [1], [0, 0, 1, 1], [], []>} : vector<2x32xbf16>, vector<32x64xbf16>, vector<2x64xf32> -> vector<2x64xf32>
    %224 = arith.addf %223, %12 : vector<2x64xf32>
    %225 = vector.extract_strided_slice %224 {offsets = [0, 0], sizes = [2, 32], strides = [1, 1]} : vector<2x64xf32> to vector<2x32xf32>
    %226 = math.tanh %225 : vector<2x32xf32>
    %cst_63 = arith.constant 1.000000e-01 : f32
    %cst_64 = arith.constant 0.899999976 : f32
    %227 = vector.broadcast %cst_63 : f32 to vector<2x32xf32>
    %228 = arith.maximumf %227, %226 : vector<2x32xf32>
    %229 = vector.broadcast %cst_64 : f32 to vector<2x32xf32>
    %230 = arith.minimumf %229, %228 : vector<2x32xf32>
    %231 = vector.extract_strided_slice %224 {offsets = [0, 32], sizes = [2, 32], strides = [1, 1]} : vector<2x64xf32> to vector<2x32xf32>
    %232 = math.tanh %231 : vector<2x32xf32>
    %cst_65 = arith.constant -0.899999976 : f32
    %cst_66 = arith.constant 0.899999976 : f32
    %233 = vector.broadcast %cst_65 : f32 to vector<2x32xf32>
    %234 = arith.maximumf %233, %232 : vector<2x32xf32>
    %235 = vector.broadcast %cst_66 : f32 to vector<2x32xf32>
    %236 = arith.minimumf %235, %234 : vector<2x32xf32>
    %cst_67 = arith.constant 5.000000e+00 : f32
    %237 = vector.broadcast %cst_67 : f32 to vector<2x32xf32>
    %238 = arith.mulf %237, %230 : vector<2x32xf32>
    %239 = arith.mulf %238, %236 : vector<2x32xf32>
    %240 = math.cos %239 : vector<2x32xf32>
    %cst_68 = arith.constant 9.99999993E-9 : f32
    %241 = vector.broadcast %cst_68 : f32 to vector<2x32xf32>
    %242 = arith.addf %230, %241 : vector<2x32xf32>
    %243 = tpu.reciprocal %242 {approx = true} : vector<2x32xf32> -> vector<2x32xf32>
    %cst_69 = arith.constant 0.000000e+00 : f32
    %244 = vector.broadcast %cst_69 : f32 to vector<2x32xf32>
    %245 = arith.subf %244, %243 : vector<2x32xf32>
    %246 = arith.mulf %236, %236 : vector<2x32xf32>
    %247 = arith.mulf %245, %246 : vector<2x32xf32>
    %248 = math.exp %247 : vector<2x32xf32>
    %249 = arith.mulf %240, %248 : vector<2x32xf32>
    %250 = math.absf %249 : vector<2x32xf32>
    %251 = arith.mulf %218, %219 : vector<2x32xf32>
    %252 = arith.mulf %251, %220 : vector<2x32xf32>
    %253 = arith.mulf %252, %197 : vector<2x32xf32>
    %254 = arith.mulf %221, %250 : vector<2x32xf32>
    %255 = arith.addf %253, %254 : vector<2x32xf32>
    %cst_70 = arith.constant -1.000000e+01 : f32
    %cst_71 = arith.constant 1.000000e+01 : f32
    %256 = vector.broadcast %cst_70 : f32 to vector<2x32xf32>
    %257 = arith.maximumf %256, %255 : vector<2x32xf32>
    %258 = vector.broadcast %cst_71 : f32 to vector<2x32xf32>
    %259 = arith.minimumf %258, %257 : vector<2x32xf32>
    %260 = arith.truncf %259 : vector<2x32xf32> to vector<2x32xbf16>
    %cst_72 = arith.constant dense<0.000000e+00> : vector<2x32xf32>
    %261 = tpu.matmul %260, %9, %cst_72 {dimension_numbers = #tpu.dot_dimension_numbers<[1], [0], [0], [1], [0, 0, 1, 1], [], []>} : vector<2x32xbf16>, vector<32x32xbf16>, vector<2x32xf32> -> vector<2x32xf32>
    %262 = arith.addf %261, %15 : vector<2x32xf32>
    %263 = math.tanh %262 : vector<2x32xf32>
    %264 = arith.mulf %217, %263 : vector<2x32xf32>
    %c6 = arith.constant 6 : index
    %c0_73 = arith.constant 0 : index
    %265 = vector.load %arg17[%c6, %c0_73] : memref<16x32xf32, #tpu.memory_space<vmem>>, vector<2x32xf32>
    tpu.vector_store %arg17[%c6, %c0_73], %264 {strides = array<i32>} : memref<16x32xf32, #tpu.memory_space<vmem>>, vector<2x32xf32>,
    %266 = vector.extract_strided_slice %6 {offsets = [8, 0], sizes = [2, 192], strides = [1, 1]} : vector<16x192xf32> to vector<2x192xf32>
    %267 = arith.truncf %264 : vector<2x32xf32> to vector<2x32xbf16>
    %cst_74 = arith.constant dense<0.000000e+00> : vector<2x192xf32>
    %268 = tpu.matmul %267, %7, %cst_74 {dimension_numbers = #tpu.dot_dimension_numbers<[1], [0], [0], [1], [0, 0, 1, 1], [], []>} : vector<2x32xbf16>, vector<32x192xbf16>, vector<2x192xf32> -> vector<2x192xf32>
    %269 = arith.addf %266, %268 : vector<2x192xf32>
    %270 = vector.extract_strided_slice %269 {offsets = [0, 0], sizes = [2, 160], strides = [1, 1]} : vector<2x192xf32> to vector<2x160xf32>
    %271 = arith.negf %270 : vector<2x160xf32>
    %272 = math.exp %271 : vector<2x160xf32>
    %cst_75 = arith.constant 1.000000e+00 : f32
    %273 = vector.broadcast %cst_75 : f32 to vector<2x160xf32>
    %274 = arith.addf %273, %272 : vector<2x160xf32>
    %275 = arith.divf %273, %274 : vector<2x160xf32>
    %276 = vector.extract_strided_slice %269 {offsets = [0, 160], sizes = [2, 32], strides = [1, 1]} : vector<2x192xf32> to vector<2x32xf32>
    %277 = math.tanh %276 : vector<2x32xf32>
    %278 = vector.extract_strided_slice %275 {offsets = [0, 0], sizes = [2, 32], strides = [1, 1]} : vector<2x160xf32> to vector<2x32xf32>
    %279 = vector.extract_strided_slice %275 {offsets = [0, 32], sizes = [2, 32], strides = [1, 1]} : vector<2x160xf32> to vector<2x32xf32>
    %280 = vector.extract_strided_slice %275 {offsets = [0, 64], sizes = [2, 32], strides = [1, 1]} : vector<2x160xf32> to vector<2x32xf32>
    %281 = vector.extract_strided_slice %275 {offsets = [0, 96], sizes = [2, 32], strides = [1, 1]} : vector<2x160xf32> to vector<2x32xf32>
    %282 = vector.extract_strided_slice %275 {offsets = [0, 128], sizes = [2, 32], strides = [1, 1]} : vector<2x160xf32> to vector<2x32xf32>
    %283 = arith.mulf %278, %277 : vector<2x32xf32>
    %284 = arith.truncf %283 : vector<2x32xf32> to vector<2x32xbf16>
    %cst_76 = arith.constant dense<0.000000e+00> : vector<2x64xf32>
    %285 = tpu.matmul %284, %8, %cst_76 {dimension_numbers = #tpu.dot_dimension_numbers<[1], [0], [0], [1], [0, 0, 1, 1], [], []>} : vector<2x32xbf16>, vector<32x64xbf16>, vector<2x64xf32> -> vector<2x64xf32>
    %286 = arith.addf %285, %12 : vector<2x64xf32>
    %287 = vector.extract_strided_slice %286 {offsets = [0, 0], sizes = [2, 32], strides = [1, 1]} : vector<2x64xf32> to vector<2x32xf32>
    %288 = math.tanh %287 : vector<2x32xf32>
    %cst_77 = arith.constant 1.000000e-01 : f32
    %cst_78 = arith.constant 0.899999976 : f32
    %289 = vector.broadcast %cst_77 : f32 to vector<2x32xf32>
    %290 = arith.maximumf %289, %288 : vector<2x32xf32>
    %291 = vector.broadcast %cst_78 : f32 to vector<2x32xf32>
    %292 = arith.minimumf %291, %290 : vector<2x32xf32>
    %293 = vector.extract_strided_slice %286 {offsets = [0, 32], sizes = [2, 32], strides = [1, 1]} : vector<2x64xf32> to vector<2x32xf32>
    %294 = math.tanh %293 : vector<2x32xf32>
    %cst_79 = arith.constant -0.899999976 : f32
    %cst_80 = arith.constant 0.899999976 : f32
    %295 = vector.broadcast %cst_79 : f32 to vector<2x32xf32>
    %296 = arith.maximumf %295, %294 : vector<2x32xf32>
    %297 = vector.broadcast %cst_80 : f32 to vector<2x32xf32>
    %298 = arith.minimumf %297, %296 : vector<2x32xf32>
    %cst_81 = arith.constant 5.000000e+00 : f32
    %299 = vector.broadcast %cst_81 : f32 to vector<2x32xf32>
    %300 = arith.mulf %299, %292 : vector<2x32xf32>
    %301 = arith.mulf %300, %298 : vector<2x32xf32>
    %302 = math.cos %301 : vector<2x32xf32>
    %cst_82 = arith.constant 9.99999993E-9 : f32
    %303 = vector.broadcast %cst_82 : f32 to vector<2x32xf32>
    %304 = arith.addf %292, %303 : vector<2x32xf32>
    %305 = tpu.reciprocal %304 {approx = true} : vector<2x32xf32> -> vector<2x32xf32>
    %cst_83 = arith.constant 0.000000e+00 : f32
    %306 = vector.broadcast %cst_83 : f32 to vector<2x32xf32>
    %307 = arith.subf %306, %305 : vector<2x32xf32>
    %308 = arith.mulf %298, %298 : vector<2x32xf32>
    %309 = arith.mulf %307, %308 : vector<2x32xf32>
    %310 = math.exp %309 : vector<2x32xf32>
    %311 = arith.mulf %302, %310 : vector<2x32xf32>
    %312 = math.absf %311 : vector<2x32xf32>
    %313 = arith.mulf %280, %281 : vector<2x32xf32>
    %314 = arith.mulf %313, %282 : vector<2x32xf32>
    %315 = arith.mulf %314, %259 : vector<2x32xf32>
    %316 = arith.mulf %283, %312 : vector<2x32xf32>
    %317 = arith.addf %315, %316 : vector<2x32xf32>
    %cst_84 = arith.constant -1.000000e+01 : f32
    %cst_85 = arith.constant 1.000000e+01 : f32
    %318 = vector.broadcast %cst_84 : f32 to vector<2x32xf32>
    %319 = arith.maximumf %318, %317 : vector<2x32xf32>
    %320 = vector.broadcast %cst_85 : f32 to vector<2x32xf32>
    %321 = arith.minimumf %320, %319 : vector<2x32xf32>
    %322 = arith.truncf %321 : vector<2x32xf32> to vector<2x32xbf16>
    %cst_86 = arith.constant dense<0.000000e+00> : vector<2x32xf32>
    %323 = tpu.matmul %322, %9, %cst_86 {dimension_numbers = #tpu.dot_dimension_numbers<[1], [0], [0], [1], [0, 0, 1, 1], [], []>} : vector<2x32xbf16>, vector<32x32xbf16>, vector<2x32xf32> -> vector<2x32xf32>
    %324 = arith.addf %323, %15 : vector<2x32xf32>
    %325 = math.tanh %324 : vector<2x32xf32>
    %326 = arith.mulf %279, %325 : vector<2x32xf32>
    %c8 = arith.constant 8 : index
    %c0_87 = arith.constant 0 : index
    %327 = vector.load %arg17[%c8, %c0_87] : memref<16x32xf32, #tpu.memory_space<vmem>>, vector<2x32xf32>
    tpu.vector_store %arg17[%c8, %c0_87], %326 {strides = array<i32>} : memref<16x32xf32, #tpu.memory_space<vmem>>, vector<2x32xf32>,
    %328 = vector.extract_strided_slice %6 {offsets = [10, 0], sizes = [2, 192], strides = [1, 1]} : vector<16x192xf32> to vector<2x192xf32>
    %329 = arith.truncf %326 : vector<2x32xf32> to vector<2x32xbf16>
    %cst_88 = arith.constant dense<0.000000e+00> : vector<2x192xf32>
    %330 = tpu.matmul %329, %7, %cst_88 {dimension_numbers = #tpu.dot_dimension_numbers<[1], [0], [0], [1], [0, 0, 1, 1], [], []>} : vector<2x32xbf16>, vector<32x192xbf16>, vector<2x192xf32> -> vector<2x192xf32>
    %331 = arith.addf %328, %330 : vector<2x192xf32>
    %332 = vector.extract_strided_slice %331 {offsets = [0, 0], sizes = [2, 160], strides = [1, 1]} : vector<2x192xf32> to vector<2x160xf32>
    %333 = arith.negf %332 : vector<2x160xf32>
    %334 = math.exp %333 : vector<2x160xf32>
    %cst_89 = arith.constant 1.000000e+00 : f32
    %335 = vector.broadcast %cst_89 : f32 to vector<2x160xf32>
    %336 = arith.addf %335, %334 : vector<2x160xf32>
    %337 = arith.divf %335, %336 : vector<2x160xf32>
    %338 = vector.extract_strided_slice %331 {offsets = [0, 160], sizes = [2, 32], strides = [1, 1]} : vector<2x192xf32> to vector<2x32xf32>
    %339 = math.tanh %338 : vector<2x32xf32>
    %340 = vector.extract_strided_slice %337 {offsets = [0, 0], sizes = [2, 32], strides = [1, 1]} : vector<2x160xf32> to vector<2x32xf32>
    %341 = vector.extract_strided_slice %337 {offsets = [0, 32], sizes = [2, 32], strides = [1, 1]} : vector<2x160xf32> to vector<2x32xf32>
    %342 = vector.extract_strided_slice %337 {offsets = [0, 64], sizes = [2, 32], strides = [1, 1]} : vector<2x160xf32> to vector<2x32xf32>
    %343 = vector.extract_strided_slice %337 {offsets = [0, 96], sizes = [2, 32], strides = [1, 1]} : vector<2x160xf32> to vector<2x32xf32>
    %344 = vector.extract_strided_slice %337 {offsets = [0, 128], sizes = [2, 32], strides = [1, 1]} : vector<2x160xf32> to vector<2x32xf32>
    %345 = arith.mulf %340, %339 : vector<2x32xf32>
    %346 = arith.truncf %345 : vector<2x32xf32> to vector<2x32xbf16>
    %cst_90 = arith.constant dense<0.000000e+00> : vector<2x64xf32>
    %347 = tpu.matmul %346, %8, %cst_90 {dimension_numbers = #tpu.dot_dimension_numbers<[1], [0], [0], [1], [0, 0, 1, 1], [], []>} : vector<2x32xbf16>, vector<32x64xbf16>, vector<2x64xf32> -> vector<2x64xf32>
    %348 = arith.addf %347, %12 : vector<2x64xf32>
    %349 = vector.extract_strided_slice %348 {offsets = [0, 0], sizes = [2, 32], strides = [1, 1]} : vector<2x64xf32> to vector<2x32xf32>
    %350 = math.tanh %349 : vector<2x32xf32>
    %cst_91 = arith.constant 1.000000e-01 : f32
    %cst_92 = arith.constant 0.899999976 : f32
    %351 = vector.broadcast %cst_91 : f32 to vector<2x32xf32>
    %352 = arith.maximumf %351, %350 : vector<2x32xf32>
    %353 = vector.broadcast %cst_92 : f32 to vector<2x32xf32>
    %354 = arith.minimumf %353, %352 : vector<2x32xf32>
    %355 = vector.extract_strided_slice %348 {offsets = [0, 32], sizes = [2, 32], strides = [1, 1]} : vector<2x64xf32> to vector<2x32xf32>
    %356 = math.tanh %355 : vector<2x32xf32>
    %cst_93 = arith.constant -0.899999976 : f32
    %cst_94 = arith.constant 0.899999976 : f32
    %357 = vector.broadcast %cst_93 : f32 to vector<2x32xf32>
    %358 = arith.maximumf %357, %356 : vector<2x32xf32>
    %359 = vector.broadcast %cst_94 : f32 to vector<2x32xf32>
    %360 = arith.minimumf %359, %358 : vector<2x32xf32>
    %cst_95 = arith.constant 5.000000e+00 : f32
    %361 = vector.broadcast %cst_95 : f32 to vector<2x32xf32>
    %362 = arith.mulf %361, %354 : vector<2x32xf32>
    %363 = arith.mulf %362, %360 : vector<2x32xf32>
    %364 = math.cos %363 : vector<2x32xf32>
    %cst_96 = arith.constant 9.99999993E-9 : f32
    %365 = vector.broadcast %cst_96 : f32 to vector<2x32xf32>
    %366 = arith.addf %354, %365 : vector<2x32xf32>
    %367 = tpu.reciprocal %366 {approx = true} : vector<2x32xf32> -> vector<2x32xf32>
    %cst_97 = arith.constant 0.000000e+00 : f32
    %368 = vector.broadcast %cst_97 : f32 to vector<2x32xf32>
    %369 = arith.subf %368, %367 : vector<2x32xf32>
    %370 = arith.mulf %360, %360 : vector<2x32xf32>
    %371 = arith.mulf %369, %370 : vector<2x32xf32>
    %372 = math.exp %371 : vector<2x32xf32>
    %373 = arith.mulf %364, %372 : vector<2x32xf32>
    %374 = math.absf %373 : vector<2x32xf32>
    %375 = arith.mulf %342, %343 : vector<2x32xf32>
    %376 = arith.mulf %375, %344 : vector<2x32xf32>
    %377 = arith.mulf %376, %321 : vector<2x32xf32>
    %378 = arith.mulf %345, %374 : vector<2x32xf32>
    %379 = arith.addf %377, %378 : vector<2x32xf32>
    %cst_98 = arith.constant -1.000000e+01 : f32
    %cst_99 = arith.constant 1.000000e+01 : f32
    %380 = vector.broadcast %cst_98 : f32 to vector<2x32xf32>
    %381 = arith.maximumf %380, %379 : vector<2x32xf32>
    %382 = vector.broadcast %cst_99 : f32 to vector<2x32xf32>
    %383 = arith.minimumf %382, %381 : vector<2x32xf32>
    %384 = arith.truncf %383 : vector<2x32xf32> to vector<2x32xbf16>
    %cst_100 = arith.constant dense<0.000000e+00> : vector<2x32xf32>
    %385 = tpu.matmul %384, %9, %cst_100 {dimension_numbers = #tpu.dot_dimension_numbers<[1], [0], [0], [1], [0, 0, 1, 1], [], []>} : vector<2x32xbf16>, vector<32x32xbf16>, vector<2x32xf32> -> vector<2x32xf32>
    %386 = arith.addf %385, %15 : vector<2x32xf32>
    %387 = math.tanh %386 : vector<2x32xf32>
    %388 = arith.mulf %341, %387 : vector<2x32xf32>
    %c10 = arith.constant 10 : index
    %c0_101 = arith.constant 0 : index
    %389 = vector.load %arg17[%c10, %c0_101] : memref<16x32xf32, #tpu.memory_space<vmem>>, vector<2x32xf32>
    tpu.vector_store %arg17[%c10, %c0_101], %388 {strides = array<i32>} : memref<16x32xf32, #tpu.memory_space<vmem>>, vector<2x32xf32>,
    %390 = vector.extract_strided_slice %6 {offsets = [12, 0], sizes = [2, 192], strides = [1, 1]} : vector<16x192xf32> to vector<2x192xf32>
    %391 = arith.truncf %388 : vector<2x32xf32> to vector<2x32xbf16>
    %cst_102 = arith.constant dense<0.000000e+00> : vector<2x192xf32>
    %392 = tpu.matmul %391, %7, %cst_102 {dimension_numbers = #tpu.dot_dimension_numbers<[1], [0], [0], [1], [0, 0, 1, 1], [], []>} : vector<2x32xbf16>, vector<32x192xbf16>, vector<2x192xf32> -> vector<2x192xf32>
    %393 = arith.addf %390, %392 : vector<2x192xf32>
    %394 = vector.extract_strided_slice %393 {offsets = [0, 0], sizes = [2, 160], strides = [1, 1]} : vector<2x192xf32> to vector<2x160xf32>
    %395 = arith.negf %394 : vector<2x160xf32>
    %396 = math.exp %395 : vector<2x160xf32>
    %cst_103 = arith.constant 1.000000e+00 : f32
    %397 = vector.broadcast %cst_103 : f32 to vector<2x160xf32>
    %398 = arith.addf %397, %396 : vector<2x160xf32>
    %399 = arith.divf %397, %398 : vector<2x160xf32>
    %400 = vector.extract_strided_slice %393 {offsets = [0, 160], sizes = [2, 32], strides = [1, 1]} : vector<2x192xf32> to vector<2x32xf32>
    %401 = math.tanh %400 : vector<2x32xf32>
    %402 = vector.extract_strided_slice %399 {offsets = [0, 0], sizes = [2, 32], strides = [1, 1]} : vector<2x160xf32> to vector<2x32xf32>
    %403 = vector.extract_strided_slice %399 {offsets = [0, 32], sizes = [2, 32], strides = [1, 1]} : vector<2x160xf32> to vector<2x32xf32>
    %404 = vector.extract_strided_slice %399 {offsets = [0, 64], sizes = [2, 32], strides = [1, 1]} : vector<2x160xf32> to vector<2x32xf32>
    %405 = vector.extract_strided_slice %399 {offsets = [0, 96], sizes = [2, 32], strides = [1, 1]} : vector<2x160xf32> to vector<2x32xf32>
    %406 = vector.extract_strided_slice %399 {offsets = [0, 128], sizes = [2, 32], strides = [1, 1]} : vector<2x160xf32> to vector<2x32xf32>
    %407 = arith.mulf %402, %401 : vector<2x32xf32>
    %408 = arith.truncf %407 : vector<2x32xf32> to vector<2x32xbf16>
    %cst_104 = arith.constant dense<0.000000e+00> : vector<2x64xf32>
    %409 = tpu.matmul %408, %8, %cst_104 {dimension_numbers = #tpu.dot_dimension_numbers<[1], [0], [0], [1], [0, 0, 1, 1], [], []>} : vector<2x32xbf16>, vector<32x64xbf16>, vector<2x64xf32> -> vector<2x64xf32>
    %410 = arith.addf %409, %12 : vector<2x64xf32>
    %411 = vector.extract_strided_slice %410 {offsets = [0, 0], sizes = [2, 32], strides = [1, 1]} : vector<2x64xf32> to vector<2x32xf32>
    %412 = math.tanh %411 : vector<2x32xf32>
    %cst_105 = arith.constant 1.000000e-01 : f32
    %cst_106 = arith.constant 0.899999976 : f32
    %413 = vector.broadcast %cst_105 : f32 to vector<2x32xf32>
    %414 = arith.maximumf %413, %412 : vector<2x32xf32>
    %415 = vector.broadcast %cst_106 : f32 to vector<2x32xf32>
    %416 = arith.minimumf %415, %414 : vector<2x32xf32>
    %417 = vector.extract_strided_slice %410 {offsets = [0, 32], sizes = [2, 32], strides = [1, 1]} : vector<2x64xf32> to vector<2x32xf32>
    %418 = math.tanh %417 : vector<2x32xf32>
    %cst_107 = arith.constant -0.899999976 : f32
    %cst_108 = arith.constant 0.899999976 : f32
    %419 = vector.broadcast %cst_107 : f32 to vector<2x32xf32>
    %420 = arith.maximumf %419, %418 : vector<2x32xf32>
    %421 = vector.broadcast %cst_108 : f32 to vector<2x32xf32>
    %422 = arith.minimumf %421, %420 : vector<2x32xf32>
    %cst_109 = arith.constant 5.000000e+00 : f32
    %423 = vector.broadcast %cst_109 : f32 to vector<2x32xf32>
    %424 = arith.mulf %423, %416 : vector<2x32xf32>
    %425 = arith.mulf %424, %422 : vector<2x32xf32>
    %426 = math.cos %425 : vector<2x32xf32>
    %cst_110 = arith.constant 9.99999993E-9 : f32
    %427 = vector.broadcast %cst_110 : f32 to vector<2x32xf32>
    %428 = arith.addf %416, %427 : vector<2x32xf32>
    %429 = tpu.reciprocal %428 {approx = true} : vector<2x32xf32> -> vector<2x32xf32>
    %cst_111 = arith.constant 0.000000e+00 : f32
    %430 = vector.broadcast %cst_111 : f32 to vector<2x32xf32>
    %431 = arith.subf %430, %429 : vector<2x32xf32>
    %432 = arith.mulf %422, %422 : vector<2x32xf32>
    %433 = arith.mulf %431, %432 : vector<2x32xf32>
    %434 = math.exp %433 : vector<2x32xf32>
    %435 = arith.mulf %426, %434 : vector<2x32xf32>
    %436 = math.absf %435 : vector<2x32xf32>
    %437 = arith.mulf %404, %405 : vector<2x32xf32>
    %438 = arith.mulf %437, %406 : vector<2x32xf32>
    %439 = arith.mulf %438, %383 : vector<2x32xf32>
    %440 = arith.mulf %407, %436 : vector<2x32xf32>
    %441 = arith.addf %439, %440 : vector<2x32xf32>
    %cst_112 = arith.constant -1.000000e+01 : f32
    %cst_113 = arith.constant 1.000000e+01 : f32
    %442 = vector.broadcast %cst_112 : f32 to vector<2x32xf32>
    %443 = arith.maximumf %442, %441 : vector<2x32xf32>
    %444 = vector.broadcast %cst_113 : f32 to vector<2x32xf32>
    %445 = arith.minimumf %444, %443 : vector<2x32xf32>
    %446 = arith.truncf %445 : vector<2x32xf32> to vector<2x32xbf16>
    %cst_114 = arith.constant dense<0.000000e+00> : vector<2x32xf32>
    %447 = tpu.matmul %446, %9, %cst_114 {dimension_numbers = #tpu.dot_dimension_numbers<[1], [0], [0], [1], [0, 0, 1, 1], [], []>} : vector<2x32xbf16>, vector<32x32xbf16>, vector<2x32xf32> -> vector<2x32xf32>
    %448 = arith.addf %447, %15 : vector<2x32xf32>
    %449 = math.tanh %448 : vector<2x32xf32>
    %450 = arith.mulf %403, %449 : vector<2x32xf32>
    %c12 = arith.constant 12 : index
    %c0_115 = arith.constant 0 : index
    %451 = vector.load %arg17[%c12, %c0_115] : memref<16x32xf32, #tpu.memory_space<vmem>>, vector<2x32xf32>
    tpu.vector_store %arg17[%c12, %c0_115], %450 {strides = array<i32>} : memref<16x32xf32, #tpu.memory_space<vmem>>, vector<2x32xf32>,
    %452 = vector.extract_strided_slice %6 {offsets = [14, 0], sizes = [2, 192], strides = [1, 1]} : vector<16x192xf32> to vector<2x192xf32>
    %453 = arith.truncf %450 : vector<2x32xf32> to vector<2x32xbf16>
    %cst_116 = arith.constant dense<0.000000e+00> : vector<2x192xf32>
    %454 = tpu.matmul %453, %7, %cst_116 {dimension_numbers = #tpu.dot_dimension_numbers<[1], [0], [0], [1], [0, 0, 1, 1], [], []>} : vector<2x32xbf16>, vector<32x192xbf16>, vector<2x192xf32> -> vector<2x192xf32>
    %455 = arith.addf %452, %454 : vector<2x192xf32>
    %456 = vector.extract_strided_slice %455 {offsets = [0, 0], sizes = [2, 160], strides = [1, 1]} : vector<2x192xf32> to vector<2x160xf32>
    %457 = arith.negf %456 : vector<2x160xf32>
    %458 = math.exp %457 : vector<2x160xf32>
    %cst_117 = arith.constant 1.000000e+00 : f32
    %459 = vector.broadcast %cst_117 : f32 to vector<2x160xf32>
    %460 = arith.addf %459, %458 : vector<2x160xf32>
    %461 = arith.divf %459, %460 : vector<2x160xf32>
    %462 = vector.extract_strided_slice %455 {offsets = [0, 160], sizes = [2, 32], strides = [1, 1]} : vector<2x192xf32> to vector<2x32xf32>
    %463 = math.tanh %462 : vector<2x32xf32>
    %464 = vector.extract_strided_slice %461 {offsets = [0, 0], sizes = [2, 32], strides = [1, 1]} : vector<2x160xf32> to vector<2x32xf32>
    %465 = vector.extract_strided_slice %461 {offsets = [0, 32], sizes = [2, 32], strides = [1, 1]} : vector<2x160xf32> to vector<2x32xf32>
    %466 = vector.extract_strided_slice %461 {offsets = [0, 64], sizes = [2, 32], strides = [1, 1]} : vector<2x160xf32> to vector<2x32xf32>
    %467 = vector.extract_strided_slice %461 {offsets = [0, 96], sizes = [2, 32], strides = [1, 1]} : vector<2x160xf32> to vector<2x32xf32>
    %468 = vector.extract_strided_slice %461 {offsets = [0, 128], sizes = [2, 32], strides = [1, 1]} : vector<2x160xf32> to vector<2x32xf32>
    %469 = arith.mulf %464, %463 : vector<2x32xf32>
    %470 = arith.truncf %469 : vector<2x32xf32> to vector<2x32xbf16>
    %cst_118 = arith.constant dense<0.000000e+00> : vector<2x64xf32>
    %471 = tpu.matmul %470, %8, %cst_118 {dimension_numbers = #tpu.dot_dimension_numbers<[1], [0], [0], [1], [0, 0, 1, 1], [], []>} : vector<2x32xbf16>, vector<32x64xbf16>, vector<2x64xf32> -> vector<2x64xf32>
    %472 = arith.addf %471, %12 : vector<2x64xf32>
    %473 = vector.extract_strided_slice %472 {offsets = [0, 0], sizes = [2, 32], strides = [1, 1]} : vector<2x64xf32> to vector<2x32xf32>
    %474 = math.tanh %473 : vector<2x32xf32>
    %cst_119 = arith.constant 1.000000e-01 : f32
    %cst_120 = arith.constant 0.899999976 : f32
    %475 = vector.broadcast %cst_119 : f32 to vector<2x32xf32>
    %476 = arith.maximumf %475, %474 : vector<2x32xf32>
    %477 = vector.broadcast %cst_120 : f32 to vector<2x32xf32>
    %478 = arith.minimumf %477, %476 : vector<2x32xf32>
    %479 = vector.extract_strided_slice %472 {offsets = [0, 32], sizes = [2, 32], strides = [1, 1]} : vector<2x64xf32> to vector<2x32xf32>
    %480 = math.tanh %479 : vector<2x32xf32>
    %cst_121 = arith.constant -0.899999976 : f32
    %cst_122 = arith.constant 0.899999976 : f32
    %481 = vector.broadcast %cst_121 : f32 to vector<2x32xf32>
    %482 = arith.maximumf %481, %480 : vector<2x32xf32>
    %483 = vector.broadcast %cst_122 : f32 to vector<2x32xf32>
    %484 = arith.minimumf %483, %482 : vector<2x32xf32>
    %cst_123 = arith.constant 5.000000e+00 : f32
    %485 = vector.broadcast %cst_123 : f32 to vector<2x32xf32>
    %486 = arith.mulf %485, %478 : vector<2x32xf32>
    %487 = arith.mulf %486, %484 : vector<2x32xf32>
    %488 = math.cos %487 : vector<2x32xf32>
    %cst_124 = arith.constant 9.99999993E-9 : f32
    %489 = vector.broadcast %cst_124 : f32 to vector<2x32xf32>
    %490 = arith.addf %478, %489 : vector<2x32xf32>
    %491 = tpu.reciprocal %490 {approx = true} : vector<2x32xf32> -> vector<2x32xf32>
    %cst_125 = arith.constant 0.000000e+00 : f32
    %492 = vector.broadcast %cst_125 : f32 to vector<2x32xf32>
    %493 = arith.subf %492, %491 : vector<2x32xf32>
    %494 = arith.mulf %484, %484 : vector<2x32xf32>
    %495 = arith.mulf %493, %494 : vector<2x32xf32>
    %496 = math.exp %495 : vector<2x32xf32>
    %497 = arith.mulf %488, %496 : vector<2x32xf32>
    %498 = math.absf %497 : vector<2x32xf32>
    %499 = arith.mulf %466, %467 : vector<2x32xf32>
    %500 = arith.mulf %499, %468 : vector<2x32xf32>
    %501 = arith.mulf %500, %445 : vector<2x32xf32>
    %502 = arith.mulf %469, %498 : vector<2x32xf32>
    %503 = arith.addf %501, %502 : vector<2x32xf32>
    %cst_126 = arith.constant -1.000000e+01 : f32
    %cst_127 = arith.constant 1.000000e+01 : f32
    %504 = vector.broadcast %cst_126 : f32 to vector<2x32xf32>
    %505 = arith.maximumf %504, %503 : vector<2x32xf32>
    %506 = vector.broadcast %cst_127 : f32 to vector<2x32xf32>
    %507 = arith.minimumf %506, %505 : vector<2x32xf32>
    %508 = arith.truncf %507 : vector<2x32xf32> to vector<2x32xbf16>
    %cst_128 = arith.constant dense<0.000000e+00> : vector<2x32xf32>
    %509 = tpu.matmul %508, %9, %cst_128 {dimension_numbers = #tpu.dot_dimension_numbers<[1], [0], [0], [1], [0, 0, 1, 1], [], []>} : vector<2x32xbf16>, vector<32x32xbf16>, vector<2x32xf32> -> vector<2x32xf32>
    %510 = arith.addf %509, %15 : vector<2x32xf32>
    %511 = math.tanh %510 : vector<2x32xf32>
    %512 = arith.mulf %465, %511 : vector<2x32xf32>
    %c14 = arith.constant 14 : index
    %c0_129 = arith.constant 0 : index
    %513 = vector.load %arg17[%c14, %c0_129] : memref<16x32xf32, #tpu.memory_space<vmem>>, vector<2x32xf32>
    tpu.vector_store %arg17[%c14, %c0_129], %512 {strides = array<i32>} : memref<16x32xf32, #tpu.memory_space<vmem>>, vector<2x32xf32>,
    %c0_130 = arith.constant 0 : index
    %c0_131 = arith.constant 0 : index
    %514 = vector.load %arg17[%c0_130, %c0_131] : memref<16x32xf32, #tpu.memory_space<vmem>>, vector<16x32xf32>
    %515 = arith.truncf %514 : vector<16x32xf32> to vector<16x32xbf16>
    %c0_132 = arith.constant 0 : index
    %c0_133 = arith.constant 0 : index
    %516 = vector.load %arg9[%c0_132, %c0_133] : memref<32x192xbf16, #tpu.memory_space<vmem>>, vector<32x192xbf16>
    %cst_134 = arith.constant dense<0.000000e+00> : vector<16x192xf32>
    %517 = tpu.matmul %515, %516, %cst_134 {dimension_numbers = #tpu.dot_dimension_numbers<[1], [0], [0], [1], [0, 0, 1, 1], [], []>} : vector<16x32xbf16>, vector<32x192xbf16>, vector<16x192xf32> -> vector<16x192xf32>
    %c0_135 = arith.constant 0 : index
    %c0_136 = arith.constant 0 : index
    %518 = vector.load %arg11[%c0_135, %c0_136] : memref<1x192xf32, #tpu.memory_space<vmem>>, vector<1x192xf32>
    %519 = vector.broadcast %518 : vector<1x192xf32> to vector<16x192xf32>
    %520 = arith.addf %517, %519 : vector<16x192xf32>
    %c0_137 = arith.constant 0 : index
    %c0_138 = arith.constant 0 : index
    %521 = vector.load %arg10[%c0_137, %c0_138] : memref<32x192xbf16, #tpu.memory_space<vmem>>, vector<32x192xbf16>
    %c0_139 = arith.constant 0 : index
    %c0_140 = arith.constant 0 : index
    %522 = vector.load %arg12[%c0_139, %c0_140] : memref<32x64xbf16, #tpu.memory_space<vmem>>, vector<32x64xbf16>
    %c0_141 = arith.constant 0 : index
    %c0_142 = arith.constant 0 : index
    %523 = vector.load %arg14[%c0_141, %c0_142] : memref<32x32xbf16, #tpu.memory_space<vmem>>, vector<32x32xbf16>
    %c0_143 = arith.constant 0 : index
    %c0_144 = arith.constant 0 : index
    %524 = vector.load %arg13[%c0_143, %c0_144] : memref<1x64xf32, #tpu.memory_space<vmem>>, vector<1x64xf32>
    %525 = vector.shape_cast %524 : vector<1x64xf32> to vector<1x64xf32>
    %526 = vector.broadcast %525 : vector<1x64xf32> to vector<2x64xf32>
    %c0_145 = arith.constant 0 : index
    %c0_146 = arith.constant 0 : index
    %527 = vector.load %arg15[%c0_145, %c0_146] : memref<1x32xf32, #tpu.memory_space<vmem>>, vector<1x32xf32>
    %528 = vector.shape_cast %527 : vector<1x32xf32> to vector<1x32xf32>
    %529 = vector.broadcast %528 : vector<1x32xf32> to vector<2x32xf32>
    %cst_147 = arith.constant 0.000000e+00 : f32
    %530 = vector.broadcast %cst_147 : f32 to vector<2x32xf32>
    %cst_148 = arith.constant 0.000000e+00 : f32
    %531 = vector.broadcast %cst_148 : f32 to vector<2x32xf32>
    %532 = vector.extract_strided_slice %520 {offsets = [0, 0], sizes = [2, 192], strides = [1, 1]} : vector<16x192xf32> to vector<2x192xf32>
    %533 = arith.truncf %530 : vector<2x32xf32> to vector<2x32xbf16>
    %cst_149 = arith.constant dense<0.000000e+00> : vector<2x192xf32>
    %534 = tpu.matmul %533, %521, %cst_149 {dimension_numbers = #tpu.dot_dimension_numbers<[1], [0], [0], [1], [0, 0, 1, 1], [], []>} : vector<2x32xbf16>, vector<32x192xbf16>, vector<2x192xf32> -> vector<2x192xf32>
    %535 = arith.addf %532, %534 : vector<2x192xf32>
    %536 = vector.extract_strided_slice %535 {offsets = [0, 0], sizes = [2, 160], strides = [1, 1]} : vector<2x192xf32> to vector<2x160xf32>
    %537 = arith.negf %536 : vector<2x160xf32>
    %538 = math.exp %537 : vector<2x160xf32>
    %cst_150 = arith.constant 1.000000e+00 : f32
    %539 = vector.broadcast %cst_150 : f32 to vector<2x160xf32>
    %540 = arith.addf %539, %538 : vector<2x160xf32>
    %541 = arith.divf %539, %540 : vector<2x160xf32>
    %542 = vector.extract_strided_slice %535 {offsets = [0, 160], sizes = [2, 32], strides = [1, 1]} : vector<2x192xf32> to vector<2x32xf32>
    %543 = math.tanh %542 : vector<2x32xf32>
    %544 = vector.extract_strided_slice %541 {offsets = [0, 0], sizes = [2, 32], strides = [1, 1]} : vector<2x160xf32> to vector<2x32xf32>
    %545 = vector.extract_strided_slice %541 {offsets = [0, 32], sizes = [2, 32], strides = [1, 1]} : vector<2x160xf32> to vector<2x32xf32>
    %546 = vector.extract_strided_slice %541 {offsets = [0, 64], sizes = [2, 32], strides = [1, 1]} : vector<2x160xf32> to vector<2x32xf32>
    %547 = vector.extract_strided_slice %541 {offsets = [0, 96], sizes = [2, 32], strides = [1, 1]} : vector<2x160xf32> to vector<2x32xf32>
    %548 = vector.extract_strided_slice %541 {offsets = [0, 128], sizes = [2, 32], strides = [1, 1]} : vector<2x160xf32> to vector<2x32xf32>
    %549 = arith.mulf %544, %543 : vector<2x32xf32>
    %550 = arith.truncf %549 : vector<2x32xf32> to vector<2x32xbf16>
    %cst_151 = arith.constant dense<0.000000e+00> : vector<2x64xf32>
    %551 = tpu.matmul %550, %522, %cst_151 {dimension_numbers = #tpu.dot_dimension_numbers<[1], [0], [0], [1], [0, 0, 1, 1], [], []>} : vector<2x32xbf16>, vector<32x64xbf16>, vector<2x64xf32> -> vector<2x64xf32>
    %552 = arith.addf %551, %526 : vector<2x64xf32>
    %553 = vector.extract_strided_slice %552 {offsets = [0, 0], sizes = [2, 32], strides = [1, 1]} : vector<2x64xf32> to vector<2x32xf32>
    %554 = math.tanh %553 : vector<2x32xf32>
    %cst_152 = arith.constant 1.000000e-01 : f32
    %cst_153 = arith.constant 0.899999976 : f32
    %555 = vector.broadcast %cst_152 : f32 to vector<2x32xf32>
    %556 = arith.maximumf %555, %554 : vector<2x32xf32>
    %557 = vector.broadcast %cst_153 : f32 to vector<2x32xf32>
    %558 = arith.minimumf %557, %556 : vector<2x32xf32>
    %559 = vector.extract_strided_slice %552 {offsets = [0, 32], sizes = [2, 32], strides = [1, 1]} : vector<2x64xf32> to vector<2x32xf32>
    %560 = math.tanh %559 : vector<2x32xf32>
    %cst_154 = arith.constant -0.899999976 : f32
    %cst_155 = arith.constant 0.899999976 : f32
    %561 = vector.broadcast %cst_154 : f32 to vector<2x32xf32>
    %562 = arith.maximumf %561, %560 : vector<2x32xf32>
    %563 = vector.broadcast %cst_155 : f32 to vector<2x32xf32>
    %564 = arith.minimumf %563, %562 : vector<2x32xf32>
    %cst_156 = arith.constant 5.000000e+00 : f32
    %565 = vector.broadcast %cst_156 : f32 to vector<2x32xf32>
    %566 = arith.mulf %565, %558 : vector<2x32xf32>
    %567 = arith.mulf %566, %564 : vector<2x32xf32>
    %568 = math.cos %567 : vector<2x32xf32>
    %cst_157 = arith.constant 9.99999993E-9 : f32
    %569 = vector.broadcast %cst_157 : f32 to vector<2x32xf32>
    %570 = arith.addf %558, %569 : vector<2x32xf32>
    %571 = tpu.reciprocal %570 {approx = true} : vector<2x32xf32> -> vector<2x32xf32>
    %cst_158 = arith.constant 0.000000e+00 : f32
    %572 = vector.broadcast %cst_158 : f32 to vector<2x32xf32>
    %573 = arith.subf %572, %571 : vector<2x32xf32>
    %574 = arith.mulf %564, %564 : vector<2x32xf32>
    %575 = arith.mulf %573, %574 : vector<2x32xf32>
    %576 = math.exp %575 : vector<2x32xf32>
    %577 = arith.mulf %568, %576 : vector<2x32xf32>
    %578 = math.absf %577 : vector<2x32xf32>
    %579 = arith.mulf %546, %547 : vector<2x32xf32>
    %580 = arith.mulf %579, %548 : vector<2x32xf32>
    %581 = arith.mulf %580, %531 : vector<2x32xf32>
    %582 = arith.mulf %549, %578 : vector<2x32xf32>
    %583 = arith.addf %581, %582 : vector<2x32xf32>
    %cst_159 = arith.constant -1.000000e+01 : f32
    %cst_160 = arith.constant 1.000000e+01 : f32
    %584 = vector.broadcast %cst_159 : f32 to vector<2x32xf32>
    %585 = arith.maximumf %584, %583 : vector<2x32xf32>
    %586 = vector.broadcast %cst_160 : f32 to vector<2x32xf32>
    %587 = arith.minimumf %586, %585 : vector<2x32xf32>
    %588 = arith.truncf %587 : vector<2x32xf32> to vector<2x32xbf16>
    %cst_161 = arith.constant dense<0.000000e+00> : vector<2x32xf32>
    %589 = tpu.matmul %588, %523, %cst_161 {dimension_numbers = #tpu.dot_dimension_numbers<[1], [0], [0], [1], [0, 0, 1, 1], [], []>} : vector<2x32xbf16>, vector<32x32xbf16>, vector<2x32xf32> -> vector<2x32xf32>
    %590 = arith.addf %589, %529 : vector<2x32xf32>
    %591 = math.tanh %590 : vector<2x32xf32>
    %592 = arith.mulf %545, %591 : vector<2x32xf32>
    %c0_162 = arith.constant 0 : index
    %c0_163 = arith.constant 0 : index
    %593 = vector.load %arg16[%c0_162, %c0_163] : memref<16x32xf32, #tpu.memory_space<vmem>>, vector<2x32xf32>
    tpu.vector_store %arg16[%c0_162, %c0_163], %592 {strides = array<i32>} : memref<16x32xf32, #tpu.memory_space<vmem>>, vector<2x32xf32>,
    %594 = vector.extract_strided_slice %520 {offsets = [2, 0], sizes = [2, 192], strides = [1, 1]} : vector<16x192xf32> to vector<2x192xf32>
    %595 = arith.truncf %592 : vector<2x32xf32> to vector<2x32xbf16>
    %cst_164 = arith.constant dense<0.000000e+00> : vector<2x192xf32>
    %596 = tpu.matmul %595, %521, %cst_164 {dimension_numbers = #tpu.dot_dimension_numbers<[1], [0], [0], [1], [0, 0, 1, 1], [], []>} : vector<2x32xbf16>, vector<32x192xbf16>, vector<2x192xf32> -> vector<2x192xf32>
    %597 = arith.addf %594, %596 : vector<2x192xf32>
    %598 = vector.extract_strided_slice %597 {offsets = [0, 0], sizes = [2, 160], strides = [1, 1]} : vector<2x192xf32> to vector<2x160xf32>
    %599 = arith.negf %598 : vector<2x160xf32>
    %600 = math.exp %599 : vector<2x160xf32>
    %cst_165 = arith.constant 1.000000e+00 : f32
    %601 = vector.broadcast %cst_165 : f32 to vector<2x160xf32>
    %602 = arith.addf %601, %600 : vector<2x160xf32>
    %603 = arith.divf %601, %602 : vector<2x160xf32>
    %604 = vector.extract_strided_slice %597 {offsets = [0, 160], sizes = [2, 32], strides = [1, 1]} : vector<2x192xf32> to vector<2x32xf32>
    %605 = math.tanh %604 : vector<2x32xf32>
    %606 = vector.extract_strided_slice %603 {offsets = [0, 0], sizes = [2, 32], strides = [1, 1]} : vector<2x160xf32> to vector<2x32xf32>
    %607 = vector.extract_strided_slice %603 {offsets = [0, 32], sizes = [2, 32], strides = [1, 1]} : vector<2x160xf32> to vector<2x32xf32>
    %608 = vector.extract_strided_slice %603 {offsets = [0, 64], sizes = [2, 32], strides = [1, 1]} : vector<2x160xf32> to vector<2x32xf32>
    %609 = vector.extract_strided_slice %603 {offsets = [0, 96], sizes = [2, 32], strides = [1, 1]} : vector<2x160xf32> to vector<2x32xf32>
    %610 = vector.extract_strided_slice %603 {offsets = [0, 128], sizes = [2, 32], strides = [1, 1]} : vector<2x160xf32> to vector<2x32xf32>
    %611 = arith.mulf %606, %605 : vector<2x32xf32>
    %612 = arith.truncf %611 : vector<2x32xf32> to vector<2x32xbf16>
    %cst_166 = arith.constant dense<0.000000e+00> : vector<2x64xf32>
    %613 = tpu.matmul %612, %522, %cst_166 {dimension_numbers = #tpu.dot_dimension_numbers<[1], [0], [0], [1], [0, 0, 1, 1], [], []>} : vector<2x32xbf16>, vector<32x64xbf16>, vector<2x64xf32> -> vector<2x64xf32>
    %614 = arith.addf %613, %526 : vector<2x64xf32>
    %615 = vector.extract_strided_slice %614 {offsets = [0, 0], sizes = [2, 32], strides = [1, 1]} : vector<2x64xf32> to vector<2x32xf32>
    %616 = math.tanh %615 : vector<2x32xf32>
    %cst_167 = arith.constant 1.000000e-01 : f32
    %cst_168 = arith.constant 0.899999976 : f32
    %617 = vector.broadcast %cst_167 : f32 to vector<2x32xf32>
    %618 = arith.maximumf %617, %616 : vector<2x32xf32>
    %619 = vector.broadcast %cst_168 : f32 to vector<2x32xf32>
    %620 = arith.minimumf %619, %618 : vector<2x32xf32>
    %621 = vector.extract_strided_slice %614 {offsets = [0, 32], sizes = [2, 32], strides = [1, 1]} : vector<2x64xf32> to vector<2x32xf32>
    %622 = math.tanh %621 : vector<2x32xf32>
    %cst_169 = arith.constant -0.899999976 : f32
    %cst_170 = arith.constant 0.899999976 : f32
    %623 = vector.broadcast %cst_169 : f32 to vector<2x32xf32>
    %624 = arith.maximumf %623, %622 : vector<2x32xf32>
    %625 = vector.broadcast %cst_170 : f32 to vector<2x32xf32>
    %626 = arith.minimumf %625, %624 : vector<2x32xf32>
    %cst_171 = arith.constant 5.000000e+00 : f32
    %627 = vector.broadcast %cst_171 : f32 to vector<2x32xf32>
    %628 = arith.mulf %627, %620 : vector<2x32xf32>
    %629 = arith.mulf %628, %626 : vector<2x32xf32>
    %630 = math.cos %629 : vector<2x32xf32>
    %cst_172 = arith.constant 9.99999993E-9 : f32
    %631 = vector.broadcast %cst_172 : f32 to vector<2x32xf32>
    %632 = arith.addf %620, %631 : vector<2x32xf32>
    %633 = tpu.reciprocal %632 {approx = true} : vector<2x32xf32> -> vector<2x32xf32>
    %cst_173 = arith.constant 0.000000e+00 : f32
    %634 = vector.broadcast %cst_173 : f32 to vector<2x32xf32>
    %635 = arith.subf %634, %633 : vector<2x32xf32>
    %636 = arith.mulf %626, %626 : vector<2x32xf32>
    %637 = arith.mulf %635, %636 : vector<2x32xf32>
    %638 = math.exp %637 : vector<2x32xf32>
    %639 = arith.mulf %630, %638 : vector<2x32xf32>
    %640 = math.absf %639 : vector<2x32xf32>
    %641 = arith.mulf %608, %609 : vector<2x32xf32>
    %642 = arith.mulf %641, %610 : vector<2x32xf32>
    %643 = arith.mulf %642, %587 : vector<2x32xf32>
    %644 = arith.mulf %611, %640 : vector<2x32xf32>
    %645 = arith.addf %643, %644 : vector<2x32xf32>
    %cst_174 = arith.constant -1.000000e+01 : f32
    %cst_175 = arith.constant 1.000000e+01 : f32
    %646 = vector.broadcast %cst_174 : f32 to vector<2x32xf32>
    %647 = arith.maximumf %646, %645 : vector<2x32xf32>
    %648 = vector.broadcast %cst_175 : f32 to vector<2x32xf32>
    %649 = arith.minimumf %648, %647 : vector<2x32xf32>
    %650 = arith.truncf %649 : vector<2x32xf32> to vector<2x32xbf16>
    %cst_176 = arith.constant dense<0.000000e+00> : vector<2x32xf32>
    %651 = tpu.matmul %650, %523, %cst_176 {dimension_numbers = #tpu.dot_dimension_numbers<[1], [0], [0], [1], [0, 0, 1, 1], [], []>} : vector<2x32xbf16>, vector<32x32xbf16>, vector<2x32xf32> -> vector<2x32xf32>
    %652 = arith.addf %651, %529 : vector<2x32xf32>
    %653 = math.tanh %652 : vector<2x32xf32>
    %654 = arith.mulf %607, %653 : vector<2x32xf32>
    %c2_177 = arith.constant 2 : index
    %c0_178 = arith.constant 0 : index
    %655 = vector.load %arg16[%c2_177, %c0_178] : memref<16x32xf32, #tpu.memory_space<vmem>>, vector<2x32xf32>
    tpu.vector_store %arg16[%c2_177, %c0_178], %654 {strides = array<i32>} : memref<16x32xf32, #tpu.memory_space<vmem>>, vector<2x32xf32>,
    %656 = vector.extract_strided_slice %520 {offsets = [4, 0], sizes = [2, 192], strides = [1, 1]} : vector<16x192xf32> to vector<2x192xf32>
    %657 = arith.truncf %654 : vector<2x32xf32> to vector<2x32xbf16>
    %cst_179 = arith.constant dense<0.000000e+00> : vector<2x192xf32>
    %658 = tpu.matmul %657, %521, %cst_179 {dimension_numbers = #tpu.dot_dimension_numbers<[1], [0], [0], [1], [0, 0, 1, 1], [], []>} : vector<2x32xbf16>, vector<32x192xbf16>, vector<2x192xf32> -> vector<2x192xf32>
    %659 = arith.addf %656, %658 : vector<2x192xf32>
    %660 = vector.extract_strided_slice %659 {offsets = [0, 0], sizes = [2, 160], strides = [1, 1]} : vector<2x192xf32> to vector<2x160xf32>
    %661 = arith.negf %660 : vector<2x160xf32>
    %662 = math.exp %661 : vector<2x160xf32>
    %cst_180 = arith.constant 1.000000e+00 : f32
    %663 = vector.broadcast %cst_180 : f32 to vector<2x160xf32>
    %664 = arith.addf %663, %662 : vector<2x160xf32>
    %665 = arith.divf %663, %664 : vector<2x160xf32>
    %666 = vector.extract_strided_slice %659 {offsets = [0, 160], sizes = [2, 32], strides = [1, 1]} : vector<2x192xf32> to vector<2x32xf32>
    %667 = math.tanh %666 : vector<2x32xf32>
    %668 = vector.extract_strided_slice %665 {offsets = [0, 0], sizes = [2, 32], strides = [1, 1]} : vector<2x160xf32> to vector<2x32xf32>
    %669 = vector.extract_strided_slice %665 {offsets = [0, 32], sizes = [2, 32], strides = [1, 1]} : vector<2x160xf32> to vector<2x32xf32>
    %670 = vector.extract_strided_slice %665 {offsets = [0, 64], sizes = [2, 32], strides = [1, 1]} : vector<2x160xf32> to vector<2x32xf32>
    %671 = vector.extract_strided_slice %665 {offsets = [0, 96], sizes = [2, 32], strides = [1, 1]} : vector<2x160xf32> to vector<2x32xf32>
    %672 = vector.extract_strided_slice %665 {offsets = [0, 128], sizes = [2, 32], strides = [1, 1]} : vector<2x160xf32> to vector<2x32xf32>
    %673 = arith.mulf %668, %667 : vector<2x32xf32>
    %674 = arith.truncf %673 : vector<2x32xf32> to vector<2x32xbf16>
    %cst_181 = arith.constant dense<0.000000e+00> : vector<2x64xf32>
    %675 = tpu.matmul %674, %522, %cst_181 {dimension_numbers = #tpu.dot_dimension_numbers<[1], [0], [0], [1], [0, 0, 1, 1], [], []>} : vector<2x32xbf16>, vector<32x64xbf16>, vector<2x64xf32> -> vector<2x64xf32>
    %676 = arith.addf %675, %526 : vector<2x64xf32>
    %677 = vector.extract_strided_slice %676 {offsets = [0, 0], sizes = [2, 32], strides = [1, 1]} : vector<2x64xf32> to vector<2x32xf32>
    %678 = math.tanh %677 : vector<2x32xf32>
    %cst_182 = arith.constant 1.000000e-01 : f32
    %cst_183 = arith.constant 0.899999976 : f32
    %679 = vector.broadcast %cst_182 : f32 to vector<2x32xf32>
    %680 = arith.maximumf %679, %678 : vector<2x32xf32>
    %681 = vector.broadcast %cst_183 : f32 to vector<2x32xf32>
    %682 = arith.minimumf %681, %680 : vector<2x32xf32>
    %683 = vector.extract_strided_slice %676 {offsets = [0, 32], sizes = [2, 32], strides = [1, 1]} : vector<2x64xf32> to vector<2x32xf32>
    %684 = math.tanh %683 : vector<2x32xf32>
    %cst_184 = arith.constant -0.899999976 : f32
    %cst_185 = arith.constant 0.899999976 : f32
    %685 = vector.broadcast %cst_184 : f32 to vector<2x32xf32>
    %686 = arith.maximumf %685, %684 : vector<2x32xf32>
    %687 = vector.broadcast %cst_185 : f32 to vector<2x32xf32>
    %688 = arith.minimumf %687, %686 : vector<2x32xf32>
    %cst_186 = arith.constant 5.000000e+00 : f32
    %689 = vector.broadcast %cst_186 : f32 to vector<2x32xf32>
    %690 = arith.mulf %689, %682 : vector<2x32xf32>
    %691 = arith.mulf %690, %688 : vector<2x32xf32>
    %692 = math.cos %691 : vector<2x32xf32>
    %cst_187 = arith.constant 9.99999993E-9 : f32
    %693 = vector.broadcast %cst_187 : f32 to vector<2x32xf32>
    %694 = arith.addf %682, %693 : vector<2x32xf32>
    %695 = tpu.reciprocal %694 {approx = true} : vector<2x32xf32> -> vector<2x32xf32>
    %cst_188 = arith.constant 0.000000e+00 : f32
    %696 = vector.broadcast %cst_188 : f32 to vector<2x32xf32>
    %697 = arith.subf %696, %695 : vector<2x32xf32>
    %698 = arith.mulf %688, %688 : vector<2x32xf32>
    %699 = arith.mulf %697, %698 : vector<2x32xf32>
    %700 = math.exp %699 : vector<2x32xf32>
    %701 = arith.mulf %692, %700 : vector<2x32xf32>
    %702 = math.absf %701 : vector<2x32xf32>
    %703 = arith.mulf %670, %671 : vector<2x32xf32>
    %704 = arith.mulf %703, %672 : vector<2x32xf32>
    %705 = arith.mulf %704, %649 : vector<2x32xf32>
    %706 = arith.mulf %673, %702 : vector<2x32xf32>
    %707 = arith.addf %705, %706 : vector<2x32xf32>
    %cst_189 = arith.constant -1.000000e+01 : f32
    %cst_190 = arith.constant 1.000000e+01 : f32
    %708 = vector.broadcast %cst_189 : f32 to vector<2x32xf32>
    %709 = arith.maximumf %708, %707 : vector<2x32xf32>
    %710 = vector.broadcast %cst_190 : f32 to vector<2x32xf32>
    %711 = arith.minimumf %710, %709 : vector<2x32xf32>
    %712 = arith.truncf %711 : vector<2x32xf32> to vector<2x32xbf16>
    %cst_191 = arith.constant dense<0.000000e+00> : vector<2x32xf32>
    %713 = tpu.matmul %712, %523, %cst_191 {dimension_numbers = #tpu.dot_dimension_numbers<[1], [0], [0], [1], [0, 0, 1, 1], [], []>} : vector<2x32xbf16>, vector<32x32xbf16>, vector<2x32xf32> -> vector<2x32xf32>
    %714 = arith.addf %713, %529 : vector<2x32xf32>
    %715 = math.tanh %714 : vector<2x32xf32>
    %716 = arith.mulf %669, %715 : vector<2x32xf32>
    %c4_192 = arith.constant 4 : index
    %c0_193 = arith.constant 0 : index
    %717 = vector.load %arg16[%c4_192, %c0_193] : memref<16x32xf32, #tpu.memory_space<vmem>>, vector<2x32xf32>
    tpu.vector_store %arg16[%c4_192, %c0_193], %716 {strides = array<i32>} : memref<16x32xf32, #tpu.memory_space<vmem>>, vector<2x32xf32>,
    %718 = vector.extract_strided_slice %520 {offsets = [6, 0], sizes = [2, 192], strides = [1, 1]} : vector<16x192xf32> to vector<2x192xf32>
    %719 = arith.truncf %716 : vector<2x32xf32> to vector<2x32xbf16>
    %cst_194 = arith.constant dense<0.000000e+00> : vector<2x192xf32>
    %720 = tpu.matmul %719, %521, %cst_194 {dimension_numbers = #tpu.dot_dimension_numbers<[1], [0], [0], [1], [0, 0, 1, 1], [], []>} : vector<2x32xbf16>, vector<32x192xbf16>, vector<2x192xf32> -> vector<2x192xf32>
    %721 = arith.addf %718, %720 : vector<2x192xf32>
    %722 = vector.extract_strided_slice %721 {offsets = [0, 0], sizes = [2, 160], strides = [1, 1]} : vector<2x192xf32> to vector<2x160xf32>
    %723 = arith.negf %722 : vector<2x160xf32>
    %724 = math.exp %723 : vector<2x160xf32>
    %cst_195 = arith.constant 1.000000e+00 : f32
    %725 = vector.broadcast %cst_195 : f32 to vector<2x160xf32>
    %726 = arith.addf %725, %724 : vector<2x160xf32>
    %727 = arith.divf %725, %726 : vector<2x160xf32>
    %728 = vector.extract_strided_slice %721 {offsets = [0, 160], sizes = [2, 32], strides = [1, 1]} : vector<2x192xf32> to vector<2x32xf32>
    %729 = math.tanh %728 : vector<2x32xf32>
    %730 = vector.extract_strided_slice %727 {offsets = [0, 0], sizes = [2, 32], strides = [1, 1]} : vector<2x160xf32> to vector<2x32xf32>
    %731 = vector.extract_strided_slice %727 {offsets = [0, 32], sizes = [2, 32], strides = [1, 1]} : vector<2x160xf32> to vector<2x32xf32>
    %732 = vector.extract_strided_slice %727 {offsets = [0, 64], sizes = [2, 32], strides = [1, 1]} : vector<2x160xf32> to vector<2x32xf32>
    %733 = vector.extract_strided_slice %727 {offsets = [0, 96], sizes = [2, 32], strides = [1, 1]} : vector<2x160xf32> to vector<2x32xf32>
    %734 = vector.extract_strided_slice %727 {offsets = [0, 128], sizes = [2, 32], strides = [1, 1]} : vector<2x160xf32> to vector<2x32xf32>
    %735 = arith.mulf %730, %729 : vector<2x32xf32>
    %736 = arith.truncf %735 : vector<2x32xf32> to vector<2x32xbf16>
    %cst_196 = arith.constant dense<0.000000e+00> : vector<2x64xf32>
    %737 = tpu.matmul %736, %522, %cst_196 {dimension_numbers = #tpu.dot_dimension_numbers<[1], [0], [0], [1], [0, 0, 1, 1], [], []>} : vector<2x32xbf16>, vector<32x64xbf16>, vector<2x64xf32> -> vector<2x64xf32>
    %738 = arith.addf %737, %526 : vector<2x64xf32>
    %739 = vector.extract_strided_slice %738 {offsets = [0, 0], sizes = [2, 32], strides = [1, 1]} : vector<2x64xf32> to vector<2x32xf32>
    %740 = math.tanh %739 : vector<2x32xf32>
    %cst_197 = arith.constant 1.000000e-01 : f32
    %cst_198 = arith.constant 0.899999976 : f32
    %741 = vector.broadcast %cst_197 : f32 to vector<2x32xf32>
    %742 = arith.maximumf %741, %740 : vector<2x32xf32>
    %743 = vector.broadcast %cst_198 : f32 to vector<2x32xf32>
    %744 = arith.minimumf %743, %742 : vector<2x32xf32>
    %745 = vector.extract_strided_slice %738 {offsets = [0, 32], sizes = [2, 32], strides = [1, 1]} : vector<2x64xf32> to vector<2x32xf32>
    %746 = math.tanh %745 : vector<2x32xf32>
    %cst_199 = arith.constant -0.899999976 : f32
    %cst_200 = arith.constant 0.899999976 : f32
    %747 = vector.broadcast %cst_199 : f32 to vector<2x32xf32>
    %748 = arith.maximumf %747, %746 : vector<2x32xf32>
    %749 = vector.broadcast %cst_200 : f32 to vector<2x32xf32>
    %750 = arith.minimumf %749, %748 : vector<2x32xf32>
    %cst_201 = arith.constant 5.000000e+00 : f32
    %751 = vector.broadcast %cst_201 : f32 to vector<2x32xf32>
    %752 = arith.mulf %751, %744 : vector<2x32xf32>
    %753 = arith.mulf %752, %750 : vector<2x32xf32>
    %754 = math.cos %753 : vector<2x32xf32>
    %cst_202 = arith.constant 9.99999993E-9 : f32
    %755 = vector.broadcast %cst_202 : f32 to vector<2x32xf32>
    %756 = arith.addf %744, %755 : vector<2x32xf32>
    %757 = tpu.reciprocal %756 {approx = true} : vector<2x32xf32> -> vector<2x32xf32>
    %cst_203 = arith.constant 0.000000e+00 : f32
    %758 = vector.broadcast %cst_203 : f32 to vector<2x32xf32>
    %759 = arith.subf %758, %757 : vector<2x32xf32>
    %760 = arith.mulf %750, %750 : vector<2x32xf32>
    %761 = arith.mulf %759, %760 : vector<2x32xf32>
    %762 = math.exp %761 : vector<2x32xf32>
    %763 = arith.mulf %754, %762 : vector<2x32xf32>
    %764 = math.absf %763 : vector<2x32xf32>
    %765 = arith.mulf %732, %733 : vector<2x32xf32>
    %766 = arith.mulf %765, %734 : vector<2x32xf32>
    %767 = arith.mulf %766, %711 : vector<2x32xf32>
    %768 = arith.mulf %735, %764 : vector<2x32xf32>
    %769 = arith.addf %767, %768 : vector<2x32xf32>
    %cst_204 = arith.constant -1.000000e+01 : f32
    %cst_205 = arith.constant 1.000000e+01 : f32
    %770 = vector.broadcast %cst_204 : f32 to vector<2x32xf32>
    %771 = arith.maximumf %770, %769 : vector<2x32xf32>
    %772 = vector.broadcast %cst_205 : f32 to vector<2x32xf32>
    %773 = arith.minimumf %772, %771 : vector<2x32xf32>
    %774 = arith.truncf %773 : vector<2x32xf32> to vector<2x32xbf16>
    %cst_206 = arith.constant dense<0.000000e+00> : vector<2x32xf32>
    %775 = tpu.matmul %774, %523, %cst_206 {dimension_numbers = #tpu.dot_dimension_numbers<[1], [0], [0], [1], [0, 0, 1, 1], [], []>} : vector<2x32xbf16>, vector<32x32xbf16>, vector<2x32xf32> -> vector<2x32xf32>
    %776 = arith.addf %775, %529 : vector<2x32xf32>
    %777 = math.tanh %776 : vector<2x32xf32>
    %778 = arith.mulf %731, %777 : vector<2x32xf32>
    %c6_207 = arith.constant 6 : index
    %c0_208 = arith.constant 0 : index
    %779 = vector.load %arg16[%c6_207, %c0_208] : memref<16x32xf32, #tpu.memory_space<vmem>>, vector<2x32xf32>
    tpu.vector_store %arg16[%c6_207, %c0_208], %778 {strides = array<i32>} : memref<16x32xf32, #tpu.memory_space<vmem>>, vector<2x32xf32>,
    %780 = vector.extract_strided_slice %520 {offsets = [8, 0], sizes = [2, 192], strides = [1, 1]} : vector<16x192xf32> to vector<2x192xf32>
    %781 = arith.truncf %778 : vector<2x32xf32> to vector<2x32xbf16>
    %cst_209 = arith.constant dense<0.000000e+00> : vector<2x192xf32>
    %782 = tpu.matmul %781, %521, %cst_209 {dimension_numbers = #tpu.dot_dimension_numbers<[1], [0], [0], [1], [0, 0, 1, 1], [], []>} : vector<2x32xbf16>, vector<32x192xbf16>, vector<2x192xf32> -> vector<2x192xf32>
    %783 = arith.addf %780, %782 : vector<2x192xf32>
    %784 = vector.extract_strided_slice %783 {offsets = [0, 0], sizes = [2, 160], strides = [1, 1]} : vector<2x192xf32> to vector<2x160xf32>
    %785 = arith.negf %784 : vector<2x160xf32>
    %786 = math.exp %785 : vector<2x160xf32>
    %cst_210 = arith.constant 1.000000e+00 : f32
    %787 = vector.broadcast %cst_210 : f32 to vector<2x160xf32>
    %788 = arith.addf %787, %786 : vector<2x160xf32>
    %789 = arith.divf %787, %788 : vector<2x160xf32>
    %790 = vector.extract_strided_slice %783 {offsets = [0, 160], sizes = [2, 32], strides = [1, 1]} : vector<2x192xf32> to vector<2x32xf32>
    %791 = math.tanh %790 : vector<2x32xf32>
    %792 = vector.extract_strided_slice %789 {offsets = [0, 0], sizes = [2, 32], strides = [1, 1]} : vector<2x160xf32> to vector<2x32xf32>
    %793 = vector.extract_strided_slice %789 {offsets = [0, 32], sizes = [2, 32], strides = [1, 1]} : vector<2x160xf32> to vector<2x32xf32>
    %794 = vector.extract_strided_slice %789 {offsets = [0, 64], sizes = [2, 32], strides = [1, 1]} : vector<2x160xf32> to vector<2x32xf32>
    %795 = vector.extract_strided_slice %789 {offsets = [0, 96], sizes = [2, 32], strides = [1, 1]} : vector<2x160xf32> to vector<2x32xf32>
    %796 = vector.extract_strided_slice %789 {offsets = [0, 128], sizes = [2, 32], strides = [1, 1]} : vector<2x160xf32> to vector<2x32xf32>
    %797 = arith.mulf %792, %791 : vector<2x32xf32>
    %798 = arith.truncf %797 : vector<2x32xf32> to vector<2x32xbf16>
    %cst_211 = arith.constant dense<0.000000e+00> : vector<2x64xf32>
    %799 = tpu.matmul %798, %522, %cst_211 {dimension_numbers = #tpu.dot_dimension_numbers<[1], [0], [0], [1], [0, 0, 1, 1], [], []>} : vector<2x32xbf16>, vector<32x64xbf16>, vector<2x64xf32> -> vector<2x64xf32>
    %800 = arith.addf %799, %526 : vector<2x64xf32>
    %801 = vector.extract_strided_slice %800 {offsets = [0, 0], sizes = [2, 32], strides = [1, 1]} : vector<2x64xf32> to vector<2x32xf32>
    %802 = math.tanh %801 : vector<2x32xf32>
    %cst_212 = arith.constant 1.000000e-01 : f32
    %cst_213 = arith.constant 0.899999976 : f32
    %803 = vector.broadcast %cst_212 : f32 to vector<2x32xf32>
    %804 = arith.maximumf %803, %802 : vector<2x32xf32>
    %805 = vector.broadcast %cst_213 : f32 to vector<2x32xf32>
    %806 = arith.minimumf %805, %804 : vector<2x32xf32>
    %807 = vector.extract_strided_slice %800 {offsets = [0, 32], sizes = [2, 32], strides = [1, 1]} : vector<2x64xf32> to vector<2x32xf32>
    %808 = math.tanh %807 : vector<2x32xf32>
    %cst_214 = arith.constant -0.899999976 : f32
    %cst_215 = arith.constant 0.899999976 : f32
    %809 = vector.broadcast %cst_214 : f32 to vector<2x32xf32>
    %810 = arith.maximumf %809, %808 : vector<2x32xf32>
    %811 = vector.broadcast %cst_215 : f32 to vector<2x32xf32>
    %812 = arith.minimumf %811, %810 : vector<2x32xf32>
    %cst_216 = arith.constant 5.000000e+00 : f32
    %813 = vector.broadcast %cst_216 : f32 to vector<2x32xf32>
    %814 = arith.mulf %813, %806 : vector<2x32xf32>
    %815 = arith.mulf %814, %812 : vector<2x32xf32>
    %816 = math.cos %815 : vector<2x32xf32>
    %cst_217 = arith.constant 9.99999993E-9 : f32
    %817 = vector.broadcast %cst_217 : f32 to vector<2x32xf32>
    %818 = arith.addf %806, %817 : vector<2x32xf32>
    %819 = tpu.reciprocal %818 {approx = true} : vector<2x32xf32> -> vector<2x32xf32>
    %cst_218 = arith.constant 0.000000e+00 : f32
    %820 = vector.broadcast %cst_218 : f32 to vector<2x32xf32>
    %821 = arith.subf %820, %819 : vector<2x32xf32>
    %822 = arith.mulf %812, %812 : vector<2x32xf32>
    %823 = arith.mulf %821, %822 : vector<2x32xf32>
    %824 = math.exp %823 : vector<2x32xf32>
    %825 = arith.mulf %816, %824 : vector<2x32xf32>
    %826 = math.absf %825 : vector<2x32xf32>
    %827 = arith.mulf %794, %795 : vector<2x32xf32>
    %828 = arith.mulf %827, %796 : vector<2x32xf32>
    %829 = arith.mulf %828, %773 : vector<2x32xf32>
    %830 = arith.mulf %797, %826 : vector<2x32xf32>
    %831 = arith.addf %829, %830 : vector<2x32xf32>
    %cst_219 = arith.constant -1.000000e+01 : f32
    %cst_220 = arith.constant 1.000000e+01 : f32
    %832 = vector.broadcast %cst_219 : f32 to vector<2x32xf32>
    %833 = arith.maximumf %832, %831 : vector<2x32xf32>
    %834 = vector.broadcast %cst_220 : f32 to vector<2x32xf32>
    %835 = arith.minimumf %834, %833 : vector<2x32xf32>
    %836 = arith.truncf %835 : vector<2x32xf32> to vector<2x32xbf16>
    %cst_221 = arith.constant dense<0.000000e+00> : vector<2x32xf32>
    %837 = tpu.matmul %836, %523, %cst_221 {dimension_numbers = #tpu.dot_dimension_numbers<[1], [0], [0], [1], [0, 0, 1, 1], [], []>} : vector<2x32xbf16>, vector<32x32xbf16>, vector<2x32xf32> -> vector<2x32xf32>
    %838 = arith.addf %837, %529 : vector<2x32xf32>
    %839 = math.tanh %838 : vector<2x32xf32>
    %840 = arith.mulf %793, %839 : vector<2x32xf32>
    %c8_222 = arith.constant 8 : index
    %c0_223 = arith.constant 0 : index
    %841 = vector.load %arg16[%c8_222, %c0_223] : memref<16x32xf32, #tpu.memory_space<vmem>>, vector<2x32xf32>
    tpu.vector_store %arg16[%c8_222, %c0_223], %840 {strides = array<i32>} : memref<16x32xf32, #tpu.memory_space<vmem>>, vector<2x32xf32>,
    %842 = vector.extract_strided_slice %520 {offsets = [10, 0], sizes = [2, 192], strides = [1, 1]} : vector<16x192xf32> to vector<2x192xf32>
    %843 = arith.truncf %840 : vector<2x32xf32> to vector<2x32xbf16>
    %cst_224 = arith.constant dense<0.000000e+00> : vector<2x192xf32>
    %844 = tpu.matmul %843, %521, %cst_224 {dimension_numbers = #tpu.dot_dimension_numbers<[1], [0], [0], [1], [0, 0, 1, 1], [], []>} : vector<2x32xbf16>, vector<32x192xbf16>, vector<2x192xf32> -> vector<2x192xf32>
    %845 = arith.addf %842, %844 : vector<2x192xf32>
    %846 = vector.extract_strided_slice %845 {offsets = [0, 0], sizes = [2, 160], strides = [1, 1]} : vector<2x192xf32> to vector<2x160xf32>
    %847 = arith.negf %846 : vector<2x160xf32>
    %848 = math.exp %847 : vector<2x160xf32>
    %cst_225 = arith.constant 1.000000e+00 : f32
    %849 = vector.broadcast %cst_225 : f32 to vector<2x160xf32>
    %850 = arith.addf %849, %848 : vector<2x160xf32>
    %851 = arith.divf %849, %850 : vector<2x160xf32>
    %852 = vector.extract_strided_slice %845 {offsets = [0, 160], sizes = [2, 32], strides = [1, 1]} : vector<2x192xf32> to vector<2x32xf32>
    %853 = math.tanh %852 : vector<2x32xf32>
    %854 = vector.extract_strided_slice %851 {offsets = [0, 0], sizes = [2, 32], strides = [1, 1]} : vector<2x160xf32> to vector<2x32xf32>
    %855 = vector.extract_strided_slice %851 {offsets = [0, 32], sizes = [2, 32], strides = [1, 1]} : vector<2x160xf32> to vector<2x32xf32>
    %856 = vector.extract_strided_slice %851 {offsets = [0, 64], sizes = [2, 32], strides = [1, 1]} : vector<2x160xf32> to vector<2x32xf32>
    %857 = vector.extract_strided_slice %851 {offsets = [0, 96], sizes = [2, 32], strides = [1, 1]} : vector<2x160xf32> to vector<2x32xf32>
    %858 = vector.extract_strided_slice %851 {offsets = [0, 128], sizes = [2, 32], strides = [1, 1]} : vector<2x160xf32> to vector<2x32xf32>
    %859 = arith.mulf %854, %853 : vector<2x32xf32>
    %860 = arith.truncf %859 : vector<2x32xf32> to vector<2x32xbf16>
    %cst_226 = arith.constant dense<0.000000e+00> : vector<2x64xf32>
    %861 = tpu.matmul %860, %522, %cst_226 {dimension_numbers = #tpu.dot_dimension_numbers<[1], [0], [0], [1], [0, 0, 1, 1], [], []>} : vector<2x32xbf16>, vector<32x64xbf16>, vector<2x64xf32> -> vector<2x64xf32>
    %862 = arith.addf %861, %526 : vector<2x64xf32>
    %863 = vector.extract_strided_slice %862 {offsets = [0, 0], sizes = [2, 32], strides = [1, 1]} : vector<2x64xf32> to vector<2x32xf32>
    %864 = math.tanh %863 : vector<2x32xf32>
    %cst_227 = arith.constant 1.000000e-01 : f32
    %cst_228 = arith.constant 0.899999976 : f32
    %865 = vector.broadcast %cst_227 : f32 to vector<2x32xf32>
    %866 = arith.maximumf %865, %864 : vector<2x32xf32>
    %867 = vector.broadcast %cst_228 : f32 to vector<2x32xf32>
    %868 = arith.minimumf %867, %866 : vector<2x32xf32>
    %869 = vector.extract_strided_slice %862 {offsets = [0, 32], sizes = [2, 32], strides = [1, 1]} : vector<2x64xf32> to vector<2x32xf32>
    %870 = math.tanh %869 : vector<2x32xf32>
    %cst_229 = arith.constant -0.899999976 : f32
    %cst_230 = arith.constant 0.899999976 : f32
    %871 = vector.broadcast %cst_229 : f32 to vector<2x32xf32>
    %872 = arith.maximumf %871, %870 : vector<2x32xf32>
    %873 = vector.broadcast %cst_230 : f32 to vector<2x32xf32>
    %874 = arith.minimumf %873, %872 : vector<2x32xf32>
    %cst_231 = arith.constant 5.000000e+00 : f32
    %875 = vector.broadcast %cst_231 : f32 to vector<2x32xf32>
    %876 = arith.mulf %875, %868 : vector<2x32xf32>
    %877 = arith.mulf %876, %874 : vector<2x32xf32>
    %878 = math.cos %877 : vector<2x32xf32>
    %cst_232 = arith.constant 9.99999993E-9 : f32
    %879 = vector.broadcast %cst_232 : f32 to vector<2x32xf32>
    %880 = arith.addf %868, %879 : vector<2x32xf32>
    %881 = tpu.reciprocal %880 {approx = true} : vector<2x32xf32> -> vector<2x32xf32>
    %cst_233 = arith.constant 0.000000e+00 : f32
    %882 = vector.broadcast %cst_233 : f32 to vector<2x32xf32>
    %883 = arith.subf %882, %881 : vector<2x32xf32>
    %884 = arith.mulf %874, %874 : vector<2x32xf32>
    %885 = arith.mulf %883, %884 : vector<2x32xf32>
    %886 = math.exp %885 : vector<2x32xf32>
    %887 = arith.mulf %878, %886 : vector<2x32xf32>
    %888 = math.absf %887 : vector<2x32xf32>
    %889 = arith.mulf %856, %857 : vector<2x32xf32>
    %890 = arith.mulf %889, %858 : vector<2x32xf32>
    %891 = arith.mulf %890, %835 : vector<2x32xf32>
    %892 = arith.mulf %859, %888 : vector<2x32xf32>
    %893 = arith.addf %891, %892 : vector<2x32xf32>
    %cst_234 = arith.constant -1.000000e+01 : f32
    %cst_235 = arith.constant 1.000000e+01 : f32
    %894 = vector.broadcast %cst_234 : f32 to vector<2x32xf32>
    %895 = arith.maximumf %894, %893 : vector<2x32xf32>
    %896 = vector.broadcast %cst_235 : f32 to vector<2x32xf32>
    %897 = arith.minimumf %896, %895 : vector<2x32xf32>
    %898 = arith.truncf %897 : vector<2x32xf32> to vector<2x32xbf16>
    %cst_236 = arith.constant dense<0.000000e+00> : vector<2x32xf32>
    %899 = tpu.matmul %898, %523, %cst_236 {dimension_numbers = #tpu.dot_dimension_numbers<[1], [0], [0], [1], [0, 0, 1, 1], [], []>} : vector<2x32xbf16>, vector<32x32xbf16>, vector<2x32xf32> -> vector<2x32xf32>
    %900 = arith.addf %899, %529 : vector<2x32xf32>
    %901 = math.tanh %900 : vector<2x32xf32>
    %902 = arith.mulf %855, %901 : vector<2x32xf32>
    %c10_237 = arith.constant 10 : index
    %c0_238 = arith.constant 0 : index
    %903 = vector.load %arg16[%c10_237, %c0_238] : memref<16x32xf32, #tpu.memory_space<vmem>>, vector<2x32xf32>
    tpu.vector_store %arg16[%c10_237, %c0_238], %902 {strides = array<i32>} : memref<16x32xf32, #tpu.memory_space<vmem>>, vector<2x32xf32>,
    %904 = vector.extract_strided_slice %520 {offsets = [12, 0], sizes = [2, 192], strides = [1, 1]} : vector<16x192xf32> to vector<2x192xf32>
    %905 = arith.truncf %902 : vector<2x32xf32> to vector<2x32xbf16>
    %cst_239 = arith.constant dense<0.000000e+00> : vector<2x192xf32>
    %906 = tpu.matmul %905, %521, %cst_239 {dimension_numbers = #tpu.dot_dimension_numbers<[1], [0], [0], [1], [0, 0, 1, 1], [], []>} : vector<2x32xbf16>, vector<32x192xbf16>, vector<2x192xf32> -> vector<2x192xf32>
    %907 = arith.addf %904, %906 : vector<2x192xf32>
    %908 = vector.extract_strided_slice %907 {offsets = [0, 0], sizes = [2, 160], strides = [1, 1]} : vector<2x192xf32> to vector<2x160xf32>
    %909 = arith.negf %908 : vector<2x160xf32>
    %910 = math.exp %909 : vector<2x160xf32>
    %cst_240 = arith.constant 1.000000e+00 : f32
    %911 = vector.broadcast %cst_240 : f32 to vector<2x160xf32>
    %912 = arith.addf %911, %910 : vector<2x160xf32>
    %913 = arith.divf %911, %912 : vector<2x160xf32>
    %914 = vector.extract_strided_slice %907 {offsets = [0, 160], sizes = [2, 32], strides = [1, 1]} : vector<2x192xf32> to vector<2x32xf32>
    %915 = math.tanh %914 : vector<2x32xf32>
    %916 = vector.extract_strided_slice %913 {offsets = [0, 0], sizes = [2, 32], strides = [1, 1]} : vector<2x160xf32> to vector<2x32xf32>
    %917 = vector.extract_strided_slice %913 {offsets = [0, 32], sizes = [2, 32], strides = [1, 1]} : vector<2x160xf32> to vector<2x32xf32>
    %918 = vector.extract_strided_slice %913 {offsets = [0, 64], sizes = [2, 32], strides = [1, 1]} : vector<2x160xf32> to vector<2x32xf32>
    %919 = vector.extract_strided_slice %913 {offsets = [0, 96], sizes = [2, 32], strides = [1, 1]} : vector<2x160xf32> to vector<2x32xf32>
    %920 = vector.extract_strided_slice %913 {offsets = [0, 128], sizes = [2, 32], strides = [1, 1]} : vector<2x160xf32> to vector<2x32xf32>
    %921 = arith.mulf %916, %915 : vector<2x32xf32>
    %922 = arith.truncf %921 : vector<2x32xf32> to vector<2x32xbf16>
    %cst_241 = arith.constant dense<0.000000e+00> : vector<2x64xf32>
    %923 = tpu.matmul %922, %522, %cst_241 {dimension_numbers = #tpu.dot_dimension_numbers<[1], [0], [0], [1], [0, 0, 1, 1], [], []>} : vector<2x32xbf16>, vector<32x64xbf16>, vector<2x64xf32> -> vector<2x64xf32>
    %924 = arith.addf %923, %526 : vector<2x64xf32>
    %925 = vector.extract_strided_slice %924 {offsets = [0, 0], sizes = [2, 32], strides = [1, 1]} : vector<2x64xf32> to vector<2x32xf32>
    %926 = math.tanh %925 : vector<2x32xf32>
    %cst_242 = arith.constant 1.000000e-01 : f32
    %cst_243 = arith.constant 0.899999976 : f32
    %927 = vector.broadcast %cst_242 : f32 to vector<2x32xf32>
    %928 = arith.maximumf %927, %926 : vector<2x32xf32>
    %929 = vector.broadcast %cst_243 : f32 to vector<2x32xf32>
    %930 = arith.minimumf %929, %928 : vector<2x32xf32>
    %931 = vector.extract_strided_slice %924 {offsets = [0, 32], sizes = [2, 32], strides = [1, 1]} : vector<2x64xf32> to vector<2x32xf32>
    %932 = math.tanh %931 : vector<2x32xf32>
    %cst_244 = arith.constant -0.899999976 : f32
    %cst_245 = arith.constant 0.899999976 : f32
    %933 = vector.broadcast %cst_244 : f32 to vector<2x32xf32>
    %934 = arith.maximumf %933, %932 : vector<2x32xf32>
    %935 = vector.broadcast %cst_245 : f32 to vector<2x32xf32>
    %936 = arith.minimumf %935, %934 : vector<2x32xf32>
    %cst_246 = arith.constant 5.000000e+00 : f32
    %937 = vector.broadcast %cst_246 : f32 to vector<2x32xf32>
    %938 = arith.mulf %937, %930 : vector<2x32xf32>
    %939 = arith.mulf %938, %936 : vector<2x32xf32>
    %940 = math.cos %939 : vector<2x32xf32>
    %cst_247 = arith.constant 9.99999993E-9 : f32
    %941 = vector.broadcast %cst_247 : f32 to vector<2x32xf32>
    %942 = arith.addf %930, %941 : vector<2x32xf32>
    %943 = tpu.reciprocal %942 {approx = true} : vector<2x32xf32> -> vector<2x32xf32>
    %cst_248 = arith.constant 0.000000e+00 : f32
    %944 = vector.broadcast %cst_248 : f32 to vector<2x32xf32>
    %945 = arith.subf %944, %943 : vector<2x32xf32>
    %946 = arith.mulf %936, %936 : vector<2x32xf32>
    %947 = arith.mulf %945, %946 : vector<2x32xf32>
    %948 = math.exp %947 : vector<2x32xf32>
    %949 = arith.mulf %940, %948 : vector<2x32xf32>
    %950 = math.absf %949 : vector<2x32xf32>
    %951 = arith.mulf %918, %919 : vector<2x32xf32>
    %952 = arith.mulf %951, %920 : vector<2x32xf32>
    %953 = arith.mulf %952, %897 : vector<2x32xf32>
    %954 = arith.mulf %921, %950 : vector<2x32xf32>
    %955 = arith.addf %953, %954 : vector<2x32xf32>
    %cst_249 = arith.constant -1.000000e+01 : f32
    %cst_250 = arith.constant 1.000000e+01 : f32
    %956 = vector.broadcast %cst_249 : f32 to vector<2x32xf32>
    %957 = arith.maximumf %956, %955 : vector<2x32xf32>
    %958 = vector.broadcast %cst_250 : f32 to vector<2x32xf32>
    %959 = arith.minimumf %958, %957 : vector<2x32xf32>
    %960 = arith.truncf %959 : vector<2x32xf32> to vector<2x32xbf16>
    %cst_251 = arith.constant dense<0.000000e+00> : vector<2x32xf32>
    %961 = tpu.matmul %960, %523, %cst_251 {dimension_numbers = #tpu.dot_dimension_numbers<[1], [0], [0], [1], [0, 0, 1, 1], [], []>} : vector<2x32xbf16>, vector<32x32xbf16>, vector<2x32xf32> -> vector<2x32xf32>
    %962 = arith.addf %961, %529 : vector<2x32xf32>
    %963 = math.tanh %962 : vector<2x32xf32>
    %964 = arith.mulf %917, %963 : vector<2x32xf32>
    %c12_252 = arith.constant 12 : index
    %c0_253 = arith.constant 0 : index
    %965 = vector.load %arg16[%c12_252, %c0_253] : memref<16x32xf32, #tpu.memory_space<vmem>>, vector<2x32xf32>
    tpu.vector_store %arg16[%c12_252, %c0_253], %964 {strides = array<i32>} : memref<16x32xf32, #tpu.memory_space<vmem>>, vector<2x32xf32>,
    %966 = vector.extract_strided_slice %520 {offsets = [14, 0], sizes = [2, 192], strides = [1, 1]} : vector<16x192xf32> to vector<2x192xf32>
    %967 = arith.truncf %964 : vector<2x32xf32> to vector<2x32xbf16>
    %cst_254 = arith.constant dense<0.000000e+00> : vector<2x192xf32>
    %968 = tpu.matmul %967, %521, %cst_254 {dimension_numbers = #tpu.dot_dimension_numbers<[1], [0], [0], [1], [0, 0, 1, 1], [], []>} : vector<2x32xbf16>, vector<32x192xbf16>, vector<2x192xf32> -> vector<2x192xf32>
    %969 = arith.addf %966, %968 : vector<2x192xf32>
    %970 = vector.extract_strided_slice %969 {offsets = [0, 0], sizes = [2, 160], strides = [1, 1]} : vector<2x192xf32> to vector<2x160xf32>
    %971 = arith.negf %970 : vector<2x160xf32>
    %972 = math.exp %971 : vector<2x160xf32>
    %cst_255 = arith.constant 1.000000e+00 : f32
    %973 = vector.broadcast %cst_255 : f32 to vector<2x160xf32>
    %974 = arith.addf %973, %972 : vector<2x160xf32>
    %975 = arith.divf %973, %974 : vector<2x160xf32>
    %976 = vector.extract_strided_slice %969 {offsets = [0, 160], sizes = [2, 32], strides = [1, 1]} : vector<2x192xf32> to vector<2x32xf32>
    %977 = math.tanh %976 : vector<2x32xf32>
    %978 = vector.extract_strided_slice %975 {offsets = [0, 0], sizes = [2, 32], strides = [1, 1]} : vector<2x160xf32> to vector<2x32xf32>
    %979 = vector.extract_strided_slice %975 {offsets = [0, 32], sizes = [2, 32], strides = [1, 1]} : vector<2x160xf32> to vector<2x32xf32>
    %980 = vector.extract_strided_slice %975 {offsets = [0, 64], sizes = [2, 32], strides = [1, 1]} : vector<2x160xf32> to vector<2x32xf32>
    %981 = vector.extract_strided_slice %975 {offsets = [0, 96], sizes = [2, 32], strides = [1, 1]} : vector<2x160xf32> to vector<2x32xf32>
    %982 = vector.extract_strided_slice %975 {offsets = [0, 128], sizes = [2, 32], strides = [1, 1]} : vector<2x160xf32> to vector<2x32xf32>
    %983 = arith.mulf %978, %977 : vector<2x32xf32>
    %984 = arith.truncf %983 : vector<2x32xf32> to vector<2x32xbf16>
    %cst_256 = arith.constant dense<0.000000e+00> : vector<2x64xf32>
    %985 = tpu.matmul %984, %522, %cst_256 {dimension_numbers = #tpu.dot_dimension_numbers<[1], [0], [0], [1], [0, 0, 1, 1], [], []>} : vector<2x32xbf16>, vector<32x64xbf16>, vector<2x64xf32> -> vector<2x64xf32>
    %986 = arith.addf %985, %526 : vector<2x64xf32>
    %987 = vector.extract_strided_slice %986 {offsets = [0, 0], sizes = [2, 32], strides = [1, 1]} : vector<2x64xf32> to vector<2x32xf32>
    %988 = math.tanh %987 : vector<2x32xf32>
    %cst_257 = arith.constant 1.000000e-01 : f32
    %cst_258 = arith.constant 0.899999976 : f32
    %989 = vector.broadcast %cst_257 : f32 to vector<2x32xf32>
    %990 = arith.maximumf %989, %988 : vector<2x32xf32>
    %991 = vector.broadcast %cst_258 : f32 to vector<2x32xf32>
    %992 = arith.minimumf %991, %990 : vector<2x32xf32>
    %993 = vector.extract_strided_slice %986 {offsets = [0, 32], sizes = [2, 32], strides = [1, 1]} : vector<2x64xf32> to vector<2x32xf32>
    %994 = math.tanh %993 : vector<2x32xf32>
    %cst_259 = arith.constant -0.899999976 : f32
    %cst_260 = arith.constant 0.899999976 : f32
    %995 = vector.broadcast %cst_259 : f32 to vector<2x32xf32>
    %996 = arith.maximumf %995, %994 : vector<2x32xf32>
    %997 = vector.broadcast %cst_260 : f32 to vector<2x32xf32>
    %998 = arith.minimumf %997, %996 : vector<2x32xf32>
    %cst_261 = arith.constant 5.000000e+00 : f32
    %999 = vector.broadcast %cst_261 : f32 to vector<2x32xf32>
    %1000 = arith.mulf %999, %992 : vector<2x32xf32>
    %1001 = arith.mulf %1000, %998 : vector<2x32xf32>
    %1002 = math.cos %1001 : vector<2x32xf32>
    %cst_262 = arith.constant 9.99999993E-9 : f32
    %1003 = vector.broadcast %cst_262 : f32 to vector<2x32xf32>
    %1004 = arith.addf %992, %1003 : vector<2x32xf32>
    %1005 = tpu.reciprocal %1004 {approx = true} : vector<2x32xf32> -> vector<2x32xf32>
    %cst_263 = arith.constant 0.000000e+00 : f32
    %1006 = vector.broadcast %cst_263 : f32 to vector<2x32xf32>
    %1007 = arith.subf %1006, %1005 : vector<2x32xf32>
    %1008 = arith.mulf %998, %998 : vector<2x32xf32>
    %1009 = arith.mulf %1007, %1008 : vector<2x32xf32>
    %1010 = math.exp %1009 : vector<2x32xf32>
    %1011 = arith.mulf %1002, %1010 : vector<2x32xf32>
    %1012 = math.absf %1011 : vector<2x32xf32>
    %1013 = arith.mulf %980, %981 : vector<2x32xf32>
    %1014 = arith.mulf %1013, %982 : vector<2x32xf32>
    %1015 = arith.mulf %1014, %959 : vector<2x32xf32>
    %1016 = arith.mulf %983, %1012 : vector<2x32xf32>
    %1017 = arith.addf %1015, %1016 : vector<2x32xf32>
    %cst_264 = arith.constant -1.000000e+01 : f32
    %cst_265 = arith.constant 1.000000e+01 : f32
    %1018 = vector.broadcast %cst_264 : f32 to vector<2x32xf32>
    %1019 = arith.maximumf %1018, %1017 : vector<2x32xf32>
    %1020 = vector.broadcast %cst_265 : f32 to vector<2x32xf32>
    %1021 = arith.minimumf %1020, %1019 : vector<2x32xf32>
    %1022 = arith.truncf %1021 : vector<2x32xf32> to vector<2x32xbf16>
    %cst_266 = arith.constant dense<0.000000e+00> : vector<2x32xf32>
    %1023 = tpu.matmul %1022, %523, %cst_266 {dimension_numbers = #tpu.dot_dimension_numbers<[1], [0], [0], [1], [0, 0, 1, 1], [], []>} : vector<2x32xbf16>, vector<32x32xbf16>, vector<2x32xf32> -> vector<2x32xf32>
    %1024 = arith.addf %1023, %529 : vector<2x32xf32>
    %1025 = math.tanh %1024 : vector<2x32xf32>
    %1026 = arith.mulf %979, %1025 : vector<2x32xf32>
    %c14_267 = arith.constant 14 : index
    %c0_268 = arith.constant 0 : index
    %1027 = vector.load %arg16[%c14_267, %c0_268] : memref<16x32xf32, #tpu.memory_space<vmem>>, vector<2x32xf32>
    tpu.vector_store %arg16[%c14_267, %c0_268], %1026 {strides = array<i32>} : memref<16x32xf32, #tpu.memory_space<vmem>>, vector<2x32xf32>,
    return
  }
  func.func @transform_0(%arg0: i32) -> (i32, i32) {
    %c0_i32 = arith.constant 0 : i32
    %c0_i32_0 = arith.constant 0 : i32
    %c0_i32_1 = arith.constant 0 : i32
    return %c0_i32, %c0_i32_0 : i32, i32
  }
  func.func @transform_1(%arg0: i32) -> (i32, i32) {
    %c0_i32 = arith.constant 0 : i32
    %c0_i32_0 = arith.constant 0 : i32
    %c0_i32_1 = arith.constant 0 : i32
    return %c0_i32, %c0_i32_0 : i32, i32
  }
  func.func @transform_2(%arg0: i32) -> (i32, i32) {
    %c0_i32 = arith.constant 0 : i32
    %c0_i32_0 = arith.constant 0 : i32
    %c0_i32_1 = arith.constant 0 : i32
    return %c0_i32, %c0_i32_0 : i32, i32
  }
  func.func @transform_3(%arg0: i32) -> (i32, i32) {
    %c0_i32 = arith.constant 0 : i32
    %c0_i32_0 = arith.constant 0 : i32
    %c0_i32_1 = arith.constant 0 : i32
    return %c0_i32, %c0_i32_0 : i32, i32
  }
  func.func @transform_4(%arg0: i32) -> (i32, i32) {
    %c0_i32 = arith.constant 0 : i32
    %c0_i32_0 = arith.constant 0 : i32
    %c0_i32_1 = arith.constant 0 : i32
    return %c0_i32, %c0_i32_0 : i32, i32
  }
  func.func @transform_5(%arg0: i32) -> (i32, i32) {
    %c0_i32 = arith.constant 0 : i32
    %c0_i32_0 = arith.constant 0 : i32
    %c0_i32_1 = arith.constant 0 : i32
    return %c0_i32, %c0_i32_0 : i32, i32
  }
  func.func @transform_6(%arg0: i32) -> (i32, i32) {
    %c0_i32 = arith.constant 0 : i32
    %c0_i32_0 = arith.constant 0 : i32
    %c0_i32_1 = arith.constant 0 : i32
    return %c0_i32, %c0_i32_0 : i32, i32
  }
  func.func @transform_7(%arg0: i32) -> (i32, i32) {
    %c0_i32 = arith.constant 0 : i32
    %c0_i32_0 = arith.constant 0 : i32
    %c0_i32_1 = arith.constant 0 : i32
    return %c0_i32, %c0_i32_0 : i32, i32
  }
  func.func @transform_8(%arg0: i32) -> (i32, i32) {
    %c0_i32 = arith.constant 0 : i32
    %c0_i32_0 = arith.constant 0 : i32
    %c0_i32_1 = arith.constant 0 : i32
    return %c0_i32, %c0_i32_0 : i32, i32
  }
  func.func @transform_9(%arg0: i32) -> (i32, i32) {
    %c0_i32 = arith.constant 0 : i32
    %c0_i32_0 = arith.constant 0 : i32
    %c0_i32_1 = arith.constant 0 : i32
    return %c0_i32, %c0_i32_0 : i32, i32
  }
  func.func @transform_10(%arg0: i32) -> (i32, i32) {
    %c0_i32 = arith.constant 0 : i32
    %c0_i32_0 = arith.constant 0 : i32
    %c0_i32_1 = arith.constant 0 : i32
    return %c0_i32, %c0_i32_0 : i32, i32
  }
  func.func @transform_11(%arg0: i32) -> (i32, i32) {
    %c0_i32 = arith.constant 0 : i32
    %c0_i32_0 = arith.constant 0 : i32
    %c0_i32_1 = arith.constant 0 : i32
    return %c0_i32, %c0_i32_0 : i32, i32
  }
  func.func @transform_12(%arg0: i32) -> (i32, i32) {
    %c0_i32 = arith.constant 0 : i32
    %c0_i32_0 = arith.constant 0 : i32
    %c0_i32_1 = arith.constant 0 : i32
    return %c0_i32, %c0_i32_0 : i32, i32
  }
  func.func @transform_13(%arg0: i32) -> (i32, i32) {
    %c0_i32 = arith.constant 0 : i32
    %c0_i32_0 = arith.constant 0 : i32
    %c0_i32_1 = arith.constant 0 : i32
    return %c0_i32, %c0_i32_0 : i32, i32
  }
  func.func @transform_14(%arg0: i32) -> (i32, i32) {
    %c0_i32 = arith.constant 0 : i32
    %c0_i32_0 = arith.constant 0 : i32
    %c0_i32_1 = arith.constant 0 : i32
    return %c0_i32, %c0_i32_0 : i32, i32
  }
  func.func @transform_15(%arg0: i32) -> (i32, i32) {
    %c0_i32 = arith.constant 0 : i32
    %c0_i32_0 = arith.constant 0 : i32
    %c0_i32_1 = arith.constant 0 : i32
    return %c0_i32, %c0_i32_0 : i32, i32
  }
}

</mosaic_0001>

<llo_original>
// kernel: tpu_custom_call.1
$region0: #{tpu_custom_call.1}
  #allocation0 [shape = 'u32[]', space=smem, size = 0x4, offset = 0x4, fixed_abs, tag = 'smem constant byte address 0x4 - core index']
  #allocation1 [shape = 'u32[144,128]{1,0:T(1,128)}', space=vmem, size = 0x12000, scoped, tag = 'internal scratch']
  #allocation2 [shape = 'f32[16,32]{1,0:T(8,128)}', space=vmem, size = 0x2000, scoped, tag = 'scratch operand']
  %s0 = inlined_call_operand.hbm [shape: f32[16,16], index: 0, kind: input, shape index: {}]
  %s1 = inlined_call_operand.hbm [shape: bf16[16,192], index: 1, kind: input, shape index: {}]
  %s2 = inlined_call_operand.hbm [shape: bf16[32,192], index: 2, kind: input, shape index: {}]
  %s3 = inlined_call_operand.hbm [shape: f32[1,192], index: 3, kind: input, shape index: {}]
  %s4 = inlined_call_operand.hbm [shape: bf16[32,64], index: 4, kind: input, shape index: {}]
  %s5 = inlined_call_operand.vmem [shape: f32[1,64], index: 5, kind: input, shape index: {}]
  %s6 = inlined_call_operand.hbm [shape: bf16[32,32], index: 6, kind: input, shape index: {}]
  %s7 = inlined_call_operand.hbm [shape: f32[1,32], index: 7, kind: input, shape index: {}]
  %s8 = inlined_call_operand.hbm [shape: bf16[32,192], index: 8, kind: input, shape index: {}]
  %s9 = inlined_call_operand.vmem [shape: bf16[32,192], index: 9, kind: input, shape index: {}]
  %s10 = inlined_call_operand.hbm [shape: f32[1,192], index: 10, kind: input, shape index: {}]
  %s11 = inlined_call_operand.hbm [shape: bf16[32,64], index: 11, kind: input, shape index: {}]
  %s12 = inlined_call_operand.hbm [shape: f32[1,64], index: 12, kind: input, shape index: {}]
  %s13 = inlined_call_operand.vmem [shape: bf16[32,32], index: 13, kind: input, shape index: {}]
  %s14 = inlined_call_operand.vmem [shape: f32[1,32], index: 14, kind: input, shape index: {}]
  %s15 = inlined_call_operand.hbm [shape: f32[16,32], index: 15, kind: output, shape index: {}]
  %s16 = sld [smem:[#allocation0]]
  $region114: #{tpu_custom_call.1} parent=0
    _
  %s18 = ssub.s32 1, %s16
  %s19 = scalar_select 0, %s18, %s16
  $region1: #{tpu_custom_call.1} parent=0
    #allocation3 [shape = 'u8[8192]{0}', space=vmem, size = 0x2000, scoped, tag = 'input window, operand 0, single buffered']
    #allocation4 [shape = 's32[1]{0}', space=sflag, size = 0x4, scoped, tag = 'scoped memory for tpu_custom_call.1']
    #allocation5 [shape = 's32[1]{0}', space=sflag, size = 0x4, scoped, tag = 'scoped memory for tpu_custom_call.1']
    #allocation6 [shape = 'u8[8192]{0}', space=vmem, size = 0x2000, scoped, tag = 'input window, operand 1, single buffered']
    #allocation7 [shape = 's32[1]{0}', space=sflag, size = 0x4, scoped, tag = 'scoped memory for tpu_custom_call.1']
    #allocation8 [shape = 'u8[16384]{0}', space=vmem, size = 0x4000, scoped, tag = 'input window, operand 2, single buffered']
    #allocation9 [shape = 'u8[1024]{0}', space=vmem, size = 0x400, scoped, tag = 'input window, operand 3, single buffered']
    #allocation10 [shape = 's32[1]{0}', space=sflag, size = 0x4, scoped, tag = 'scoped memory for tpu_custom_call.1']
    #allocation11 [shape = 'u8[8192]{0}', space=vmem, size = 0x2000, scoped, tag = 'input window, operand 4, single buffered']
    #allocation12 [shape = 'u8[8192]{0}', space=vmem, size = 0x2000, scoped, tag = 'input window, operand 6, single buffered']
    #allocation13 [shape = 's32[1]{0}', space=sflag, size = 0x4, scoped, tag = 'scoped memory for tpu_custom_call.1']
    #allocation14 [shape = 'u8[512]{0}', space=vmem, size = 0x400, scoped, tag = 'input window, operand 7, single buffered']
    #allocation15 [shape = 'u8[16384]{0}', space=vmem, size = 0x4000, scoped, tag = 'input window, operand 8, single buffered']
    #allocation16 [shape = 's32[1]{0}', space=sflag, size = 0x4, scoped, tag = 'scoped memory for tpu_custom_call.1']
    #allocation17 [shape = 'u8[1024]{0}', space=vmem, size = 0x400, scoped, tag = 'input window, operand 10, single buffered']
    #allocation18 [shape = 'u8[8192]{0}', space=vmem, size = 0x2000, scoped, tag = 'input window, operand 11, single buffered']
    #allocation19 [shape = 's32[1]{0}', space=sflag, size = 0x4, scoped, tag = 'scoped memory for tpu_custom_call.1']
    #allocation20 [shape = 'u8[512]{0}', space=vmem, size = 0x400, scoped, tag = 'input window, operand 12, single buffered']
    #allocation21 [shape = 'u8[8192]{0}', space=vmem, size = 0x2000, scoped, tag = 'output window, operand 0, single buffered']
    %20 = vsyncpa [#allocation4], 0
    %21 = vsyncpa [#allocation7], 0
    %22 = vsyncpa [#allocation10], 0
    %23 = vsyncpa [#allocation13], 0
    %24 = vsyncpa [#allocation16], 0
    %25 = vsyncpa [#allocation19], 0
    %26 = vsyncpa [#allocation5], 0
    // Predicated region
    $region2: #{tpu_custom_call.1} parent=1 // pred_check
      _
    $region3: #{tpu_custom_call.1} parent=1 // pred_check_branch
      %28 = sbr.rel (0) target = $region5
    $region4: #{tpu_custom_call.1} parent=1 // pred_region
      %s30 = ssub.s32 256, 256
      %31 = vsyncadd [#allocation4], %s30
      %s32 = sshll.u32 [#allocation3], 4
      %s33 = int_to_ptr.vmem [resolvable:$true] %s32
      %38 = dma.hbm_to_vmem [thread:$0]  %s0, 256, %s33, [#allocation4], 128, 128, 8
    $region5: #{tpu_custom_call.1} parent=1 // pred_fallthru
      _
    // Predicated region
    $region6: #{tpu_custom_call.1} parent=1 // pred_check
      _
    $region7: #{tpu_custom_call.1} parent=1 // pred_check_branch
      %40 = sbr.rel (0) target = $region9
    $region8: #{tpu_custom_call.1} parent=1 // pred_region
      %s42 = ssub.s32 256, 256
      %43 = vsyncadd [#allocation7], %s42
      %s44 = sshll.u32 [#allocation6], 4
      %s45 = int_to_ptr.vmem [resolvable:$true] %s44
      %50 = dma.hbm_to_vmem [thread:$0]  %s1, 256, %s45, [#allocation7], 128, 128, 8
    $region9: #{tpu_custom_call.1} parent=1 // pred_fallthru
      _
    // Predicated region
    $region10: #{tpu_custom_call.1} parent=1 // pred_check
      _
    $region11: #{tpu_custom_call.1} parent=1 // pred_check_branch
      %52 = sbr.rel (0) target = $region13
    $region12: #{tpu_custom_call.1} parent=1 // pred_region
      %s54 = ssub.s32 512, 512
      %55 = vsyncadd [#allocation7], %s54
      %s56 = sshll.u32 [#allocation8], 4
      %s57 = int_to_ptr.vmem [resolvable:$true] %s56
      %62 = dma.hbm_to_vmem [thread:$0]  %s2, 512, %s57, [#allocation7], 128, 128, 8
    $region13: #{tpu_custom_call.1} parent=1 // pred_fallthru
      _
    // Predicated region
    $region14: #{tpu_custom_call.1} parent=1 // pred_check
      _
    $region15: #{tpu_custom_call.1} parent=1 // pred_check_branch
      %64 = sbr.rel (0) target = $region17
    $region16: #{tpu_custom_call.1} parent=1 // pred_region
      %s66 = ssub.s32 32, 32
      %67 = vsyncadd [#allocation10], %s66
      %s69 = sshll.u32 [#allocation9], 4
      %s70 = int_to_ptr.vmem [resolvable:$true] %s69
      %72 = dma.hbm_to_vmem [thread:$0]  %s3, 32, %s70, [#allocation10]
    $region17: #{tpu_custom_call.1} parent=1 // pred_fallthru
      _
    // Predicated region
    $region18: #{tpu_custom_call.1} parent=1 // pred_check
      _
    $region19: #{tpu_custom_call.1} parent=1 // pred_check_branch
      %74 = sbr.rel (0) target = $region21
    $region20: #{tpu_custom_call.1} parent=1 // pred_region
      %s76 = ssub.s32 256, 256
      %77 = vsyncadd [#allocation10], %s76
      %s78 = sshll.u32 [#allocation11], 4
      %s79 = int_to_ptr.vmem [resolvable:$true] %s78
      %84 = dma.hbm_to_vmem [thread:$0]  %s4, 256, %s79, [#allocation10], 64, 64, 4
    $region21: #{tpu_custom_call.1} parent=1 // pred_fallthru
      _
    // Predicated region
    $region22: #{tpu_custom_call.1} parent=1 // pred_check
      _
    $region23: #{tpu_custom_call.1} parent=1 // pred_check_branch
      %86 = sbr.rel (0) target = $region25
    $region24: #{tpu_custom_call.1} parent=1 // pred_region
      _
    $region25: #{tpu_custom_call.1} parent=1 // pred_fallthru
      _
    // Predicated region
    $region26: #{tpu_custom_call.1} parent=1 // pred_check
      _
    $region27: #{tpu_custom_call.1} parent=1 // pred_check_branch
      %88 = sbr.rel (0) target = $region29
    $region28: #{tpu_custom_call.1} parent=1 // pred_region
      %s90 = ssub.s32 256, 256
      %91 = vsyncadd [#allocation13], %s90
      %s92 = sshll.u32 [#allocation12], 4
      %s93 = int_to_ptr.vmem [resolvable:$true] %s92
      %98 = dma.hbm_to_vmem [thread:$0]  %s6, 256, %s93, [#allocation13], 64, 64, 4
    $region29: #{tpu_custom_call.1} parent=1 // pred_fallthru
      _
    // Predicated region
    $region30: #{tpu_custom_call.1} parent=1 // pred_check
      _
    $region31: #{tpu_custom_call.1} parent=1 // pred_check_branch
      %100 = sbr.rel (0) target = $region33
    $region32: #{tpu_custom_call.1} parent=1 // pred_region
      %s102 = ssub.s32 16, 16
      %103 = vsyncadd [#allocation13], %s102
      %s105 = sshll.u32 [#allocation14], 4
      %s106 = int_to_ptr.vmem [resolvable:$true] %s105
      %108 = dma.hbm_to_vmem [thread:$0]  %s7, 16, %s106, [#allocation13]
    $region33: #{tpu_custom_call.1} parent=1 // pred_fallthru
      _
    // Predicated region
    $region34: #{tpu_custom_call.1} parent=1 // pred_check
      _
    $region35: #{tpu_custom_call.1} parent=1 // pred_check_branch
      %110 = sbr.rel (0) target = $region37
    $region36: #{tpu_custom_call.1} parent=1 // pred_region
      %s112 = ssub.s32 512, 512
      %113 = vsyncadd [#allocation16], %s112
      %s114 = sshll.u32 [#allocation15], 4
      %s115 = int_to_ptr.vmem [resolvable:$true] %s114
      %120 = dma.hbm_to_vmem [thread:$0]  %s8, 512, %s115, [#allocation16], 128, 128, 8
    $region37: #{tpu_custom_call.1} parent=1 // pred_fallthru
      _
    // Predicated region
    $region38: #{tpu_custom_call.1} parent=1 // pred_check
      _
    $region39: #{tpu_custom_call.1} parent=1 // pred_check_branch
      %122 = sbr.rel (0) target = $region41
    $region40: #{tpu_custom_call.1} parent=1 // pred_region
      _
    $region41: #{tpu_custom_call.1} parent=1 // pred_fallthru
      _
    // Predicated region
    $region42: #{tpu_custom_call.1} parent=1 // pred_check
      _
    $region43: #{tpu_custom_call.1} parent=1 // pred_check_branch
      %124 = sbr.rel (0) target = $region45
    $region44: #{tpu_custom_call.1} parent=1 // pred_region
      %s126 = ssub.s32 32, 32
      %127 = vsyncadd [#allocation16], %s126
      %s129 = sshll.u32 [#allocation17], 4
      %s130 = int_to_ptr.vmem [resolvable:$true] %s129
      %132 = dma.hbm_to_vmem [thread:$0]  %s10, 32, %s130, [#allocation16]
    $region45: #{tpu_custom_call.1} parent=1 // pred_fallthru
      _
    // Predicated region
    $region46: #{tpu_custom_call.1} parent=1 // pred_check
      _
    $region47: #{tpu_custom_call.1} parent=1 // pred_check_branch
      %134 = sbr.rel (0) target = $region49
    $region48: #{tpu_custom_call.1} parent=1 // pred_region
      %s136 = ssub.s32 256, 256
      %137 = vsyncadd [#allocation19], %s136
      %s138 = sshll.u32 [#allocation18], 4
      %s139 = int_to_ptr.vmem [resolvable:$true] %s138
      %144 = dma.hbm_to_vmem [thread:$0]  %s11, 256, %s139, [#allocation19], 64, 64, 4
    $region49: #{tpu_custom_call.1} parent=1 // pred_fallthru
      _
    // Predicated region
    $region50: #{tpu_custom_call.1} parent=1 // pred_check
      _
    $region51: #{tpu_custom_call.1} parent=1 // pred_check_branch
      %146 = sbr.rel (0) target = $region53
    $region52: #{tpu_custom_call.1} parent=1 // pred_region
      %s148 = ssub.s32 16, 16
      %149 = vsyncadd [#allocation19], %s148
      %s151 = sshll.u32 [#allocation20], 4
      %s152 = int_to_ptr.vmem [resolvable:$true] %s151
      %154 = dma.hbm_to_vmem [thread:$0]  %s12, 16, %s152, [#allocation19]
    $region53: #{tpu_custom_call.1} parent=1 // pred_fallthru
      _
    // Predicated region
    $region54: #{tpu_custom_call.1} parent=1 // pred_check
      _
    $region55: #{tpu_custom_call.1} parent=1 // pred_check_branch
      %156 = sbr.rel (0) target = $region57
    $region56: #{tpu_custom_call.1} parent=1 // pred_region
      _
    $region57: #{tpu_custom_call.1} parent=1 // pred_fallthru
      _
    // Predicated region
    $region58: #{tpu_custom_call.1} parent=1 // pred_check
      _
    $region59: #{tpu_custom_call.1} parent=1 // pred_check_branch
      %158 = sbr.rel (0) target = $region61
    $region60: #{tpu_custom_call.1} parent=1 // pred_region
      _
    $region61: #{tpu_custom_call.1} parent=1 // pred_fallthru
      _
    // Predicated region
    $region62: #{tpu_custom_call.1} parent=1 // pred_check
      _
    $region63: #{tpu_custom_call.1} parent=1 // pred_check_branch
      %160 = sbr.rel (0) target = $region65
    $region64: #{tpu_custom_call.1} parent=1 // pred_region
      %161 = dma.done [#allocation4], 256
    $region65: #{tpu_custom_call.1} parent=1 // pred_fallthru
      _
    // Predicated region
    $region66: #{tpu_custom_call.1} parent=1 // pred_check
      _
    $region67: #{tpu_custom_call.1} parent=1 // pred_check_branch
      %163 = sbr.rel (0) target = $region69
    $region68: #{tpu_custom_call.1} parent=1 // pred_region
      %164 = dma.done [#allocation7], 256
    $region69: #{tpu_custom_call.1} parent=1 // pred_fallthru
      _
    // Predicated region
    $region70: #{tpu_custom_call.1} parent=1 // pred_check
      _
    $region71: #{tpu_custom_call.1} parent=1 // pred_check_branch
      %166 = sbr.rel (0) target = $region73
    $region72: #{tpu_custom_call.1} parent=1 // pred_region
      %167 = dma.done [#allocation7], 512
    $region73: #{tpu_custom_call.1} parent=1 // pred_fallthru
      _
    // Predicated region
    $region74: #{tpu_custom_call.1} parent=1 // pred_check
      _
    $region75: #{tpu_custom_call.1} parent=1 // pred_check_branch
      %169 = sbr.rel (0) target = $region77
    $region76: #{tpu_custom_call.1} parent=1 // pred_region
      %170 = dma.done [#allocation10], 32
    $region77: #{tpu_custom_call.1} parent=1 // pred_fallthru
      _
    // Predicated region
    $region78: #{tpu_custom_call.1} parent=1 // pred_check
      _
    $region79: #{tpu_custom_call.1} parent=1 // pred_check_branch
      %172 = sbr.rel (0) target = $region81
    $region80: #{tpu_custom_call.1} parent=1 // pred_region
      %173 = dma.done [#allocation10], 256
    $region81: #{tpu_custom_call.1} parent=1 // pred_fallthru
      _
    // Predicated region
    $region82: #{tpu_custom_call.1} parent=1 // pred_check
      _
    $region83: #{tpu_custom_call.1} parent=1 // pred_check_branch
      %175 = sbr.rel (0) target = $region85
    $region84: #{tpu_custom_call.1} parent=1 // pred_region
      %176 = dma.done [#allocation13], 256
    $region85: #{tpu_custom_call.1} parent=1 // pred_fallthru
      _
    // Predicated region
    $region86: #{tpu_custom_call.1} parent=1 // pred_check
      _
    $region87: #{tpu_custom_call.1} parent=1 // pred_check_branch
      %178 = sbr.rel (0) target = $region89
    $region88: #{tpu_custom_call.1} parent=1 // pred_region
      %179 = dma.done [#allocation13], 16
    $region89: #{tpu_custom_call.1} parent=1 // pred_fallthru
      _
    // Predicated region
    $region90: #{tpu_custom_call.1} parent=1 // pred_check
      _
    $region91: #{tpu_custom_call.1} parent=1 // pred_check_branch
      %181 = sbr.rel (0) target = $region93
    $region92: #{tpu_custom_call.1} parent=1 // pred_region
      %182 = dma.done [#allocation16], 512
    $region93: #{tpu_custom_call.1} parent=1 // pred_fallthru
      _
    // Predicated region
    $region94: #{tpu_custom_call.1} parent=1 // pred_check
      _
    $region95: #{tpu_custom_call.1} parent=1 // pred_check_branch
      %184 = sbr.rel (0) target = $region97
    $region96: #{tpu_custom_call.1} parent=1 // pred_region
      %185 = dma.done [#allocation16], 32
    $region97: #{tpu_custom_call.1} parent=1 // pred_fallthru
      _
    // Predicated region
    $region98: #{tpu_custom_call.1} parent=1 // pred_check
      _
    $region99: #{tpu_custom_call.1} parent=1 // pred_check_branch
      %187 = sbr.rel (0) target = $region101
    $region100: #{tpu_custom_call.1} parent=1 // pred_region
      %188 = dma.done [#allocation19], 256
    $region101: #{tpu_custom_call.1} parent=1 // pred_fallthru
      _
    // Predicated region
    $region102: #{tpu_custom_call.1} parent=1 // pred_check
      _
    $region103: #{tpu_custom_call.1} parent=1 // pred_check_branch
      %190 = sbr.rel (0) target = $region105
    $region104: #{tpu_custom_call.1} parent=1 // pred_region
      %191 = dma.done [#allocation19], 16
    $region105: #{tpu_custom_call.1} parent=1 // pred_fallthru
      _
    %v193 = vld [vmem:[#allocation3] sm:$0xff]
    %v194 = vld [vmem:[#allocation3 + $0x8] sm:$0xff]
    %v195 = vpack.c.bf16 %v194, %v193
    %v196 = vld [vmem:[#allocation6] sm:$0xff]
    %v197 = vld [vmem:[#allocation6 + $0x8] sm:$0xff]
    %v198 = vld [vmem:[#allocation9] sm:$0x3]
    %v200 = vlaneseq
    %v201 = vshrl.u32 %v200, 7
    %v202 = vsub.s32 0, %v201
    %v203 = vrot.slane %v198, %v202
    %v204 = vlaneseq
    %v205 = vshrl.u32 %v204, 7
    %v206 = vsub.s32 1, %v205
    %v207 = vrot.slane %v198, %v206
    %v212 = vunpack.c.l.b16 %v196
    %v213 = vunpack.c.h.b16 %v196
    %v214 = vunpack.c.l.b16 %v197
    %v215 = vunpack.c.h.b16 %v197
    %v216 = vpack.c.b16 %v214, %v212
    %v217 = vpack.c.b16 %v215, %v213
    %vm220 = vcmask 130048
    %v222 = vsel %vm220, %v195, 0
    %224 = vmatprep.subr.bf16.mxu0 %v217
    %225 = vmatpush1.bf16.msra.mxu0 %v216
    %226 = vmatprep.subr.bf16.mxu0 0
    %227 = vmatpush1.bf16.msra.mxu0 0
    %228 = vmatprep.subr.bf16.mxu0 0
    %229 = vmatpush1.bf16.msra.mxu0 0
    %230 = vmatprep.subr.bf16.mxu0 0
    %231 = vmatpush1.bf16.msra.mxu0 0
    %232 = vmatprep.subr.bf16.mxu0 0
    %233 = vmatpush1.bf16.msra.mxu0 0
    %234 = vmatprep.subr.bf16.mxu0 0
    %235 = vmatpush1.bf16.msra.mxu0 0
    %236 = vmatprep.subr.bf16.mxu0 0
    %237 = vmatpush1.bf16.msra.mxu0 0
    %238 = vmatprep.subr.bf16.mxu0 0
    %239 = vmatpush1.bf16.msra.mxu0 0
    %240 = vmatprep.subr.bf16.mxu0 0
    %241 = vmatpush1.bf16.msra.mxu0 0
    %242 = vmatprep.subr.bf16.mxu0 0
    %243 = vmatpush1.bf16.msra.mxu0 0
    %244 = vmatprep.subr.bf16.mxu0 0
    %245 = vmatpush1.bf16.msra.mxu0 0
    %246 = vmatprep.subr.bf16.mxu0 0
    %247 = vmatpush1.bf16.msra.mxu0 0
    %248 = vmatprep.subr.bf16.mxu0 0
    %249 = vmatpush1.bf16.msra.mxu0 0
    %250 = vmatprep.subr.bf16.mxu0 0
    %251 = vmatpush1.bf16.msra.mxu0 0
    %252 = vmatprep.subr.bf16.mxu0 0
    %253 = vmatpush1.bf16.msra.mxu0 0
    %254 = vmatprep.subr.bf16.mxu0 0
    %255 = vmatpush1.bf16.msra.mxu0 0
    %256 = vmatprep.mubr.bf16.mxu0 0
    %257 = vmatmul.mubr.bf16.gmra.mrb[0].mxu0 %v222
    %v258 = vpop.f32.mrb[0].mxu0
    %v259 = vadd.f32 %v203, %v258
    %v260 = vpop.f32.mrb[0].mxu0
    %v261 = vadd.f32 %v207, %v260
    %v262 = vpop.f32.mrb[0].mxu0
    %v263 = vadd.f32 %v203, %v262
    %v264 = vpop.f32.mrb[0].mxu0
    %v265 = vadd.f32 %v207, %v264
    %266 = vdwg.mxu0
    %v267 = vld [vmem:[#allocation8] sm:$0xff]
    %v268 = vld [vmem:[#allocation8 + $0x8] sm:$0xff]
    %v269 = vld [vmem:[#allocation8 + $0x10] sm:$0xff]
    %v270 = vld [vmem:[#allocation8 + $0x18] sm:$0xff]
    %v271 = vld [vmem:[#allocation11] sm:$0xf]
    %v272 = vld [vmem:[#allocation11 + $0x4] sm:$0xf]
    %v273 = vld [vmem:[#allocation11 + $0x8] sm:$0xf]
    %v274 = vld [vmem:[#allocation11 + $0xc] sm:$0xf]
    %v275 = vld [vmem:[#allocation12] sm:$0xf]
    %v276 = vld [vmem:[#allocation12 + $0x4] sm:$0xf]
    %v277 = vld [vmem:[#allocation12 + $0x8] sm:$0xf]
    %v278 = vld [vmem:[#allocation12 + $0xc] sm:$0xf]
    %v279 = vld [vmem:[%s5] sm:$0x1]
    %v281 = vlaneseq
    %v282 = vshrl.u32 %v281, 7
    %v283 = vsub.s32 0, %v282
    %v284 = vrot.slane %v279, %v283
    %v286 = vld [vmem:[#allocation14] sm:$0x1]
    %v288 = vlaneseq
    %v289 = vshrl.u32 %v288, 7
    %v290 = vsub.s32 0, %v289
    %v291 = vrot.slane %v286, %v290
    %v297 = vunpack.c.l.b16 %v267
    %v298 = vunpack.c.h.b16 %v267
    %v299 = vunpack.c.l.b16 %v268
    %v300 = vunpack.c.h.b16 %v268
    %v301 = vunpack.c.l.b16 %v269
    %v302 = vunpack.c.h.b16 %v269
    %v303 = vunpack.c.l.b16 %v270
    %v304 = vunpack.c.h.b16 %v270
    %v305 = vpack.c.b16 %v299, %v297
    %v306 = vpack.c.b16 %v300, %v298
    %v307 = vpack.c.b16 %v303, %v301
    %v308 = vpack.c.b16 %v304, %v302
    %vm313 = vcmask 261120
    %v315 = vsel %vm313, 0, 0
    %317 = vmatprep.subr.bf16.mxu0 %v306
    %318 = vmatpush1.bf16.msra.mxu0 %v305
    %319 = vmatprep.subr.bf16.mxu0 %v308
    %320 = vmatpush1.bf16.msra.mxu0 %v307
    %321 = vmatprep.subr.bf16.mxu0 0
    %322 = vmatpush1.bf16.msra.mxu0 0
    %323 = vmatprep.subr.bf16.mxu0 0
    %324 = vmatpush1.bf16.msra.mxu0 0
    %325 = vmatprep.subr.bf16.mxu0 0
    %326 = vmatpush1.bf16.msra.mxu0 0
    %327 = vmatprep.subr.bf16.mxu0 0
    %328 = vmatpush1.bf16.msra.mxu0 0
    %329 = vmatprep.subr.bf16.mxu0 0
    %330 = vmatpush1.bf16.msra.mxu0 0
    %331 = vmatprep.subr.bf16.mxu0 0
    %332 = vmatpush1.bf16.msra.mxu0 0
    %333 = vmatprep.subr.bf16.mxu0 0
    %334 = vmatpush1.bf16.msra.mxu0 0
    %335 = vmatprep.subr.bf16.mxu0 0
    %336 = vmatpush1.bf16.msra.mxu0 0
    %337 = vmatprep.subr.bf16.mxu0 0
    %338 = vmatpush1.bf16.msra.mxu0 0
    %339 = vmatprep.subr.bf16.mxu0 0
    %340 = vmatpush1.bf16.msra.mxu0 0
    %341 = vmatprep.subr.bf16.mxu0 0
    %342 = vmatpush1.bf16.msra.mxu0 0
    %343 = vmatprep.subr.bf16.mxu0 0
    %344 = vmatpush1.bf16.msra.mxu0 0
    %345 = vmatprep.subr.bf16.mxu0 0
    %346 = vmatpush1.bf16.msra.mxu0 0
    %347 = vmatprep.subr.bf16.mxu0 0
    %348 = vmatpush1.bf16.msra.mxu0 0
    %349 = vmatprep.mubr.bf16.mxu0 0
    %350 = vmatmul.mubr.bf16.gmra.mrb[0].mxu0 %v315
    %v351 = vpop.f32.mrb[0].mxu0
    %v352 = vadd.f32 0.0, %v351
    %v353 = vpop.f32.mrb[0].mxu0
    %v354 = vadd.f32 0.0, %v353
    %v355 = vpop.f32.mrb[0].mxu0
    %v356 = vpop.f32.mrb[0].mxu0
    %357 = vdwg.mxu0
    %v358 = vadd.f32 %v259, %v352
    %v359 = vadd.f32 %v261, %v354
    %v360 = vxor.u32 %v358, 2147483648
    %v361 = vxor.u32 %v359, 2147483648
    %v362 = vmul.f32 %v360, 1.442695
    %v363 = vpow.pop %v362
    %v364 = vmul.f32 %v361, 1.442695
    %v365 = vpow.pop %v364
    %v366 = vadd.f32 %v363, 1.0
    %v367 = vadd.f32 %v365, 1.0
    %v368 = vrcp.pop %v366
    %v369 = vmul.f32 1.0, %v368
    %v370 = vrcp.pop %v367
    %v371 = vmul.f32 1.0, %v370
    %v372 = vtanh.pop %v359
    %374 = vrot.lane.b32.xlu0 %v372, 96
    %v375 = vpop.permute.xlu0 %374
    %v377 = vmul.f32 %v369, %v375
    %v378 = vpack.c.bf16 %v377, %v377
    %v383 = vunpack.c.l.b16 %v271
    %v384 = vunpack.c.l.b16 %v272
    %v385 = vunpack.c.l.b16 %v273
    %v386 = vunpack.c.l.b16 %v274
    %v387 = vpack.c.b16 %v384, %v383
    %v388 = vpack.c.b16 %v386, %v385
    %v392 = vsel %vm313, %v378, 0
    %394 = vmatprep.subr.bf16.mxu0 0
    %395 = vmatpush1.bf16.msra.mxu0 %v387
    %396 = vmatprep.subr.bf16.mxu0 0
    %397 = vmatpush1.bf16.msra.mxu0 %v388
    %398 = vmatprep.subr.bf16.mxu0 0
    %399 = vmatpush1.bf16.msra.mxu0 0
    %400 = vmatprep.subr.bf16.mxu0 0
    %401 = vmatpush1.bf16.msra.mxu0 0
    %402 = vmatprep.subr.bf16.mxu0 0
    %403 = vmatpush1.bf16.msra.mxu0 0
    %404 = vmatprep.subr.bf16.mxu0 0
    %405 = vmatpush1.bf16.msra.mxu0 0
    %406 = vmatprep.subr.bf16.mxu0 0
    %407 = vmatpush1.bf16.msra.mxu0 0
    %408 = vmatprep.subr.bf16.mxu0 0
    %409 = vmatpush1.bf16.msra.mxu0 0
    %410 = vmatprep.subr.bf16.mxu0 0
    %411 = vmatpush1.bf16.msra.mxu0 0
    %412 = vmatprep.subr.bf16.mxu0 0
    %413 = vmatpush1.bf16.msra.mxu0 0
    %414 = vmatprep.subr.bf16.mxu0 0
    %415 = vmatpush1.bf16.msra.mxu0 0
    %416 = vmatprep.subr.bf16.mxu0 0
    %417 = vmatpush1.bf16.msra.mxu0 0
    %418 = vmatprep.subr.bf16.mxu0 0
    %419 = vmatpush1.bf16.msra.mxu0 0
    %420 = vmatprep.subr.bf16.mxu0 0
    %421 = vmatpush1.bf16.msra.mxu0 0
    %422 = vmatprep.subr.bf16.mxu0 0
    %423 = vmatpush1.bf16.msra.mxu0 0
    %424 = vmatprep.subr.bf16.mxu0 0
    %425 = vmatpush1.bf16.msra.mxu0 0
    %426 = vmatprep.mubr.bf16.mxu0 0
    %427 = vmatmul.mubr.bf16.gmra.mrb[0].mxu0 %v392
    %v428 = vpop.f32.mrb[0].mxu0
    %v429 = vadd.f32 %v284, %v428
    %v430 = vpop.f32.mrb[0].mxu0
    %v431 = vpop.f32.mrb[0].mxu0
    %v432 = vpop.f32.mrb[0].mxu0
    %433 = vdwg.mxu0
    %v434 = vtanh.pop %v429
    %v435 = vmax.f32 %v434, 0.1
    %v436 = vmin.f32 %v435, 0.9
    %v437 = vmax.f32 %v434, -0.9
    %v438 = vmin.f32 %v437, 0.9
    %v439 = vmul.f32 %v436, 5.0
    %441 = vrot.lane.b32.xlu0 %v438, 96
    %v442 = vpop.permute.xlu0 %441
    %v444 = vmul.f32 %v439, %v442
    %v445 = vand.u32 2147483647, %v444
    %vm446 = vcmp.le.f32.partialorder %v445, 0.7853982
    %vm447 = vcmp.lt.s32.totalorder %v444, 0
    %v448 = vand.u32 %v444, 2139095040
    %v449 = vshrl.u32 %v448, 23
    %v450 = vsub.s32 %v449, 127
    %v451 = vand.u32 2147483647, %v444
    %v452 = vand.u32 %v451, 8388607
    %v453 = vor.u32 %v452, 8388608
    %v454 = vsub.s32 0, %v453
    %v455 = vadd.s32 %v450, 1
    %vm456 = vcmp.gt.s32.totalorder %v455, 0
    %v457 = vsel %vm456, %v455, 0
    %v458 = vshrl.u32 %v457, 5
    %v459 = vand.u32 %v457, 31
    %v460 = vsub.s32 32, %v459
    %v461 = vshrl.u32 683565275, %v460
    %v462 = vshll.u32 683565275, %v459
    %v463 = vshrl.u32 2475754826, %v460
    %v464 = vor.u32 %v462, %v463
    %v465 = vshll.u32 2475754826, %v459
    %v466 = vshrl.u32 2131351028, %v460
    %v467 = vor.u32 %v465, %v466
    %v468 = vshll.u32 2131351028, %v459
    %v469 = vshrl.u32 2102212464, %v460
    %v470 = vor.u32 %v468, %v469
    %v471 = vshll.u32 2102212464, %v459
    %v472 = vshrl.u32 920167782, %v460
    %v473 = vor.u32 %v471, %v472
    %v474 = vshll.u32 920167782, %v459
    %v475 = vshrl.u32 1326507024, %v460
    %v476 = vor.u32 %v474, %v475
    %vm477 = vcmp.lt.s32.totalorder %v458, 1
    %vm478 = vcmp.lt.s32.totalorder %v458, 2
    %vm479 = vcmp.lt.s32.totalorder %v458, 3
    %vm480 = vcmp.lt.s32.totalorder %v458, 4
    %v481 = vsel %vm477, %v461, %v464
    %v482 = vsel %vm480, %v470, 2102212464
    %v483 = vsel %vm479, %v467, %v482
    %v484 = vsel %vm478, %v481, %v483
    %v485 = vsel %vm477, %v464, %v467
    %v486 = vsel %vm480, %v473, 920167782
    %v487 = vsel %vm479, %v470, %v486
    %v488 = vsel %vm478, %v485, %v487
    %v489 = vsel %vm477, %v467, %v470
    %v490 = vsel %vm480, %v476, 1326507024
    %v491 = vsel %vm479, %v473, %v490
    %v492 = vsel %vm478, %v489, %v491
    %v493 = vshll.u32 %v453, 8
    %v494 = vmul.u32.u64.compose %v493, %v492
    %v495 = vextract.low.u32 %v494
    %v496 = vextract.high.u32 %v494
    %v497 = vmul.u32.u64.compose %v493, %v488
    %v498 = vextract.low.u32 %v497
    %v499 = vextract.high.u32 %v497
    %v500 = vmul.u32 %v493, %v484
    %v501 = vadd.s32 %v496, %v498
    %vm502 = vc.u32 %v496, %v498
    %v503 = vadd.s32 %v499, 1
    %v504 = vsel %vm502, %v503, %v499
    %v505 = vadd.s32 %v500, %v504
    %v506 = vadd.s32 %v505, 536870912
    %v507 = vshrl.u32 %v506, 30
    %v508 = vshll.u32 %v507, 30
    %v509 = vsub.s32 %v505, %v508
    %vm510 = vcmp.lt.s32.totalorder %v509, 0
    %v511 = vsub.s32 0, %v509
    %v512 = vsel %vm510, %v511, %v509
    %v513 = vclz %v512
    %v514 = vsub.s32 %v513, 2
    %vm515 = vcmp.gt.s32.totalorder 0, %v514
    %v516 = vsel %vm515, 0, %v514
    %v517 = vsub.s32 32, %v516
    %v518 = vshll.u32 %v509, %v516
    %v519 = vshrl.u32 %v501, %v517
    %v520 = vor.u32 %v518, %v519
    %v521 = vsub.s32 4294967266, %v516
    %v522 = vadd.s32 %v521, 127
    %v523 = vshll.u32 %v522, 23
    %v524 = vor.u32 4788187, %v523
    %v525 = vand.u32 2147483647, %v524
    %v527 = vcvt.s32.f32 %v520
    %v528 = vmul.f32 %v527, %v525
    %v529 = vxor.u32 %v528, 2147483648
    %v530 = vsel %vm447, %v529, %v528
    %v531 = vsub.s32 4, %v507
    %v532 = vsel %vm447, %v531, %v507
    %v533 = vsel %vm446, %v444, %v530
    %v534 = vsel %vm446, 0, %v532
    %v535 = vcosq.f32.pop %v533
    %v536 = vsinq.f32.pop %v533
    %vm537 = vweird.f32 %v444
    %v538 = vand.u32 %v534, 3
    %vm539 = vcmp.lt.s32.totalorder %v538, 2
    %vm540 = vcmp.eq.s32.totalorder %v538, 0
    %v541 = vxor.u32 %v536, 2147483648
    %v542 = vsel %vm540, %v535, %v541
    %vm543 = vcmp.eq.s32.totalorder %v538, 2
    %v544 = vxor.u32 %v535, 2147483648
    %v545 = vsel %vm543, %v544, %v536
    %v546 = vsel %vm539, %v542, %v545
    %v547 = vsel %vm537, nan, %v546
    %v548 = vadd.f32 %v436, 1e-08
    %v549 = vrcp.pop %v548
    %v550 = vsub.f32 0.0, %v549
    %v551 = vmul.f32 %v438, %v438
    %553 = vrot.lane.b32.xlu0 %v551, 96
    %v554 = vpop.permute.xlu0 %553
    %v556 = vmul.f32 %v550, %v554
    %v557 = vmul.f32 %v556, 1.442695
    %v558 = vpow.pop %v557
    %v559 = vmul.f32 %v547, %v558
    %v560 = vand.u32 2147483647, %v559
    %562 = vrot.lane.b32.xlu0 %v369, 96
    %v563 = vpop.permute.xlu0 %562
    %v565 = vmul.f32 %v369, %v563
    %567 = vrot.lane.b32.xlu0 %v371, 64
    %v568 = vpop.permute.xlu0 %567
    %v570 = vmul.f32 %v565, %v568
    %v571 = vmul.f32 %v570, 0.0
    %v572 = vmul.f32 %v377, %v560
    %574 = vrot.lane.b32.xlu0 %v572, 64
    %v575 = vpop.permute.xlu0 %574
    %v577 = vadd.f32 %v571, %v575
    %v578 = vmax.f32 %v577, -10.0
    %v579 = vmin.f32 %v578, 10.0
    %v580 = vpack.c.bf16 %v579, %v579
    %582 = vrot.lane.b32.xlu0 %v580, 64
    %v583 = vpop.permute.xlu0 %582
    %v588 = vunpack.c.l.b16 %v275
    %v589 = vunpack.c.l.b16 %v276
    %v590 = vunpack.c.l.b16 %v277
    %v591 = vunpack.c.l.b16 %v278
    %v592 = vpack.c.b16 %v589, %v588
    %v593 = vpack.c.b16 %v591, %v590
    %v597 = vsel %vm313, %v583, 0
    %599 = vmatprep.subr.bf16.mxu0 0
    %600 = vmatpush1.bf16.msra.mxu0 %v592
    %601 = vmatprep.subr.bf16.mxu0 0
    %602 = vmatpush1.bf16.msra.mxu0 %v593
    %603 = vmatprep.subr.bf16.mxu0 0
    %604 = vmatpush1.bf16.msra.mxu0 0
    %605 = vmatprep.subr.bf16.mxu0 0
    %606 = vmatpush1.bf16.msra.mxu0 0
    %607 = vmatprep.subr.bf16.mxu0 0
    %608 = vmatpush1.bf16.msra.mxu0 0
    %609 = vmatprep.subr.bf16.mxu0 0
    %610 = vmatpush1.bf16.msra.mxu0 0
    %611 = vmatprep.subr.bf16.mxu0 0
    %612 = vmatpush1.bf16.msra.mxu0 0
    %613 = vmatprep.subr.bf16.mxu0 0
    %614 = vmatpush1.bf16.msra.mxu0 0
    %615 = vmatprep.subr.bf16.mxu0 0
    %616 = vmatpush1.bf16.msra.mxu0 0
    %617 = vmatprep.subr.bf16.mxu0 0
    %618 = vmatpush1.bf16.msra.mxu0 0
    %619 = vmatprep.subr.bf16.mxu0 0
    %620 = vmatpush1.bf16.msra.mxu0 0
    %621 = vmatprep.subr.bf16.mxu0 0
    %622 = vmatpush1.bf16.msra.mxu0 0
    %623 = vmatprep.subr.bf16.mxu0 0
    %624 = vmatpush1.bf16.msra.mxu0 0
    %625 = vmatprep.subr.bf16.mxu0 0
    %626 = vmatpush1.bf16.msra.mxu0 0
    %627 = vmatprep.subr.bf16.mxu0 0
    %628 = vmatpush1.bf16.msra.mxu0 0
    %629 = vmatprep.subr.bf16.mxu0 0
    %630 = vmatpush1.bf16.msra.mxu0 0
    %631 = vmatprep.mubr.bf16.mxu0 0
    %632 = vmatmul.mubr.bf16.gmra.mrb[0].mxu0 %v597
    %v633 = vpop.f32.mrb[0].mxu0
    %v634 = vadd.f32 %v291, %v633
    %v635 = vpop.f32.mrb[0].mxu0
    %v636 = vpop.f32.mrb[0].mxu0
    %v637 = vpop.f32.mrb[0].mxu0
    %638 = vdwg.mxu0
    %v639 = vtanh.pop %v634
    %641 = vrot.lane.b32.xlu0 %v639, 32
    %v642 = vpop.permute.xlu0 %641
    %v644 = vmul.f32 %v369, %v642
    %646 = vrot.lane.b32.xlu0 %v644, 96
    %v647 = vpop.permute.xlu0 %646
    %vm649 = vcmask 254976
    %650 = vst.msk [vmem:[#allocation2] sm:$0x3] %vm649, %v647
    %v651 = vpack.c.bf16 %v644, %v644
    %653 = vrot.lane.b32.xlu0 %v651, 96
    %v654 = vpop.permute.xlu0 %653
    %v656 = vsel %vm313, %v654, 0
    %658 = vmatprep.subr.bf16.mxu0 %v306
    %659 = vmatpush1.bf16.msra.mxu0 %v305
    %660 = vmatprep.subr.bf16.mxu0 %v308
    %661 = vmatpush1.bf16.msra.mxu0 %v307
    %662 = vmatprep.subr.bf16.mxu0 0
    %663 = vmatpush1.bf16.msra.mxu0 0
    %664 = vmatprep.subr.bf16.mxu0 0
    %665 = vmatpush1.bf16.msra.mxu0 0
    %666 = vmatprep.subr.bf16.mxu0 0
    %667 = vmatpush1.bf16.msra.mxu0 0
    %668 = vmatprep.subr.bf16.mxu0 0
    %669 = vmatpush1.bf16.msra.mxu0 0
    %670 = vmatprep.subr.bf16.mxu0 0
    %671 = vmatpush1.bf16.msra.mxu0 0
    %672 = vmatprep.subr.bf16.mxu0 0
    %673 = vmatpush1.bf16.msra.mxu0 0
    %674 = vmatprep.subr.bf16.mxu0 0
    %675 = vmatpush1.bf16.msra.mxu0 0
    %676 = vmatprep.subr.bf16.mxu0 0
    %677 = vmatpush1.bf16.msra.mxu0 0
    %678 = vmatprep.subr.bf16.mxu0 0
    %679 = vmatpush1.bf16.msra.mxu0 0
    %680 = vmatprep.subr.bf16.mxu0 0
    %681 = vmatpush1.bf16.msra.mxu0 0
    %682 = vmatprep.subr.bf16.mxu0 0
    %683 = vmatpush1.bf16.msra.mxu0 0
    %684 = vmatprep.subr.bf16.mxu0 0
    %685 = vmatpush1.bf16.msra.mxu0 0
    %686 = vmatprep.subr.bf16.mxu0 0
    %687 = vmatpush1.bf16.msra.mxu0 0
    %688 = vmatprep.subr.bf16.mxu0 0
    %689 = vmatpush1.bf16.msra.mxu0 0
    %690 = vmatprep.mubr.bf16.mxu0 0
    %691 = vmatmul.mubr.bf16.gmra.mrb[0].mxu0 %v656
    %v692 = vpop.f32.mrb[0].mxu0
    %v693 = vadd.f32 0.0, %v692
    %v694 = vpop.f32.mrb[0].mxu0
    %v695 = vadd.f32 0.0, %v694
    %v696 = vpop.f32.mrb[0].mxu0
    %v697 = vpop.f32.mrb[0].mxu0
    %698 = vdwg.mxu0
    %v701 = vrot.slane %v693, 6
    %v702 = vrot.slane %v695, 6
    %v705 = vadd.f32 %v259, %v701
    %v706 = vadd.f32 %v261, %v702
    %v707 = vxor.u32 %v705, 2147483648
    %v708 = vxor.u32 %v706, 2147483648
    %v709 = vmul.f32 %v707, 1.442695
    %v710 = vpow.pop %v709
    %v711 = vmul.f32 %v708, 1.442695
    %v712 = vpow.pop %v711
    %v713 = vadd.f32 %v710, 1.0
    %v714 = vadd.f32 %v712, 1.0
    %v715 = vrcp.pop %v713
    %v716 = vmul.f32 1.0, %v715
    %v717 = vrcp.pop %v714
    %v718 = vmul.f32 1.0, %v717
    %v719 = vtanh.pop %v706
    %721 = vrot.lane.b32.xlu0 %v719, 96
    %v722 = vpop.permute.xlu0 %721
    %v724 = vmul.f32 %v716, %v722
    %v725 = vpack.c.bf16 %v724, %v724
    %v727 = vrot.slane %v725, 1
    %v729 = vsel %vm313, %v727, 0
    %731 = vmatprep.subr.bf16.mxu0 0
    %732 = vmatpush1.bf16.msra.mxu0 %v387
    %733 = vmatprep.subr.bf16.mxu0 0
    %734 = vmatpush1.bf16.msra.mxu0 %v388
    %735 = vmatprep.subr.bf16.mxu0 0
    %736 = vmatpush1.bf16.msra.mxu0 0
    %737 = vmatprep.subr.bf16.mxu0 0
    %738 = vmatpush1.bf16.msra.mxu0 0
    %739 = vmatprep.subr.bf16.mxu0 0
    %740 = vmatpush1.bf16.msra.mxu0 0
    %741 = vmatprep.subr.bf16.mxu0 0
    %742 = vmatpush1.bf16.msra.mxu0 0
    %743 = vmatprep.subr.bf16.mxu0 0
    %744 = vmatpush1.bf16.msra.mxu0 0
    %745 = vmatprep.subr.bf16.mxu0 0
    %746 = vmatpush1.bf16.msra.mxu0 0
    %747 = vmatprep.subr.bf16.mxu0 0
    %748 = vmatpush1.bf16.msra.mxu0 0
    %749 = vmatprep.subr.bf16.mxu0 0
    %750 = vmatpush1.bf16.msra.mxu0 0
    %751 = vmatprep.subr.bf16.mxu0 0
    %752 = vmatpush1.bf16.msra.mxu0 0
    %753 = vmatprep.subr.bf16.mxu0 0
    %754 = vmatpush1.bf16.msra.mxu0 0
    %755 = vmatprep.subr.bf16.mxu0 0
    %756 = vmatpush1.bf16.msra.mxu0 0
    %757 = vmatprep.subr.bf16.mxu0 0
    %758 = vmatpush1.bf16.msra.mxu0 0
    %759 = vmatprep.subr.bf16.mxu0 0
    %760 = vmatpush1.bf16.msra.mxu0 0
    %761 = vmatprep.subr.bf16.mxu0 0
    %762 = vmatpush1.bf16.msra.mxu0 0
    %763 = vmatprep.mubr.bf16.mxu0 0
    %764 = vmatmul.mubr.bf16.gmra.mrb[0].mxu0 %v729
    %v765 = vpop.f32.mrb[0].mxu0
    %v766 = vadd.f32 %v284, %v765
    %v767 = vpop.f32.mrb[0].mxu0
    %v768 = vpop.f32.mrb[0].mxu0
    %v769 = vpop.f32.mrb[0].mxu0
    %770 = vdwg.mxu0
    %v771 = vtanh.pop %v766
    %v772 = vmax.f32 %v771, 0.1
    %v773 = vmin.f32 %v772, 0.9
    %v774 = vmax.f32 %v771, -0.9
    %v775 = vmin.f32 %v774, 0.9
    %v776 = vmul.f32 %v773, 5.0
    %778 = vrot.lane.b32.xlu0 %v775, 96
    %v779 = vpop.permute.xlu0 %778
    %v781 = vmul.f32 %v776, %v779
    %v782 = vand.u32 2147483647, %v781
    %vm783 = vcmp.le.f32.partialorder %v782, 0.7853982
    %vm784 = vcmp.lt.s32.totalorder %v781, 0
    %v785 = vand.u32 %v781, 2139095040
    %v786 = vshrl.u32 %v785, 23
    %v787 = vsub.s32 %v786, 127
    %v788 = vand.u32 2147483647, %v781
    %v789 = vand.u32 %v788, 8388607
    %v790 = vor.u32 %v789, 8388608
    %v791 = vsub.s32 0, %v790
    %v792 = vadd.s32 %v787, 1
    %vm793 = vcmp.gt.s32.totalorder %v792, 0
    %v794 = vsel %vm793, %v792, 0
    %v795 = vshrl.u32 %v794, 5
    %v796 = vand.u32 %v794, 31
    %v797 = vsub.s32 32, %v796
    %v798 = vshrl.u32 683565275, %v797
    %v799 = vshll.u32 683565275, %v796
    %v800 = vshrl.u32 2475754826, %v797
    %v801 = vor.u32 %v799, %v800
    %v802 = vshll.u32 2475754826, %v796
    %v803 = vshrl.u32 2131351028, %v797
    %v804 = vor.u32 %v802, %v803
    %v805 = vshll.u32 2131351028, %v796
    %v806 = vshrl.u32 2102212464, %v797
    %v807 = vor.u32 %v805, %v806
    %v808 = vshll.u32 2102212464, %v796
    %v809 = vshrl.u32 920167782, %v797
    %v810 = vor.u32 %v808, %v809
    %v811 = vshll.u32 920167782, %v796
    %v812 = vshrl.u32 1326507024, %v797
    %v813 = vor.u32 %v811, %v812
    %vm814 = vcmp.lt.s32.totalorder %v795, 1
    %vm815 = vcmp.lt.s32.totalorder %v795, 2
    %vm816 = vcmp.lt.s32.totalorder %v795, 3
    %vm817 = vcmp.lt.s32.totalorder %v795, 4
    %v818 = vsel %vm814, %v798, %v801
    %v819 = vsel %vm817, %v807, 2102212464
    %v820 = vsel %vm816, %v804, %v819
    %v821 = vsel %vm815, %v818, %v820
    %v822 = vsel %vm814, %v801, %v804
    %v823 = vsel %vm817, %v810, 920167782
    %v824 = vsel %vm816, %v807, %v823
    %v825 = vsel %vm815, %v822, %v824
    %v826 = vsel %vm814, %v804, %v807
    %v827 = vsel %vm817, %v813, 1326507024
    %v828 = vsel %vm816, %v810, %v827
    %v829 = vsel %vm815, %v826, %v828
    %v830 = vshll.u32 %v790, 8
    %v831 = vmul.u32.u64.compose %v830, %v829
    %v832 = vextract.low.u32 %v831
    %v833 = vextract.high.u32 %v831
    %v834 = vmul.u32.u64.compose %v830, %v825
    %v835 = vextract.low.u32 %v834
    %v836 = vextract.high.u32 %v834
    %v837 = vmul.u32 %v830, %v821
    %v838 = vadd.s32 %v833, %v835
    %vm839 = vc.u32 %v833, %v835
    %v840 = vadd.s32 %v836, 1
    %v841 = vsel %vm839, %v840, %v836
    %v842 = vadd.s32 %v837, %v841
    %v843 = vadd.s32 %v842, 536870912
    %v844 = vshrl.u32 %v843, 30
    %v845 = vshll.u32 %v844, 30
    %v846 = vsub.s32 %v842, %v845
    %vm847 = vcmp.lt.s32.totalorder %v846, 0
    %v848 = vsub.s32 0, %v846
    %v849 = vsel %vm847, %v848, %v846
    %v850 = vclz %v849
    %v851 = vsub.s32 %v850, 2
    %vm852 = vcmp.gt.s32.totalorder 0, %v851
    %v853 = vsel %vm852, 0, %v851
    %v854 = vsub.s32 32, %v853
    %v855 = vshll.u32 %v846, %v853
    %v856 = vshrl.u32 %v838, %v854
    %v857 = vor.u32 %v855, %v856
    %v858 = vsub.s32 4294967266, %v853
    %v859 = vadd.s32 %v858, 127
    %v860 = vshll.u32 %v859, 23
    %v861 = vor.u32 4788187, %v860
    %v862 = vand.u32 2147483647, %v861
    %v864 = vcvt.s32.f32 %v857
    %v865 = vmul.f32 %v864, %v862
    %v866 = vxor.u32 %v865, 2147483648
    %v867 = vsel %vm784, %v866, %v865
    %v868 = vsub.s32 4, %v844
    %v869 = vsel %vm784, %v868, %v844
    %v870 = vsel %vm783, %v781, %v867
    %v871 = vsel %vm783, 0, %v869
    %v872 = vcosq.f32.pop %v870
    %v873 = vsinq.f32.pop %v870
    %vm874 = vweird.f32 %v781
    %v875 = vand.u32 %v871, 3
    %vm876 = vcmp.lt.s32.totalorder %v875, 2
    %vm877 = vcmp.eq.s32.totalorder %v875, 0
    %v878 = vxor.u32 %v873, 2147483648
    %v879 = vsel %vm877, %v872, %v878
    %vm880 = vcmp.eq.s32.totalorder %v875, 2
    %v881 = vxor.u32 %v872, 2147483648
    %v882 = vsel %vm880, %v881, %v873
    %v883 = vsel %vm876, %v879, %v882
    %v884 = vsel %vm874, nan, %v883
    %v885 = vadd.f32 %v773, 1e-08
    %v886 = vrcp.pop %v885
    %v887 = vsub.f32 0.0, %v886
    %v888 = vmul.f32 %v775, %v775
    %890 = vrot.lane.b32.xlu0 %v888, 96
    %v891 = vpop.permute.xlu0 %890
    %v893 = vmul.f32 %v887, %v891
    %v894 = vmul.f32 %v893, 1.442695
    %v895 = vpow.pop %v894
    %v896 = vmul.f32 %v884, %v895
    %v897 = vand.u32 2147483647, %v896
    %899 = vrot.lane.b32.xlu0 %v716, 96
    %v900 = vpop.permute.xlu0 %899
    %v902 = vmul.f32 %v716, %v900
    %904 = vrot.lane.b32.xlu0 %v718, 64
    %v905 = vpop.permute.xlu0 %904
    %v907 = vmul.f32 %v902, %v905
    %v909 = vrot.slane %v579, 6
    %v911 = vmul.f32 %v907, %v909
    %v913 = vrot.slane %v897, 6
    %v915 = vmul.f32 %v724, %v913
    %917 = vrot.lane.b32.xlu0 %v915, 64
    %v918 = vpop.permute.xlu0 %917
    %v920 = vadd.f32 %v911, %v918
    %v921 = vmax.f32 %v920, -10.0
    %v922 = vmin.f32 %v921, 10.0
    %v923 = vpack.c.bf16 %v922, %v922
    %v925 = vrot.slane %v923, 1
    %926 = vrot.lane.b32.xlu0 %v925, 64
    %v927 = vpop.permute.xlu0 %926
    %v929 = vsel %vm313, %v927, 0
    %931 = vmatprep.subr.bf16.mxu0 0
    %932 = vmatpush1.bf16.msra.mxu0 %v592
    %933 = vmatprep.subr.bf16.mxu0 0
    %934 = vmatpush1.bf16.msra.mxu0 %v593
    %935 = vmatprep.subr.bf16.mxu0 0
    %936 = vmatpush1.bf16.msra.mxu0 0
    %937 = vmatprep.subr.bf16.mxu0 0
    %938 = vmatpush1.bf16.msra.mxu0 0
    %939 = vmatprep.subr.bf16.mxu0 0
    %940 = vmatpush1.bf16.msra.mxu0 0
    %941 = vmatprep.subr.bf16.mxu0 0
    %942 = vmatpush1.bf16.msra.mxu0 0
    %943 = vmatprep.subr.bf16.mxu0 0
    %944 = vmatpush1.bf16.msra.mxu0 0
    %945 = vmatprep.subr.bf16.mxu0 0
    %946 = vmatpush1.bf16.msra.mxu0 0
    %947 = vmatprep.subr.bf16.mxu0 0
    %948 = vmatpush1.bf16.msra.mxu0 0
    %949 = vmatprep.subr.bf16.mxu0 0
    %950 = vmatpush1.bf16.msra.mxu0 0
    %951 = vmatprep.subr.bf16.mxu0 0
    %952 = vmatpush1.bf16.msra.mxu0 0
    %953 = vmatprep.subr.bf16.mxu0 0
    %954 = vmatpush1.bf16.msra.mxu0 0
    %955 = vmatprep.subr.bf16.mxu0 0
    %956 = vmatpush1.bf16.msra.mxu0 0
    %957 = vmatprep.subr.bf16.mxu0 0
    %958 = vmatpush1.bf16.msra.mxu0 0
    %959 = vmatprep.subr.bf16.mxu0 0
    %960 = vmatpush1.bf16.msra.mxu0 0
    %961 = vmatprep.subr.bf16.mxu0 0
    %962 = vmatpush1.bf16.msra.mxu0 0
    %963 = vmatprep.mubr.bf16.mxu0 0
    %964 = vmatmul.mubr.bf16.gmra.mrb[0].mxu0 %v929
    %v965 = vpop.f32.mrb[0].mxu0
    %v966 = vadd.f32 %v291, %v965
    %v967 = vpop.f32.mrb[0].mxu0
    %v968 = vpop.f32.mrb[0].mxu0
    %v969 = vpop.f32.mrb[0].mxu0
    %970 = vdwg.mxu0
    %v971 = vtanh.pop %v966
    %v973 = vrot.slane %v971, 6
    %974 = vrot.lane.b32.xlu0 %v973, 32
    %v975 = vpop.permute.xlu0 %974
    %v977 = vmul.f32 %v716, %v975
    %979 = vrot.lane.b32.xlu0 %v977, 96
    %v980 = vpop.permute.xlu0 %979
    %vm982 = vcmask 257026
    %983 = vst.msk [vmem:[#allocation2] sm:$0xc] %vm982, %v980
    %v984 = vpack.c.bf16 %v977, %v977
    %v986 = vrot.slane %v984, 1
    %987 = vrot.lane.b32.xlu0 %v986, 96
    %v988 = vpop.permute.xlu0 %987
    %v990 = vsel %vm313, %v988, 0
    %992 = vmatprep.subr.bf16.mxu0 %v306
    %993 = vmatpush1.bf16.msra.mxu0 %v305
    %994 = vmatprep.subr.bf16.mxu0 %v308
    %995 = vmatpush1.bf16.msra.mxu0 %v307
    %996 = vmatprep.subr.bf16.mxu0 0
    %997 = vmatpush1.bf16.msra.mxu0 0
    %998 = vmatprep.subr.bf16.mxu0 0
    %999 = vmatpush1.bf16.msra.mxu0 0
    %1000 = vmatprep.subr.bf16.mxu0 0
    %1001 = vmatpush1.bf16.msra.mxu0 0
    %1002 = vmatprep.subr.bf16.mxu0 0
    %1003 = vmatpush1.bf16.msra.mxu0 0
    %1004 = vmatprep.subr.bf16.mxu0 0
    %1005 = vmatpush1.bf16.msra.mxu0 0
    %1006 = vmatprep.subr.bf16.mxu0 0
    %1007 = vmatpush1.bf16.msra.mxu0 0
    %1008 = vmatprep.subr.bf16.mxu0 0
    %1009 = vmatpush1.bf16.msra.mxu0 0
    %1010 = vmatprep.subr.bf16.mxu0 0
    %1011 = vmatpush1.bf16.msra.mxu0 0
    %1012 = vmatprep.subr.bf16.mxu0 0
    %1013 = vmatpush1.bf16.msra.mxu0 0
    %1014 = vmatprep.subr.bf16.mxu0 0
    %1015 = vmatpush1.bf16.msra.mxu0 0
    %1016 = vmatprep.subr.bf16.mxu0 0
    %1017 = vmatpush1.bf16.msra.mxu0 0
    %1018 = vmatprep.subr.bf16.mxu0 0
    %1019 = vmatpush1.bf16.msra.mxu0 0
    %1020 = vmatprep.subr.bf16.mxu0 0
    %1021 = vmatpush1.bf16.msra.mxu0 0
    %1022 = vmatprep.subr.bf16.mxu0 0
    %1023 = vmatpush1.bf16.msra.mxu0 0
    %1024 = vmatprep.mubr.bf16.mxu0 0
    %1025 = vmatmul.mubr.bf16.gmra.mrb[0].mxu0 %v990
    %v1026 = vpop.f32.mrb[0].mxu0
    %v1027 = vadd.f32 0.0, %v1026
    %v1028 = vpop.f32.mrb[0].mxu0
    %v1029 = vadd.f32 0.0, %v1028
    %v1030 = vpop.f32.mrb[0].mxu0
    %v1031 = vpop.f32.mrb[0].mxu0
    %1032 = vdwg.mxu0
    %v1035 = vrot.slane %v1027, 4
    %v1036 = vrot.slane %v1029, 4
    %v1039 = vadd.f32 %v259, %v1035
    %v1040 = vadd.f32 %v261, %v1036
    %v1041 = vxor.u32 %v1039, 2147483648
    %v1042 = vxor.u32 %v1040, 2147483648
    %v1043 = vmul.f32 %v1041, 1.442695
    %v1044 = vpow.pop %v1043
    %v1045 = vmul.f32 %v1042, 1.442695
    %v1046 = vpow.pop %v1045
    %v1047 = vadd.f32 %v1044, 1.0
    %v1048 = vadd.f32 %v1046, 1.0
    %v1049 = vrcp.pop %v1047
    %v1050 = vmul.f32 1.0, %v1049
    %v1051 = vrcp.pop %v1048
    %v1052 = vmul.f32 1.0, %v1051
    %v1053 = vtanh.pop %v1040
    %1055 = vrot.lane.b32.xlu0 %v1053, 96
    %v1056 = vpop.permute.xlu0 %1055
    %v1058 = vmul.f32 %v1050, %v1056
    %v1059 = vpack.c.bf16 %v1058, %v1058
    %v1061 = vrot.slane %v1059, 2
    %v1063 = vsel %vm313, %v1061, 0
    %1065 = vmatprep.subr.bf16.mxu0 0
    %1066 = vmatpush1.bf16.msra.mxu0 %v387
    %1067 = vmatprep.subr.bf16.mxu0 0
    %1068 = vmatpush1.bf16.msra.mxu0 %v388
    %1069 = vmatprep.subr.bf16.mxu0 0
    %1070 = vmatpush1.bf16.msra.mxu0 0
    %1071 = vmatprep.subr.bf16.mxu0 0
    %1072 = vmatpush1.bf16.msra.mxu0 0
    %1073 = vmatprep.subr.bf16.mxu0 0
    %1074 = vmatpush1.bf16.msra.mxu0 0
    %1075 = vmatprep.subr.bf16.mxu0 0
    %1076 = vmatpush1.bf16.msra.mxu0 0
    %1077 = vmatprep.subr.bf16.mxu0 0
    %1078 = vmatpush1.bf16.msra.mxu0 0
    %1079 = vmatprep.subr.bf16.mxu0 0
    %1080 = vmatpush1.bf16.msra.mxu0 0
    %1081 = vmatprep.subr.bf16.mxu0 0
    %1082 = vmatpush1.bf16.msra.mxu0 0
    %1083 = vmatprep.subr.bf16.mxu0 0
    %1084 = vmatpush1.bf16.msra.mxu0 0
    %1085 = vmatprep.subr.bf16.mxu0 0
    %1086 = vmatpush1.bf16.msra.mxu0 0
    %1087 = vmatprep.subr.bf16.mxu0 0
    %1088 = vmatpush1.bf16.msra.mxu0 0
    %1089 = vmatprep.subr.bf16.mxu0 0
    %1090 = vmatpush1.bf16.msra.mxu0 0
    %1091 = vmatprep.subr.bf16.mxu0 0
    %1092 = vmatpush1.bf16.msra.mxu0 0
    %1093 = vmatprep.subr.bf16.mxu0 0
    %1094 = vmatpush1.bf16.msra.mxu0 0
    %1095 = vmatprep.subr.bf16.mxu0 0
    %1096 = vmatpush1.bf16.msra.mxu0 0
    %1097 = vmatprep.mubr.bf16.mxu0 0
    %1098 = vmatmul.mubr.bf16.gmra.mrb[0].mxu0 %v1063
    %v1099 = vpop.f32.mrb[0].mxu0
    %v1100 = vadd.f32 %v284, %v1099
    %v1101 = vpop.f32.mrb[0].mxu0
    %v1102 = vpop.f32.mrb[0].mxu0
    %v1103 = vpop.f32.mrb[0].mxu0
    %1104 = vdwg.mxu0
    %v1105 = vtanh.pop %v1100
    %v1106 = vmax.f32 %v1105, 0.1
    %v1107 = vmin.f32 %v1106, 0.9
    %v1108 = vmax.f32 %v1105, -0.9
    %v1109 = vmin.f32 %v1108, 0.9
    %v1110 = vmul.f32 %v1107, 5.0
    %1112 = vrot.lane.b32.xlu0 %v1109, 96
    %v1113 = vpop.permute.xlu0 %1112
    %v1115 = vmul.f32 %v1110, %v1113
    %v1116 = vand.u32 2147483647, %v1115
    %vm1117 = vcmp.le.f32.partialorder %v1116, 0.7853982
    %vm1118 = vcmp.lt.s32.totalorder %v1115, 0
    %v1119 = vand.u32 %v1115, 2139095040
    %v1120 = vshrl.u32 %v1119, 23
    %v1121 = vsub.s32 %v1120, 127
    %v1122 = vand.u32 2147483647, %v1115
    %v1123 = vand.u32 %v1122, 8388607
    %v1124 = vor.u32 %v1123, 8388608
    %v1125 = vsub.s32 0, %v1124
    %v1126 = vadd.s32 %v1121, 1
    %vm1127 = vcmp.gt.s32.totalorder %v1126, 0
    %v1128 = vsel %vm1127, %v1126, 0
    %v1129 = vshrl.u32 %v1128, 5
    %v1130 = vand.u32 %v1128, 31
    %v1131 = vsub.s32 32, %v1130
    %v1132 = vshrl.u32 683565275, %v1131
    %v1133 = vshll.u32 683565275, %v1130
    %v1134 = vshrl.u32 2475754826, %v1131
    %v1135 = vor.u32 %v1133, %v1134
    %v1136 = vshll.u32 2475754826, %v1130
    %v1137 = vshrl.u32 2131351028, %v1131
    %v1138 = vor.u32 %v1136, %v1137
    %v1139 = vshll.u32 2131351028, %v1130
    %v1140 = vshrl.u32 2102212464, %v1131
    %v1141 = vor.u32 %v1139, %v1140
    %v1142 = vshll.u32 2102212464, %v1130
    %v1143 = vshrl.u32 920167782, %v1131
    %v1144 = vor.u32 %v1142, %v1143
    %v1145 = vshll.u32 920167782, %v1130
    %v1146 = vshrl.u32 1326507024, %v1131
    %v1147 = vor.u32 %v1145, %v1146
    %vm1148 = vcmp.lt.s32.totalorder %v1129, 1
    %vm1149 = vcmp.lt.s32.totalorder %v1129, 2
    %vm1150 = vcmp.lt.s32.totalorder %v1129, 3
    %vm1151 = vcmp.lt.s32.totalorder %v1129, 4
    %v1152 = vsel %vm1148, %v1132, %v1135
    %v1153 = vsel %vm1151, %v1141, 2102212464
    %v1154 = vsel %vm1150, %v1138, %v1153
    %v1155 = vsel %vm1149, %v1152, %v1154
    %v1156 = vsel %vm1148, %v1135, %v1138
    %v1157 = vsel %vm1151, %v1144, 920167782
    %v1158 = vsel %vm1150, %v1141, %v1157
    %v1159 = vsel %vm1149, %v1156, %v1158
    %v1160 = vsel %vm1148, %v1138, %v1141
    %v1161 = vsel %vm1151, %v1147, 1326507024
    %v1162 = vsel %vm1150, %v1144, %v1161
    %v1163 = vsel %vm1149, %v1160, %v1162
    %v1164 = vshll.u32 %v1124, 8
    %v1165 = vmul.u32.u64.compose %v1164, %v1163
    %v1166 = vextract.low.u32 %v1165
    %v1167 = vextract.high.u32 %v1165
    %v1168 = vmul.u32.u64.compose %v1164, %v1159
    %v1169 = vextract.low.u32 %v1168
    %v1170 = vextract.high.u32 %v1168
    %v1171 = vmul.u32 %v1164, %v1155
    %v1172 = vadd.s32 %v1167, %v1169
    %vm1173 = vc.u32 %v1167, %v1169
    %v1174 = vadd.s32 %v1170, 1
    %v1175 = vsel %vm1173, %v1174, %v1170
    %v1176 = vadd.s32 %v1171, %v1175
    %v1177 = vadd.s32 %v1176, 536870912
    %v1178 = vshrl.u32 %v1177, 30
    %v1179 = vshll.u32 %v1178, 30
    %v1180 = vsub.s32 %v1176, %v1179
    %vm1181 = vcmp.lt.s32.totalorder %v1180, 0
    %v1182 = vsub.s32 0, %v1180
    %v1183 = vsel %vm1181, %v1182, %v1180
    %v1184 = vclz %v1183
    %v1185 = vsub.s32 %v1184, 2
    %vm1186 = vcmp.gt.s32.totalorder 0, %v1185
    %v1187 = vsel %vm1186, 0, %v1185
    %v1188 = vsub.s32 32, %v1187
    %v1189 = vshll.u32 %v1180, %v1187
    %v1190 = vshrl.u32 %v1172, %v1188
    %v1191 = vor.u32 %v1189, %v1190
    %v1192 = vsub.s32 4294967266, %v1187
    %v1193 = vadd.s32 %v1192, 127
    %v1194 = vshll.u32 %v1193, 23
    %v1195 = vor.u32 4788187, %v1194
    %v1196 = vand.u32 2147483647, %v1195
    %v1198 = vcvt.s32.f32 %v1191
    %v1199 = vmul.f32 %v1198, %v1196
    %v1200 = vxor.u32 %v1199, 2147483648
    %v1201 = vsel %vm1118, %v1200, %v1199
    %v1202 = vsub.s32 4, %v1178
    %v1203 = vsel %vm1118, %v1202, %v1178
    %v1204 = vsel %vm1117, %v1115, %v1201
    %v1205 = vsel %vm1117, 0, %v1203
    %v1206 = vcosq.f32.pop %v1204
    %v1207 = vsinq.f32.pop %v1204
    %vm1208 = vweird.f32 %v1115
    %v1209 = vand.u32 %v1205, 3
    %vm1210 = vcmp.lt.s32.totalorder %v1209, 2
    %vm1211 = vcmp.eq.s32.totalorder %v1209, 0
    %v1212 = vxor.u32 %v1207, 2147483648
    %v1213 = vsel %vm1211, %v1206, %v1212
    %vm1214 = vcmp.eq.s32.totalorder %v1209, 2
    %v1215 = vxor.u32 %v1206, 2147483648
    %v1216 = vsel %vm1214, %v1215, %v1207
    %v1217 = vsel %vm1210, %v1213, %v1216
    %v1218 = vsel %vm1208, nan, %v1217
    %v1219 = vadd.f32 %v1107, 1e-08
    %v1220 = vrcp.pop %v1219
    %v1221 = vsub.f32 0.0, %v1220
    %v1222 = vmul.f32 %v1109, %v1109
    %1224 = vrot.lane.b32.xlu0 %v1222, 96
    %v1225 = vpop.permute.xlu0 %1224
    %v1227 = vmul.f32 %v1221, %v1225
    %v1228 = vmul.f32 %v1227, 1.442695
    %v1229 = vpow.pop %v1228
    %v1230 = vmul.f32 %v1218, %v1229
    %v1231 = vand.u32 2147483647, %v1230
    %1233 = vrot.lane.b32.xlu0 %v1050, 96
    %v1234 = vpop.permute.xlu0 %1233
    %v1236 = vmul.f32 %v1050, %v1234
    %1238 = vrot.lane.b32.xlu0 %v1052, 64
    %v1239 = vpop.permute.xlu0 %1238
    %v1241 = vmul.f32 %v1236, %v1239
    %v1243 = vrot.slane %v922, 6
    %v1245 = vmul.f32 %v1241, %v1243
    %v1247 = vrot.slane %v1231, 4
    %v1249 = vmul.f32 %v1058, %v1247
    %1251 = vrot.lane.b32.xlu0 %v1249, 64
    %v1252 = vpop.permute.xlu0 %1251
    %v1254 = vadd.f32 %v1245, %v1252
    %v1255 = vmax.f32 %v1254, -10.0
    %v1256 = vmin.f32 %v1255, 10.0
    %v1257 = vpack.c.bf16 %v1256, %v1256
    %v1259 = vrot.slane %v1257, 2
    %1260 = vrot.lane.b32.xlu0 %v1259, 64
    %v1261 = vpop.permute.xlu0 %1260
    %v1263 = vsel %vm313, %v1261, 0
    %1265 = vmatprep.subr.bf16.mxu0 0
    %1266 = vmatpush1.bf16.msra.mxu0 %v592
    %1267 = vmatprep.subr.bf16.mxu0 0
    %1268 = vmatpush1.bf16.msra.mxu0 %v593
    %1269 = vmatprep.subr.bf16.mxu0 0
    %1270 = vmatpush1.bf16.msra.mxu0 0
    %1271 = vmatprep.subr.bf16.mxu0 0
    %1272 = vmatpush1.bf16.msra.mxu0 0
    %1273 = vmatprep.subr.bf16.mxu0 0
    %1274 = vmatpush1.bf16.msra.mxu0 0
    %1275 = vmatprep.subr.bf16.mxu0 0
    %1276 = vmatpush1.bf16.msra.mxu0 0
    %1277 = vmatprep.subr.bf16.mxu0 0
    %1278 = vmatpush1.bf16.msra.mxu0 0
    %1279 = vmatprep.subr.bf16.mxu0 0
    %1280 = vmatpush1.bf16.msra.mxu0 0
    %1281 = vmatprep.subr.bf16.mxu0 0
    %1282 = vmatpush1.bf16.msra.mxu0 0
    %1283 = vmatprep.subr.bf16.mxu0 0
    %1284 = vmatpush1.bf16.msra.mxu0 0
    %1285 = vmatprep.subr.bf16.mxu0 0
    %1286 = vmatpush1.bf16.msra.mxu0 0
    %1287 = vmatprep.subr.bf16.mxu0 0
    %1288 = vmatpush1.bf16.msra.mxu0 0
    %1289 = vmatprep.subr.bf16.mxu0 0
    %1290 = vmatpush1.bf16.msra.mxu0 0
    %1291 = vmatprep.subr.bf16.mxu0 0
    %1292 = vmatpush1.bf16.msra.mxu0 0
    %1293 = vmatprep.subr.bf16.mxu0 0
    %1294 = vmatpush1.bf16.msra.mxu0 0
    %1295 = vmatprep.subr.bf16.mxu0 0
    %1296 = vmatpush1.bf16.msra.mxu0 0
    %1297 = vmatprep.mubr.bf16.mxu0 0
    %1298 = vmatmul.mubr.bf16.gmra.mrb[0].mxu0 %v1263
    %v1299 = vpop.f32.mrb[0].mxu0
    %v1300 = vadd.f32 %v291, %v1299
    %v1301 = vpop.f32.mrb[0].mxu0
    %v1302 = vpop.f32.mrb[0].mxu0
    %v1303 = vpop.f32.mrb[0].mxu0
    %1304 = vdwg.mxu0
    %v1305 = vtanh.pop %v1300
    %v1307 = vrot.slane %v1305, 4
    %1308 = vrot.lane.b32.xlu0 %v1307, 32
    %v1309 = vpop.permute.xlu0 %1308
    %v1311 = vmul.f32 %v1050, %v1309
    %1313 = vrot.lane.b32.xlu0 %v1311, 96
    %v1314 = vpop.permute.xlu0 %1313
    %vm1316 = vcmask 259076
    %1317 = vst.msk [vmem:[#allocation2] sm:$0x30] %vm1316, %v1314
    %v1318 = vpack.c.bf16 %v1311, %v1311
    %v1320 = vrot.slane %v1318, 2
    %1321 = vrot.lane.b32.xlu0 %v1320, 96
    %v1322 = vpop.permute.xlu0 %1321
    %v1324 = vsel %vm313, %v1322, 0
    %1326 = vmatprep.subr.bf16.mxu0 %v306
    %1327 = vmatpush1.bf16.msra.mxu0 %v305
    %1328 = vmatprep.subr.bf16.mxu0 %v308
    %1329 = vmatpush1.bf16.msra.mxu0 %v307
    %1330 = vmatprep.subr.bf16.mxu0 0
    %1331 = vmatpush1.bf16.msra.mxu0 0
    %1332 = vmatprep.subr.bf16.mxu0 0
    %1333 = vmatpush1.bf16.msra.mxu0 0
    %1334 = vmatprep.subr.bf16.mxu0 0
    %1335 = vmatpush1.bf16.msra.mxu0 0
    %1336 = vmatprep.subr.bf16.mxu0 0
    %1337 = vmatpush1.bf16.msra.mxu0 0
    %1338 = vmatprep.subr.bf16.mxu0 0
    %1339 = vmatpush1.bf16.msra.mxu0 0
    %1340 = vmatprep.subr.bf16.mxu0 0
    %1341 = vmatpush1.bf16.msra.mxu0 0
    %1342 = vmatprep.subr.bf16.mxu0 0
    %1343 = vmatpush1.bf16.msra.mxu0 0
    %1344 = vmatprep.subr.bf16.mxu0 0
    %1345 = vmatpush1.bf16.msra.mxu0 0
    %1346 = vmatprep.subr.bf16.mxu0 0
    %1347 = vmatpush1.bf16.msra.mxu0 0
    %1348 = vmatprep.subr.bf16.mxu0 0
    %1349 = vmatpush1.bf16.msra.mxu0 0
    %1350 = vmatprep.subr.bf16.mxu0 0
    %1351 = vmatpush1.bf16.msra.mxu0 0
    %1352 = vmatprep.subr.bf16.mxu0 0
    %1353 = vmatpush1.bf16.msra.mxu0 0
    %1354 = vmatprep.subr.bf16.mxu0 0
    %1355 = vmatpush1.bf16.msra.mxu0 0
    %1356 = vmatprep.subr.bf16.mxu0 0
    %1357 = vmatpush1.bf16.msra.mxu0 0
    %1358 = vmatprep.mubr.bf16.mxu0 0
    %1359 = vmatmul.mubr.bf16.gmra.mrb[0].mxu0 %v1324
    %v1360 = vpop.f32.mrb[0].mxu0
    %v1361 = vadd.f32 0.0, %v1360
    %v1362 = vpop.f32.mrb[0].mxu0
    %v1363 = vadd.f32 0.0, %v1362
    %v1364 = vpop.f32.mrb[0].mxu0
    %v1365 = vpop.f32.mrb[0].mxu0
    %1366 = vdwg.mxu0
    %v1369 = vrot.slane %v1361, 2
    %v1370 = vrot.slane %v1363, 2
    %v1373 = vadd.f32 %v259, %v1369
    %v1374 = vadd.f32 %v261, %v1370
    %v1375 = vxor.u32 %v1373, 2147483648
    %v1376 = vxor.u32 %v1374, 2147483648
    %v1377 = vmul.f32 %v1375, 1.442695
    %v1378 = vpow.pop %v1377
    %v1379 = vmul.f32 %v1376, 1.442695
    %v1380 = vpow.pop %v1379
    %v1381 = vadd.f32 %v1378, 1.0
    %v1382 = vadd.f32 %v1380, 1.0
    %v1383 = vrcp.pop %v1381
    %v1384 = vmul.f32 1.0, %v1383
    %v1385 = vrcp.pop %v1382
    %v1386 = vmul.f32 1.0, %v1385
    %v1387 = vtanh.pop %v1374
    %1389 = vrot.lane.b32.xlu0 %v1387, 96
    %v1390 = vpop.permute.xlu0 %1389
    %v1392 = vmul.f32 %v1384, %v1390
    %v1393 = vpack.c.bf16 %v1392, %v1392
    %v1395 = vrot.slane %v1393, 3
    %v1397 = vsel %vm313, %v1395, 0
    %1399 = vmatprep.subr.bf16.mxu0 0
    %1400 = vmatpush1.bf16.msra.mxu0 %v387
    %1401 = vmatprep.subr.bf16.mxu0 0
    %1402 = vmatpush1.bf16.msra.mxu0 %v388
    %1403 = vmatprep.subr.bf16.mxu0 0
    %1404 = vmatpush1.bf16.msra.mxu0 0
    %1405 = vmatprep.subr.bf16.mxu0 0
    %1406 = vmatpush1.bf16.msra.mxu0 0
    %1407 = vmatprep.subr.bf16.mxu0 0
    %1408 = vmatpush1.bf16.msra.mxu0 0
    %1409 = vmatprep.subr.bf16.mxu0 0
    %1410 = vmatpush1.bf16.msra.mxu0 0
    %1411 = vmatprep.subr.bf16.mxu0 0
    %1412 = vmatpush1.bf16.msra.mxu0 0
    %1413 = vmatprep.subr.bf16.mxu0 0
    %1414 = vmatpush1.bf16.msra.mxu0 0
    %1415 = vmatprep.subr.bf16.mxu0 0
    %1416 = vmatpush1.bf16.msra.mxu0 0
    %1417 = vmatprep.subr.bf16.mxu0 0
    %1418 = vmatpush1.bf16.msra.mxu0 0
    %1419 = vmatprep.subr.bf16.mxu0 0
    %1420 = vmatpush1.bf16.msra.mxu0 0
    %1421 = vmatprep.subr.bf16.mxu0 0
    %1422 = vmatpush1.bf16.msra.mxu0 0
    %1423 = vmatprep.subr.bf16.mxu0 0
    %1424 = vmatpush1.bf16.msra.mxu0 0
    %1425 = vmatprep.subr.bf16.mxu0 0
    %1426 = vmatpush1.bf16.msra.mxu0 0
    %1427 = vmatprep.subr.bf16.mxu0 0
    %1428 = vmatpush1.bf16.msra.mxu0 0
    %1429 = vmatprep.subr.bf16.mxu0 0
    %1430 = vmatpush1.bf16.msra.mxu0 0
    %1431 = vmatprep.mubr.bf16.mxu0 0
    %1432 = vmatmul.mubr.bf16.gmra.mrb[0].mxu0 %v1397
    %v1433 = vpop.f32.mrb[0].mxu0
    %v1434 = vadd.f32 %v284, %v1433
    %v1435 = vpop.f32.mrb[0].mxu0
    %v1436 = vpop.f32.mrb[0].mxu0
    %v1437 = vpop.f32.mrb[0].mxu0
    %1438 = vdwg.mxu0
    %v1439 = vtanh.pop %v1434
    %v1440 = vmax.f32 %v1439, 0.1
    %v1441 = vmin.f32 %v1440, 0.9
    %v1442 = vmax.f32 %v1439, -0.9
    %v1443 = vmin.f32 %v1442, 0.9
    %v1444 = vmul.f32 %v1441, 5.0
    %1446 = vrot.lane.b32.xlu0 %v1443, 96
    %v1447 = vpop.permute.xlu0 %1446
    %v1449 = vmul.f32 %v1444, %v1447
    %v1450 = vand.u32 2147483647, %v1449
    %vm1451 = vcmp.le.f32.partialorder %v1450, 0.7853982
    %vm1452 = vcmp.lt.s32.totalorder %v1449, 0
    %v1453 = vand.u32 %v1449, 2139095040
    %v1454 = vshrl.u32 %v1453, 23
    %v1455 = vsub.s32 %v1454, 127
    %v1456 = vand.u32 2147483647, %v1449
    %v1457 = vand.u32 %v1456, 8388607
    %v1458 = vor.u32 %v1457, 8388608
    %v1459 = vsub.s32 0, %v1458
    %v1460 = vadd.s32 %v1455, 1
    %vm1461 = vcmp.gt.s32.totalorder %v1460, 0
    %v1462 = vsel %vm1461, %v1460, 0
    %v1463 = vshrl.u32 %v1462, 5
    %v1464 = vand.u32 %v1462, 31
    %v1465 = vsub.s32 32, %v1464
    %v1466 = vshrl.u32 683565275, %v1465
    %v1467 = vshll.u32 683565275, %v1464
    %v1468 = vshrl.u32 2475754826, %v1465
    %v1469 = vor.u32 %v1467, %v1468
    %v1470 = vshll.u32 2475754826, %v1464
    %v1471 = vshrl.u32 2131351028, %v1465
    %v1472 = vor.u32 %v1470, %v1471
    %v1473 = vshll.u32 2131351028, %v1464
    %v1474 = vshrl.u32 2102212464, %v1465
    %v1475 = vor.u32 %v1473, %v1474
    %v1476 = vshll.u32 2102212464, %v1464
    %v1477 = vshrl.u32 920167782, %v1465
    %v1478 = vor.u32 %v1476, %v1477
    %v1479 = vshll.u32 920167782, %v1464
    %v1480 = vshrl.u32 1326507024, %v1465
    %v1481 = vor.u32 %v1479, %v1480
    %vm1482 = vcmp.lt.s32.totalorder %v1463, 1
    %vm1483 = vcmp.lt.s32.totalorder %v1463, 2
    %vm1484 = vcmp.lt.s32.totalorder %v1463, 3
    %vm1485 = vcmp.lt.s32.totalorder %v1463, 4
    %v1486 = vsel %vm1482, %v1466, %v1469
    %v1487 = vsel %vm1485, %v1475, 2102212464
    %v1488 = vsel %vm1484, %v1472, %v1487
    %v1489 = vsel %vm1483, %v1486, %v1488
    %v1490 = vsel %vm1482, %v1469, %v1472
    %v1491 = vsel %vm1485, %v1478, 920167782
    %v1492 = vsel %vm1484, %v1475, %v1491
    %v1493 = vsel %vm1483, %v1490, %v1492
    %v1494 = vsel %vm1482, %v1472, %v1475
    %v1495 = vsel %vm1485, %v1481, 1326507024
    %v1496 = vsel %vm1484, %v1478, %v1495
    %v1497 = vsel %vm1483, %v1494, %v1496
    %v1498 = vshll.u32 %v1458, 8
    %v1499 = vmul.u32.u64.compose %v1498, %v1497
    %v1500 = vextract.low.u32 %v1499
    %v1501 = vextract.high.u32 %v1499
    %v1502 = vmul.u32.u64.compose %v1498, %v1493
    %v1503 = vextract.low.u32 %v1502
    %v1504 = vextract.high.u32 %v1502
    %v1505 = vmul.u32 %v1498, %v1489
    %v1506 = vadd.s32 %v1501, %v1503
    %vm1507 = vc.u32 %v1501, %v1503
    %v1508 = vadd.s32 %v1504, 1
    %v1509 = vsel %vm1507, %v1508, %v1504
    %v1510 = vadd.s32 %v1505, %v1509
    %v1511 = vadd.s32 %v1510, 536870912
    %v1512 = vshrl.u32 %v1511, 30
    %v1513 = vshll.u32 %v1512, 30
    %v1514 = vsub.s32 %v1510, %v1513
    %vm1515 = vcmp.lt.s32.totalorder %v1514, 0
    %v1516 = vsub.s32 0, %v1514
    %v1517 = vsel %vm1515, %v1516, %v1514
    %v1518 = vclz %v1517
    %v1519 = vsub.s32 %v1518, 2
    %vm1520 = vcmp.gt.s32.totalorder 0, %v1519
    %v1521 = vsel %vm1520, 0, %v1519
    %v1522 = vsub.s32 32, %v1521
    %v1523 = vshll.u32 %v1514, %v1521
    %v1524 = vshrl.u32 %v1506, %v1522
    %v1525 = vor.u32 %v1523, %v1524
    %v1526 = vsub.s32 4294967266, %v1521
    %v1527 = vadd.s32 %v1526, 127
    %v1528 = vshll.u32 %v1527, 23
    %v1529 = vor.u32 4788187, %v1528
    %v1530 = vand.u32 2147483647, %v1529
    %v1532 = vcvt.s32.f32 %v1525
    %v1533 = vmul.f32 %v1532, %v1530
    %v1534 = vxor.u32 %v1533, 2147483648
    %v1535 = vsel %vm1452, %v1534, %v1533
    %v1536 = vsub.s32 4, %v1512
    %v1537 = vsel %vm1452, %v1536, %v1512
    %v1538 = vsel %vm1451, %v1449, %v1535
    %v1539 = vsel %vm1451, 0, %v1537
    %v1540 = vcosq.f32.pop %v1538
    %v1541 = vsinq.f32.pop %v1538
    %vm1542 = vweird.f32 %v1449
    %v1543 = vand.u32 %v1539, 3
    %vm1544 = vcmp.lt.s32.totalorder %v1543, 2
    %vm1545 = vcmp.eq.s32.totalorder %v1543, 0
    %v1546 = vxor.u32 %v1541, 2147483648
    %v1547 = vsel %vm1545, %v1540, %v1546
    %vm1548 = vcmp.eq.s32.totalorder %v1543, 2
    %v1549 = vxor.u32 %v1540, 2147483648
    %v1550 = vsel %vm1548, %v1549, %v1541
    %v1551 = vsel %vm1544, %v1547, %v1550
    %v1552 = vsel %vm1542, nan, %v1551
    %v1553 = vadd.f32 %v1441, 1e-08
    %v1554 = vrcp.pop %v1553
    %v1555 = vsub.f32 0.0, %v1554
    %v1556 = vmul.f32 %v1443, %v1443
    %1558 = vrot.lane.b32.xlu0 %v1556, 96
    %v1559 = vpop.permute.xlu0 %1558
    %v1561 = vmul.f32 %v1555, %v1559
    %v1562 = vmul.f32 %v1561, 1.442695
    %v1563 = vpow.pop %v1562
    %v1564 = vmul.f32 %v1552, %v1563
    %v1565 = vand.u32 2147483647, %v1564
    %1567 = vrot.lane.b32.xlu0 %v1384, 96
    %v1568 = vpop.permute.xlu0 %1567
    %v1570 = vmul.f32 %v1384, %v1568
    %1572 = vrot.lane.b32.xlu0 %v1386, 64
    %v1573 = vpop.permute.xlu0 %1572
    %v1575 = vmul.f32 %v1570, %v1573
    %v1577 = vrot.slane %v1256, 6
    %v1579 = vmul.f32 %v1575, %v1577
    %v1581 = vrot.slane %v1565, 2
    %v1583 = vmul.f32 %v1392, %v1581
    %1585 = vrot.lane.b32.xlu0 %v1583, 64
    %v1586 = vpop.permute.xlu0 %1585
    %v1588 = vadd.f32 %v1579, %v1586
    %v1589 = vmax.f32 %v1588, -10.0
    %v1590 = vmin.f32 %v1589, 10.0
    %v1591 = vpack.c.bf16 %v1590, %v1590
    %v1593 = vrot.slane %v1591, 3
    %1594 = vrot.lane.b32.xlu0 %v1593, 64
    %v1595 = vpop.permute.xlu0 %1594
    %v1597 = vsel %vm313, %v1595, 0
    %1599 = vmatprep.subr.bf16.mxu0 0
    %1600 = vmatpush1.bf16.msra.mxu0 %v592
    %1601 = vmatprep.subr.bf16.mxu0 0
    %1602 = vmatpush1.bf16.msra.mxu0 %v593
    %1603 = vmatprep.subr.bf16.mxu0 0
    %1604 = vmatpush1.bf16.msra.mxu0 0
    %1605 = vmatprep.subr.bf16.mxu0 0
    %1606 = vmatpush1.bf16.msra.mxu0 0
    %1607 = vmatprep.subr.bf16.mxu0 0
    %1608 = vmatpush1.bf16.msra.mxu0 0
    %1609 = vmatprep.subr.bf16.mxu0 0
    %1610 = vmatpush1.bf16.msra.mxu0 0
    %1611 = vmatprep.subr.bf16.mxu0 0
    %1612 = vmatpush1.bf16.msra.mxu0 0
    %1613 = vmatprep.subr.bf16.mxu0 0
    %1614 = vmatpush1.bf16.msra.mxu0 0
    %1615 = vmatprep.subr.bf16.mxu0 0
    %1616 = vmatpush1.bf16.msra.mxu0 0
    %1617 = vmatprep.subr.bf16.mxu0 0
    %1618 = vmatpush1.bf16.msra.mxu0 0
    %1619 = vmatprep.subr.bf16.mxu0 0
    %1620 = vmatpush1.bf16.msra.mxu0 0
    %1621 = vmatprep.subr.bf16.mxu0 0
    %1622 = vmatpush1.bf16.msra.mxu0 0
    %1623 = vmatprep.subr.bf16.mxu0 0
    %1624 = vmatpush1.bf16.msra.mxu0 0
    %1625 = vmatprep.subr.bf16.mxu0 0
    %1626 = vmatpush1.bf16.msra.mxu0 0
    %1627 = vmatprep.subr.bf16.mxu0 0
    %1628 = vmatpush1.bf16.msra.mxu0 0
    %1629 = vmatprep.subr.bf16.mxu0 0
    %1630 = vmatpush1.bf16.msra.mxu0 0
    %1631 = vmatprep.mubr.bf16.mxu0 0
    %1632 = vmatmul.mubr.bf16.gmra.mrb[0].mxu0 %v1597
    %v1633 = vpop.f32.mrb[0].mxu0
    %v1634 = vadd.f32 %v291, %v1633
    %v1635 = vpop.f32.mrb[0].mxu0
    %v1636 = vpop.f32.mrb[0].mxu0
    %v1637 = vpop.f32.mrb[0].mxu0
    %1638 = vdwg.mxu0
    %v1639 = vtanh.pop %v1634
    %v1641 = vrot.slane %v1639, 2
    %1642 = vrot.lane.b32.xlu0 %v1641, 32
    %v1643 = vpop.permute.xlu0 %1642
    %v1645 = vmul.f32 %v1384, %v1643
    %1647 = vrot.lane.b32.xlu0 %v1645, 96
    %v1648 = vpop.permute.xlu0 %1647
    %vm1650 = vcmask 261126
    %1651 = vst.msk [vmem:[#allocation2] sm:$0xc0] %vm1650, %v1648
    %v1652 = vpack.c.bf16 %v1645, %v1645
    %v1654 = vrot.slane %v1652, 3
    %1655 = vrot.lane.b32.xlu0 %v1654, 96
    %v1656 = vpop.permute.xlu0 %1655
    %v1658 = vsel %vm313, %v1656, 0
    %1660 = vmatprep.subr.bf16.mxu0 %v306
    %1661 = vmatpush1.bf16.msra.mxu0 %v305
    %1662 = vmatprep.subr.bf16.mxu0 %v308
    %1663 = vmatpush1.bf16.msra.mxu0 %v307
    %1664 = vmatprep.subr.bf16.mxu0 0
    %1665 = vmatpush1.bf16.msra.mxu0 0
    %1666 = vmatprep.subr.bf16.mxu0 0
    %1667 = vmatpush1.bf16.msra.mxu0 0
    %1668 = vmatprep.subr.bf16.mxu0 0
    %1669 = vmatpush1.bf16.msra.mxu0 0
    %1670 = vmatprep.subr.bf16.mxu0 0
    %1671 = vmatpush1.bf16.msra.mxu0 0
    %1672 = vmatprep.subr.bf16.mxu0 0
    %1673 = vmatpush1.bf16.msra.mxu0 0
    %1674 = vmatprep.subr.bf16.mxu0 0
    %1675 = vmatpush1.bf16.msra.mxu0 0
    %1676 = vmatprep.subr.bf16.mxu0 0
    %1677 = vmatpush1.bf16.msra.mxu0 0
    %1678 = vmatprep.subr.bf16.mxu0 0
    %1679 = vmatpush1.bf16.msra.mxu0 0
    %1680 = vmatprep.subr.bf16.mxu0 0
    %1681 = vmatpush1.bf16.msra.mxu0 0
    %1682 = vmatprep.subr.bf16.mxu0 0
    %1683 = vmatpush1.bf16.msra.mxu0 0
    %1684 = vmatprep.subr.bf16.mxu0 0
    %1685 = vmatpush1.bf16.msra.mxu0 0
    %1686 = vmatprep.subr.bf16.mxu0 0
    %1687 = vmatpush1.bf16.msra.mxu0 0
    %1688 = vmatprep.subr.bf16.mxu0 0
    %1689 = vmatpush1.bf16.msra.mxu0 0
    %1690 = vmatprep.subr.bf16.mxu0 0
    %1691 = vmatpush1.bf16.msra.mxu0 0
    %1692 = vmatprep.mubr.bf16.mxu0 0
    %1693 = vmatmul.mubr.bf16.gmra.mrb[0].mxu0 %v1658
    %v1694 = vpop.f32.mrb[0].mxu0
    %v1695 = vadd.f32 0.0, %v1694
    %v1696 = vpop.f32.mrb[0].mxu0
    %v1697 = vadd.f32 0.0, %v1696
    %v1698 = vpop.f32.mrb[0].mxu0
    %v1699 = vpop.f32.mrb[0].mxu0
    %1700 = vdwg.mxu0
    %v1701 = vadd.f32 %v263, %v1695
    %v1702 = vadd.f32 %v265, %v1697
    %v1703 = vxor.u32 %v1701, 2147483648
    %v1704 = vxor.u32 %v1702, 2147483648
    %v1705 = vmul.f32 %v1703, 1.442695
    %v1706 = vpow.pop %v1705
    %v1707 = vmul.f32 %v1704, 1.442695
    %v1708 = vpow.pop %v1707
    %v1709 = vadd.f32 %v1706, 1.0
    %v1710 = vadd.f32 %v1708, 1.0
    %v1711 = vrcp.pop %v1709
    %v1712 = vmul.f32 1.0, %v1711
    %v1713 = vrcp.pop %v1710
    %v1714 = vmul.f32 1.0, %v1713
    %v1715 = vtanh.pop %v1702
    %1717 = vrot.lane.b32.xlu0 %v1715, 96
    %v1718 = vpop.permute.xlu0 %1717
    %v1720 = vmul.f32 %v1712, %v1718
    %v1721 = vpack.c.bf16 %v1720, %v1720
    %v1723 = vsel %vm313, %v1721, 0
    %1725 = vmatprep.subr.bf16.mxu0 0
    %1726 = vmatpush1.bf16.msra.mxu0 %v387
    %1727 = vmatprep.subr.bf16.mxu0 0
    %1728 = vmatpush1.bf16.msra.mxu0 %v388
    %1729 = vmatprep.subr.bf16.mxu0 0
    %1730 = vmatpush1.bf16.msra.mxu0 0
    %1731 = vmatprep.subr.bf16.mxu0 0
    %1732 = vmatpush1.bf16.msra.mxu0 0
    %1733 = vmatprep.subr.bf16.mxu0 0
    %1734 = vmatpush1.bf16.msra.mxu0 0
    %1735 = vmatprep.subr.bf16.mxu0 0
    %1736 = vmatpush1.bf16.msra.mxu0 0
    %1737 = vmatprep.subr.bf16.mxu0 0
    %1738 = vmatpush1.bf16.msra.mxu0 0
    %1739 = vmatprep.subr.bf16.mxu0 0
    %1740 = vmatpush1.bf16.msra.mxu0 0
    %1741 = vmatprep.subr.bf16.mxu0 0
    %1742 = vmatpush1.bf16.msra.mxu0 0
    %1743 = vmatprep.subr.bf16.mxu0 0
    %1744 = vmatpush1.bf16.msra.mxu0 0
    %1745 = vmatprep.subr.bf16.mxu0 0
    %1746 = vmatpush1.bf16.msra.mxu0 0
    %1747 = vmatprep.subr.bf16.mxu0 0
    %1748 = vmatpush1.bf16.msra.mxu0 0
    %1749 = vmatprep.subr.bf16.mxu0 0
    %1750 = vmatpush1.bf16.msra.mxu0 0
    %1751 = vmatprep.subr.bf16.mxu0 0
    %1752 = vmatpush1.bf16.msra.mxu0 0
    %1753 = vmatprep.subr.bf16.mxu0 0
    %1754 = vmatpush1.bf16.msra.mxu0 0
    %1755 = vmatprep.subr.bf16.mxu0 0
    %1756 = vmatpush1.bf16.msra.mxu0 0
    %1757 = vmatprep.mubr.bf16.mxu0 0
    %1758 = vmatmul.mubr.bf16.gmra.mrb[0].mxu0 %v1723
    %v1759 = vpop.f32.mrb[0].mxu0
    %v1760 = vadd.f32 %v284, %v1759
    %v1761 = vpop.f32.mrb[0].mxu0
    %v1762 = vpop.f32.mrb[0].mxu0
    %v1763 = vpop.f32.mrb[0].mxu0
    %1764 = vdwg.mxu0
    %v1765 = vtanh.pop %v1760
    %v1766 = vmax.f32 %v1765, 0.1
    %v1767 = vmin.f32 %v1766, 0.9
    %v1768 = vmax.f32 %v1765, -0.9
    %v1769 = vmin.f32 %v1768, 0.9
    %v1770 = vmul.f32 %v1767, 5.0
    %1772 = vrot.lane.b32.xlu0 %v1769, 96
    %v1773 = vpop.permute.xlu0 %1772
    %v1775 = vmul.f32 %v1770, %v1773
    %v1776 = vand.u32 2147483647, %v1775
    %vm1777 = vcmp.le.f32.partialorder %v1776, 0.7853982
    %vm1778 = vcmp.lt.s32.totalorder %v1775, 0
    %v1779 = vand.u32 %v1775, 2139095040
    %v1780 = vshrl.u32 %v1779, 23
    %v1781 = vsub.s32 %v1780, 127
    %v1782 = vand.u32 2147483647, %v1775
    %v1783 = vand.u32 %v1782, 8388607
    %v1784 = vor.u32 %v1783, 8388608
    %v1785 = vsub.s32 0, %v1784
    %v1786 = vadd.s32 %v1781, 1
    %vm1787 = vcmp.gt.s32.totalorder %v1786, 0
    %v1788 = vsel %vm1787, %v1786, 0
    %v1789 = vshrl.u32 %v1788, 5
    %v1790 = vand.u32 %v1788, 31
    %v1791 = vsub.s32 32, %v1790
    %v1792 = vshrl.u32 683565275, %v1791
    %v1793 = vshll.u32 683565275, %v1790
    %v1794 = vshrl.u32 2475754826, %v1791
    %v1795 = vor.u32 %v1793, %v1794
    %v1796 = vshll.u32 2475754826, %v1790
    %v1797 = vshrl.u32 2131351028, %v1791
    %v1798 = vor.u32 %v1796, %v1797
    %v1799 = vshll.u32 2131351028, %v1790
    %v1800 = vshrl.u32 2102212464, %v1791
    %v1801 = vor.u32 %v1799, %v1800
    %v1802 = vshll.u32 2102212464, %v1790
    %v1803 = vshrl.u32 920167782, %v1791
    %v1804 = vor.u32 %v1802, %v1803
    %v1805 = vshll.u32 920167782, %v1790
    %v1806 = vshrl.u32 1326507024, %v1791
    %v1807 = vor.u32 %v1805, %v1806
    %vm1808 = vcmp.lt.s32.totalorder %v1789, 1
    %vm1809 = vcmp.lt.s32.totalorder %v1789, 2
    %vm1810 = vcmp.lt.s32.totalorder %v1789, 3
    %vm1811 = vcmp.lt.s32.totalorder %v1789, 4
    %v1812 = vsel %vm1808, %v1792, %v1795
    %v1813 = vsel %vm1811, %v1801, 2102212464
    %v1814 = vsel %vm1810, %v1798, %v1813
    %v1815 = vsel %vm1809, %v1812, %v1814
    %v1816 = vsel %vm1808, %v1795, %v1798
    %v1817 = vsel %vm1811, %v1804, 920167782
    %v1818 = vsel %vm1810, %v1801, %v1817
    %v1819 = vsel %vm1809, %v1816, %v1818
    %v1820 = vsel %vm1808, %v1798, %v1801
    %v1821 = vsel %vm1811, %v1807, 1326507024
    %v1822 = vsel %vm1810, %v1804, %v1821
    %v1823 = vsel %vm1809, %v1820, %v1822
    %v1824 = vshll.u32 %v1784, 8
    %v1825 = vmul.u32.u64.compose %v1824, %v1823
    %v1826 = vextract.low.u32 %v1825
    %v1827 = vextract.high.u32 %v1825
    %v1828 = vmul.u32.u64.compose %v1824, %v1819
    %v1829 = vextract.low.u32 %v1828
    %v1830 = vextract.high.u32 %v1828
    %v1831 = vmul.u32 %v1824, %v1815
    %v1832 = vadd.s32 %v1827, %v1829
    %vm1833 = vc.u32 %v1827, %v1829
    %v1834 = vadd.s32 %v1830, 1
    %v1835 = vsel %vm1833, %v1834, %v1830
    %v1836 = vadd.s32 %v1831, %v1835
    %v1837 = vadd.s32 %v1836, 536870912
    %v1838 = vshrl.u32 %v1837, 30
    %v1839 = vshll.u32 %v1838, 30
    %v1840 = vsub.s32 %v1836, %v1839
    %vm1841 = vcmp.lt.s32.totalorder %v1840, 0
    %v1842 = vsub.s32 0, %v1840
    %v1843 = vsel %vm1841, %v1842, %v1840
    %v1844 = vclz %v1843
    %v1845 = vsub.s32 %v1844, 2
    %vm1846 = vcmp.gt.s32.totalorder 0, %v1845
    %v1847 = vsel %vm1846, 0, %v1845
    %v1848 = vsub.s32 32, %v1847
    %v1849 = vshll.u32 %v1840, %v1847
    %v1850 = vshrl.u32 %v1832, %v1848
    %v1851 = vor.u32 %v1849, %v1850
    %v1852 = vsub.s32 4294967266, %v1847
    %v1853 = vadd.s32 %v1852, 127
    %v1854 = vshll.u32 %v1853, 23
    %v1855 = vor.u32 4788187, %v1854
    %v1856 = vand.u32 2147483647, %v1855
    %v1858 = vcvt.s32.f32 %v1851
    %v1859 = vmul.f32 %v1858, %v1856
    %v1860 = vxor.u32 %v1859, 2147483648
    %v1861 = vsel %vm1778, %v1860, %v1859
    %v1862 = vsub.s32 4, %v1838
    %v1863 = vsel %vm1778, %v1862, %v1838
    %v1864 = vsel %vm1777, %v1775, %v1861
    %v1865 = vsel %vm1777, 0, %v1863
    %v1866 = vcosq.f32.pop %v1864
    %v1867 = vsinq.f32.pop %v1864
    %vm1868 = vweird.f32 %v1775
    %v1869 = vand.u32 %v1865, 3
    %vm1870 = vcmp.lt.s32.totalorder %v1869, 2
    %vm1871 = vcmp.eq.s32.totalorder %v1869, 0
    %v1872 = vxor.u32 %v1867, 2147483648
    %v1873 = vsel %vm1871, %v1866, %v1872
    %vm1874 = vcmp.eq.s32.totalorder %v1869, 2
    %v1875 = vxor.u32 %v1866, 2147483648
    %v1876 = vsel %vm1874, %v1875, %v1867
    %v1877 = vsel %vm1870, %v1873, %v1876
    %v1878 = vsel %vm1868, nan, %v1877
    %v1879 = vadd.f32 %v1767, 1e-08
    %v1880 = vrcp.pop %v1879
    %v1881 = vsub.f32 0.0, %v1880
    %v1882 = vmul.f32 %v1769, %v1769
    %1884 = vrot.lane.b32.xlu0 %v1882, 96
    %v1885 = vpop.permute.xlu0 %1884
    %v1887 = vmul.f32 %v1881, %v1885
    %v1888 = vmul.f32 %v1887, 1.442695
    %v1889 = vpow.pop %v1888
    %v1890 = vmul.f32 %v1878, %v1889
    %v1891 = vand.u32 2147483647, %v1890
    %1893 = vrot.lane.b32.xlu0 %v1712, 96
    %v1894 = vpop.permute.xlu0 %1893
    %v1896 = vmul.f32 %v1712, %v1894
    %1898 = vrot.lane.b32.xlu0 %v1714, 64
    %v1899 = vpop.permute.xlu0 %1898
    %v1901 = vmul.f32 %v1896, %v1899
    %v1903 = vrot.slane %v1590, 6
    %v1905 = vmul.f32 %v1901, %v1903
    %v1906 = vmul.f32 %v1720, %v1891
    %1908 = vrot.lane.b32.xlu0 %v1906, 64
    %v1909 = vpop.permute.xlu0 %1908
    %v1911 = vadd.f32 %v1905, %v1909
    %v1912 = vmax.f32 %v1911, -10.0
    %v1913 = vmin.f32 %v1912, 10.0
    %v1914 = vpack.c.bf16 %v1913, %v1913
    %1916 = vrot.lane.b32.xlu0 %v1914, 64
    %v1917 = vpop.permute.xlu0 %1916
    %v1919 = vsel %vm313, %v1917, 0
    %1921 = vmatprep.subr.bf16.mxu0 0
    %1922 = vmatpush1.bf16.msra.mxu0 %v592
    %1923 = vmatprep.subr.bf16.mxu0 0
    %1924 = vmatpush1.bf16.msra.mxu0 %v593
    %1925 = vmatprep.subr.bf16.mxu0 0
    %1926 = vmatpush1.bf16.msra.mxu0 0
    %1927 = vmatprep.subr.bf16.mxu0 0
    %1928 = vmatpush1.bf16.msra.mxu0 0
    %1929 = vmatprep.subr.bf16.mxu0 0
    %1930 = vmatpush1.bf16.msra.mxu0 0
    %1931 = vmatprep.subr.bf16.mxu0 0
    %1932 = vmatpush1.bf16.msra.mxu0 0
    %1933 = vmatprep.subr.bf16.mxu0 0
    %1934 = vmatpush1.bf16.msra.mxu0 0
    %1935 = vmatprep.subr.bf16.mxu0 0
    %1936 = vmatpush1.bf16.msra.mxu0 0
    %1937 = vmatprep.subr.bf16.mxu0 0
    %1938 = vmatpush1.bf16.msra.mxu0 0
    %1939 = vmatprep.subr.bf16.mxu0 0
    %1940 = vmatpush1.bf16.msra.mxu0 0
    %1941 = vmatprep.subr.bf16.mxu0 0
    %1942 = vmatpush1.bf16.msra.mxu0 0
    %1943 = vmatprep.subr.bf16.mxu0 0
    %1944 = vmatpush1.bf16.msra.mxu0 0
    %1945 = vmatprep.subr.bf16.mxu0 0
    %1946 = vmatpush1.bf16.msra.mxu0 0
    %1947 = vmatprep.subr.bf16.mxu0 0
    %1948 = vmatpush1.bf16.msra.mxu0 0
    %1949 = vmatprep.subr.bf16.mxu0 0
    %1950 = vmatpush1.bf16.msra.mxu0 0
    %1951 = vmatprep.subr.bf16.mxu0 0
    %1952 = vmatpush1.bf16.msra.mxu0 0
    %1953 = vmatprep.mubr.bf16.mxu0 0
    %1954 = vmatmul.mubr.bf16.gmra.mrb[0].mxu0 %v1919
    %v1955 = vpop.f32.mrb[0].mxu0
    %v1956 = vadd.f32 %v291, %v1955
    %v1957 = vpop.f32.mrb[0].mxu0
    %v1958 = vpop.f32.mrb[0].mxu0
    %v1959 = vpop.f32.mrb[0].mxu0
    %1960 = vdwg.mxu0
    %v1961 = vtanh.pop %v1956
    %1963 = vrot.lane.b32.xlu0 %v1961, 32
    %v1964 = vpop.permute.xlu0 %1963
    %v1966 = vmul.f32 %v1712, %v1964
    %1968 = vrot.lane.b32.xlu0 %v1966, 96
    %v1969 = vpop.permute.xlu0 %1968
    %1971 = vst.msk [vmem:[#allocation2 + $0x8] sm:$0x3] %vm649, %v1969
    %v1972 = vpack.c.bf16 %v1966, %v1966
    %1974 = vrot.lane.b32.xlu0 %v1972, 96
    %v1975 = vpop.permute.xlu0 %1974
    %v1977 = vsel %vm313, %v1975, 0
    %1979 = vmatprep.subr.bf16.mxu0 %v306
    %1980 = vmatpush1.bf16.msra.mxu0 %v305
    %1981 = vmatprep.subr.bf16.mxu0 %v308
    %1982 = vmatpush1.bf16.msra.mxu0 %v307
    %1983 = vmatprep.subr.bf16.mxu0 0
    %1984 = vmatpush1.bf16.msra.mxu0 0
    %1985 = vmatprep.subr.bf16.mxu0 0
    %1986 = vmatpush1.bf16.msra.mxu0 0
    %1987 = vmatprep.subr.bf16.mxu0 0
    %1988 = vmatpush1.bf16.msra.mxu0 0
    %1989 = vmatprep.subr.bf16.mxu0 0
    %1990 = vmatpush1.bf16.msra.mxu0 0
    %1991 = vmatprep.subr.bf16.mxu0 0
    %1992 = vmatpush1.bf16.msra.mxu0 0
    %1993 = vmatprep.subr.bf16.mxu0 0
    %1994 = vmatpush1.bf16.msra.mxu0 0
    %1995 = vmatprep.subr.bf16.mxu0 0
    %1996 = vmatpush1.bf16.msra.mxu0 0
    %1997 = vmatprep.subr.bf16.mxu0 0
    %1998 = vmatpush1.bf16.msra.mxu0 0
    %1999 = vmatprep.subr.bf16.mxu0 0
    %2000 = vmatpush1.bf16.msra.mxu0 0
    %2001 = vmatprep.subr.bf16.mxu0 0
    %2002 = vmatpush1.bf16.msra.mxu0 0
    %2003 = vmatprep.subr.bf16.mxu0 0
    %2004 = vmatpush1.bf16.msra.mxu0 0
    %2005 = vmatprep.subr.bf16.mxu0 0
    %2006 = vmatpush1.bf16.msra.mxu0 0
    %2007 = vmatprep.subr.bf16.mxu0 0
    %2008 = vmatpush1.bf16.msra.mxu0 0
    %2009 = vmatprep.subr.bf16.mxu0 0
    %2010 = vmatpush1.bf16.msra.mxu0 0
    %2011 = vmatprep.mubr.bf16.mxu0 0
    %2012 = vmatmul.mubr.bf16.gmra.mrb[0].mxu0 %v1977
    %v2013 = vpop.f32.mrb[0].mxu0
    %v2014 = vadd.f32 0.0, %v2013
    %v2015 = vpop.f32.mrb[0].mxu0
    %v2016 = vadd.f32 0.0, %v2015
    %v2017 = vpop.f32.mrb[0].mxu0
    %v2018 = vpop.f32.mrb[0].mxu0
    %2019 = vdwg.mxu0
    %v2022 = vrot.slane %v2014, 6
    %v2023 = vrot.slane %v2016, 6
    %v2026 = vadd.f32 %v263, %v2022
    %v2027 = vadd.f32 %v265, %v2023
    %v2028 = vxor.u32 %v2026, 2147483648
    %v2029 = vxor.u32 %v2027, 2147483648
    %v2030 = vmul.f32 %v2028, 1.442695
    %v2031 = vpow.pop %v2030
    %v2032 = vmul.f32 %v2029, 1.442695
    %v2033 = vpow.pop %v2032
    %v2034 = vadd.f32 %v2031, 1.0
    %v2035 = vadd.f32 %v2033, 1.0
    %v2036 = vrcp.pop %v2034
    %v2037 = vmul.f32 1.0, %v2036
    %v2038 = vrcp.pop %v2035
    %v2039 = vmul.f32 1.0, %v2038
    %v2040 = vtanh.pop %v2027
    %2042 = vrot.lane.b32.xlu0 %v2040, 96
    %v2043 = vpop.permute.xlu0 %2042
    %v2045 = vmul.f32 %v2037, %v2043
    %v2046 = vpack.c.bf16 %v2045, %v2045
    %v2048 = vrot.slane %v2046, 1
    %v2050 = vsel %vm313, %v2048, 0
    %2052 = vmatprep.subr.bf16.mxu0 0
    %2053 = vmatpush1.bf16.msra.mxu0 %v387
    %2054 = vmatprep.subr.bf16.mxu0 0
    %2055 = vmatpush1.bf16.msra.mxu0 %v388
    %2056 = vmatprep.subr.bf16.mxu0 0
    %2057 = vmatpush1.bf16.msra.mxu0 0
    %2058 = vmatprep.subr.bf16.mxu0 0
    %2059 = vmatpush1.bf16.msra.mxu0 0
    %2060 = vmatprep.subr.bf16.mxu0 0
    %2061 = vmatpush1.bf16.msra.mxu0 0
    %2062 = vmatprep.subr.bf16.mxu0 0
    %2063 = vmatpush1.bf16.msra.mxu0 0
    %2064 = vmatprep.subr.bf16.mxu0 0
    %2065 = vmatpush1.bf16.msra.mxu0 0
    %2066 = vmatprep.subr.bf16.mxu0 0
    %2067 = vmatpush1.bf16.msra.mxu0 0
    %2068 = vmatprep.subr.bf16.mxu0 0
    %2069 = vmatpush1.bf16.msra.mxu0 0
    %2070 = vmatprep.subr.bf16.mxu0 0
    %2071 = vmatpush1.bf16.msra.mxu0 0
    %2072 = vmatprep.subr.bf16.mxu0 0
    %2073 = vmatpush1.bf16.msra.mxu0 0
    %2074 = vmatprep.subr.bf16.mxu0 0
    %2075 = vmatpush1.bf16.msra.mxu0 0
    %2076 = vmatprep.subr.bf16.mxu0 0
    %2077 = vmatpush1.bf16.msra.mxu0 0
    %2078 = vmatprep.subr.bf16.mxu0 0
    %2079 = vmatpush1.bf16.msra.mxu0 0
    %2080 = vmatprep.subr.bf16.mxu0 0
    %2081 = vmatpush1.bf16.msra.mxu0 0
    %2082 = vmatprep.subr.bf16.mxu0 0
    %2083 = vmatpush1.bf16.msra.mxu0 0
    %2084 = vmatprep.mubr.bf16.mxu0 0
    %2085 = vmatmul.mubr.bf16.gmra.mrb[0].mxu0 %v2050
    %v2086 = vpop.f32.mrb[0].mxu0
    %v2087 = vadd.f32 %v284, %v2086
    %v2088 = vpop.f32.mrb[0].mxu0
    %v2089 = vpop.f32.mrb[0].mxu0
    %v2090 = vpop.f32.mrb[0].mxu0
    %2091 = vdwg.mxu0
    %v2092 = vtanh.pop %v2087
    %v2093 = vmax.f32 %v2092, 0.1
    %v2094 = vmin.f32 %v2093, 0.9
    %v2095 = vmax.f32 %v2092, -0.9
    %v2096 = vmin.f32 %v2095, 0.9
    %v2097 = vmul.f32 %v2094, 5.0
    %2099 = vrot.lane.b32.xlu0 %v2096, 96
    %v2100 = vpop.permute.xlu0 %2099
    %v2102 = vmul.f32 %v2097, %v2100
    %v2103 = vand.u32 2147483647, %v2102
    %vm2104 = vcmp.le.f32.partialorder %v2103, 0.7853982
    %vm2105 = vcmp.lt.s32.totalorder %v2102, 0
    %v2106 = vand.u32 %v2102, 2139095040
    %v2107 = vshrl.u32 %v2106, 23
    %v2108 = vsub.s32 %v2107, 127
    %v2109 = vand.u32 2147483647, %v2102
    %v2110 = vand.u32 %v2109, 8388607
    %v2111 = vor.u32 %v2110, 8388608
    %v2112 = vsub.s32 0, %v2111
    %v2113 = vadd.s32 %v2108, 1
    %vm2114 = vcmp.gt.s32.totalorder %v2113, 0
    %v2115 = vsel %vm2114, %v2113, 0
    %v2116 = vshrl.u32 %v2115, 5
    %v2117 = vand.u32 %v2115, 31
    %v2118 = vsub.s32 32, %v2117
    %v2119 = vshrl.u32 683565275, %v2118
    %v2120 = vshll.u32 683565275, %v2117
    %v2121 = vshrl.u32 2475754826, %v2118
    %v2122 = vor.u32 %v2120, %v2121
    %v2123 = vshll.u32 2475754826, %v2117
    %v2124 = vshrl.u32 2131351028, %v2118
    %v2125 = vor.u32 %v2123, %v2124
    %v2126 = vshll.u32 2131351028, %v2117
    %v2127 = vshrl.u32 2102212464, %v2118
    %v2128 = vor.u32 %v2126, %v2127
    %v2129 = vshll.u32 2102212464, %v2117
    %v2130 = vshrl.u32 920167782, %v2118
    %v2131 = vor.u32 %v2129, %v2130
    %v2132 = vshll.u32 920167782, %v2117
    %v2133 = vshrl.u32 1326507024, %v2118
    %v2134 = vor.u32 %v2132, %v2133
    %vm2135 = vcmp.lt.s32.totalorder %v2116, 1
    %vm2136 = vcmp.lt.s32.totalorder %v2116, 2
    %vm2137 = vcmp.lt.s32.totalorder %v2116, 3
    %vm2138 = vcmp.lt.s32.totalorder %v2116, 4
    %v2139 = vsel %vm2135, %v2119, %v2122
    %v2140 = vsel %vm2138, %v2128, 2102212464
    %v2141 = vsel %vm2137, %v2125, %v2140
    %v2142 = vsel %vm2136, %v2139, %v2141
    %v2143 = vsel %vm2135, %v2122, %v2125
    %v2144 = vsel %vm2138, %v2131, 920167782
    %v2145 = vsel %vm2137, %v2128, %v2144
    %v2146 = vsel %vm2136, %v2143, %v2145
    %v2147 = vsel %vm2135, %v2125, %v2128
    %v2148 = vsel %vm2138, %v2134, 1326507024
    %v2149 = vsel %vm2137, %v2131, %v2148
    %v2150 = vsel %vm2136, %v2147, %v2149
    %v2151 = vshll.u32 %v2111, 8
    %v2152 = vmul.u32.u64.compose %v2151, %v2150
    %v2153 = vextract.low.u32 %v2152
    %v2154 = vextract.high.u32 %v2152
    %v2155 = vmul.u32.u64.compose %v2151, %v2146
    %v2156 = vextract.low.u32 %v2155
    %v2157 = vextract.high.u32 %v2155
    %v2158 = vmul.u32 %v2151, %v2142
    %v2159 = vadd.s32 %v2154, %v2156
    %vm2160 = vc.u32 %v2154, %v2156
    %v2161 = vadd.s32 %v2157, 1
    %v2162 = vsel %vm2160, %v2161, %v2157
    %v2163 = vadd.s32 %v2158, %v2162
    %v2164 = vadd.s32 %v2163, 536870912
    %v2165 = vshrl.u32 %v2164, 30
    %v2166 = vshll.u32 %v2165, 30
    %v2167 = vsub.s32 %v2163, %v2166
    %vm2168 = vcmp.lt.s32.totalorder %v2167, 0
    %v2169 = vsub.s32 0, %v2167
    %v2170 = vsel %vm2168, %v2169, %v2167
    %v2171 = vclz %v2170
    %v2172 = vsub.s32 %v2171, 2
    %vm2173 = vcmp.gt.s32.totalorder 0, %v2172
    %v2174 = vsel %vm2173, 0, %v2172
    %v2175 = vsub.s32 32, %v2174
    %v2176 = vshll.u32 %v2167, %v2174
    %v2177 = vshrl.u32 %v2159, %v2175
    %v2178 = vor.u32 %v2176, %v2177
    %v2179 = vsub.s32 4294967266, %v2174
    %v2180 = vadd.s32 %v2179, 127
    %v2181 = vshll.u32 %v2180, 23
    %v2182 = vor.u32 4788187, %v2181
    %v2183 = vand.u32 2147483647, %v2182
    %v2185 = vcvt.s32.f32 %v2178
    %v2186 = vmul.f32 %v2185, %v2183
    %v2187 = vxor.u32 %v2186, 2147483648
    %v2188 = vsel %vm2105, %v2187, %v2186
    %v2189 = vsub.s32 4, %v2165
    %v2190 = vsel %vm2105, %v2189, %v2165
    %v2191 = vsel %vm2104, %v2102, %v2188
    %v2192 = vsel %vm2104, 0, %v2190
    %v2193 = vcosq.f32.pop %v2191
    %v2194 = vsinq.f32.pop %v2191
    %vm2195 = vweird.f32 %v2102
    %v2196 = vand.u32 %v2192, 3
    %vm2197 = vcmp.lt.s32.totalorder %v2196, 2
    %vm2198 = vcmp.eq.s32.totalorder %v2196, 0
    %v2199 = vxor.u32 %v2194, 2147483648
    %v2200 = vsel %vm2198, %v2193, %v2199
    %vm2201 = vcmp.eq.s32.totalorder %v2196, 2
    %v2202 = vxor.u32 %v2193, 2147483648
    %v2203 = vsel %vm2201, %v2202, %v2194
    %v2204 = vsel %vm2197, %v2200, %v2203
    %v2205 = vsel %vm2195, nan, %v2204
    %v2206 = vadd.f32 %v2094, 1e-08
    %v2207 = vrcp.pop %v2206
    %v2208 = vsub.f32 0.0, %v2207
    %v2209 = vmul.f32 %v2096, %v2096
    %2211 = vrot.lane.b32.xlu0 %v2209, 96
    %v2212 = vpop.permute.xlu0 %2211
    %v2214 = vmul.f32 %v2208, %v2212
    %v2215 = vmul.f32 %v2214, 1.442695
    %v2216 = vpow.pop %v2215
    %v2217 = vmul.f32 %v2205, %v2216
    %v2218 = vand.u32 2147483647, %v2217
    %2220 = vrot.lane.b32.xlu0 %v2037, 96
    %v2221 = vpop.permute.xlu0 %2220
    %v2223 = vmul.f32 %v2037, %v2221
    %2225 = vrot.lane.b32.xlu0 %v2039, 64
    %v2226 = vpop.permute.xlu0 %2225
    %v2228 = vmul.f32 %v2223, %v2226
    %v2230 = vrot.slane %v1913, 6
    %v2232 = vmul.f32 %v2228, %v2230
    %v2234 = vrot.slane %v2218, 6
    %v2236 = vmul.f32 %v2045, %v2234
    %2238 = vrot.lane.b32.xlu0 %v2236, 64
    %v2239 = vpop.permute.xlu0 %2238
    %v2241 = vadd.f32 %v2232, %v2239
    %v2242 = vmax.f32 %v2241, -10.0
    %v2243 = vmin.f32 %v2242, 10.0
    %v2244 = vpack.c.bf16 %v2243, %v2243
    %v2246 = vrot.slane %v2244, 1
    %2247 = vrot.lane.b32.xlu0 %v2246, 64
    %v2248 = vpop.permute.xlu0 %2247
    %v2250 = vsel %vm313, %v2248, 0
    %2252 = vmatprep.subr.bf16.mxu0 0
    %2253 = vmatpush1.bf16.msra.mxu0 %v592
    %2254 = vmatprep.subr.bf16.mxu0 0
    %2255 = vmatpush1.bf16.msra.mxu0 %v593
    %2256 = vmatprep.subr.bf16.mxu0 0
    %2257 = vmatpush1.bf16.msra.mxu0 0
    %2258 = vmatprep.subr.bf16.mxu0 0
    %2259 = vmatpush1.bf16.msra.mxu0 0
    %2260 = vmatprep.subr.bf16.mxu0 0
    %2261 = vmatpush1.bf16.msra.mxu0 0
    %2262 = vmatprep.subr.bf16.mxu0 0
    %2263 = vmatpush1.bf16.msra.mxu0 0
    %2264 = vmatprep.subr.bf16.mxu0 0
    %2265 = vmatpush1.bf16.msra.mxu0 0
    %2266 = vmatprep.subr.bf16.mxu0 0
    %2267 = vmatpush1.bf16.msra.mxu0 0
    %2268 = vmatprep.subr.bf16.mxu0 0
    %2269 = vmatpush1.bf16.msra.mxu0 0
    %2270 = vmatprep.subr.bf16.mxu0 0
    %2271 = vmatpush1.bf16.msra.mxu0 0
    %2272 = vmatprep.subr.bf16.mxu0 0
    %2273 = vmatpush1.bf16.msra.mxu0 0
    %2274 = vmatprep.subr.bf16.mxu0 0
    %2275 = vmatpush1.bf16.msra.mxu0 0
    %2276 = vmatprep.subr.bf16.mxu0 0
    %2277 = vmatpush1.bf16.msra.mxu0 0
    %2278 = vmatprep.subr.bf16.mxu0 0
    %2279 = vmatpush1.bf16.msra.mxu0 0
    %2280 = vmatprep.subr.bf16.mxu0 0
    %2281 = vmatpush1.bf16.msra.mxu0 0
    %2282 = vmatprep.subr.bf16.mxu0 0
    %2283 = vmatpush1.bf16.msra.mxu0 0
    %2284 = vmatprep.mubr.bf16.mxu0 0
    %2285 = vmatmul.mubr.bf16.gmra.mrb[0].mxu0 %v2250
    %v2286 = vpop.f32.mrb[0].mxu0
    %v2287 = vadd.f32 %v291, %v2286
    %v2288 = vpop.f32.mrb[0].mxu0
    %v2289 = vpop.f32.mrb[0].mxu0
    %v2290 = vpop.f32.mrb[0].mxu0
    %2291 = vdwg.mxu0
    %v2292 = vtanh.pop %v2287
    %v2294 = vrot.slane %v2292, 6
    %2295 = vrot.lane.b32.xlu0 %v2294, 32
    %v2296 = vpop.permute.xlu0 %2295
    %v2298 = vmul.f32 %v2037, %v2296
    %2300 = vrot.lane.b32.xlu0 %v2298, 96
    %v2301 = vpop.permute.xlu0 %2300
    %2303 = vst.msk [vmem:[#allocation2 + $0x8] sm:$0xc] %vm982, %v2301
    %v2304 = vpack.c.bf16 %v2298, %v2298
    %v2306 = vrot.slane %v2304, 1
    %2307 = vrot.lane.b32.xlu0 %v2306, 96
    %v2308 = vpop.permute.xlu0 %2307
    %v2310 = vsel %vm313, %v2308, 0
    %2312 = vmatprep.subr.bf16.mxu0 %v306
    %2313 = vmatpush1.bf16.msra.mxu0 %v305
    %2314 = vmatprep.subr.bf16.mxu0 %v308
    %2315 = vmatpush1.bf16.msra.mxu0 %v307
    %2316 = vmatprep.subr.bf16.mxu0 0
    %2317 = vmatpush1.bf16.msra.mxu0 0
    %2318 = vmatprep.subr.bf16.mxu0 0
    %2319 = vmatpush1.bf16.msra.mxu0 0
    %2320 = vmatprep.subr.bf16.mxu0 0
    %2321 = vmatpush1.bf16.msra.mxu0 0
    %2322 = vmatprep.subr.bf16.mxu0 0
    %2323 = vmatpush1.bf16.msra.mxu0 0
    %2324 = vmatprep.subr.bf16.mxu0 0
    %2325 = vmatpush1.bf16.msra.mxu0 0
    %2326 = vmatprep.subr.bf16.mxu0 0
    %2327 = vmatpush1.bf16.msra.mxu0 0
    %2328 = vmatprep.subr.bf16.mxu0 0
    %2329 = vmatpush1.bf16.msra.mxu0 0
    %2330 = vmatprep.subr.bf16.mxu0 0
    %2331 = vmatpush1.bf16.msra.mxu0 0
    %2332 = vmatprep.subr.bf16.mxu0 0
    %2333 = vmatpush1.bf16.msra.mxu0 0
    %2334 = vmatprep.subr.bf16.mxu0 0
    %2335 = vmatpush1.bf16.msra.mxu0 0
    %2336 = vmatprep.subr.bf16.mxu0 0
    %2337 = vmatpush1.bf16.msra.mxu0 0
    %2338 = vmatprep.subr.bf16.mxu0 0
    %2339 = vmatpush1.bf16.msra.mxu0 0
    %2340 = vmatprep.subr.bf16.mxu0 0
    %2341 = vmatpush1.bf16.msra.mxu0 0
    %2342 = vmatprep.subr.bf16.mxu0 0
    %2343 = vmatpush1.bf16.msra.mxu0 0
    %2344 = vmatprep.mubr.bf16.mxu0 0
    %2345 = vmatmul.mubr.bf16.gmra.mrb[0].mxu0 %v2310
    %v2346 = vpop.f32.mrb[0].mxu0
    %v2347 = vadd.f32 0.0, %v2346
    %v2348 = vpop.f32.mrb[0].mxu0
    %v2349 = vadd.f32 0.0, %v2348
    %v2350 = vpop.f32.mrb[0].mxu0
    %v2351 = vpop.f32.mrb[0].mxu0
    %2352 = vdwg.mxu0
    %v2355 = vrot.slane %v2347, 4
    %v2356 = vrot.slane %v2349, 4
    %v2359 = vadd.f32 %v263, %v2355
    %v2360 = vadd.f32 %v265, %v2356
    %v2361 = vxor.u32 %v2359, 2147483648
    %v2362 = vxor.u32 %v2360, 2147483648
    %v2363 = vmul.f32 %v2361, 1.442695
    %v2364 = vpow.pop %v2363
    %v2365 = vmul.f32 %v2362, 1.442695
    %v2366 = vpow.pop %v2365
    %v2367 = vadd.f32 %v2364, 1.0
    %v2368 = vadd.f32 %v2366, 1.0
    %v2369 = vrcp.pop %v2367
    %v2370 = vmul.f32 1.0, %v2369
    %v2371 = vrcp.pop %v2368
    %v2372 = vmul.f32 1.0, %v2371
    %v2373 = vtanh.pop %v2360
    %2375 = vrot.lane.b32.xlu0 %v2373, 96
    %v2376 = vpop.permute.xlu0 %2375
    %v2378 = vmul.f32 %v2370, %v2376
    %v2379 = vpack.c.bf16 %v2378, %v2378
    %v2381 = vrot.slane %v2379, 2
    %v2383 = vsel %vm313, %v2381, 0
    %2385 = vmatprep.subr.bf16.mxu0 0
    %2386 = vmatpush1.bf16.msra.mxu0 %v387
    %2387 = vmatprep.subr.bf16.mxu0 0
    %2388 = vmatpush1.bf16.msra.mxu0 %v388
    %2389 = vmatprep.subr.bf16.mxu0 0
    %2390 = vmatpush1.bf16.msra.mxu0 0
    %2391 = vmatprep.subr.bf16.mxu0 0
    %2392 = vmatpush1.bf16.msra.mxu0 0
    %2393 = vmatprep.subr.bf16.mxu0 0
    %2394 = vmatpush1.bf16.msra.mxu0 0
    %2395 = vmatprep.subr.bf16.mxu0 0
    %2396 = vmatpush1.bf16.msra.mxu0 0
    %2397 = vmatprep.subr.bf16.mxu0 0
    %2398 = vmatpush1.bf16.msra.mxu0 0
    %2399 = vmatprep.subr.bf16.mxu0 0
    %2400 = vmatpush1.bf16.msra.mxu0 0
    %2401 = vmatprep.subr.bf16.mxu0 0
    %2402 = vmatpush1.bf16.msra.mxu0 0
    %2403 = vmatprep.subr.bf16.mxu0 0
    %2404 = vmatpush1.bf16.msra.mxu0 0
    %2405 = vmatprep.subr.bf16.mxu0 0
    %2406 = vmatpush1.bf16.msra.mxu0 0
    %2407 = vmatprep.subr.bf16.mxu0 0
    %2408 = vmatpush1.bf16.msra.mxu0 0
    %2409 = vmatprep.subr.bf16.mxu0 0
    %2410 = vmatpush1.bf16.msra.mxu0 0
    %2411 = vmatprep.subr.bf16.mxu0 0
    %2412 = vmatpush1.bf16.msra.mxu0 0
    %2413 = vmatprep.subr.bf16.mxu0 0
    %2414 = vmatpush1.bf16.msra.mxu0 0
    %2415 = vmatprep.subr.bf16.mxu0 0
    %2416 = vmatpush1.bf16.msra.mxu0 0
    %2417 = vmatprep.mubr.bf16.mxu0 0
    %2418 = vmatmul.mubr.bf16.gmra.mrb[0].mxu0 %v2383
    %v2419 = vpop.f32.mrb[0].mxu0
    %v2420 = vadd.f32 %v284, %v2419
    %v2421 = vpop.f32.mrb[0].mxu0
    %v2422 = vpop.f32.mrb[0].mxu0
    %v2423 = vpop.f32.mrb[0].mxu0
    %2424 = vdwg.mxu0
    %v2425 = vtanh.pop %v2420
    %v2426 = vmax.f32 %v2425, 0.1
    %v2427 = vmin.f32 %v2426, 0.9
    %v2428 = vmax.f32 %v2425, -0.9
    %v2429 = vmin.f32 %v2428, 0.9
    %v2430 = vmul.f32 %v2427, 5.0
    %2432 = vrot.lane.b32.xlu0 %v2429, 96
    %v2433 = vpop.permute.xlu0 %2432
    %v2435 = vmul.f32 %v2430, %v2433
    %v2436 = vand.u32 2147483647, %v2435
    %vm2437 = vcmp.le.f32.partialorder %v2436, 0.7853982
    %vm2438 = vcmp.lt.s32.totalorder %v2435, 0
    %v2439 = vand.u32 %v2435, 2139095040
    %v2440 = vshrl.u32 %v2439, 23
    %v2441 = vsub.s32 %v2440, 127
    %v2442 = vand.u32 2147483647, %v2435
    %v2443 = vand.u32 %v2442, 8388607
    %v2444 = vor.u32 %v2443, 8388608
    %v2445 = vsub.s32 0, %v2444
    %v2446 = vadd.s32 %v2441, 1
    %vm2447 = vcmp.gt.s32.totalorder %v2446, 0
    %v2448 = vsel %vm2447, %v2446, 0
    %v2449 = vshrl.u32 %v2448, 5
    %v2450 = vand.u32 %v2448, 31
    %v2451 = vsub.s32 32, %v2450
    %v2452 = vshrl.u32 683565275, %v2451
    %v2453 = vshll.u32 683565275, %v2450
    %v2454 = vshrl.u32 2475754826, %v2451
    %v2455 = vor.u32 %v2453, %v2454
    %v2456 = vshll.u32 2475754826, %v2450
    %v2457 = vshrl.u32 2131351028, %v2451
    %v2458 = vor.u32 %v2456, %v2457
    %v2459 = vshll.u32 2131351028, %v2450
    %v2460 = vshrl.u32 2102212464, %v2451
    %v2461 = vor.u32 %v2459, %v2460
    %v2462 = vshll.u32 2102212464, %v2450
    %v2463 = vshrl.u32 920167782, %v2451
    %v2464 = vor.u32 %v2462, %v2463
    %v2465 = vshll.u32 920167782, %v2450
    %v2466 = vshrl.u32 1326507024, %v2451
    %v2467 = vor.u32 %v2465, %v2466
    %vm2468 = vcmp.lt.s32.totalorder %v2449, 1
    %vm2469 = vcmp.lt.s32.totalorder %v2449, 2
    %vm2470 = vcmp.lt.s32.totalorder %v2449, 3
    %vm2471 = vcmp.lt.s32.totalorder %v2449, 4
    %v2472 = vsel %vm2468, %v2452, %v2455
    %v2473 = vsel %vm2471, %v2461, 2102212464
    %v2474 = vsel %vm2470, %v2458, %v2473
    %v2475 = vsel %vm2469, %v2472, %v2474
    %v2476 = vsel %vm2468, %v2455, %v2458
    %v2477 = vsel %vm2471, %v2464, 920167782
    %v2478 = vsel %vm2470, %v2461, %v2477
    %v2479 = vsel %vm2469, %v2476, %v2478
    %v2480 = vsel %vm2468, %v2458, %v2461
    %v2481 = vsel %vm2471, %v2467, 1326507024
    %v2482 = vsel %vm2470, %v2464, %v2481
    %v2483 = vsel %vm2469, %v2480, %v2482
    %v2484 = vshll.u32 %v2444, 8
    %v2485 = vmul.u32.u64.compose %v2484, %v2483
    %v2486 = vextract.low.u32 %v2485
    %v2487 = vextract.high.u32 %v2485
    %v2488 = vmul.u32.u64.compose %v2484, %v2479
    %v2489 = vextract.low.u32 %v2488
    %v2490 = vextract.high.u32 %v2488
    %v2491 = vmul.u32 %v2484, %v2475
    %v2492 = vadd.s32 %v2487, %v2489
    %vm2493 = vc.u32 %v2487, %v2489
    %v2494 = vadd.s32 %v2490, 1
    %v2495 = vsel %vm2493, %v2494, %v2490
    %v2496 = vadd.s32 %v2491, %v2495
    %v2497 = vadd.s32 %v2496, 536870912
    %v2498 = vshrl.u32 %v2497, 30
    %v2499 = vshll.u32 %v2498, 30
    %v2500 = vsub.s32 %v2496, %v2499
    %vm2501 = vcmp.lt.s32.totalorder %v2500, 0
    %v2502 = vsub.s32 0, %v2500
    %v2503 = vsel %vm2501, %v2502, %v2500
    %v2504 = vclz %v2503
    %v2505 = vsub.s32 %v2504, 2
    %vm2506 = vcmp.gt.s32.totalorder 0, %v2505
    %v2507 = vsel %vm2506, 0, %v2505
    %v2508 = vsub.s32 32, %v2507
    %v2509 = vshll.u32 %v2500, %v2507
    %v2510 = vshrl.u32 %v2492, %v2508
    %v2511 = vor.u32 %v2509, %v2510
    %v2512 = vsub.s32 4294967266, %v2507
    %v2513 = vadd.s32 %v2512, 127
    %v2514 = vshll.u32 %v2513, 23
    %v2515 = vor.u32 4788187, %v2514
    %v2516 = vand.u32 2147483647, %v2515
    %v2518 = vcvt.s32.f32 %v2511
    %v2519 = vmul.f32 %v2518, %v2516
    %v2520 = vxor.u32 %v2519, 2147483648
    %v2521 = vsel %vm2438, %v2520, %v2519
    %v2522 = vsub.s32 4, %v2498
    %v2523 = vsel %vm2438, %v2522, %v2498
    %v2524 = vsel %vm2437, %v2435, %v2521
    %v2525 = vsel %vm2437, 0, %v2523
    %v2526 = vcosq.f32.pop %v2524
    %v2527 = vsinq.f32.pop %v2524
    %vm2528 = vweird.f32 %v2435
    %v2529 = vand.u32 %v2525, 3
    %vm2530 = vcmp.lt.s32.totalorder %v2529, 2
    %vm2531 = vcmp.eq.s32.totalorder %v2529, 0
    %v2532 = vxor.u32 %v2527, 2147483648
    %v2533 = vsel %vm2531, %v2526, %v2532
    %vm2534 = vcmp.eq.s32.totalorder %v2529, 2
    %v2535 = vxor.u32 %v2526, 2147483648
    %v2536 = vsel %vm2534, %v2535, %v2527
    %v2537 = vsel %vm2530, %v2533, %v2536
    %v2538 = vsel %vm2528, nan, %v2537
    %v2539 = vadd.f32 %v2427, 1e-08
    %v2540 = vrcp.pop %v2539
    %v2541 = vsub.f32 0.0, %v2540
    %v2542 = vmul.f32 %v2429, %v2429
    %2544 = vrot.lane.b32.xlu0 %v2542, 96
    %v2545 = vpop.permute.xlu0 %2544
    %v2547 = vmul.f32 %v2541, %v2545
    %v2548 = vmul.f32 %v2547, 1.442695
    %v2549 = vpow.pop %v2548
    %v2550 = vmul.f32 %v2538, %v2549
    %v2551 = vand.u32 2147483647, %v2550
    %2553 = vrot.lane.b32.xlu0 %v2370, 96
    %v2554 = vpop.permute.xlu0 %2553
    %v2556 = vmul.f32 %v2370, %v2554
    %2558 = vrot.lane.b32.xlu0 %v2372, 64
    %v2559 = vpop.permute.xlu0 %2558
    %v2561 = vmul.f32 %v2556, %v2559
    %v2563 = vrot.slane %v2243, 6
    %v2565 = vmul.f32 %v2561, %v2563
    %v2567 = vrot.slane %v2551, 4
    %v2569 = vmul.f32 %v2378, %v2567
    %2571 = vrot.lane.b32.xlu0 %v2569, 64
    %v2572 = vpop.permute.xlu0 %2571
    %v2574 = vadd.f32 %v2565, %v2572
    %v2575 = vmax.f32 %v2574, -10.0
    %v2576 = vmin.f32 %v2575, 10.0
    %v2577 = vpack.c.bf16 %v2576, %v2576
    %v2579 = vrot.slane %v2577, 2
    %2580 = vrot.lane.b32.xlu0 %v2579, 64
    %v2581 = vpop.permute.xlu0 %2580
    %v2583 = vsel %vm313, %v2581, 0
    %2585 = vmatprep.subr.bf16.mxu0 0
    %2586 = vmatpush1.bf16.msra.mxu0 %v592
    %2587 = vmatprep.subr.bf16.mxu0 0
    %2588 = vmatpush1.bf16.msra.mxu0 %v593
    %2589 = vmatprep.subr.bf16.mxu0 0
    %2590 = vmatpush1.bf16.msra.mxu0 0
    %2591 = vmatprep.subr.bf16.mxu0 0
    %2592 = vmatpush1.bf16.msra.mxu0 0
    %2593 = vmatprep.subr.bf16.mxu0 0
    %2594 = vmatpush1.bf16.msra.mxu0 0
    %2595 = vmatprep.subr.bf16.mxu0 0
    %2596 = vmatpush1.bf16.msra.mxu0 0
    %2597 = vmatprep.subr.bf16.mxu0 0
    %2598 = vmatpush1.bf16.msra.mxu0 0
    %2599 = vmatprep.subr.bf16.mxu0 0
    %2600 = vmatpush1.bf16.msra.mxu0 0
    %2601 = vmatprep.subr.bf16.mxu0 0
    %2602 = vmatpush1.bf16.msra.mxu0 0
    %2603 = vmatprep.subr.bf16.mxu0 0
    %2604 = vmatpush1.bf16.msra.mxu0 0
    %2605 = vmatprep.subr.bf16.mxu0 0
    %2606 = vmatpush1.bf16.msra.mxu0 0
    %2607 = vmatprep.subr.bf16.mxu0 0
    %2608 = vmatpush1.bf16.msra.mxu0 0
    %2609 = vmatprep.subr.bf16.mxu0 0
    %2610 = vmatpush1.bf16.msra.mxu0 0
    %2611 = vmatprep.subr.bf16.mxu0 0
    %2612 = vmatpush1.bf16.msra.mxu0 0
    %2613 = vmatprep.subr.bf16.mxu0 0
    %2614 = vmatpush1.bf16.msra.mxu0 0
    %2615 = vmatprep.subr.bf16.mxu0 0
    %2616 = vmatpush1.bf16.msra.mxu0 0
    %2617 = vmatprep.mubr.bf16.mxu0 0
    %2618 = vmatmul.mubr.bf16.gmra.mrb[0].mxu0 %v2583
    %v2619 = vpop.f32.mrb[0].mxu0
    %v2620 = vadd.f32 %v291, %v2619
    %v2621 = vpop.f32.mrb[0].mxu0
    %v2622 = vpop.f32.mrb[0].mxu0
    %v2623 = vpop.f32.mrb[0].mxu0
    %2624 = vdwg.mxu0
    %v2625 = vtanh.pop %v2620
    %v2627 = vrot.slane %v2625, 4
    %2628 = vrot.lane.b32.xlu0 %v2627, 32
    %v2629 = vpop.permute.xlu0 %2628
    %v2631 = vmul.f32 %v2370, %v2629
    %2633 = vrot.lane.b32.xlu0 %v2631, 96
    %v2634 = vpop.permute.xlu0 %2633
    %2636 = vst.msk [vmem:[#allocation2 + $0x8] sm:$0x30] %vm1316, %v2634
    %v2637 = vpack.c.bf16 %v2631, %v2631
    %v2639 = vrot.slane %v2637, 2
    %2640 = vrot.lane.b32.xlu0 %v2639, 96
    %v2641 = vpop.permute.xlu0 %2640
    %v2643 = vsel %vm313, %v2641, 0
    %2645 = vmatprep.subr.bf16.mxu0 %v306
    %2646 = vmatpush1.bf16.msra.mxu0 %v305
    %2647 = vmatprep.subr.bf16.mxu0 %v308
    %2648 = vmatpush1.bf16.msra.mxu0 %v307
    %2649 = vmatprep.subr.bf16.mxu0 0
    %2650 = vmatpush1.bf16.msra.mxu0 0
    %2651 = vmatprep.subr.bf16.mxu0 0
    %2652 = vmatpush1.bf16.msra.mxu0 0
    %2653 = vmatprep.subr.bf16.mxu0 0
    %2654 = vmatpush1.bf16.msra.mxu0 0
    %2655 = vmatprep.subr.bf16.mxu0 0
    %2656 = vmatpush1.bf16.msra.mxu0 0
    %2657 = vmatprep.subr.bf16.mxu0 0
    %2658 = vmatpush1.bf16.msra.mxu0 0
    %2659 = vmatprep.subr.bf16.mxu0 0
    %2660 = vmatpush1.bf16.msra.mxu0 0
    %2661 = vmatprep.subr.bf16.mxu0 0
    %2662 = vmatpush1.bf16.msra.mxu0 0
    %2663 = vmatprep.subr.bf16.mxu0 0
    %2664 = vmatpush1.bf16.msra.mxu0 0
    %2665 = vmatprep.subr.bf16.mxu0 0
    %2666 = vmatpush1.bf16.msra.mxu0 0
    %2667 = vmatprep.subr.bf16.mxu0 0
    %2668 = vmatpush1.bf16.msra.mxu0 0
    %2669 = vmatprep.subr.bf16.mxu0 0
    %2670 = vmatpush1.bf16.msra.mxu0 0
    %2671 = vmatprep.subr.bf16.mxu0 0
    %2672 = vmatpush1.bf16.msra.mxu0 0
    %2673 = vmatprep.subr.bf16.mxu0 0
    %2674 = vmatpush1.bf16.msra.mxu0 0
    %2675 = vmatprep.subr.bf16.mxu0 0
    %2676 = vmatpush1.bf16.msra.mxu0 0
    %2677 = vmatprep.mubr.bf16.mxu0 0
    %2678 = vmatmul.mubr.bf16.gmra.mrb[0].mxu0 %v2643
    %v2679 = vpop.f32.mrb[0].mxu0
    %v2680 = vadd.f32 0.0, %v2679
    %v2681 = vpop.f32.mrb[0].mxu0
    %v2682 = vadd.f32 0.0, %v2681
    %v2683 = vpop.f32.mrb[0].mxu0
    %v2684 = vpop.f32.mrb[0].mxu0
    %2685 = vdwg.mxu0
    %v2688 = vrot.slane %v2680, 2
    %v2689 = vrot.slane %v2682, 2
    %v2692 = vadd.f32 %v263, %v2688
    %v2693 = vadd.f32 %v265, %v2689
    %v2694 = vxor.u32 %v2692, 2147483648
    %v2695 = vxor.u32 %v2693, 2147483648
    %v2696 = vmul.f32 %v2694, 1.442695
    %v2697 = vpow.pop %v2696
    %v2698 = vmul.f32 %v2695, 1.442695
    %v2699 = vpow.pop %v2698
    %v2700 = vadd.f32 %v2697, 1.0
    %v2701 = vadd.f32 %v2699, 1.0
    %v2702 = vrcp.pop %v2700
    %v2703 = vmul.f32 1.0, %v2702
    %v2704 = vrcp.pop %v2701
    %v2705 = vmul.f32 1.0, %v2704
    %v2706 = vtanh.pop %v2693
    %2708 = vrot.lane.b32.xlu0 %v2706, 96
    %v2709 = vpop.permute.xlu0 %2708
    %v2711 = vmul.f32 %v2703, %v2709
    %v2712 = vpack.c.bf16 %v2711, %v2711
    %v2714 = vrot.slane %v2712, 3
    %v2716 = vsel %vm313, %v2714, 0
    %2718 = vmatprep.subr.bf16.mxu0 0
    %2719 = vmatpush1.bf16.msra.mxu0 %v387
    %2720 = vmatprep.subr.bf16.mxu0 0
    %2721 = vmatpush1.bf16.msra.mxu0 %v388
    %2722 = vmatprep.subr.bf16.mxu0 0
    %2723 = vmatpush1.bf16.msra.mxu0 0
    %2724 = vmatprep.subr.bf16.mxu0 0
    %2725 = vmatpush1.bf16.msra.mxu0 0
    %2726 = vmatprep.subr.bf16.mxu0 0
    %2727 = vmatpush1.bf16.msra.mxu0 0
    %2728 = vmatprep.subr.bf16.mxu0 0
    %2729 = vmatpush1.bf16.msra.mxu0 0
    %2730 = vmatprep.subr.bf16.mxu0 0
    %2731 = vmatpush1.bf16.msra.mxu0 0
    %2732 = vmatprep.subr.bf16.mxu0 0
    %2733 = vmatpush1.bf16.msra.mxu0 0
    %2734 = vmatprep.subr.bf16.mxu0 0
    %2735 = vmatpush1.bf16.msra.mxu0 0
    %2736 = vmatprep.subr.bf16.mxu0 0
    %2737 = vmatpush1.bf16.msra.mxu0 0
    %2738 = vmatprep.subr.bf16.mxu0 0
    %2739 = vmatpush1.bf16.msra.mxu0 0
    %2740 = vmatprep.subr.bf16.mxu0 0
    %2741 = vmatpush1.bf16.msra.mxu0 0
    %2742 = vmatprep.subr.bf16.mxu0 0
    %2743 = vmatpush1.bf16.msra.mxu0 0
    %2744 = vmatprep.subr.bf16.mxu0 0
    %2745 = vmatpush1.bf16.msra.mxu0 0
    %2746 = vmatprep.subr.bf16.mxu0 0
    %2747 = vmatpush1.bf16.msra.mxu0 0
    %2748 = vmatprep.subr.bf16.mxu0 0
    %2749 = vmatpush1.bf16.msra.mxu0 0
    %2750 = vmatprep.mubr.bf16.mxu0 0
    %2751 = vmatmul.mubr.bf16.gmra.mrb[0].mxu0 %v2716
    %v2752 = vpop.f32.mrb[0].mxu0
    %v2753 = vadd.f32 %v284, %v2752
    %v2754 = vpop.f32.mrb[0].mxu0
    %v2755 = vpop.f32.mrb[0].mxu0
    %v2756 = vpop.f32.mrb[0].mxu0
    %2757 = vdwg.mxu0
    %v2758 = vtanh.pop %v2753
    %v2759 = vmax.f32 %v2758, 0.1
    %v2760 = vmin.f32 %v2759, 0.9
    %v2761 = vmax.f32 %v2758, -0.9
    %v2762 = vmin.f32 %v2761, 0.9
    %v2763 = vmul.f32 %v2760, 5.0
    %2765 = vrot.lane.b32.xlu0 %v2762, 96
    %v2766 = vpop.permute.xlu0 %2765
    %v2768 = vmul.f32 %v2763, %v2766
    %v2769 = vand.u32 2147483647, %v2768
    %vm2770 = vcmp.le.f32.partialorder %v2769, 0.7853982
    %vm2771 = vcmp.lt.s32.totalorder %v2768, 0
    %v2772 = vand.u32 %v2768, 2139095040
    %v2773 = vshrl.u32 %v2772, 23
    %v2774 = vsub.s32 %v2773, 127
    %v2775 = vand.u32 2147483647, %v2768
    %v2776 = vand.u32 %v2775, 8388607
    %v2777 = vor.u32 %v2776, 8388608
    %v2778 = vsub.s32 0, %v2777
    %v2779 = vadd.s32 %v2774, 1
    %vm2780 = vcmp.gt.s32.totalorder %v2779, 0
    %v2781 = vsel %vm2780, %v2779, 0
    %v2782 = vshrl.u32 %v2781, 5
    %v2783 = vand.u32 %v2781, 31
    %v2784 = vsub.s32 32, %v2783
    %v2785 = vshrl.u32 683565275, %v2784
    %v2786 = vshll.u32 683565275, %v2783
    %v2787 = vshrl.u32 2475754826, %v2784
    %v2788 = vor.u32 %v2786, %v2787
    %v2789 = vshll.u32 2475754826, %v2783
    %v2790 = vshrl.u32 2131351028, %v2784
    %v2791 = vor.u32 %v2789, %v2790
    %v2792 = vshll.u32 2131351028, %v2783
    %v2793 = vshrl.u32 2102212464, %v2784
    %v2794 = vor.u32 %v2792, %v2793
    %v2795 = vshll.u32 2102212464, %v2783
    %v2796 = vshrl.u32 920167782, %v2784
    %v2797 = vor.u32 %v2795, %v2796
    %v2798 = vshll.u32 920167782, %v2783
    %v2799 = vshrl.u32 1326507024, %v2784
    %v2800 = vor.u32 %v2798, %v2799
    %vm2801 = vcmp.lt.s32.totalorder %v2782, 1
    %vm2802 = vcmp.lt.s32.totalorder %v2782, 2
    %vm2803 = vcmp.lt.s32.totalorder %v2782, 3
    %vm2804 = vcmp.lt.s32.totalorder %v2782, 4
    %v2805 = vsel %vm2801, %v2785, %v2788
    %v2806 = vsel %vm2804, %v2794, 2102212464
    %v2807 = vsel %vm2803, %v2791, %v2806
    %v2808 = vsel %vm2802, %v2805, %v2807
    %v2809 = vsel %vm2801, %v2788, %v2791
    %v2810 = vsel %vm2804, %v2797, 920167782
    %v2811 = vsel %vm2803, %v2794, %v2810
    %v2812 = vsel %vm2802, %v2809, %v2811
    %v2813 = vsel %vm2801, %v2791, %v2794
    %v2814 = vsel %vm2804, %v2800, 1326507024
    %v2815 = vsel %vm2803, %v2797, %v2814
    %v2816 = vsel %vm2802, %v2813, %v2815
    %v2817 = vshll.u32 %v2777, 8
    %v2818 = vmul.u32.u64.compose %v2817, %v2816
    %v2819 = vextract.low.u32 %v2818
    %v2820 = vextract.high.u32 %v2818
    %v2821 = vmul.u32.u64.compose %v2817, %v2812
    %v2822 = vextract.low.u32 %v2821
    %v2823 = vextract.high.u32 %v2821
    %v2824 = vmul.u32 %v2817, %v2808
    %v2825 = vadd.s32 %v2820, %v2822
    %vm2826 = vc.u32 %v2820, %v2822
    %v2827 = vadd.s32 %v2823, 1
    %v2828 = vsel %vm2826, %v2827, %v2823
    %v2829 = vadd.s32 %v2824, %v2828
    %v2830 = vadd.s32 %v2829, 536870912
    %v2831 = vshrl.u32 %v2830, 30
    %v2832 = vshll.u32 %v2831, 30
    %v2833 = vsub.s32 %v2829, %v2832
    %vm2834 = vcmp.lt.s32.totalorder %v2833, 0
    %v2835 = vsub.s32 0, %v2833
    %v2836 = vsel %vm2834, %v2835, %v2833
    %v2837 = vclz %v2836
    %v2838 = vsub.s32 %v2837, 2
    %vm2839 = vcmp.gt.s32.totalorder 0, %v2838
    %v2840 = vsel %vm2839, 0, %v2838
    %v2841 = vsub.s32 32, %v2840
    %v2842 = vshll.u32 %v2833, %v2840
    %v2843 = vshrl.u32 %v2825, %v2841
    %v2844 = vor.u32 %v2842, %v2843
    %v2845 = vsub.s32 4294967266, %v2840
    %v2846 = vadd.s32 %v2845, 127
    %v2847 = vshll.u32 %v2846, 23
    %v2848 = vor.u32 4788187, %v2847
    %v2849 = vand.u32 2147483647, %v2848
    %v2851 = vcvt.s32.f32 %v2844
    %v2852 = vmul.f32 %v2851, %v2849
    %v2853 = vxor.u32 %v2852, 2147483648
    %v2854 = vsel %vm2771, %v2853, %v2852
    %v2855 = vsub.s32 4, %v2831
    %v2856 = vsel %vm2771, %v2855, %v2831
    %v2857 = vsel %vm2770, %v2768, %v2854
    %v2858 = vsel %vm2770, 0, %v2856
    %v2859 = vcosq.f32.pop %v2857
    %v2860 = vsinq.f32.pop %v2857
    %vm2861 = vweird.f32 %v2768
    %v2862 = vand.u32 %v2858, 3
    %vm2863 = vcmp.lt.s32.totalorder %v2862, 2
    %vm2864 = vcmp.eq.s32.totalorder %v2862, 0
    %v2865 = vxor.u32 %v2860, 2147483648
    %v2866 = vsel %vm2864, %v2859, %v2865
    %vm2867 = vcmp.eq.s32.totalorder %v2862, 2
    %v2868 = vxor.u32 %v2859, 2147483648
    %v2869 = vsel %vm2867, %v2868, %v2860
    %v2870 = vsel %vm2863, %v2866, %v2869
    %v2871 = vsel %vm2861, nan, %v2870
    %v2872 = vadd.f32 %v2760, 1e-08
    %v2873 = vrcp.pop %v2872
    %v2874 = vsub.f32 0.0, %v2873
    %v2875 = vmul.f32 %v2762, %v2762
    %2877 = vrot.lane.b32.xlu0 %v2875, 96
    %v2878 = vpop.permute.xlu0 %2877
    %v2880 = vmul.f32 %v2874, %v2878
    %v2881 = vmul.f32 %v2880, 1.442695
    %v2882 = vpow.pop %v2881
    %v2883 = vmul.f32 %v2871, %v2882
    %v2884 = vand.u32 2147483647, %v2883
    %2886 = vrot.lane.b32.xlu0 %v2703, 96
    %v2887 = vpop.permute.xlu0 %2886
    %v2889 = vmul.f32 %v2703, %v2887
    %2891 = vrot.lane.b32.xlu0 %v2705, 64
    %v2892 = vpop.permute.xlu0 %2891
    %v2894 = vmul.f32 %v2889, %v2892
    %v2896 = vrot.slane %v2576, 6
    %v2898 = vmul.f32 %v2894, %v2896
    %v2900 = vrot.slane %v2884, 2
    %v2902 = vmul.f32 %v2711, %v2900
    %2904 = vrot.lane.b32.xlu0 %v2902, 64
    %v2905 = vpop.permute.xlu0 %2904
    %v2907 = vadd.f32 %v2898, %v2905
    %v2908 = vmax.f32 %v2907, -10.0
    %v2909 = vmin.f32 %v2908, 10.0
    %v2910 = vpack.c.bf16 %v2909, %v2909
    %v2912 = vrot.slane %v2910, 3
    %2913 = vrot.lane.b32.xlu0 %v2912, 64
    %v2914 = vpop.permute.xlu0 %2913
    %v2916 = vsel %vm313, %v2914, 0
    %2918 = vmatprep.subr.bf16.mxu0 0
    %2919 = vmatpush1.bf16.msra.mxu0 %v592
    %2920 = vmatprep.subr.bf16.mxu0 0
    %2921 = vmatpush1.bf16.msra.mxu0 %v593
    %2922 = vmatprep.subr.bf16.mxu0 0
    %2923 = vmatpush1.bf16.msra.mxu0 0
    %2924 = vmatprep.subr.bf16.mxu0 0
    %2925 = vmatpush1.bf16.msra.mxu0 0
    %2926 = vmatprep.subr.bf16.mxu0 0
    %2927 = vmatpush1.bf16.msra.mxu0 0
    %2928 = vmatprep.subr.bf16.mxu0 0
    %2929 = vmatpush1.bf16.msra.mxu0 0
    %2930 = vmatprep.subr.bf16.mxu0 0
    %2931 = vmatpush1.bf16.msra.mxu0 0
    %2932 = vmatprep.subr.bf16.mxu0 0
    %2933 = vmatpush1.bf16.msra.mxu0 0
    %2934 = vmatprep.subr.bf16.mxu0 0
    %2935 = vmatpush1.bf16.msra.mxu0 0
    %2936 = vmatprep.subr.bf16.mxu0 0
    %2937 = vmatpush1.bf16.msra.mxu0 0
    %2938 = vmatprep.subr.bf16.mxu0 0
    %2939 = vmatpush1.bf16.msra.mxu0 0
    %2940 = vmatprep.subr.bf16.mxu0 0
    %2941 = vmatpush1.bf16.msra.mxu0 0
    %2942 = vmatprep.subr.bf16.mxu0 0
    %2943 = vmatpush1.bf16.msra.mxu0 0
    %2944 = vmatprep.subr.bf16.mxu0 0
    %2945 = vmatpush1.bf16.msra.mxu0 0
    %2946 = vmatprep.subr.bf16.mxu0 0
    %2947 = vmatpush1.bf16.msra.mxu0 0
    %2948 = vmatprep.subr.bf16.mxu0 0
    %2949 = vmatpush1.bf16.msra.mxu0 0
    %2950 = vmatprep.mubr.bf16.mxu0 0
    %2951 = vmatmul.mubr.bf16.gmra.mrb[0].mxu0 %v2916
    %v2952 = vpop.f32.mrb[0].mxu0
    %v2953 = vadd.f32 %v291, %v2952
    %v2954 = vpop.f32.mrb[0].mxu0
    %v2955 = vpop.f32.mrb[0].mxu0
    %v2956 = vpop.f32.mrb[0].mxu0
    %2957 = vdwg.mxu0
    %v2958 = vtanh.pop %v2953
    %v2960 = vrot.slane %v2958, 2
    %2961 = vrot.lane.b32.xlu0 %v2960, 32
    %v2962 = vpop.permute.xlu0 %2961
    %v2964 = vmul.f32 %v2703, %v2962
    %2966 = vrot.lane.b32.xlu0 %v2964, 96
    %v2967 = vpop.permute.xlu0 %2966
    %2969 = vst.msk [vmem:[#allocation2 + $0x8] sm:$0xc0] %vm1650, %v2967
    %v2970 = vld [vmem:[#allocation2] sm:$0xff]
    %v2971 = vld [vmem:[#allocation2 + $0x8] sm:$0xff]
    %v2972 = vpack.c.bf16 %v2971, %v2970
    %v2973 = vld [vmem:[#allocation15] sm:$0xff]
    %v2974 = vld [vmem:[#allocation15 + $0x8] sm:$0xff]
    %v2975 = vld [vmem:[#allocation15 + $0x10] sm:$0xff]
    %v2976 = vld [vmem:[#allocation15 + $0x18] sm:$0xff]
    %v2977 = vld [vmem:[#allocation17] sm:$0x3]
    %v2979 = vlaneseq
    %v2980 = vshrl.u32 %v2979, 7
    %v2981 = vsub.s32 0, %v2980
    %v2982 = vrot.slane %v2977, %v2981
    %v2983 = vlaneseq
    %v2984 = vshrl.u32 %v2983, 7
    %v2985 = vsub.s32 1, %v2984
    %v2986 = vrot.slane %v2977, %v2985
    %v2993 = vunpack.c.l.b16 %v2973
    %v2994 = vunpack.c.h.b16 %v2973
    %v2995 = vunpack.c.l.b16 %v2974
    %v2996 = vunpack.c.h.b16 %v2974
    %v2997 = vunpack.c.l.b16 %v2975
    %v2998 = vunpack.c.h.b16 %v2975
    %v2999 = vunpack.c.l.b16 %v2976
    %v3000 = vunpack.c.h.b16 %v2976
    %v3001 = vpack.c.b16 %v2995, %v2993
    %v3002 = vpack.c.b16 %v2996, %v2994
    %v3003 = vpack.c.b16 %v2999, %v2997
    %v3004 = vpack.c.b16 %v3000, %v2998
    %v3010 = vsel %vm313, %v2972, 0
    %3012 = vmatprep.subr.bf16.mxu0 %v3002
    %3013 = vmatpush1.bf16.msra.mxu0 %v3001
    %3014 = vmatprep.subr.bf16.mxu0 %v3004
    %3015 = vmatpush1.bf16.msra.mxu0 %v3003
    %3016 = vmatprep.subr.bf16.mxu0 0
    %3017 = vmatpush1.bf16.msra.mxu0 0
    %3018 = vmatprep.subr.bf16.mxu0 0
    %3019 = vmatpush1.bf16.msra.mxu0 0
    %3020 = vmatprep.subr.bf16.mxu0 0
    %3021 = vmatpush1.bf16.msra.mxu0 0
    %3022 = vmatprep.subr.bf16.mxu0 0
    %3023 = vmatpush1.bf16.msra.mxu0 0
    %3024 = vmatprep.subr.bf16.mxu0 0
    %3025 = vmatpush1.bf16.msra.mxu0 0
    %3026 = vmatprep.subr.bf16.mxu0 0
    %3027 = vmatpush1.bf16.msra.mxu0 0
    %3028 = vmatprep.subr.bf16.mxu0 0
    %3029 = vmatpush1.bf16.msra.mxu0 0
    %3030 = vmatprep.subr.bf16.mxu0 0
    %3031 = vmatpush1.bf16.msra.mxu0 0
    %3032 = vmatprep.subr.bf16.mxu0 0
    %3033 = vmatpush1.bf16.msra.mxu0 0
    %3034 = vmatprep.subr.bf16.mxu0 0
    %3035 = vmatpush1.bf16.msra.mxu0 0
    %3036 = vmatprep.subr.bf16.mxu0 0
    %3037 = vmatpush1.bf16.msra.mxu0 0
    %3038 = vmatprep.subr.bf16.mxu0 0
    %3039 = vmatpush1.bf16.msra.mxu0 0
    %3040 = vmatprep.subr.bf16.mxu0 0
    %3041 = vmatpush1.bf16.msra.mxu0 0
    %3042 = vmatprep.subr.bf16.mxu0 0
    %3043 = vmatpush1.bf16.msra.mxu0 0
    %3044 = vmatprep.mubr.bf16.mxu0 0
    %3045 = vmatmul.mubr.bf16.gmra.mrb[0].mxu0 %v3010
    %v3046 = vpop.f32.mrb[0].mxu0
    %v3047 = vadd.f32 %v2982, %v3046
    %v3048 = vpop.f32.mrb[0].mxu0
    %v3049 = vadd.f32 %v2986, %v3048
    %v3050 = vpop.f32.mrb[0].mxu0
    %v3051 = vadd.f32 %v2982, %v3050
    %v3052 = vpop.f32.mrb[0].mxu0
    %v3053 = vadd.f32 %v2986, %v3052
    %3054 = vdwg.mxu0
    %v3055 = vld [vmem:[%s9] sm:$0xff]
    %v3056 = vld [vmem:[%s9 + $0x8] sm:$0xff]
    %v3057 = vld [vmem:[%s9 + $0x10] sm:$0xff]
    %v3058 = vld [vmem:[%s9 + $0x18] sm:$0xff]
    %v3059 = vld [vmem:[#allocation18] sm:$0xf]
    %v3060 = vld [vmem:[#allocation18 + $0x4] sm:$0xf]
    %v3061 = vld [vmem:[#allocation18 + $0x8] sm:$0xf]
    %v3062 = vld [vmem:[#allocation18 + $0xc] sm:$0xf]
    %v3063 = vld [vmem:[%s13] sm:$0xf]
    %v3064 = vld [vmem:[%s13 + $0x4] sm:$0xf]
    %v3065 = vld [vmem:[%s13 + $0x8] sm:$0xf]
    %v3066 = vld [vmem:[%s13 + $0xc] sm:$0xf]
    %v3067 = vld [vmem:[#allocation20] sm:$0x1]
    %v3069 = vlaneseq
    %v3070 = vshrl.u32 %v3069, 7
    %v3071 = vsub.s32 0, %v3070
    %v3072 = vrot.slane %v3067, %v3071
    %v3074 = vld [vmem:[%s14] sm:$0x1]
    %v3076 = vlaneseq
    %v3077 = vshrl.u32 %v3076, 7
    %v3078 = vsub.s32 0, %v3077
    %v3079 = vrot.slane %v3074, %v3078
    %v3085 = vunpack.c.l.b16 %v3055
    %v3086 = vunpack.c.h.b16 %v3055
    %v3087 = vunpack.c.l.b16 %v3056
    %v3088 = vunpack.c.h.b16 %v3056
    %v3089 = vunpack.c.l.b16 %v3057
    %v3090 = vunpack.c.h.b16 %v3057
    %v3091 = vunpack.c.l.b16 %v3058
    %v3092 = vunpack.c.h.b16 %v3058
    %v3093 = vpack.c.b16 %v3087, %v3085
    %v3094 = vpack.c.b16 %v3088, %v3086
    %v3095 = vpack.c.b16 %v3091, %v3089
    %v3096 = vpack.c.b16 %v3092, %v3090
    %3101 = vmatprep.subr.bf16.mxu0 %v3094
    %3102 = vmatpush1.bf16.msra.mxu0 %v3093
    %3103 = vmatprep.subr.bf16.mxu0 %v3096
    %3104 = vmatpush1.bf16.msra.mxu0 %v3095
    %3105 = vmatprep.subr.bf16.mxu0 0
    %3106 = vmatpush1.bf16.msra.mxu0 0
    %3107 = vmatprep.subr.bf16.mxu0 0
    %3108 = vmatpush1.bf16.msra.mxu0 0
    %3109 = vmatprep.subr.bf16.mxu0 0
    %3110 = vmatpush1.bf16.msra.mxu0 0
    %3111 = vmatprep.subr.bf16.mxu0 0
    %3112 = vmatpush1.bf16.msra.mxu0 0
    %3113 = vmatprep.subr.bf16.mxu0 0
    %3114 = vmatpush1.bf16.msra.mxu0 0
    %3115 = vmatprep.subr.bf16.mxu0 0
    %3116 = vmatpush1.bf16.msra.mxu0 0
    %3117 = vmatprep.subr.bf16.mxu0 0
    %3118 = vmatpush1.bf16.msra.mxu0 0
    %3119 = vmatprep.subr.bf16.mxu0 0
    %3120 = vmatpush1.bf16.msra.mxu0 0
    %3121 = vmatprep.subr.bf16.mxu0 0
    %3122 = vmatpush1.bf16.msra.mxu0 0
    %3123 = vmatprep.subr.bf16.mxu0 0
    %3124 = vmatpush1.bf16.msra.mxu0 0
    %3125 = vmatprep.subr.bf16.mxu0 0
    %3126 = vmatpush1.bf16.msra.mxu0 0
    %3127 = vmatprep.subr.bf16.mxu0 0
    %3128 = vmatpush1.bf16.msra.mxu0 0
    %3129 = vmatprep.subr.bf16.mxu0 0
    %3130 = vmatpush1.bf16.msra.mxu0 0
    %3131 = vmatprep.subr.bf16.mxu0 0
    %3132 = vmatpush1.bf16.msra.mxu0 0
    %3133 = vmatprep.mubr.bf16.mxu0 0
    %3134 = vmatmul.mubr.bf16.gmra.mrb[0].mxu0 %v315
    %v3135 = vpop.f32.mrb[0].mxu0
    %v3136 = vadd.f32 0.0, %v3135
    %v3137 = vpop.f32.mrb[0].mxu0
    %v3138 = vadd.f32 0.0, %v3137
    %v3139 = vpop.f32.mrb[0].mxu0
    %v3140 = vpop.f32.mrb[0].mxu0
    %3141 = vdwg.mxu0
    %v3142 = vadd.f32 %v3047, %v3136
    %v3143 = vadd.f32 %v3049, %v3138
    %v3144 = vxor.u32 %v3142, 2147483648
    %v3145 = vxor.u32 %v3143, 2147483648
    %v3146 = vmul.f32 %v3144, 1.442695
    %v3147 = vpow.pop %v3146
    %v3148 = vmul.f32 %v3145, 1.442695
    %v3149 = vpow.pop %v3148
    %v3150 = vadd.f32 %v3147, 1.0
    %v3151 = vadd.f32 %v3149, 1.0
    %v3152 = vrcp.pop %v3150
    %v3153 = vmul.f32 1.0, %v3152
    %v3154 = vrcp.pop %v3151
    %v3155 = vmul.f32 1.0, %v3154
    %v3156 = vtanh.pop %v3143
    %3158 = vrot.lane.b32.xlu0 %v3156, 96
    %v3159 = vpop.permute.xlu0 %3158
    %v3161 = vmul.f32 %v3153, %v3159
    %v3162 = vpack.c.bf16 %v3161, %v3161
    %v3167 = vunpack.c.l.b16 %v3059
    %v3168 = vunpack.c.l.b16 %v3060
    %v3169 = vunpack.c.l.b16 %v3061
    %v3170 = vunpack.c.l.b16 %v3062
    %v3171 = vpack.c.b16 %v3168, %v3167
    %v3172 = vpack.c.b16 %v3170, %v3169
    %v3176 = vsel %vm313, %v3162, 0
    %3178 = vmatprep.subr.bf16.mxu0 0
    %3179 = vmatpush1.bf16.msra.mxu0 %v3171
    %3180 = vmatprep.subr.bf16.mxu0 0
    %3181 = vmatpush1.bf16.msra.mxu0 %v3172
    %3182 = vmatprep.subr.bf16.mxu0 0
    %3183 = vmatpush1.bf16.msra.mxu0 0
    %3184 = vmatprep.subr.bf16.mxu0 0
    %3185 = vmatpush1.bf16.msra.mxu0 0
    %3186 = vmatprep.subr.bf16.mxu0 0
    %3187 = vmatpush1.bf16.msra.mxu0 0
    %3188 = vmatprep.subr.bf16.mxu0 0
    %3189 = vmatpush1.bf16.msra.mxu0 0
    %3190 = vmatprep.subr.bf16.mxu0 0
    %3191 = vmatpush1.bf16.msra.mxu0 0
    %3192 = vmatprep.subr.bf16.mxu0 0
    %3193 = vmatpush1.bf16.msra.mxu0 0
    %3194 = vmatprep.subr.bf16.mxu0 0
    %3195 = vmatpush1.bf16.msra.mxu0 0
    %3196 = vmatprep.subr.bf16.mxu0 0
    %3197 = vmatpush1.bf16.msra.mxu0 0
    %3198 = vmatprep.subr.bf16.mxu0 0
    %3199 = vmatpush1.bf16.msra.mxu0 0
    %3200 = vmatprep.subr.bf16.mxu0 0
    %3201 = vmatpush1.bf16.msra.mxu0 0
    %3202 = vmatprep.subr.bf16.mxu0 0
    %3203 = vmatpush1.bf16.msra.mxu0 0
    %3204 = vmatprep.subr.bf16.mxu0 0
    %3205 = vmatpush1.bf16.msra.mxu0 0
    %3206 = vmatprep.subr.bf16.mxu0 0
    %3207 = vmatpush1.bf16.msra.mxu0 0
    %3208 = vmatprep.subr.bf16.mxu0 0
    %3209 = vmatpush1.bf16.msra.mxu0 0
    %3210 = vmatprep.mubr.bf16.mxu0 0
    %3211 = vmatmul.mubr.bf16.gmra.mrb[0].mxu0 %v3176
    %v3212 = vpop.f32.mrb[0].mxu0
    %v3213 = vadd.f32 %v3072, %v3212
    %v3214 = vpop.f32.mrb[0].mxu0
    %v3215 = vpop.f32.mrb[0].mxu0
    %v3216 = vpop.f32.mrb[0].mxu0
    %3217 = vdwg.mxu0
    %v3218 = vtanh.pop %v3213
    %v3219 = vmax.f32 %v3218, 0.1
    %v3220 = vmin.f32 %v3219, 0.9
    %v3221 = vmax.f32 %v3218, -0.9
    %v3222 = vmin.f32 %v3221, 0.9
    %v3223 = vmul.f32 %v3220, 5.0
    %3225 = vrot.lane.b32.xlu0 %v3222, 96
    %v3226 = vpop.permute.xlu0 %3225
    %v3228 = vmul.f32 %v3223, %v3226
    %v3229 = vand.u32 2147483647, %v3228
    %vm3230 = vcmp.le.f32.partialorder %v3229, 0.7853982
    %vm3231 = vcmp.lt.s32.totalorder %v3228, 0
    %v3232 = vand.u32 %v3228, 2139095040
    %v3233 = vshrl.u32 %v3232, 23
    %v3234 = vsub.s32 %v3233, 127
    %v3235 = vand.u32 2147483647, %v3228
    %v3236 = vand.u32 %v3235, 8388607
    %v3237 = vor.u32 %v3236, 8388608
    %v3238 = vsub.s32 0, %v3237
    %v3239 = vadd.s32 %v3234, 1
    %vm3240 = vcmp.gt.s32.totalorder %v3239, 0
    %v3241 = vsel %vm3240, %v3239, 0
    %v3242 = vshrl.u32 %v3241, 5
    %v3243 = vand.u32 %v3241, 31
    %v3244 = vsub.s32 32, %v3243
    %v3245 = vshrl.u32 683565275, %v3244
    %v3246 = vshll.u32 683565275, %v3243
    %v3247 = vshrl.u32 2475754826, %v3244
    %v3248 = vor.u32 %v3246, %v3247
    %v3249 = vshll.u32 2475754826, %v3243
    %v3250 = vshrl.u32 2131351028, %v3244
    %v3251 = vor.u32 %v3249, %v3250
    %v3252 = vshll.u32 2131351028, %v3243
    %v3253 = vshrl.u32 2102212464, %v3244
    %v3254 = vor.u32 %v3252, %v3253
    %v3255 = vshll.u32 2102212464, %v3243
    %v3256 = vshrl.u32 920167782, %v3244
    %v3257 = vor.u32 %v3255, %v3256
    %v3258 = vshll.u32 920167782, %v3243
    %v3259 = vshrl.u32 1326507024, %v3244
    %v3260 = vor.u32 %v3258, %v3259
    %vm3261 = vcmp.lt.s32.totalorder %v3242, 1
    %vm3262 = vcmp.lt.s32.totalorder %v3242, 2
    %vm3263 = vcmp.lt.s32.totalorder %v3242, 3
    %vm3264 = vcmp.lt.s32.totalorder %v3242, 4
    %v3265 = vsel %vm3261, %v3245, %v3248
    %v3266 = vsel %vm3264, %v3254, 2102212464
    %v3267 = vsel %vm3263, %v3251, %v3266
    %v3268 = vsel %vm3262, %v3265, %v3267
    %v3269 = vsel %vm3261, %v3248, %v3251
    %v3270 = vsel %vm3264, %v3257, 920167782
    %v3271 = vsel %vm3263, %v3254, %v3270
    %v3272 = vsel %vm3262, %v3269, %v3271
    %v3273 = vsel %vm3261, %v3251, %v3254
    %v3274 = vsel %vm3264, %v3260, 1326507024
    %v3275 = vsel %vm3263, %v3257, %v3274
    %v3276 = vsel %vm3262, %v3273, %v3275
    %v3277 = vshll.u32 %v3237, 8
    %v3278 = vmul.u32.u64.compose %v3277, %v3276
    %v3279 = vextract.low.u32 %v3278
    %v3280 = vextract.high.u32 %v3278
    %v3281 = vmul.u32.u64.compose %v3277, %v3272
    %v3282 = vextract.low.u32 %v3281
    %v3283 = vextract.high.u32 %v3281
    %v3284 = vmul.u32 %v3277, %v3268
    %v3285 = vadd.s32 %v3280, %v3282
    %vm3286 = vc.u32 %v3280, %v3282
    %v3287 = vadd.s32 %v3283, 1
    %v3288 = vsel %vm3286, %v3287, %v3283
    %v3289 = vadd.s32 %v3284, %v3288
    %v3290 = vadd.s32 %v3289, 536870912
    %v3291 = vshrl.u32 %v3290, 30
    %v3292 = vshll.u32 %v3291, 30
    %v3293 = vsub.s32 %v3289, %v3292
    %vm3294 = vcmp.lt.s32.totalorder %v3293, 0
    %v3295 = vsub.s32 0, %v3293
    %v3296 = vsel %vm3294, %v3295, %v3293
    %v3297 = vclz %v3296
    %v3298 = vsub.s32 %v3297, 2
    %vm3299 = vcmp.gt.s32.totalorder 0, %v3298
    %v3300 = vsel %vm3299, 0, %v3298
    %v3301 = vsub.s32 32, %v3300
    %v3302 = vshll.u32 %v3293, %v3300
    %v3303 = vshrl.u32 %v3285, %v3301
    %v3304 = vor.u32 %v3302, %v3303
    %v3305 = vsub.s32 4294967266, %v3300
    %v3306 = vadd.s32 %v3305, 127
    %v3307 = vshll.u32 %v3306, 23
    %v3308 = vor.u32 4788187, %v3307
    %v3309 = vand.u32 2147483647, %v3308
    %v3311 = vcvt.s32.f32 %v3304
    %v3312 = vmul.f32 %v3311, %v3309
    %v3313 = vxor.u32 %v3312, 2147483648
    %v3314 = vsel %vm3231, %v3313, %v3312
    %v3315 = vsub.s32 4, %v3291
    %v3316 = vsel %vm3231, %v3315, %v3291
    %v3317 = vsel %vm3230, %v3228, %v3314
    %v3318 = vsel %vm3230, 0, %v3316
    %v3319 = vcosq.f32.pop %v3317
    %v3320 = vsinq.f32.pop %v3317
    %vm3321 = vweird.f32 %v3228
    %v3322 = vand.u32 %v3318, 3
    %vm3323 = vcmp.lt.s32.totalorder %v3322, 2
    %vm3324 = vcmp.eq.s32.totalorder %v3322, 0
    %v3325 = vxor.u32 %v3320, 2147483648
    %v3326 = vsel %vm3324, %v3319, %v3325
    %vm3327 = vcmp.eq.s32.totalorder %v3322, 2
    %v3328 = vxor.u32 %v3319, 2147483648
    %v3329 = vsel %vm3327, %v3328, %v3320
    %v3330 = vsel %vm3323, %v3326, %v3329
    %v3331 = vsel %vm3321, nan, %v3330
    %v3332 = vadd.f32 %v3220, 1e-08
    %v3333 = vrcp.pop %v3332
    %v3334 = vsub.f32 0.0, %v3333
    %v3335 = vmul.f32 %v3222, %v3222
    %3337 = vrot.lane.b32.xlu0 %v3335, 96
    %v3338 = vpop.permute.xlu0 %3337
    %v3340 = vmul.f32 %v3334, %v3338
    %v3341 = vmul.f32 %v3340, 1.442695
    %v3342 = vpow.pop %v3341
    %v3343 = vmul.f32 %v3331, %v3342
    %v3344 = vand.u32 2147483647, %v3343
    %3346 = vrot.lane.b32.xlu0 %v3153, 96
    %v3347 = vpop.permute.xlu0 %3346
    %v3349 = vmul.f32 %v3153, %v3347
    %3351 = vrot.lane.b32.xlu0 %v3155, 64
    %v3352 = vpop.permute.xlu0 %3351
    %v3354 = vmul.f32 %v3349, %v3352
    %v3355 = vmul.f32 %v3354, 0.0
    %v3356 = vmul.f32 %v3161, %v3344
    %3358 = vrot.lane.b32.xlu0 %v3356, 64
    %v3359 = vpop.permute.xlu0 %3358
    %v3361 = vadd.f32 %v3355, %v3359
    %v3362 = vmax.f32 %v3361, -10.0
    %v3363 = vmin.f32 %v3362, 10.0
    %v3364 = vpack.c.bf16 %v3363, %v3363
    %3366 = vrot.lane.b32.xlu0 %v3364, 64
    %v3367 = vpop.permute.xlu0 %3366
    %v3372 = vunpack.c.l.b16 %v3063
    %v3373 = vunpack.c.l.b16 %v3064
    %v3374 = vunpack.c.l.b16 %v3065
    %v3375 = vunpack.c.l.b16 %v3066
    %v3376 = vpack.c.b16 %v3373, %v3372
    %v3377 = vpack.c.b16 %v3375, %v3374
    %v3381 = vsel %vm313, %v3367, 0
    %3383 = vmatprep.subr.bf16.mxu0 0
    %3384 = vmatpush1.bf16.msra.mxu0 %v3376
    %3385 = vmatprep.subr.bf16.mxu0 0
    %3386 = vmatpush1.bf16.msra.mxu0 %v3377
    %3387 = vmatprep.subr.bf16.mxu0 0
    %3388 = vmatpush1.bf16.msra.mxu0 0
    %3389 = vmatprep.subr.bf16.mxu0 0
    %3390 = vmatpush1.bf16.msra.mxu0 0
    %3391 = vmatprep.subr.bf16.mxu0 0
    %3392 = vmatpush1.bf16.msra.mxu0 0
    %3393 = vmatprep.subr.bf16.mxu0 0
    %3394 = vmatpush1.bf16.msra.mxu0 0
    %3395 = vmatprep.subr.bf16.mxu0 0
    %3396 = vmatpush1.bf16.msra.mxu0 0
    %3397 = vmatprep.subr.bf16.mxu0 0
    %3398 = vmatpush1.bf16.msra.mxu0 0
    %3399 = vmatprep.subr.bf16.mxu0 0
    %3400 = vmatpush1.bf16.msra.mxu0 0
    %3401 = vmatprep.subr.bf16.mxu0 0
    %3402 = vmatpush1.bf16.msra.mxu0 0
    %3403 = vmatprep.subr.bf16.mxu0 0
    %3404 = vmatpush1.bf16.msra.mxu0 0
    %3405 = vmatprep.subr.bf16.mxu0 0
    %3406 = vmatpush1.bf16.msra.mxu0 0
    %3407 = vmatprep.subr.bf16.mxu0 0
    %3408 = vmatpush1.bf16.msra.mxu0 0
    %3409 = vmatprep.subr.bf16.mxu0 0
    %3410 = vmatpush1.bf16.msra.mxu0 0
    %3411 = vmatprep.subr.bf16.mxu0 0
    %3412 = vmatpush1.bf16.msra.mxu0 0
    %3413 = vmatprep.subr.bf16.mxu0 0
    %3414 = vmatpush1.bf16.msra.mxu0 0
    %3415 = vmatprep.mubr.bf16.mxu0 0
    %3416 = vmatmul.mubr.bf16.gmra.mrb[0].mxu0 %v3381
    %v3417 = vpop.f32.mrb[0].mxu0
    %v3418 = vadd.f32 %v3079, %v3417
    %v3419 = vpop.f32.mrb[0].mxu0
    %v3420 = vpop.f32.mrb[0].mxu0
    %v3421 = vpop.f32.mrb[0].mxu0
    %3422 = vdwg.mxu0
    %v3423 = vtanh.pop %v3418
    %3425 = vrot.lane.b32.xlu0 %v3423, 32
    %v3426 = vpop.permute.xlu0 %3425
    %v3428 = vmul.f32 %v3153, %v3426
    %3430 = vrot.lane.b32.xlu0 %v3428, 96
    %v3431 = vpop.permute.xlu0 %3430
    %3433 = vst.msk [vmem:[#allocation21] sm:$0x3] %vm649, %v3431
    %v3434 = vpack.c.bf16 %v3428, %v3428
    %3436 = vrot.lane.b32.xlu0 %v3434, 96
    %v3437 = vpop.permute.xlu0 %3436
    %v3439 = vsel %vm313, %v3437, 0
    %3441 = vmatprep.subr.bf16.mxu0 %v3094
    %3442 = vmatpush1.bf16.msra.mxu0 %v3093
    %3443 = vmatprep.subr.bf16.mxu0 %v3096
    %3444 = vmatpush1.bf16.msra.mxu0 %v3095
    %3445 = vmatprep.subr.bf16.mxu0 0
    %3446 = vmatpush1.bf16.msra.mxu0 0
    %3447 = vmatprep.subr.bf16.mxu0 0
    %3448 = vmatpush1.bf16.msra.mxu0 0
    %3449 = vmatprep.subr.bf16.mxu0 0
    %3450 = vmatpush1.bf16.msra.mxu0 0
    %3451 = vmatprep.subr.bf16.mxu0 0
    %3452 = vmatpush1.bf16.msra.mxu0 0
    %3453 = vmatprep.subr.bf16.mxu0 0
    %3454 = vmatpush1.bf16.msra.mxu0 0
    %3455 = vmatprep.subr.bf16.mxu0 0
    %3456 = vmatpush1.bf16.msra.mxu0 0
    %3457 = vmatprep.subr.bf16.mxu0 0
    %3458 = vmatpush1.bf16.msra.mxu0 0
    %3459 = vmatprep.subr.bf16.mxu0 0
    %3460 = vmatpush1.bf16.msra.mxu0 0
    %3461 = vmatprep.subr.bf16.mxu0 0
    %3462 = vmatpush1.bf16.msra.mxu0 0
    %3463 = vmatprep.subr.bf16.mxu0 0
    %3464 = vmatpush1.bf16.msra.mxu0 0
    %3465 = vmatprep.subr.bf16.mxu0 0
    %3466 = vmatpush1.bf16.msra.mxu0 0
    %3467 = vmatprep.subr.bf16.mxu0 0
    %3468 = vmatpush1.bf16.msra.mxu0 0
    %3469 = vmatprep.subr.bf16.mxu0 0
    %3470 = vmatpush1.bf16.msra.mxu0 0
    %3471 = vmatprep.subr.bf16.mxu0 0
    %3472 = vmatpush1.bf16.msra.mxu0 0
    %3473 = vmatprep.mubr.bf16.mxu0 0
    %3474 = vmatmul.mubr.bf16.gmra.mrb[0].mxu0 %v3439
    %v3475 = vpop.f32.mrb[0].mxu0
    %v3476 = vadd.f32 0.0, %v3475
    %v3477 = vpop.f32.mrb[0].mxu0
    %v3478 = vadd.f32 0.0, %v3477
    %v3479 = vpop.f32.mrb[0].mxu0
    %v3480 = vpop.f32.mrb[0].mxu0
    %3481 = vdwg.mxu0
    %v3484 = vrot.slane %v3476, 6
    %v3485 = vrot.slane %v3478, 6
    %v3488 = vadd.f32 %v3047, %v3484
    %v3489 = vadd.f32 %v3049, %v3485
    %v3490 = vxor.u32 %v3488, 2147483648
    %v3491 = vxor.u32 %v3489, 2147483648
    %v3492 = vmul.f32 %v3490, 1.442695
    %v3493 = vpow.pop %v3492
    %v3494 = vmul.f32 %v3491, 1.442695
    %v3495 = vpow.pop %v3494
    %v3496 = vadd.f32 %v3493, 1.0
    %v3497 = vadd.f32 %v3495, 1.0
    %v3498 = vrcp.pop %v3496
    %v3499 = vmul.f32 1.0, %v3498
    %v3500 = vrcp.pop %v3497
    %v3501 = vmul.f32 1.0, %v3500
    %v3502 = vtanh.pop %v3489
    %3504 = vrot.lane.b32.xlu0 %v3502, 96
    %v3505 = vpop.permute.xlu0 %3504
    %v3507 = vmul.f32 %v3499, %v3505
    %v3508 = vpack.c.bf16 %v3507, %v3507
    %v3510 = vrot.slane %v3508, 1
    %v3512 = vsel %vm313, %v3510, 0
    %3514 = vmatprep.subr.bf16.mxu0 0
    %3515 = vmatpush1.bf16.msra.mxu0 %v3171
    %3516 = vmatprep.subr.bf16.mxu0 0
    %3517 = vmatpush1.bf16.msra.mxu0 %v3172
    %3518 = vmatprep.subr.bf16.mxu0 0
    %3519 = vmatpush1.bf16.msra.mxu0 0
    %3520 = vmatprep.subr.bf16.mxu0 0
    %3521 = vmatpush1.bf16.msra.mxu0 0
    %3522 = vmatprep.subr.bf16.mxu0 0
    %3523 = vmatpush1.bf16.msra.mxu0 0
    %3524 = vmatprep.subr.bf16.mxu0 0
    %3525 = vmatpush1.bf16.msra.mxu0 0
    %3526 = vmatprep.subr.bf16.mxu0 0
    %3527 = vmatpush1.bf16.msra.mxu0 0
    %3528 = vmatprep.subr.bf16.mxu0 0
    %3529 = vmatpush1.bf16.msra.mxu0 0
    %3530 = vmatprep.subr.bf16.mxu0 0
    %3531 = vmatpush1.bf16.msra.mxu0 0
    %3532 = vmatprep.subr.bf16.mxu0 0
    %3533 = vmatpush1.bf16.msra.mxu0 0
    %3534 = vmatprep.subr.bf16.mxu0 0
    %3535 = vmatpush1.bf16.msra.mxu0 0
    %3536 = vmatprep.subr.bf16.mxu0 0
    %3537 = vmatpush1.bf16.msra.mxu0 0
    %3538 = vmatprep.subr.bf16.mxu0 0
    %3539 = vmatpush1.bf16.msra.mxu0 0
    %3540 = vmatprep.subr.bf16.mxu0 0
    %3541 = vmatpush1.bf16.msra.mxu0 0
    %3542 = vmatprep.subr.bf16.mxu0 0
    %3543 = vmatpush1.bf16.msra.mxu0 0
    %3544 = vmatprep.subr.bf16.mxu0 0
    %3545 = vmatpush1.bf16.msra.mxu0 0
    %3546 = vmatprep.mubr.bf16.mxu0 0
    %3547 = vmatmul.mubr.bf16.gmra.mrb[0].mxu0 %v3512
    %v3548 = vpop.f32.mrb[0].mxu0
    %v3549 = vadd.f32 %v3072, %v3548
    %v3550 = vpop.f32.mrb[0].mxu0
    %v3551 = vpop.f32.mrb[0].mxu0
    %v3552 = vpop.f32.mrb[0].mxu0
    %3553 = vdwg.mxu0
    %v3554 = vtanh.pop %v3549
    %v3555 = vmax.f32 %v3554, 0.1
    %v3556 = vmin.f32 %v3555, 0.9
    %v3557 = vmax.f32 %v3554, -0.9
    %v3558 = vmin.f32 %v3557, 0.9
    %v3559 = vmul.f32 %v3556, 5.0
    %3561 = vrot.lane.b32.xlu0 %v3558, 96
    %v3562 = vpop.permute.xlu0 %3561
    %v3564 = vmul.f32 %v3559, %v3562
    %v3565 = vand.u32 2147483647, %v3564
    %vm3566 = vcmp.le.f32.partialorder %v3565, 0.7853982
    %vm3567 = vcmp.lt.s32.totalorder %v3564, 0
    %v3568 = vand.u32 %v3564, 2139095040
    %v3569 = vshrl.u32 %v3568, 23
    %v3570 = vsub.s32 %v3569, 127
    %v3571 = vand.u32 2147483647, %v3564
    %v3572 = vand.u32 %v3571, 8388607
    %v3573 = vor.u32 %v3572, 8388608
    %v3574 = vsub.s32 0, %v3573
    %v3575 = vadd.s32 %v3570, 1
    %vm3576 = vcmp.gt.s32.totalorder %v3575, 0
    %v3577 = vsel %vm3576, %v3575, 0
    %v3578 = vshrl.u32 %v3577, 5
    %v3579 = vand.u32 %v3577, 31
    %v3580 = vsub.s32 32, %v3579
    %v3581 = vshrl.u32 683565275, %v3580
    %v3582 = vshll.u32 683565275, %v3579
    %v3583 = vshrl.u32 2475754826, %v3580
    %v3584 = vor.u32 %v3582, %v3583
    %v3585 = vshll.u32 2475754826, %v3579
    %v3586 = vshrl.u32 2131351028, %v3580
    %v3587 = vor.u32 %v3585, %v3586
    %v3588 = vshll.u32 2131351028, %v3579
    %v3589 = vshrl.u32 2102212464, %v3580
    %v3590 = vor.u32 %v3588, %v3589
    %v3591 = vshll.u32 2102212464, %v3579
    %v3592 = vshrl.u32 920167782, %v3580
    %v3593 = vor.u32 %v3591, %v3592
    %v3594 = vshll.u32 920167782, %v3579
    %v3595 = vshrl.u32 1326507024, %v3580
    %v3596 = vor.u32 %v3594, %v3595
    %vm3597 = vcmp.lt.s32.totalorder %v3578, 1
    %vm3598 = vcmp.lt.s32.totalorder %v3578, 2
    %vm3599 = vcmp.lt.s32.totalorder %v3578, 3
    %vm3600 = vcmp.lt.s32.totalorder %v3578, 4
    %v3601 = vsel %vm3597, %v3581, %v3584
    %v3602 = vsel %vm3600, %v3590, 2102212464
    %v3603 = vsel %vm3599, %v3587, %v3602
    %v3604 = vsel %vm3598, %v3601, %v3603
    %v3605 = vsel %vm3597, %v3584, %v3587
    %v3606 = vsel %vm3600, %v3593, 920167782
    %v3607 = vsel %vm3599, %v3590, %v3606
    %v3608 = vsel %vm3598, %v3605, %v3607
    %v3609 = vsel %vm3597, %v3587, %v3590
    %v3610 = vsel %vm3600, %v3596, 1326507024
    %v3611 = vsel %vm3599, %v3593, %v3610
    %v3612 = vsel %vm3598, %v3609, %v3611
    %v3613 = vshll.u32 %v3573, 8
    %v3614 = vmul.u32.u64.compose %v3613, %v3612
    %v3615 = vextract.low.u32 %v3614
    %v3616 = vextract.high.u32 %v3614
    %v3617 = vmul.u32.u64.compose %v3613, %v3608
    %v3618 = vextract.low.u32 %v3617
    %v3619 = vextract.high.u32 %v3617
    %v3620 = vmul.u32 %v3613, %v3604
    %v3621 = vadd.s32 %v3616, %v3618
    %vm3622 = vc.u32 %v3616, %v3618
    %v3623 = vadd.s32 %v3619, 1
    %v3624 = vsel %vm3622, %v3623, %v3619
    %v3625 = vadd.s32 %v3620, %v3624
    %v3626 = vadd.s32 %v3625, 536870912
    %v3627 = vshrl.u32 %v3626, 30
    %v3628 = vshll.u32 %v3627, 30
    %v3629 = vsub.s32 %v3625, %v3628
    %vm3630 = vcmp.lt.s32.totalorder %v3629, 0
    %v3631 = vsub.s32 0, %v3629
    %v3632 = vsel %vm3630, %v3631, %v3629
    %v3633 = vclz %v3632
    %v3634 = vsub.s32 %v3633, 2
    %vm3635 = vcmp.gt.s32.totalorder 0, %v3634
    %v3636 = vsel %vm3635, 0, %v3634
    %v3637 = vsub.s32 32, %v3636
    %v3638 = vshll.u32 %v3629, %v3636
    %v3639 = vshrl.u32 %v3621, %v3637
    %v3640 = vor.u32 %v3638, %v3639
    %v3641 = vsub.s32 4294967266, %v3636
    %v3642 = vadd.s32 %v3641, 127
    %v3643 = vshll.u32 %v3642, 23
    %v3644 = vor.u32 4788187, %v3643
    %v3645 = vand.u32 2147483647, %v3644
    %v3647 = vcvt.s32.f32 %v3640
    %v3648 = vmul.f32 %v3647, %v3645
    %v3649 = vxor.u32 %v3648, 2147483648
    %v3650 = vsel %vm3567, %v3649, %v3648
    %v3651 = vsub.s32 4, %v3627
    %v3652 = vsel %vm3567, %v3651, %v3627
    %v3653 = vsel %vm3566, %v3564, %v3650
    %v3654 = vsel %vm3566, 0, %v3652
    %v3655 = vcosq.f32.pop %v3653
    %v3656 = vsinq.f32.pop %v3653
    %vm3657 = vweird.f32 %v3564
    %v3658 = vand.u32 %v3654, 3
    %vm3659 = vcmp.lt.s32.totalorder %v3658, 2
    %vm3660 = vcmp.eq.s32.totalorder %v3658, 0
    %v3661 = vxor.u32 %v3656, 2147483648
    %v3662 = vsel %vm3660, %v3655, %v3661
    %vm3663 = vcmp.eq.s32.totalorder %v3658, 2
    %v3664 = vxor.u32 %v3655, 2147483648
    %v3665 = vsel %vm3663, %v3664, %v3656
    %v3666 = vsel %vm3659, %v3662, %v3665
    %v3667 = vsel %vm3657, nan, %v3666
    %v3668 = vadd.f32 %v3556, 1e-08
    %v3669 = vrcp.pop %v3668
    %v3670 = vsub.f32 0.0, %v3669
    %v3671 = vmul.f32 %v3558, %v3558
    %3673 = vrot.lane.b32.xlu0 %v3671, 96
    %v3674 = vpop.permute.xlu0 %3673
    %v3676 = vmul.f32 %v3670, %v3674
    %v3677 = vmul.f32 %v3676, 1.442695
    %v3678 = vpow.pop %v3677
    %v3679 = vmul.f32 %v3667, %v3678
    %v3680 = vand.u32 2147483647, %v3679
    %3682 = vrot.lane.b32.xlu0 %v3499, 96
    %v3683 = vpop.permute.xlu0 %3682
    %v3685 = vmul.f32 %v3499, %v3683
    %3687 = vrot.lane.b32.xlu0 %v3501, 64
    %v3688 = vpop.permute.xlu0 %3687
    %v3690 = vmul.f32 %v3685, %v3688
    %v3692 = vrot.slane %v3363, 6
    %v3694 = vmul.f32 %v3690, %v3692
    %v3696 = vrot.slane %v3680, 6
    %v3698 = vmul.f32 %v3507, %v3696
    %3700 = vrot.lane.b32.xlu0 %v3698, 64
    %v3701 = vpop.permute.xlu0 %3700
    %v3703 = vadd.f32 %v3694, %v3701
    %v3704 = vmax.f32 %v3703, -10.0
    %v3705 = vmin.f32 %v3704, 10.0
    %v3706 = vpack.c.bf16 %v3705, %v3705
    %v3708 = vrot.slane %v3706, 1
    %3709 = vrot.lane.b32.xlu0 %v3708, 64
    %v3710 = vpop.permute.xlu0 %3709
    %v3712 = vsel %vm313, %v3710, 0
    %3714 = vmatprep.subr.bf16.mxu0 0
    %3715 = vmatpush1.bf16.msra.mxu0 %v3376
    %3716 = vmatprep.subr.bf16.mxu0 0
    %3717 = vmatpush1.bf16.msra.mxu0 %v3377
    %3718 = vmatprep.subr.bf16.mxu0 0
    %3719 = vmatpush1.bf16.msra.mxu0 0
    %3720 = vmatprep.subr.bf16.mxu0 0
    %3721 = vmatpush1.bf16.msra.mxu0 0
    %3722 = vmatprep.subr.bf16.mxu0 0
    %3723 = vmatpush1.bf16.msra.mxu0 0
    %3724 = vmatprep.subr.bf16.mxu0 0
    %3725 = vmatpush1.bf16.msra.mxu0 0
    %3726 = vmatprep.subr.bf16.mxu0 0
    %3727 = vmatpush1.bf16.msra.mxu0 0
    %3728 = vmatprep.subr.bf16.mxu0 0
    %3729 = vmatpush1.bf16.msra.mxu0 0
    %3730 = vmatprep.subr.bf16.mxu0 0
    %3731 = vmatpush1.bf16.msra.mxu0 0
    %3732 = vmatprep.subr.bf16.mxu0 0
    %3733 = vmatpush1.bf16.msra.mxu0 0
    %3734 = vmatprep.subr.bf16.mxu0 0
    %3735 = vmatpush1.bf16.msra.mxu0 0
    %3736 = vmatprep.subr.bf16.mxu0 0
    %3737 = vmatpush1.bf16.msra.mxu0 0
    %3738 = vmatprep.subr.bf16.mxu0 0
    %3739 = vmatpush1.bf16.msra.mxu0 0
    %3740 = vmatprep.subr.bf16.mxu0 0
    %3741 = vmatpush1.bf16.msra.mxu0 0
    %3742 = vmatprep.subr.bf16.mxu0 0
    %3743 = vmatpush1.bf16.msra.mxu0 0
    %3744 = vmatprep.subr.bf16.mxu0 0
    %3745 = vmatpush1.bf16.msra.mxu0 0
    %3746 = vmatprep.mubr.bf16.mxu0 0
    %3747 = vmatmul.mubr.bf16.gmra.mrb[0].mxu0 %v3712
    %v3748 = vpop.f32.mrb[0].mxu0
    %v3749 = vadd.f32 %v3079, %v3748
    %v3750 = vpop.f32.mrb[0].mxu0
    %v3751 = vpop.f32.mrb[0].mxu0
    %v3752 = vpop.f32.mrb[0].mxu0
    %3753 = vdwg.mxu0
    %v3754 = vtanh.pop %v3749
    %v3756 = vrot.slane %v3754, 6
    %3757 = vrot.lane.b32.xlu0 %v3756, 32
    %v3758 = vpop.permute.xlu0 %3757
    %v3760 = vmul.f32 %v3499, %v3758
    %3762 = vrot.lane.b32.xlu0 %v3760, 96
    %v3763 = vpop.permute.xlu0 %3762
    %3765 = vst.msk [vmem:[#allocation21] sm:$0xc] %vm982, %v3763
    %v3766 = vpack.c.bf16 %v3760, %v3760
    %v3768 = vrot.slane %v3766, 1
    %3769 = vrot.lane.b32.xlu0 %v3768, 96
    %v3770 = vpop.permute.xlu0 %3769
    %v3772 = vsel %vm313, %v3770, 0
    %3774 = vmatprep.subr.bf16.mxu0 %v3094
    %3775 = vmatpush1.bf16.msra.mxu0 %v3093
    %3776 = vmatprep.subr.bf16.mxu0 %v3096
    %3777 = vmatpush1.bf16.msra.mxu0 %v3095
    %3778 = vmatprep.subr.bf16.mxu0 0
    %3779 = vmatpush1.bf16.msra.mxu0 0
    %3780 = vmatprep.subr.bf16.mxu0 0
    %3781 = vmatpush1.bf16.msra.mxu0 0
    %3782 = vmatprep.subr.bf16.mxu0 0
    %3783 = vmatpush1.bf16.msra.mxu0 0
    %3784 = vmatprep.subr.bf16.mxu0 0
    %3785 = vmatpush1.bf16.msra.mxu0 0
    %3786 = vmatprep.subr.bf16.mxu0 0
    %3787 = vmatpush1.bf16.msra.mxu0 0
    %3788 = vmatprep.subr.bf16.mxu0 0
    %3789 = vmatpush1.bf16.msra.mxu0 0
    %3790 = vmatprep.subr.bf16.mxu0 0
    %3791 = vmatpush1.bf16.msra.mxu0 0
    %3792 = vmatprep.subr.bf16.mxu0 0
    %3793 = vmatpush1.bf16.msra.mxu0 0
    %3794 = vmatprep.subr.bf16.mxu0 0
    %3795 = vmatpush1.bf16.msra.mxu0 0
    %3796 = vmatprep.subr.bf16.mxu0 0
    %3797 = vmatpush1.bf16.msra.mxu0 0
    %3798 = vmatprep.subr.bf16.mxu0 0
    %3799 = vmatpush1.bf16.msra.mxu0 0
    %3800 = vmatprep.subr.bf16.mxu0 0
    %3801 = vmatpush1.bf16.msra.mxu0 0
    %3802 = vmatprep.subr.bf16.mxu0 0
    %3803 = vmatpush1.bf16.msra.mxu0 0
    %3804 = vmatprep.subr.bf16.mxu0 0
    %3805 = vmatpush1.bf16.msra.mxu0 0
    %3806 = vmatprep.mubr.bf16.mxu0 0
    %3807 = vmatmul.mubr.bf16.gmra.mrb[0].mxu0 %v3772
    %v3808 = vpop.f32.mrb[0].mxu0
    %v3809 = vadd.f32 0.0, %v3808
    %v3810 = vpop.f32.mrb[0].mxu0
    %v3811 = vadd.f32 0.0, %v3810
    %v3812 = vpop.f32.mrb[0].mxu0
    %v3813 = vpop.f32.mrb[0].mxu0
    %3814 = vdwg.mxu0
    %v3817 = vrot.slane %v3809, 4
    %v3818 = vrot.slane %v3811, 4
    %v3821 = vadd.f32 %v3047, %v3817
    %v3822 = vadd.f32 %v3049, %v3818
    %v3823 = vxor.u32 %v3821, 2147483648
    %v3824 = vxor.u32 %v3822, 2147483648
    %v3825 = vmul.f32 %v3823, 1.442695
    %v3826 = vpow.pop %v3825
    %v3827 = vmul.f32 %v3824, 1.442695
    %v3828 = vpow.pop %v3827
    %v3829 = vadd.f32 %v3826, 1.0
    %v3830 = vadd.f32 %v3828, 1.0
    %v3831 = vrcp.pop %v3829
    %v3832 = vmul.f32 1.0, %v3831
    %v3833 = vrcp.pop %v3830
    %v3834 = vmul.f32 1.0, %v3833
    %v3835 = vtanh.pop %v3822
    %3837 = vrot.lane.b32.xlu0 %v3835, 96
    %v3838 = vpop.permute.xlu0 %3837
    %v3840 = vmul.f32 %v3832, %v3838
    %v3841 = vpack.c.bf16 %v3840, %v3840
    %v3843 = vrot.slane %v3841, 2
    %v3845 = vsel %vm313, %v3843, 0
    %3847 = vmatprep.subr.bf16.mxu0 0
    %3848 = vmatpush1.bf16.msra.mxu0 %v3171
    %3849 = vmatprep.subr.bf16.mxu0 0
    %3850 = vmatpush1.bf16.msra.mxu0 %v3172
    %3851 = vmatprep.subr.bf16.mxu0 0
    %3852 = vmatpush1.bf16.msra.mxu0 0
    %3853 = vmatprep.subr.bf16.mxu0 0
    %3854 = vmatpush1.bf16.msra.mxu0 0
    %3855 = vmatprep.subr.bf16.mxu0 0
    %3856 = vmatpush1.bf16.msra.mxu0 0
    %3857 = vmatprep.subr.bf16.mxu0 0
    %3858 = vmatpush1.bf16.msra.mxu0 0
    %3859 = vmatprep.subr.bf16.mxu0 0
    %3860 = vmatpush1.bf16.msra.mxu0 0
    %3861 = vmatprep.subr.bf16.mxu0 0
    %3862 = vmatpush1.bf16.msra.mxu0 0
    %3863 = vmatprep.subr.bf16.mxu0 0
    %3864 = vmatpush1.bf16.msra.mxu0 0
    %3865 = vmatprep.subr.bf16.mxu0 0
    %3866 = vmatpush1.bf16.msra.mxu0 0
    %3867 = vmatprep.subr.bf16.mxu0 0
    %3868 = vmatpush1.bf16.msra.mxu0 0
    %3869 = vmatprep.subr.bf16.mxu0 0
    %3870 = vmatpush1.bf16.msra.mxu0 0
    %3871 = vmatprep.subr.bf16.mxu0 0
    %3872 = vmatpush1.bf16.msra.mxu0 0
    %3873 = vmatprep.subr.bf16.mxu0 0
    %3874 = vmatpush1.bf16.msra.mxu0 0
    %3875 = vmatprep.subr.bf16.mxu0 0
    %3876 = vmatpush1.bf16.msra.mxu0 0
    %3877 = vmatprep.subr.bf16.mxu0 0
    %3878 = vmatpush1.bf16.msra.mxu0 0
    %3879 = vmatprep.mubr.bf16.mxu0 0
    %3880 = vmatmul.mubr.bf16.gmra.mrb[0].mxu0 %v3845
    %v3881 = vpop.f32.mrb[0].mxu0
    %v3882 = vadd.f32 %v3072, %v3881
    %v3883 = vpop.f32.mrb[0].mxu0
    %v3884 = vpop.f32.mrb[0].mxu0
    %v3885 = vpop.f32.mrb[0].mxu0
    %3886 = vdwg.mxu0
    %v3887 = vtanh.pop %v3882
    %v3888 = vmax.f32 %v3887, 0.1
    %v3889 = vmin.f32 %v3888, 0.9
    %v3890 = vmax.f32 %v3887, -0.9
    %v3891 = vmin.f32 %v3890, 0.9
    %v3892 = vmul.f32 %v3889, 5.0
    %3894 = vrot.lane.b32.xlu0 %v3891, 96
    %v3895 = vpop.permute.xlu0 %3894
    %v3897 = vmul.f32 %v3892, %v3895
    %v3898 = vand.u32 2147483647, %v3897
    %vm3899 = vcmp.le.f32.partialorder %v3898, 0.7853982
    %vm3900 = vcmp.lt.s32.totalorder %v3897, 0
    %v3901 = vand.u32 %v3897, 2139095040
    %v3902 = vshrl.u32 %v3901, 23
    %v3903 = vsub.s32 %v3902, 127
    %v3904 = vand.u32 2147483647, %v3897
    %v3905 = vand.u32 %v3904, 8388607
    %v3906 = vor.u32 %v3905, 8388608
    %v3907 = vsub.s32 0, %v3906
    %v3908 = vadd.s32 %v3903, 1
    %vm3909 = vcmp.gt.s32.totalorder %v3908, 0
    %v3910 = vsel %vm3909, %v3908, 0
    %v3911 = vshrl.u32 %v3910, 5
    %v3912 = vand.u32 %v3910, 31
    %v3913 = vsub.s32 32, %v3912
    %v3914 = vshrl.u32 683565275, %v3913
    %v3915 = vshll.u32 683565275, %v3912
    %v3916 = vshrl.u32 2475754826, %v3913
    %v3917 = vor.u32 %v3915, %v3916
    %v3918 = vshll.u32 2475754826, %v3912
    %v3919 = vshrl.u32 2131351028, %v3913
    %v3920 = vor.u32 %v3918, %v3919
    %v3921 = vshll.u32 2131351028, %v3912
    %v3922 = vshrl.u32 2102212464, %v3913
    %v3923 = vor.u32 %v3921, %v3922
    %v3924 = vshll.u32 2102212464, %v3912
    %v3925 = vshrl.u32 920167782, %v3913
    %v3926 = vor.u32 %v3924, %v3925
    %v3927 = vshll.u32 920167782, %v3912
    %v3928 = vshrl.u32 1326507024, %v3913
    %v3929 = vor.u32 %v3927, %v3928
    %vm3930 = vcmp.lt.s32.totalorder %v3911, 1
    %vm3931 = vcmp.lt.s32.totalorder %v3911, 2
    %vm3932 = vcmp.lt.s32.totalorder %v3911, 3
    %vm3933 = vcmp.lt.s32.totalorder %v3911, 4
    %v3934 = vsel %vm3930, %v3914, %v3917
    %v3935 = vsel %vm3933, %v3923, 2102212464
    %v3936 = vsel %vm3932, %v3920, %v3935
    %v3937 = vsel %vm3931, %v3934, %v3936
    %v3938 = vsel %vm3930, %v3917, %v3920
    %v3939 = vsel %vm3933, %v3926, 920167782
    %v3940 = vsel %vm3932, %v3923, %v3939
    %v3941 = vsel %vm3931, %v3938, %v3940
    %v3942 = vsel %vm3930, %v3920, %v3923
    %v3943 = vsel %vm3933, %v3929, 1326507024
    %v3944 = vsel %vm3932, %v3926, %v3943
    %v3945 = vsel %vm3931, %v3942, %v3944
    %v3946 = vshll.u32 %v3906, 8
    %v3947 = vmul.u32.u64.compose %v3946, %v3945
    %v3948 = vextract.low.u32 %v3947
    %v3949 = vextract.high.u32 %v3947
    %v3950 = vmul.u32.u64.compose %v3946, %v3941
    %v3951 = vextract.low.u32 %v3950
    %v3952 = vextract.high.u32 %v3950
    %v3953 = vmul.u32 %v3946, %v3937
    %v3954 = vadd.s32 %v3949, %v3951
    %vm3955 = vc.u32 %v3949, %v3951
    %v3956 = vadd.s32 %v3952, 1
    %v3957 = vsel %vm3955, %v3956, %v3952
    %v3958 = vadd.s32 %v3953, %v3957
    %v3959 = vadd.s32 %v3958, 536870912
    %v3960 = vshrl.u32 %v3959, 30
    %v3961 = vshll.u32 %v3960, 30
    %v3962 = vsub.s32 %v3958, %v3961
    %vm3963 = vcmp.lt.s32.totalorder %v3962, 0
    %v3964 = vsub.s32 0, %v3962
    %v3965 = vsel %vm3963, %v3964, %v3962
    %v3966 = vclz %v3965
    %v3967 = vsub.s32 %v3966, 2
    %vm3968 = vcmp.gt.s32.totalorder 0, %v3967
    %v3969 = vsel %vm3968, 0, %v3967
    %v3970 = vsub.s32 32, %v3969
    %v3971 = vshll.u32 %v3962, %v3969
    %v3972 = vshrl.u32 %v3954, %v3970
    %v3973 = vor.u32 %v3971, %v3972
    %v3974 = vsub.s32 4294967266, %v3969
    %v3975 = vadd.s32 %v3974, 127
    %v3976 = vshll.u32 %v3975, 23
    %v3977 = vor.u32 4788187, %v3976
    %v3978 = vand.u32 2147483647, %v3977
    %v3980 = vcvt.s32.f32 %v3973
    %v3981 = vmul.f32 %v3980, %v3978
    %v3982 = vxor.u32 %v3981, 2147483648
    %v3983 = vsel %vm3900, %v3982, %v3981
    %v3984 = vsub.s32 4, %v3960
    %v3985 = vsel %vm3900, %v3984, %v3960
    %v3986 = vsel %vm3899, %v3897, %v3983
    %v3987 = vsel %vm3899, 0, %v3985
    %v3988 = vcosq.f32.pop %v3986
    %v3989 = vsinq.f32.pop %v3986
    %vm3990 = vweird.f32 %v3897
    %v3991 = vand.u32 %v3987, 3
    %vm3992 = vcmp.lt.s32.totalorder %v3991, 2
    %vm3993 = vcmp.eq.s32.totalorder %v3991, 0
    %v3994 = vxor.u32 %v3989, 2147483648
    %v3995 = vsel %vm3993, %v3988, %v3994
    %vm3996 = vcmp.eq.s32.totalorder %v3991, 2
    %v3997 = vxor.u32 %v3988, 2147483648
    %v3998 = vsel %vm3996, %v3997, %v3989
    %v3999 = vsel %vm3992, %v3995, %v3998
    %v4000 = vsel %vm3990, nan, %v3999
    %v4001 = vadd.f32 %v3889, 1e-08
    %v4002 = vrcp.pop %v4001
    %v4003 = vsub.f32 0.0, %v4002
    %v4004 = vmul.f32 %v3891, %v3891
    %4006 = vrot.lane.b32.xlu0 %v4004, 96
    %v4007 = vpop.permute.xlu0 %4006
    %v4009 = vmul.f32 %v4003, %v4007
    %v4010 = vmul.f32 %v4009, 1.442695
    %v4011 = vpow.pop %v4010
    %v4012 = vmul.f32 %v4000, %v4011
    %v4013 = vand.u32 2147483647, %v4012
    %4015 = vrot.lane.b32.xlu0 %v3832, 96
    %v4016 = vpop.permute.xlu0 %4015
    %v4018 = vmul.f32 %v3832, %v4016
    %4020 = vrot.lane.b32.xlu0 %v3834, 64
    %v4021 = vpop.permute.xlu0 %4020
    %v4023 = vmul.f32 %v4018, %v4021
    %v4025 = vrot.slane %v3705, 6
    %v4027 = vmul.f32 %v4023, %v4025
    %v4029 = vrot.slane %v4013, 4
    %v4031 = vmul.f32 %v3840, %v4029
    %4033 = vrot.lane.b32.xlu0 %v4031, 64
    %v4034 = vpop.permute.xlu0 %4033
    %v4036 = vadd.f32 %v4027, %v4034
    %v4037 = vmax.f32 %v4036, -10.0
    %v4038 = vmin.f32 %v4037, 10.0
    %v4039 = vpack.c.bf16 %v4038, %v4038
    %v4041 = vrot.slane %v4039, 2
    %4042 = vrot.lane.b32.xlu0 %v4041, 64
    %v4043 = vpop.permute.xlu0 %4042
    %v4045 = vsel %vm313, %v4043, 0
    %4047 = vmatprep.subr.bf16.mxu0 0
    %4048 = vmatpush1.bf16.msra.mxu0 %v3376
    %4049 = vmatprep.subr.bf16.mxu0 0
    %4050 = vmatpush1.bf16.msra.mxu0 %v3377
    %4051 = vmatprep.subr.bf16.mxu0 0
    %4052 = vmatpush1.bf16.msra.mxu0 0
    %4053 = vmatprep.subr.bf16.mxu0 0
    %4054 = vmatpush1.bf16.msra.mxu0 0
    %4055 = vmatprep.subr.bf16.mxu0 0
    %4056 = vmatpush1.bf16.msra.mxu0 0
    %4057 = vmatprep.subr.bf16.mxu0 0
    %4058 = vmatpush1.bf16.msra.mxu0 0
    %4059 = vmatprep.subr.bf16.mxu0 0
    %4060 = vmatpush1.bf16.msra.mxu0 0
    %4061 = vmatprep.subr.bf16.mxu0 0
    %4062 = vmatpush1.bf16.msra.mxu0 0
    %4063 = vmatprep.subr.bf16.mxu0 0
    %4064 = vmatpush1.bf16.msra.mxu0 0
    %4065 = vmatprep.subr.bf16.mxu0 0
    %4066 = vmatpush1.bf16.msra.mxu0 0
    %4067 = vmatprep.subr.bf16.mxu0 0
    %4068 = vmatpush1.bf16.msra.mxu0 0
    %4069 = vmatprep.subr.bf16.mxu0 0
    %4070 = vmatpush1.bf16.msra.mxu0 0
    %4071 = vmatprep.subr.bf16.mxu0 0
    %4072 = vmatpush1.bf16.msra.mxu0 0
    %4073 = vmatprep.subr.bf16.mxu0 0
    %4074 = vmatpush1.bf16.msra.mxu0 0
    %4075 = vmatprep.subr.bf16.mxu0 0
    %4076 = vmatpush1.bf16.msra.mxu0 0
    %4077 = vmatprep.subr.bf16.mxu0 0
    %4078 = vmatpush1.bf16.msra.mxu0 0
    %4079 = vmatprep.mubr.bf16.mxu0 0
    %4080 = vmatmul.mubr.bf16.gmra.mrb[0].mxu0 %v4045
    %v4081 = vpop.f32.mrb[0].mxu0
    %v4082 = vadd.f32 %v3079, %v4081
    %v4083 = vpop.f32.mrb[0].mxu0
    %v4084 = vpop.f32.mrb[0].mxu0
    %v4085 = vpop.f32.mrb[0].mxu0
    %4086 = vdwg.mxu0
    %v4087 = vtanh.pop %v4082
    %v4089 = vrot.slane %v4087, 4
    %4090 = vrot.lane.b32.xlu0 %v4089, 32
    %v4091 = vpop.permute.xlu0 %4090
    %v4093 = vmul.f32 %v3832, %v4091
    %4095 = vrot.lane.b32.xlu0 %v4093, 96
    %v4096 = vpop.permute.xlu0 %4095
    %4098 = vst.msk [vmem:[#allocation21] sm:$0x30] %vm1316, %v4096
    %v4099 = vpack.c.bf16 %v4093, %v4093
    %v4101 = vrot.slane %v4099, 2
    %4102 = vrot.lane.b32.xlu0 %v4101, 96
    %v4103 = vpop.permute.xlu0 %4102
    %v4105 = vsel %vm313, %v4103, 0
    %4107 = vmatprep.subr.bf16.mxu0 %v3094
    %4108 = vmatpush1.bf16.msra.mxu0 %v3093
    %4109 = vmatprep.subr.bf16.mxu0 %v3096
    %4110 = vmatpush1.bf16.msra.mxu0 %v3095
    %4111 = vmatprep.subr.bf16.mxu0 0
    %4112 = vmatpush1.bf16.msra.mxu0 0
    %4113 = vmatprep.subr.bf16.mxu0 0
    %4114 = vmatpush1.bf16.msra.mxu0 0
    %4115 = vmatprep.subr.bf16.mxu0 0
    %4116 = vmatpush1.bf16.msra.mxu0 0
    %4117 = vmatprep.subr.bf16.mxu0 0
    %4118 = vmatpush1.bf16.msra.mxu0 0
    %4119 = vmatprep.subr.bf16.mxu0 0
    %4120 = vmatpush1.bf16.msra.mxu0 0
    %4121 = vmatprep.subr.bf16.mxu0 0
    %4122 = vmatpush1.bf16.msra.mxu0 0
    %4123 = vmatprep.subr.bf16.mxu0 0
    %4124 = vmatpush1.bf16.msra.mxu0 0
    %4125 = vmatprep.subr.bf16.mxu0 0
    %4126 = vmatpush1.bf16.msra.mxu0 0
    %4127 = vmatprep.subr.bf16.mxu0 0
    %4128 = vmatpush1.bf16.msra.mxu0 0
    %4129 = vmatprep.subr.bf16.mxu0 0
    %4130 = vmatpush1.bf16.msra.mxu0 0
    %4131 = vmatprep.subr.bf16.mxu0 0
    %4132 = vmatpush1.bf16.msra.mxu0 0
    %4133 = vmatprep.subr.bf16.mxu0 0
    %4134 = vmatpush1.bf16.msra.mxu0 0
    %4135 = vmatprep.subr.bf16.mxu0 0
    %4136 = vmatpush1.bf16.msra.mxu0 0
    %4137 = vmatprep.subr.bf16.mxu0 0
    %4138 = vmatpush1.bf16.msra.mxu0 0
    %4139 = vmatprep.mubr.bf16.mxu0 0
    %4140 = vmatmul.mubr.bf16.gmra.mrb[0].mxu0 %v4105
    %v4141 = vpop.f32.mrb[0].mxu0
    %v4142 = vadd.f32 0.0, %v4141
    %v4143 = vpop.f32.mrb[0].mxu0
    %v4144 = vadd.f32 0.0, %v4143
    %v4145 = vpop.f32.mrb[0].mxu0
    %v4146 = vpop.f32.mrb[0].mxu0
    %4147 = vdwg.mxu0
    %v4150 = vrot.slane %v4142, 2
    %v4151 = vrot.slane %v4144, 2
    %v4154 = vadd.f32 %v3047, %v4150
    %v4155 = vadd.f32 %v3049, %v4151
    %v4156 = vxor.u32 %v4154, 2147483648
    %v4157 = vxor.u32 %v4155, 2147483648
    %v4158 = vmul.f32 %v4156, 1.442695
    %v4159 = vpow.pop %v4158
    %v4160 = vmul.f32 %v4157, 1.442695
    %v4161 = vpow.pop %v4160
    %v4162 = vadd.f32 %v4159, 1.0
    %v4163 = vadd.f32 %v4161, 1.0
    %v4164 = vrcp.pop %v4162
    %v4165 = vmul.f32 1.0, %v4164
    %v4166 = vrcp.pop %v4163
    %v4167 = vmul.f32 1.0, %v4166
    %v4168 = vtanh.pop %v4155
    %4170 = vrot.lane.b32.xlu0 %v4168, 96
    %v4171 = vpop.permute.xlu0 %4170
    %v4173 = vmul.f32 %v4165, %v4171
    %v4174 = vpack.c.bf16 %v4173, %v4173
    %v4176 = vrot.slane %v4174, 3
    %v4178 = vsel %vm313, %v4176, 0
    %4180 = vmatprep.subr.bf16.mxu0 0
    %4181 = vmatpush1.bf16.msra.mxu0 %v3171
    %4182 = vmatprep.subr.bf16.mxu0 0
    %4183 = vmatpush1.bf16.msra.mxu0 %v3172
    %4184 = vmatprep.subr.bf16.mxu0 0
    %4185 = vmatpush1.bf16.msra.mxu0 0
    %4186 = vmatprep.subr.bf16.mxu0 0
    %4187 = vmatpush1.bf16.msra.mxu0 0
    %4188 = vmatprep.subr.bf16.mxu0 0
    %4189 = vmatpush1.bf16.msra.mxu0 0
    %4190 = vmatprep.subr.bf16.mxu0 0
    %4191 = vmatpush1.bf16.msra.mxu0 0
    %4192 = vmatprep.subr.bf16.mxu0 0
    %4193 = vmatpush1.bf16.msra.mxu0 0
    %4194 = vmatprep.subr.bf16.mxu0 0
    %4195 = vmatpush1.bf16.msra.mxu0 0
    %4196 = vmatprep.subr.bf16.mxu0 0
    %4197 = vmatpush1.bf16.msra.mxu0 0
    %4198 = vmatprep.subr.bf16.mxu0 0
    %4199 = vmatpush1.bf16.msra.mxu0 0
    %4200 = vmatprep.subr.bf16.mxu0 0
    %4201 = vmatpush1.bf16.msra.mxu0 0
    %4202 = vmatprep.subr.bf16.mxu0 0
    %4203 = vmatpush1.bf16.msra.mxu0 0
    %4204 = vmatprep.subr.bf16.mxu0 0
    %4205 = vmatpush1.bf16.msra.mxu0 0
    %4206 = vmatprep.subr.bf16.mxu0 0
    %4207 = vmatpush1.bf16.msra.mxu0 0
    %4208 = vmatprep.subr.bf16.mxu0 0
    %4209 = vmatpush1.bf16.msra.mxu0 0
    %4210 = vmatprep.subr.bf16.mxu0 0
    %4211 = vmatpush1.bf16.msra.mxu0 0
    %4212 = vmatprep.mubr.bf16.mxu0 0
    %4213 = vmatmul.mubr.bf16.gmra.mrb[0].mxu0 %v4178
    %v4214 = vpop.f32.mrb[0].mxu0
    %v4215 = vadd.f32 %v3072, %v4214
    %v4216 = vpop.f32.mrb[0].mxu0
    %v4217 = vpop.f32.mrb[0].mxu0
    %v4218 = vpop.f32.mrb[0].mxu0
    %4219 = vdwg.mxu0
    %v4220 = vtanh.pop %v4215
    %v4221 = vmax.f32 %v4220, 0.1
    %v4222 = vmin.f32 %v4221, 0.9
    %v4223 = vmax.f32 %v4220, -0.9
    %v4224 = vmin.f32 %v4223, 0.9
    %v4225 = vmul.f32 %v4222, 5.0
    %4227 = vrot.lane.b32.xlu0 %v4224, 96
    %v4228 = vpop.permute.xlu0 %4227
    %v4230 = vmul.f32 %v4225, %v4228
    %v4231 = vand.u32 2147483647, %v4230
    %vm4232 = vcmp.le.f32.partialorder %v4231, 0.7853982
    %vm4233 = vcmp.lt.s32.totalorder %v4230, 0
    %v4234 = vand.u32 %v4230, 2139095040
    %v4235 = vshrl.u32 %v4234, 23
    %v4236 = vsub.s32 %v4235, 127
    %v4237 = vand.u32 2147483647, %v4230
    %v4238 = vand.u32 %v4237, 8388607
    %v4239 = vor.u32 %v4238, 8388608
    %v4240 = vsub.s32 0, %v4239
    %v4241 = vadd.s32 %v4236, 1
    %vm4242 = vcmp.gt.s32.totalorder %v4241, 0
    %v4243 = vsel %vm4242, %v4241, 0
    %v4244 = vshrl.u32 %v4243, 5
    %v4245 = vand.u32 %v4243, 31
    %v4246 = vsub.s32 32, %v4245
    %v4247 = vshrl.u32 683565275, %v4246
    %v4248 = vshll.u32 683565275, %v4245
    %v4249 = vshrl.u32 2475754826, %v4246
    %v4250 = vor.u32 %v4248, %v4249
    %v4251 = vshll.u32 2475754826, %v4245
    %v4252 = vshrl.u32 2131351028, %v4246
    %v4253 = vor.u32 %v4251, %v4252
    %v4254 = vshll.u32 2131351028, %v4245
    %v4255 = vshrl.u32 2102212464, %v4246
    %v4256 = vor.u32 %v4254, %v4255
    %v4257 = vshll.u32 2102212464, %v4245
    %v4258 = vshrl.u32 920167782, %v4246
    %v4259 = vor.u32 %v4257, %v4258
    %v4260 = vshll.u32 920167782, %v4245
    %v4261 = vshrl.u32 1326507024, %v4246
    %v4262 = vor.u32 %v4260, %v4261
    %vm4263 = vcmp.lt.s32.totalorder %v4244, 1
    %vm4264 = vcmp.lt.s32.totalorder %v4244, 2
    %vm4265 = vcmp.lt.s32.totalorder %v4244, 3
    %vm4266 = vcmp.lt.s32.totalorder %v4244, 4
    %v4267 = vsel %vm4263, %v4247, %v4250
    %v4268 = vsel %vm4266, %v4256, 2102212464
    %v4269 = vsel %vm4265, %v4253, %v4268
    %v4270 = vsel %vm4264, %v4267, %v4269
    %v4271 = vsel %vm4263, %v4250, %v4253
    %v4272 = vsel %vm4266, %v4259, 920167782
    %v4273 = vsel %vm4265, %v4256, %v4272
    %v4274 = vsel %vm4264, %v4271, %v4273
    %v4275 = vsel %vm4263, %v4253, %v4256
    %v4276 = vsel %vm4266, %v4262, 1326507024
    %v4277 = vsel %vm4265, %v4259, %v4276
    %v4278 = vsel %vm4264, %v4275, %v4277
    %v4279 = vshll.u32 %v4239, 8
    %v4280 = vmul.u32.u64.compose %v4279, %v4278
    %v4281 = vextract.low.u32 %v4280
    %v4282 = vextract.high.u32 %v4280
    %v4283 = vmul.u32.u64.compose %v4279, %v4274
    %v4284 = vextract.low.u32 %v4283
    %v4285 = vextract.high.u32 %v4283
    %v4286 = vmul.u32 %v4279, %v4270
    %v4287 = vadd.s32 %v4282, %v4284
    %vm4288 = vc.u32 %v4282, %v4284
    %v4289 = vadd.s32 %v4285, 1
    %v4290 = vsel %vm4288, %v4289, %v4285
    %v4291 = vadd.s32 %v4286, %v4290
    %v4292 = vadd.s32 %v4291, 536870912
    %v4293 = vshrl.u32 %v4292, 30
    %v4294 = vshll.u32 %v4293, 30
    %v4295 = vsub.s32 %v4291, %v4294
    %vm4296 = vcmp.lt.s32.totalorder %v4295, 0
    %v4297 = vsub.s32 0, %v4295
    %v4298 = vsel %vm4296, %v4297, %v4295
    %v4299 = vclz %v4298
    %v4300 = vsub.s32 %v4299, 2
    %vm4301 = vcmp.gt.s32.totalorder 0, %v4300
    %v4302 = vsel %vm4301, 0, %v4300
    %v4303 = vsub.s32 32, %v4302
    %v4304 = vshll.u32 %v4295, %v4302
    %v4305 = vshrl.u32 %v4287, %v4303
    %v4306 = vor.u32 %v4304, %v4305
    %v4307 = vsub.s32 4294967266, %v4302
    %v4308 = vadd.s32 %v4307, 127
    %v4309 = vshll.u32 %v4308, 23
    %v4310 = vor.u32 4788187, %v4309
    %v4311 = vand.u32 2147483647, %v4310
    %v4313 = vcvt.s32.f32 %v4306
    %v4314 = vmul.f32 %v4313, %v4311
    %v4315 = vxor.u32 %v4314, 2147483648
    %v4316 = vsel %vm4233, %v4315, %v4314
    %v4317 = vsub.s32 4, %v4293
    %v4318 = vsel %vm4233, %v4317, %v4293
    %v4319 = vsel %vm4232, %v4230, %v4316
    %v4320 = vsel %vm4232, 0, %v4318
    %v4321 = vcosq.f32.pop %v4319
    %v4322 = vsinq.f32.pop %v4319
    %vm4323 = vweird.f32 %v4230
    %v4324 = vand.u32 %v4320, 3
    %vm4325 = vcmp.lt.s32.totalorder %v4324, 2
    %vm4326 = vcmp.eq.s32.totalorder %v4324, 0
    %v4327 = vxor.u32 %v4322, 2147483648
    %v4328 = vsel %vm4326, %v4321, %v4327
    %vm4329 = vcmp.eq.s32.totalorder %v4324, 2
    %v4330 = vxor.u32 %v4321, 2147483648
    %v4331 = vsel %vm4329, %v4330, %v4322
    %v4332 = vsel %vm4325, %v4328, %v4331
    %v4333 = vsel %vm4323, nan, %v4332
    %v4334 = vadd.f32 %v4222, 1e-08
    %v4335 = vrcp.pop %v4334
    %v4336 = vsub.f32 0.0, %v4335
    %v4337 = vmul.f32 %v4224, %v4224
    %4339 = vrot.lane.b32.xlu0 %v4337, 96
    %v4340 = vpop.permute.xlu0 %4339
    %v4342 = vmul.f32 %v4336, %v4340
    %v4343 = vmul.f32 %v4342, 1.442695
    %v4344 = vpow.pop %v4343
    %v4345 = vmul.f32 %v4333, %v4344
    %v4346 = vand.u32 2147483647, %v4345
    %4348 = vrot.lane.b32.xlu0 %v4165, 96
    %v4349 = vpop.permute.xlu0 %4348
    %v4351 = vmul.f32 %v4165, %v4349
    %4353 = vrot.lane.b32.xlu0 %v4167, 64
    %v4354 = vpop.permute.xlu0 %4353
    %v4356 = vmul.f32 %v4351, %v4354
    %v4358 = vrot.slane %v4038, 6
    %v4360 = vmul.f32 %v4356, %v4358
    %v4362 = vrot.slane %v4346, 2
    %v4364 = vmul.f32 %v4173, %v4362
    %4366 = vrot.lane.b32.xlu0 %v4364, 64
    %v4367 = vpop.permute.xlu0 %4366
    %v4369 = vadd.f32 %v4360, %v4367
    %v4370 = vmax.f32 %v4369, -10.0
    %v4371 = vmin.f32 %v4370, 10.0
    %v4372 = vpack.c.bf16 %v4371, %v4371
    %v4374 = vrot.slane %v4372, 3
    %4375 = vrot.lane.b32.xlu0 %v4374, 64
    %v4376 = vpop.permute.xlu0 %4375
    %v4378 = vsel %vm313, %v4376, 0
    %4380 = vmatprep.subr.bf16.mxu0 0
    %4381 = vmatpush1.bf16.msra.mxu0 %v3376
    %4382 = vmatprep.subr.bf16.mxu0 0
    %4383 = vmatpush1.bf16.msra.mxu0 %v3377
    %4384 = vmatprep.subr.bf16.mxu0 0
    %4385 = vmatpush1.bf16.msra.mxu0 0
    %4386 = vmatprep.subr.bf16.mxu0 0
    %4387 = vmatpush1.bf16.msra.mxu0 0
    %4388 = vmatprep.subr.bf16.mxu0 0
    %4389 = vmatpush1.bf16.msra.mxu0 0
    %4390 = vmatprep.subr.bf16.mxu0 0
    %4391 = vmatpush1.bf16.msra.mxu0 0
    %4392 = vmatprep.subr.bf16.mxu0 0
    %4393 = vmatpush1.bf16.msra.mxu0 0
    %4394 = vmatprep.subr.bf16.mxu0 0
    %4395 = vmatpush1.bf16.msra.mxu0 0
    %4396 = vmatprep.subr.bf16.mxu0 0
    %4397 = vmatpush1.bf16.msra.mxu0 0
    %4398 = vmatprep.subr.bf16.mxu0 0
    %4399 = vmatpush1.bf16.msra.mxu0 0
    %4400 = vmatprep.subr.bf16.mxu0 0
    %4401 = vmatpush1.bf16.msra.mxu0 0
    %4402 = vmatprep.subr.bf16.mxu0 0
    %4403 = vmatpush1.bf16.msra.mxu0 0
    %4404 = vmatprep.subr.bf16.mxu0 0
    %4405 = vmatpush1.bf16.msra.mxu0 0
    %4406 = vmatprep.subr.bf16.mxu0 0
    %4407 = vmatpush1.bf16.msra.mxu0 0
    %4408 = vmatprep.subr.bf16.mxu0 0
    %4409 = vmatpush1.bf16.msra.mxu0 0
    %4410 = vmatprep.subr.bf16.mxu0 0
    %4411 = vmatpush1.bf16.msra.mxu0 0
    %4412 = vmatprep.mubr.bf16.mxu0 0
    %4413 = vmatmul.mubr.bf16.gmra.mrb[0].mxu0 %v4378
    %v4414 = vpop.f32.mrb[0].mxu0
    %v4415 = vadd.f32 %v3079, %v4414
    %v4416 = vpop.f32.mrb[0].mxu0
    %v4417 = vpop.f32.mrb[0].mxu0
    %v4418 = vpop.f32.mrb[0].mxu0
    %4419 = vdwg.mxu0
    %v4420 = vtanh.pop %v4415
    %v4422 = vrot.slane %v4420, 2
    %4423 = vrot.lane.b32.xlu0 %v4422, 32
    %v4424 = vpop.permute.xlu0 %4423
    %v4426 = vmul.f32 %v4165, %v4424
    %4428 = vrot.lane.b32.xlu0 %v4426, 96
    %v4429 = vpop.permute.xlu0 %4428
    %4431 = vst.msk [vmem:[#allocation21] sm:$0xc0] %vm1650, %v4429
    %v4432 = vpack.c.bf16 %v4426, %v4426
    %v4434 = vrot.slane %v4432, 3
    %4435 = vrot.lane.b32.xlu0 %v4434, 96
    %v4436 = vpop.permute.xlu0 %4435
    %v4438 = vsel %vm313, %v4436, 0
    %4440 = vmatprep.subr.bf16.mxu0 %v3094
    %4441 = vmatpush1.bf16.msra.mxu0 %v3093
    %4442 = vmatprep.subr.bf16.mxu0 %v3096
    %4443 = vmatpush1.bf16.msra.mxu0 %v3095
    %4444 = vmatprep.subr.bf16.mxu0 0
    %4445 = vmatpush1.bf16.msra.mxu0 0
    %4446 = vmatprep.subr.bf16.mxu0 0
    %4447 = vmatpush1.bf16.msra.mxu0 0
    %4448 = vmatprep.subr.bf16.mxu0 0
    %4449 = vmatpush1.bf16.msra.mxu0 0
    %4450 = vmatprep.subr.bf16.mxu0 0
    %4451 = vmatpush1.bf16.msra.mxu0 0
    %4452 = vmatprep.subr.bf16.mxu0 0
    %4453 = vmatpush1.bf16.msra.mxu0 0
    %4454 = vmatprep.subr.bf16.mxu0 0
    %4455 = vmatpush1.bf16.msra.mxu0 0
    %4456 = vmatprep.subr.bf16.mxu0 0
    %4457 = vmatpush1.bf16.msra.mxu0 0
    %4458 = vmatprep.subr.bf16.mxu0 0
    %4459 = vmatpush1.bf16.msra.mxu0 0
    %4460 = vmatprep.subr.bf16.mxu0 0
    %4461 = vmatpush1.bf16.msra.mxu0 0
    %4462 = vmatprep.subr.bf16.mxu0 0
    %4463 = vmatpush1.bf16.msra.mxu0 0
    %4464 = vmatprep.subr.bf16.mxu0 0
    %4465 = vmatpush1.bf16.msra.mxu0 0
    %4466 = vmatprep.subr.bf16.mxu0 0
    %4467 = vmatpush1.bf16.msra.mxu0 0
    %4468 = vmatprep.subr.bf16.mxu0 0
    %4469 = vmatpush1.bf16.msra.mxu0 0
    %4470 = vmatprep.subr.bf16.mxu0 0
    %4471 = vmatpush1.bf16.msra.mxu0 0
    %4472 = vmatprep.mubr.bf16.mxu0 0
    %4473 = vmatmul.mubr.bf16.gmra.mrb[0].mxu0 %v4438
    %v4474 = vpop.f32.mrb[0].mxu0
    %v4475 = vadd.f32 0.0, %v4474
    %v4476 = vpop.f32.mrb[0].mxu0
    %v4477 = vadd.f32 0.0, %v4476
    %v4478 = vpop.f32.mrb[0].mxu0
    %v4479 = vpop.f32.mrb[0].mxu0
    %4480 = vdwg.mxu0
    %v4481 = vadd.f32 %v3051, %v4475
    %v4482 = vadd.f32 %v3053, %v4477
    %v4483 = vxor.u32 %v4481, 2147483648
    %v4484 = vxor.u32 %v4482, 2147483648
    %v4485 = vmul.f32 %v4483, 1.442695
    %v4486 = vpow.pop %v4485
    %v4487 = vmul.f32 %v4484, 1.442695
    %v4488 = vpow.pop %v4487
    %v4489 = vadd.f32 %v4486, 1.0
    %v4490 = vadd.f32 %v4488, 1.0
    %v4491 = vrcp.pop %v4489
    %v4492 = vmul.f32 1.0, %v4491
    %v4493 = vrcp.pop %v4490
    %v4494 = vmul.f32 1.0, %v4493
    %v4495 = vtanh.pop %v4482
    %4497 = vrot.lane.b32.xlu0 %v4495, 96
    %v4498 = vpop.permute.xlu0 %4497
    %v4500 = vmul.f32 %v4492, %v4498
    %v4501 = vpack.c.bf16 %v4500, %v4500
    %v4503 = vsel %vm313, %v4501, 0
    %4505 = vmatprep.subr.bf16.mxu0 0
    %4506 = vmatpush1.bf16.msra.mxu0 %v3171
    %4507 = vmatprep.subr.bf16.mxu0 0
    %4508 = vmatpush1.bf16.msra.mxu0 %v3172
    %4509 = vmatprep.subr.bf16.mxu0 0
    %4510 = vmatpush1.bf16.msra.mxu0 0
    %4511 = vmatprep.subr.bf16.mxu0 0
    %4512 = vmatpush1.bf16.msra.mxu0 0
    %4513 = vmatprep.subr.bf16.mxu0 0
    %4514 = vmatpush1.bf16.msra.mxu0 0
    %4515 = vmatprep.subr.bf16.mxu0 0
    %4516 = vmatpush1.bf16.msra.mxu0 0
    %4517 = vmatprep.subr.bf16.mxu0 0
    %4518 = vmatpush1.bf16.msra.mxu0 0
    %4519 = vmatprep.subr.bf16.mxu0 0
    %4520 = vmatpush1.bf16.msra.mxu0 0
    %4521 = vmatprep.subr.bf16.mxu0 0
    %4522 = vmatpush1.bf16.msra.mxu0 0
    %4523 = vmatprep.subr.bf16.mxu0 0
    %4524 = vmatpush1.bf16.msra.mxu0 0
    %4525 = vmatprep.subr.bf16.mxu0 0
    %4526 = vmatpush1.bf16.msra.mxu0 0
    %4527 = vmatprep.subr.bf16.mxu0 0
    %4528 = vmatpush1.bf16.msra.mxu0 0
    %4529 = vmatprep.subr.bf16.mxu0 0
    %4530 = vmatpush1.bf16.msra.mxu0 0
    %4531 = vmatprep.subr.bf16.mxu0 0
    %4532 = vmatpush1.bf16.msra.mxu0 0
    %4533 = vmatprep.subr.bf16.mxu0 0
    %4534 = vmatpush1.bf16.msra.mxu0 0
    %4535 = vmatprep.subr.bf16.mxu0 0
    %4536 = vmatpush1.bf16.msra.mxu0 0
    %4537 = vmatprep.mubr.bf16.mxu0 0
    %4538 = vmatmul.mubr.bf16.gmra.mrb[0].mxu0 %v4503
    %v4539 = vpop.f32.mrb[0].mxu0
    %v4540 = vadd.f32 %v3072, %v4539
    %v4541 = vpop.f32.mrb[0].mxu0
    %v4542 = vpop.f32.mrb[0].mxu0
    %v4543 = vpop.f32.mrb[0].mxu0
    %4544 = vdwg.mxu0
    %v4545 = vtanh.pop %v4540
    %v4546 = vmax.f32 %v4545, 0.1
    %v4547 = vmin.f32 %v4546, 0.9
    %v4548 = vmax.f32 %v4545, -0.9
    %v4549 = vmin.f32 %v4548, 0.9
    %v4550 = vmul.f32 %v4547, 5.0
    %4552 = vrot.lane.b32.xlu0 %v4549, 96
    %v4553 = vpop.permute.xlu0 %4552
    %v4555 = vmul.f32 %v4550, %v4553
    %v4556 = vand.u32 2147483647, %v4555
    %vm4557 = vcmp.le.f32.partialorder %v4556, 0.7853982
    %vm4558 = vcmp.lt.s32.totalorder %v4555, 0
    %v4559 = vand.u32 %v4555, 2139095040
    %v4560 = vshrl.u32 %v4559, 23
    %v4561 = vsub.s32 %v4560, 127
    %v4562 = vand.u32 2147483647, %v4555
    %v4563 = vand.u32 %v4562, 8388607
    %v4564 = vor.u32 %v4563, 8388608
    %v4565 = vsub.s32 0, %v4564
    %v4566 = vadd.s32 %v4561, 1
    %vm4567 = vcmp.gt.s32.totalorder %v4566, 0
    %v4568 = vsel %vm4567, %v4566, 0
    %v4569 = vshrl.u32 %v4568, 5
    %v4570 = vand.u32 %v4568, 31
    %v4571 = vsub.s32 32, %v4570
    %v4572 = vshrl.u32 683565275, %v4571
    %v4573 = vshll.u32 683565275, %v4570
    %v4574 = vshrl.u32 2475754826, %v4571
    %v4575 = vor.u32 %v4573, %v4574
    %v4576 = vshll.u32 2475754826, %v4570
    %v4577 = vshrl.u32 2131351028, %v4571
    %v4578 = vor.u32 %v4576, %v4577
    %v4579 = vshll.u32 2131351028, %v4570
    %v4580 = vshrl.u32 2102212464, %v4571
    %v4581 = vor.u32 %v4579, %v4580
    %v4582 = vshll.u32 2102212464, %v4570
    %v4583 = vshrl.u32 920167782, %v4571
    %v4584 = vor.u32 %v4582, %v4583
    %v4585 = vshll.u32 920167782, %v4570
    %v4586 = vshrl.u32 1326507024, %v4571
    %v4587 = vor.u32 %v4585, %v4586
    %vm4588 = vcmp.lt.s32.totalorder %v4569, 1
    %vm4589 = vcmp.lt.s32.totalorder %v4569, 2
    %vm4590 = vcmp.lt.s32.totalorder %v4569, 3
    %vm4591 = vcmp.lt.s32.totalorder %v4569, 4
    %v4592 = vsel %vm4588, %v4572, %v4575
    %v4593 = vsel %vm4591, %v4581, 2102212464
    %v4594 = vsel %vm4590, %v4578, %v4593
    %v4595 = vsel %vm4589, %v4592, %v4594
    %v4596 = vsel %vm4588, %v4575, %v4578
    %v4597 = vsel %vm4591, %v4584, 920167782
    %v4598 = vsel %vm4590, %v4581, %v4597
    %v4599 = vsel %vm4589, %v4596, %v4598
    %v4600 = vsel %vm4588, %v4578, %v4581
    %v4601 = vsel %vm4591, %v4587, 1326507024
    %v4602 = vsel %vm4590, %v4584, %v4601
    %v4603 = vsel %vm4589, %v4600, %v4602
    %v4604 = vshll.u32 %v4564, 8
    %v4605 = vmul.u32.u64.compose %v4604, %v4603
    %v4606 = vextract.low.u32 %v4605
    %v4607 = vextract.high.u32 %v4605
    %v4608 = vmul.u32.u64.compose %v4604, %v4599
    %v4609 = vextract.low.u32 %v4608
    %v4610 = vextract.high.u32 %v4608
    %v4611 = vmul.u32 %v4604, %v4595
    %v4612 = vadd.s32 %v4607, %v4609
    %vm4613 = vc.u32 %v4607, %v4609
    %v4614 = vadd.s32 %v4610, 1
    %v4615 = vsel %vm4613, %v4614, %v4610
    %v4616 = vadd.s32 %v4611, %v4615
    %v4617 = vadd.s32 %v4616, 536870912
    %v4618 = vshrl.u32 %v4617, 30
    %v4619 = vshll.u32 %v4618, 30
    %v4620 = vsub.s32 %v4616, %v4619
    %vm4621 = vcmp.lt.s32.totalorder %v4620, 0
    %v4622 = vsub.s32 0, %v4620
    %v4623 = vsel %vm4621, %v4622, %v4620
    %v4624 = vclz %v4623
    %v4625 = vsub.s32 %v4624, 2
    %vm4626 = vcmp.gt.s32.totalorder 0, %v4625
    %v4627 = vsel %vm4626, 0, %v4625
    %v4628 = vsub.s32 32, %v4627
    %v4629 = vshll.u32 %v4620, %v4627
    %v4630 = vshrl.u32 %v4612, %v4628
    %v4631 = vor.u32 %v4629, %v4630
    %v4632 = vsub.s32 4294967266, %v4627
    %v4633 = vadd.s32 %v4632, 127
    %v4634 = vshll.u32 %v4633, 23
    %v4635 = vor.u32 4788187, %v4634
    %v4636 = vand.u32 2147483647, %v4635
    %v4638 = vcvt.s32.f32 %v4631
    %v4639 = vmul.f32 %v4638, %v4636
    %v4640 = vxor.u32 %v4639, 2147483648
    %v4641 = vsel %vm4558, %v4640, %v4639
    %v4642 = vsub.s32 4, %v4618
    %v4643 = vsel %vm4558, %v4642, %v4618
    %v4644 = vsel %vm4557, %v4555, %v4641
    %v4645 = vsel %vm4557, 0, %v4643
    %v4646 = vcosq.f32.pop %v4644
    %v4647 = vsinq.f32.pop %v4644
    %vm4648 = vweird.f32 %v4555
    %v4649 = vand.u32 %v4645, 3
    %vm4650 = vcmp.lt.s32.totalorder %v4649, 2
    %vm4651 = vcmp.eq.s32.totalorder %v4649, 0
    %v4652 = vxor.u32 %v4647, 2147483648
    %v4653 = vsel %vm4651, %v4646, %v4652
    %vm4654 = vcmp.eq.s32.totalorder %v4649, 2
    %v4655 = vxor.u32 %v4646, 2147483648
    %v4656 = vsel %vm4654, %v4655, %v4647
    %v4657 = vsel %vm4650, %v4653, %v4656
    %v4658 = vsel %vm4648, nan, %v4657
    %v4659 = vadd.f32 %v4547, 1e-08
    %v4660 = vrcp.pop %v4659
    %v4661 = vsub.f32 0.0, %v4660
    %v4662 = vmul.f32 %v4549, %v4549
    %4664 = vrot.lane.b32.xlu0 %v4662, 96
    %v4665 = vpop.permute.xlu0 %4664
    %v4667 = vmul.f32 %v4661, %v4665
    %v4668 = vmul.f32 %v4667, 1.442695
    %v4669 = vpow.pop %v4668
    %v4670 = vmul.f32 %v4658, %v4669
    %v4671 = vand.u32 2147483647, %v4670
    %4673 = vrot.lane.b32.xlu0 %v4492, 96
    %v4674 = vpop.permute.xlu0 %4673
    %v4676 = vmul.f32 %v4492, %v4674
    %4678 = vrot.lane.b32.xlu0 %v4494, 64
    %v4679 = vpop.permute.xlu0 %4678
    %v4681 = vmul.f32 %v4676, %v4679
    %v4683 = vrot.slane %v4371, 6
    %v4685 = vmul.f32 %v4681, %v4683
    %v4686 = vmul.f32 %v4500, %v4671
    %4688 = vrot.lane.b32.xlu0 %v4686, 64
    %v4689 = vpop.permute.xlu0 %4688
    %v4691 = vadd.f32 %v4685, %v4689
    %v4692 = vmax.f32 %v4691, -10.0
    %v4693 = vmin.f32 %v4692, 10.0
    %v4694 = vpack.c.bf16 %v4693, %v4693
    %4696 = vrot.lane.b32.xlu0 %v4694, 64
    %v4697 = vpop.permute.xlu0 %4696
    %v4699 = vsel %vm313, %v4697, 0
    %4701 = vmatprep.subr.bf16.mxu0 0
    %4702 = vmatpush1.bf16.msra.mxu0 %v3376
    %4703 = vmatprep.subr.bf16.mxu0 0
    %4704 = vmatpush1.bf16.msra.mxu0 %v3377
    %4705 = vmatprep.subr.bf16.mxu0 0
    %4706 = vmatpush1.bf16.msra.mxu0 0
    %4707 = vmatprep.subr.bf16.mxu0 0
    %4708 = vmatpush1.bf16.msra.mxu0 0
    %4709 = vmatprep.subr.bf16.mxu0 0
    %4710 = vmatpush1.bf16.msra.mxu0 0
    %4711 = vmatprep.subr.bf16.mxu0 0
    %4712 = vmatpush1.bf16.msra.mxu0 0
    %4713 = vmatprep.subr.bf16.mxu0 0
    %4714 = vmatpush1.bf16.msra.mxu0 0
    %4715 = vmatprep.subr.bf16.mxu0 0
    %4716 = vmatpush1.bf16.msra.mxu0 0
    %4717 = vmatprep.subr.bf16.mxu0 0
    %4718 = vmatpush1.bf16.msra.mxu0 0
    %4719 = vmatprep.subr.bf16.mxu0 0
    %4720 = vmatpush1.bf16.msra.mxu0 0
    %4721 = vmatprep.subr.bf16.mxu0 0
    %4722 = vmatpush1.bf16.msra.mxu0 0
    %4723 = vmatprep.subr.bf16.mxu0 0
    %4724 = vmatpush1.bf16.msra.mxu0 0
    %4725 = vmatprep.subr.bf16.mxu0 0
    %4726 = vmatpush1.bf16.msra.mxu0 0
    %4727 = vmatprep.subr.bf16.mxu0 0
    %4728 = vmatpush1.bf16.msra.mxu0 0
    %4729 = vmatprep.subr.bf16.mxu0 0
    %4730 = vmatpush1.bf16.msra.mxu0 0
    %4731 = vmatprep.subr.bf16.mxu0 0
    %4732 = vmatpush1.bf16.msra.mxu0 0
    %4733 = vmatprep.mubr.bf16.mxu0 0
    %4734 = vmatmul.mubr.bf16.gmra.mrb[0].mxu0 %v4699
    %v4735 = vpop.f32.mrb[0].mxu0
    %v4736 = vadd.f32 %v3079, %v4735
    %v4737 = vpop.f32.mrb[0].mxu0
    %v4738 = vpop.f32.mrb[0].mxu0
    %v4739 = vpop.f32.mrb[0].mxu0
    %4740 = vdwg.mxu0
    %v4741 = vtanh.pop %v4736
    %4743 = vrot.lane.b32.xlu0 %v4741, 32
    %v4744 = vpop.permute.xlu0 %4743
    %v4746 = vmul.f32 %v4492, %v4744
    %4748 = vrot.lane.b32.xlu0 %v4746, 96
    %v4749 = vpop.permute.xlu0 %4748
    %4751 = vst.msk [vmem:[#allocation21 + $0x8] sm:$0x3] %vm649, %v4749
    %v4752 = vpack.c.bf16 %v4746, %v4746
    %4754 = vrot.lane.b32.xlu0 %v4752, 96
    %v4755 = vpop.permute.xlu0 %4754
    %v4757 = vsel %vm313, %v4755, 0
    %4759 = vmatprep.subr.bf16.mxu0 %v3094
    %4760 = vmatpush1.bf16.msra.mxu0 %v3093
    %4761 = vmatprep.subr.bf16.mxu0 %v3096
    %4762 = vmatpush1.bf16.msra.mxu0 %v3095
    %4763 = vmatprep.subr.bf16.mxu0 0
    %4764 = vmatpush1.bf16.msra.mxu0 0
    %4765 = vmatprep.subr.bf16.mxu0 0
    %4766 = vmatpush1.bf16.msra.mxu0 0
    %4767 = vmatprep.subr.bf16.mxu0 0
    %4768 = vmatpush1.bf16.msra.mxu0 0
    %4769 = vmatprep.subr.bf16.mxu0 0
    %4770 = vmatpush1.bf16.msra.mxu0 0
    %4771 = vmatprep.subr.bf16.mxu0 0
    %4772 = vmatpush1.bf16.msra.mxu0 0
    %4773 = vmatprep.subr.bf16.mxu0 0
    %4774 = vmatpush1.bf16.msra.mxu0 0
    %4775 = vmatprep.subr.bf16.mxu0 0
    %4776 = vmatpush1.bf16.msra.mxu0 0
    %4777 = vmatprep.subr.bf16.mxu0 0
    %4778 = vmatpush1.bf16.msra.mxu0 0
    %4779 = vmatprep.subr.bf16.mxu0 0
    %4780 = vmatpush1.bf16.msra.mxu0 0
    %4781 = vmatprep.subr.bf16.mxu0 0
    %4782 = vmatpush1.bf16.msra.mxu0 0
    %4783 = vmatprep.subr.bf16.mxu0 0
    %4784 = vmatpush1.bf16.msra.mxu0 0
    %4785 = vmatprep.subr.bf16.mxu0 0
    %4786 = vmatpush1.bf16.msra.mxu0 0
    %4787 = vmatprep.subr.bf16.mxu0 0
    %4788 = vmatpush1.bf16.msra.mxu0 0
    %4789 = vmatprep.subr.bf16.mxu0 0
    %4790 = vmatpush1.bf16.msra.mxu0 0
    %4791 = vmatprep.mubr.bf16.mxu0 0
    %4792 = vmatmul.mubr.bf16.gmra.mrb[0].mxu0 %v4757
    %v4793 = vpop.f32.mrb[0].mxu0
    %v4794 = vadd.f32 0.0, %v4793
    %v4795 = vpop.f32.mrb[0].mxu0
    %v4796 = vadd.f32 0.0, %v4795
    %v4797 = vpop.f32.mrb[0].mxu0
    %v4798 = vpop.f32.mrb[0].mxu0
    %4799 = vdwg.mxu0
    %v4802 = vrot.slane %v4794, 6
    %v4803 = vrot.slane %v4796, 6
    %v4806 = vadd.f32 %v3051, %v4802
    %v4807 = vadd.f32 %v3053, %v4803
    %v4808 = vxor.u32 %v4806, 2147483648
    %v4809 = vxor.u32 %v4807, 2147483648
    %v4810 = vmul.f32 %v4808, 1.442695
    %v4811 = vpow.pop %v4810
    %v4812 = vmul.f32 %v4809, 1.442695
    %v4813 = vpow.pop %v4812
    %v4814 = vadd.f32 %v4811, 1.0
    %v4815 = vadd.f32 %v4813, 1.0
    %v4816 = vrcp.pop %v4814
    %v4817 = vmul.f32 1.0, %v4816
    %v4818 = vrcp.pop %v4815
    %v4819 = vmul.f32 1.0, %v4818
    %v4820 = vtanh.pop %v4807
    %4822 = vrot.lane.b32.xlu0 %v4820, 96
    %v4823 = vpop.permute.xlu0 %4822
    %v4825 = vmul.f32 %v4817, %v4823
    %v4826 = vpack.c.bf16 %v4825, %v4825
    %v4828 = vrot.slane %v4826, 1
    %v4830 = vsel %vm313, %v4828, 0
    %4832 = vmatprep.subr.bf16.mxu0 0
    %4833 = vmatpush1.bf16.msra.mxu0 %v3171
    %4834 = vmatprep.subr.bf16.mxu0 0
    %4835 = vmatpush1.bf16.msra.mxu0 %v3172
    %4836 = vmatprep.subr.bf16.mxu0 0
    %4837 = vmatpush1.bf16.msra.mxu0 0
    %4838 = vmatprep.subr.bf16.mxu0 0
    %4839 = vmatpush1.bf16.msra.mxu0 0
    %4840 = vmatprep.subr.bf16.mxu0 0
    %4841 = vmatpush1.bf16.msra.mxu0 0
    %4842 = vmatprep.subr.bf16.mxu0 0
    %4843 = vmatpush1.bf16.msra.mxu0 0
    %4844 = vmatprep.subr.bf16.mxu0 0
    %4845 = vmatpush1.bf16.msra.mxu0 0
    %4846 = vmatprep.subr.bf16.mxu0 0
    %4847 = vmatpush1.bf16.msra.mxu0 0
    %4848 = vmatprep.subr.bf16.mxu0 0
    %4849 = vmatpush1.bf16.msra.mxu0 0
    %4850 = vmatprep.subr.bf16.mxu0 0
    %4851 = vmatpush1.bf16.msra.mxu0 0
    %4852 = vmatprep.subr.bf16.mxu0 0
    %4853 = vmatpush1.bf16.msra.mxu0 0
    %4854 = vmatprep.subr.bf16.mxu0 0
    %4855 = vmatpush1.bf16.msra.mxu0 0
    %4856 = vmatprep.subr.bf16.mxu0 0
    %4857 = vmatpush1.bf16.msra.mxu0 0
    %4858 = vmatprep.subr.bf16.mxu0 0
    %4859 = vmatpush1.bf16.msra.mxu0 0
    %4860 = vmatprep.subr.bf16.mxu0 0
    %4861 = vmatpush1.bf16.msra.mxu0 0
    %4862 = vmatprep.subr.bf16.mxu0 0
    %4863 = vmatpush1.bf16.msra.mxu0 0
    %4864 = vmatprep.mubr.bf16.mxu0 0
    %4865 = vmatmul.mubr.bf16.gmra.mrb[0].mxu0 %v4830
    %v4866 = vpop.f32.mrb[0].mxu0
    %v4867 = vadd.f32 %v3072, %v4866
    %v4868 = vpop.f32.mrb[0].mxu0
    %v4869 = vpop.f32.mrb[0].mxu0
    %v4870 = vpop.f32.mrb[0].mxu0
    %4871 = vdwg.mxu0
    %v4872 = vtanh.pop %v4867
    %v4873 = vmax.f32 %v4872, 0.1
    %v4874 = vmin.f32 %v4873, 0.9
    %v4875 = vmax.f32 %v4872, -0.9
    %v4876 = vmin.f32 %v4875, 0.9
    %v4877 = vmul.f32 %v4874, 5.0
    %4879 = vrot.lane.b32.xlu0 %v4876, 96
    %v4880 = vpop.permute.xlu0 %4879
    %v4882 = vmul.f32 %v4877, %v4880
    %v4883 = vand.u32 2147483647, %v4882
    %vm4884 = vcmp.le.f32.partialorder %v4883, 0.7853982
    %vm4885 = vcmp.lt.s32.totalorder %v4882, 0
    %v4886 = vand.u32 %v4882, 2139095040
    %v4887 = vshrl.u32 %v4886, 23
    %v4888 = vsub.s32 %v4887, 127
    %v4889 = vand.u32 2147483647, %v4882
    %v4890 = vand.u32 %v4889, 8388607
    %v4891 = vor.u32 %v4890, 8388608
    %v4892 = vsub.s32 0, %v4891
    %v4893 = vadd.s32 %v4888, 1
    %vm4894 = vcmp.gt.s32.totalorder %v4893, 0
    %v4895 = vsel %vm4894, %v4893, 0
    %v4896 = vshrl.u32 %v4895, 5
    %v4897 = vand.u32 %v4895, 31
    %v4898 = vsub.s32 32, %v4897
    %v4899 = vshrl.u32 683565275, %v4898
    %v4900 = vshll.u32 683565275, %v4897
    %v4901 = vshrl.u32 2475754826, %v4898
    %v4902 = vor.u32 %v4900, %v4901
    %v4903 = vshll.u32 2475754826, %v4897
    %v4904 = vshrl.u32 2131351028, %v4898
    %v4905 = vor.u32 %v4903, %v4904
    %v4906 = vshll.u32 2131351028, %v4897
    %v4907 = vshrl.u32 2102212464, %v4898
    %v4908 = vor.u32 %v4906, %v4907
    %v4909 = vshll.u32 2102212464, %v4897
    %v4910 = vshrl.u32 920167782, %v4898
    %v4911 = vor.u32 %v4909, %v4910
    %v4912 = vshll.u32 920167782, %v4897
    %v4913 = vshrl.u32 1326507024, %v4898
    %v4914 = vor.u32 %v4912, %v4913
    %vm4915 = vcmp.lt.s32.totalorder %v4896, 1
    %vm4916 = vcmp.lt.s32.totalorder %v4896, 2
    %vm4917 = vcmp.lt.s32.totalorder %v4896, 3
    %vm4918 = vcmp.lt.s32.totalorder %v4896, 4
    %v4919 = vsel %vm4915, %v4899, %v4902
    %v4920 = vsel %vm4918, %v4908, 2102212464
    %v4921 = vsel %vm4917, %v4905, %v4920
    %v4922 = vsel %vm4916, %v4919, %v4921
    %v4923 = vsel %vm4915, %v4902, %v4905
    %v4924 = vsel %vm4918, %v4911, 920167782
    %v4925 = vsel %vm4917, %v4908, %v4924
    %v4926 = vsel %vm4916, %v4923, %v4925
    %v4927 = vsel %vm4915, %v4905, %v4908
    %v4928 = vsel %vm4918, %v4914, 1326507024
    %v4929 = vsel %vm4917, %v4911, %v4928
    %v4930 = vsel %vm4916, %v4927, %v4929
    %v4931 = vshll.u32 %v4891, 8
    %v4932 = vmul.u32.u64.compose %v4931, %v4930
    %v4933 = vextract.low.u32 %v4932
    %v4934 = vextract.high.u32 %v4932
    %v4935 = vmul.u32.u64.compose %v4931, %v4926
    %v4936 = vextract.low.u32 %v4935
    %v4937 = vextract.high.u32 %v4935
    %v4938 = vmul.u32 %v4931, %v4922
    %v4939 = vadd.s32 %v4934, %v4936
    %vm4940 = vc.u32 %v4934, %v4936
    %v4941 = vadd.s32 %v4937, 1
    %v4942 = vsel %vm4940, %v4941, %v4937
    %v4943 = vadd.s32 %v4938, %v4942
    %v4944 = vadd.s32 %v4943, 536870912
    %v4945 = vshrl.u32 %v4944, 30
    %v4946 = vshll.u32 %v4945, 30
    %v4947 = vsub.s32 %v4943, %v4946
    %vm4948 = vcmp.lt.s32.totalorder %v4947, 0
    %v4949 = vsub.s32 0, %v4947
    %v4950 = vsel %vm4948, %v4949, %v4947
    %v4951 = vclz %v4950
    %v4952 = vsub.s32 %v4951, 2
    %vm4953 = vcmp.gt.s32.totalorder 0, %v4952
    %v4954 = vsel %vm4953, 0, %v4952
    %v4955 = vsub.s32 32, %v4954
    %v4956 = vshll.u32 %v4947, %v4954
    %v4957 = vshrl.u32 %v4939, %v4955
    %v4958 = vor.u32 %v4956, %v4957
    %v4959 = vsub.s32 4294967266, %v4954
    %v4960 = vadd.s32 %v4959, 127
    %v4961 = vshll.u32 %v4960, 23
    %v4962 = vor.u32 4788187, %v4961
    %v4963 = vand.u32 2147483647, %v4962
    %v4965 = vcvt.s32.f32 %v4958
    %v4966 = vmul.f32 %v4965, %v4963
    %v4967 = vxor.u32 %v4966, 2147483648
    %v4968 = vsel %vm4885, %v4967, %v4966
    %v4969 = vsub.s32 4, %v4945
    %v4970 = vsel %vm4885, %v4969, %v4945
    %v4971 = vsel %vm4884, %v4882, %v4968
    %v4972 = vsel %vm4884, 0, %v4970
    %v4973 = vcosq.f32.pop %v4971
    %v4974 = vsinq.f32.pop %v4971
    %vm4975 = vweird.f32 %v4882
    %v4976 = vand.u32 %v4972, 3
    %vm4977 = vcmp.lt.s32.totalorder %v4976, 2
    %vm4978 = vcmp.eq.s32.totalorder %v4976, 0
    %v4979 = vxor.u32 %v4974, 2147483648
    %v4980 = vsel %vm4978, %v4973, %v4979
    %vm4981 = vcmp.eq.s32.totalorder %v4976, 2
    %v4982 = vxor.u32 %v4973, 2147483648
    %v4983 = vsel %vm4981, %v4982, %v4974
    %v4984 = vsel %vm4977, %v4980, %v4983
    %v4985 = vsel %vm4975, nan, %v4984
    %v4986 = vadd.f32 %v4874, 1e-08
    %v4987 = vrcp.pop %v4986
    %v4988 = vsub.f32 0.0, %v4987
    %v4989 = vmul.f32 %v4876, %v4876
    %4991 = vrot.lane.b32.xlu0 %v4989, 96
    %v4992 = vpop.permute.xlu0 %4991
    %v4994 = vmul.f32 %v4988, %v4992
    %v4995 = vmul.f32 %v4994, 1.442695
    %v4996 = vpow.pop %v4995
    %v4997 = vmul.f32 %v4985, %v4996
    %v4998 = vand.u32 2147483647, %v4997
    %5000 = vrot.lane.b32.xlu0 %v4817, 96
    %v5001 = vpop.permute.xlu0 %5000
    %v5003 = vmul.f32 %v4817, %v5001
    %5005 = vrot.lane.b32.xlu0 %v4819, 64
    %v5006 = vpop.permute.xlu0 %5005
    %v5008 = vmul.f32 %v5003, %v5006
    %v5010 = vrot.slane %v4693, 6
    %v5012 = vmul.f32 %v5008, %v5010
    %v5014 = vrot.slane %v4998, 6
    %v5016 = vmul.f32 %v4825, %v5014
    %5018 = vrot.lane.b32.xlu0 %v5016, 64
    %v5019 = vpop.permute.xlu0 %5018
    %v5021 = vadd.f32 %v5012, %v5019
    %v5022 = vmax.f32 %v5021, -10.0
    %v5023 = vmin.f32 %v5022, 10.0
    %v5024 = vpack.c.bf16 %v5023, %v5023
    %v5026 = vrot.slane %v5024, 1
    %5027 = vrot.lane.b32.xlu0 %v5026, 64
    %v5028 = vpop.permute.xlu0 %5027
    %v5030 = vsel %vm313, %v5028, 0
    %5032 = vmatprep.subr.bf16.mxu0 0
    %5033 = vmatpush1.bf16.msra.mxu0 %v3376
    %5034 = vmatprep.subr.bf16.mxu0 0
    %5035 = vmatpush1.bf16.msra.mxu0 %v3377
    %5036 = vmatprep.subr.bf16.mxu0 0
    %5037 = vmatpush1.bf16.msra.mxu0 0
    %5038 = vmatprep.subr.bf16.mxu0 0
    %5039 = vmatpush1.bf16.msra.mxu0 0
    %5040 = vmatprep.subr.bf16.mxu0 0
    %5041 = vmatpush1.bf16.msra.mxu0 0
    %5042 = vmatprep.subr.bf16.mxu0 0
    %5043 = vmatpush1.bf16.msra.mxu0 0
    %5044 = vmatprep.subr.bf16.mxu0 0
    %5045 = vmatpush1.bf16.msra.mxu0 0
    %5046 = vmatprep.subr.bf16.mxu0 0
    %5047 = vmatpush1.bf16.msra.mxu0 0
    %5048 = vmatprep.subr.bf16.mxu0 0
    %5049 = vmatpush1.bf16.msra.mxu0 0
    %5050 = vmatprep.subr.bf16.mxu0 0
    %5051 = vmatpush1.bf16.msra.mxu0 0
    %5052 = vmatprep.subr.bf16.mxu0 0
    %5053 = vmatpush1.bf16.msra.mxu0 0
    %5054 = vmatprep.subr.bf16.mxu0 0
    %5055 = vmatpush1.bf16.msra.mxu0 0
    %5056 = vmatprep.subr.bf16.mxu0 0
    %5057 = vmatpush1.bf16.msra.mxu0 0
    %5058 = vmatprep.subr.bf16.mxu0 0
    %5059 = vmatpush1.bf16.msra.mxu0 0
    %5060 = vmatprep.subr.bf16.mxu0 0
    %5061 = vmatpush1.bf16.msra.mxu0 0
    %5062 = vmatprep.subr.bf16.mxu0 0
    %5063 = vmatpush1.bf16.msra.mxu0 0
    %5064 = vmatprep.mubr.bf16.mxu0 0
    %5065 = vmatmul.mubr.bf16.gmra.mrb[0].mxu0 %v5030
    %v5066 = vpop.f32.mrb[0].mxu0
    %v5067 = vadd.f32 %v3079, %v5066
    %v5068 = vpop.f32.mrb[0].mxu0
    %v5069 = vpop.f32.mrb[0].mxu0
    %v5070 = vpop.f32.mrb[0].mxu0
    %5071 = vdwg.mxu0
    %v5072 = vtanh.pop %v5067
    %v5074 = vrot.slane %v5072, 6
    %5075 = vrot.lane.b32.xlu0 %v5074, 32
    %v5076 = vpop.permute.xlu0 %5075
    %v5078 = vmul.f32 %v4817, %v5076
    %5080 = vrot.lane.b32.xlu0 %v5078, 96
    %v5081 = vpop.permute.xlu0 %5080
    %5083 = vst.msk [vmem:[#allocation21 + $0x8] sm:$0xc] %vm982, %v5081
    %v5084 = vpack.c.bf16 %v5078, %v5078
    %v5086 = vrot.slane %v5084, 1
    %5087 = vrot.lane.b32.xlu0 %v5086, 96
    %v5088 = vpop.permute.xlu0 %5087
    %v5090 = vsel %vm313, %v5088, 0
    %5092 = vmatprep.subr.bf16.mxu0 %v3094
    %5093 = vmatpush1.bf16.msra.mxu0 %v3093
    %5094 = vmatprep.subr.bf16.mxu0 %v3096
    %5095 = vmatpush1.bf16.msra.mxu0 %v3095
    %5096 = vmatprep.subr.bf16.mxu0 0
    %5097 = vmatpush1.bf16.msra.mxu0 0
    %5098 = vmatprep.subr.bf16.mxu0 0
    %5099 = vmatpush1.bf16.msra.mxu0 0
    %5100 = vmatprep.subr.bf16.mxu0 0
    %5101 = vmatpush1.bf16.msra.mxu0 0
    %5102 = vmatprep.subr.bf16.mxu0 0
    %5103 = vmatpush1.bf16.msra.mxu0 0
    %5104 = vmatprep.subr.bf16.mxu0 0
    %5105 = vmatpush1.bf16.msra.mxu0 0
    %5106 = vmatprep.subr.bf16.mxu0 0
    %5107 = vmatpush1.bf16.msra.mxu0 0
    %5108 = vmatprep.subr.bf16.mxu0 0
    %5109 = vmatpush1.bf16.msra.mxu0 0
    %5110 = vmatprep.subr.bf16.mxu0 0
    %5111 = vmatpush1.bf16.msra.mxu0 0
    %5112 = vmatprep.subr.bf16.mxu0 0
    %5113 = vmatpush1.bf16.msra.mxu0 0
    %5114 = vmatprep.subr.bf16.mxu0 0
    %5115 = vmatpush1.bf16.msra.mxu0 0
    %5116 = vmatprep.subr.bf16.mxu0 0
    %5117 = vmatpush1.bf16.msra.mxu0 0
    %5118 = vmatprep.subr.bf16.mxu0 0
    %5119 = vmatpush1.bf16.msra.mxu0 0
    %5120 = vmatprep.subr.bf16.mxu0 0
    %5121 = vmatpush1.bf16.msra.mxu0 0
    %5122 = vmatprep.subr.bf16.mxu0 0
    %5123 = vmatpush1.bf16.msra.mxu0 0
    %5124 = vmatprep.mubr.bf16.mxu0 0
    %5125 = vmatmul.mubr.bf16.gmra.mrb[0].mxu0 %v5090
    %v5126 = vpop.f32.mrb[0].mxu0
    %v5127 = vadd.f32 0.0, %v5126
    %v5128 = vpop.f32.mrb[0].mxu0
    %v5129 = vadd.f32 0.0, %v5128
    %v5130 = vpop.f32.mrb[0].mxu0
    %v5131 = vpop.f32.mrb[0].mxu0
    %5132 = vdwg.mxu0
    %v5135 = vrot.slane %v5127, 4
    %v5136 = vrot.slane %v5129, 4
    %v5139 = vadd.f32 %v3051, %v5135
    %v5140 = vadd.f32 %v3053, %v5136
    %v5141 = vxor.u32 %v5139, 2147483648
    %v5142 = vxor.u32 %v5140, 2147483648
    %v5143 = vmul.f32 %v5141, 1.442695
    %v5144 = vpow.pop %v5143
    %v5145 = vmul.f32 %v5142, 1.442695
    %v5146 = vpow.pop %v5145
    %v5147 = vadd.f32 %v5144, 1.0
    %v5148 = vadd.f32 %v5146, 1.0
    %v5149 = vrcp.pop %v5147
    %v5150 = vmul.f32 1.0, %v5149
    %v5151 = vrcp.pop %v5148
    %v5152 = vmul.f32 1.0, %v5151
    %v5153 = vtanh.pop %v5140
    %5155 = vrot.lane.b32.xlu0 %v5153, 96
    %v5156 = vpop.permute.xlu0 %5155
    %v5158 = vmul.f32 %v5150, %v5156
    %v5159 = vpack.c.bf16 %v5158, %v5158
    %v5161 = vrot.slane %v5159, 2
    %v5163 = vsel %vm313, %v5161, 0
    %5165 = vmatprep.subr.bf16.mxu0 0
    %5166 = vmatpush1.bf16.msra.mxu0 %v3171
    %5167 = vmatprep.subr.bf16.mxu0 0
    %5168 = vmatpush1.bf16.msra.mxu0 %v3172
    %5169 = vmatprep.subr.bf16.mxu0 0
    %5170 = vmatpush1.bf16.msra.mxu0 0
    %5171 = vmatprep.subr.bf16.mxu0 0
    %5172 = vmatpush1.bf16.msra.mxu0 0
    %5173 = vmatprep.subr.bf16.mxu0 0
    %5174 = vmatpush1.bf16.msra.mxu0 0
    %5175 = vmatprep.subr.bf16.mxu0 0
    %5176 = vmatpush1.bf16.msra.mxu0 0
    %5177 = vmatprep.subr.bf16.mxu0 0
    %5178 = vmatpush1.bf16.msra.mxu0 0
    %5179 = vmatprep.subr.bf16.mxu0 0
    %5180 = vmatpush1.bf16.msra.mxu0 0
    %5181 = vmatprep.subr.bf16.mxu0 0
    %5182 = vmatpush1.bf16.msra.mxu0 0
    %5183 = vmatprep.subr.bf16.mxu0 0
    %5184 = vmatpush1.bf16.msra.mxu0 0
    %5185 = vmatprep.subr.bf16.mxu0 0
    %5186 = vmatpush1.bf16.msra.mxu0 0
    %5187 = vmatprep.subr.bf16.mxu0 0
    %5188 = vmatpush1.bf16.msra.mxu0 0
    %5189 = vmatprep.subr.bf16.mxu0 0
    %5190 = vmatpush1.bf16.msra.mxu0 0
    %5191 = vmatprep.subr.bf16.mxu0 0
    %5192 = vmatpush1.bf16.msra.mxu0 0
    %5193 = vmatprep.subr.bf16.mxu0 0
    %5194 = vmatpush1.bf16.msra.mxu0 0
    %5195 = vmatprep.subr.bf16.mxu0 0
    %5196 = vmatpush1.bf16.msra.mxu0 0
    %5197 = vmatprep.mubr.bf16.mxu0 0
    %5198 = vmatmul.mubr.bf16.gmra.mrb[0].mxu0 %v5163
    %v5199 = vpop.f32.mrb[0].mxu0
    %v5200 = vadd.f32 %v3072, %v5199
    %v5201 = vpop.f32.mrb[0].mxu0
    %v5202 = vpop.f32.mrb[0].mxu0
    %v5203 = vpop.f32.mrb[0].mxu0
    %5204 = vdwg.mxu0
    %v5205 = vtanh.pop %v5200
    %v5206 = vmax.f32 %v5205, 0.1
    %v5207 = vmin.f32 %v5206, 0.9
    %v5208 = vmax.f32 %v5205, -0.9
    %v5209 = vmin.f32 %v5208, 0.9
    %v5210 = vmul.f32 %v5207, 5.0
    %5212 = vrot.lane.b32.xlu0 %v5209, 96
    %v5213 = vpop.permute.xlu0 %5212
    %v5215 = vmul.f32 %v5210, %v5213
    %v5216 = vand.u32 2147483647, %v5215
    %vm5217 = vcmp.le.f32.partialorder %v5216, 0.7853982
    %vm5218 = vcmp.lt.s32.totalorder %v5215, 0
    %v5219 = vand.u32 %v5215, 2139095040
    %v5220 = vshrl.u32 %v5219, 23
    %v5221 = vsub.s32 %v5220, 127
    %v5222 = vand.u32 2147483647, %v5215
    %v5223 = vand.u32 %v5222, 8388607
    %v5224 = vor.u32 %v5223, 8388608
    %v5225 = vsub.s32 0, %v5224
    %v5226 = vadd.s32 %v5221, 1
    %vm5227 = vcmp.gt.s32.totalorder %v5226, 0
    %v5228 = vsel %vm5227, %v5226, 0
    %v5229 = vshrl.u32 %v5228, 5
    %v5230 = vand.u32 %v5228, 31
    %v5231 = vsub.s32 32, %v5230
    %v5232 = vshrl.u32 683565275, %v5231
    %v5233 = vshll.u32 683565275, %v5230
    %v5234 = vshrl.u32 2475754826, %v5231
    %v5235 = vor.u32 %v5233, %v5234
    %v5236 = vshll.u32 2475754826, %v5230
    %v5237 = vshrl.u32 2131351028, %v5231
    %v5238 = vor.u32 %v5236, %v5237
    %v5239 = vshll.u32 2131351028, %v5230
    %v5240 = vshrl.u32 2102212464, %v5231
    %v5241 = vor.u32 %v5239, %v5240
    %v5242 = vshll.u32 2102212464, %v5230
    %v5243 = vshrl.u32 920167782, %v5231
    %v5244 = vor.u32 %v5242, %v5243
    %v5245 = vshll.u32 920167782, %v5230
    %v5246 = vshrl.u32 1326507024, %v5231
    %v5247 = vor.u32 %v5245, %v5246
    %vm5248 = vcmp.lt.s32.totalorder %v5229, 1
    %vm5249 = vcmp.lt.s32.totalorder %v5229, 2
    %vm5250 = vcmp.lt.s32.totalorder %v5229, 3
    %vm5251 = vcmp.lt.s32.totalorder %v5229, 4
    %v5252 = vsel %vm5248, %v5232, %v5235
    %v5253 = vsel %vm5251, %v5241, 2102212464
    %v5254 = vsel %vm5250, %v5238, %v5253
    %v5255 = vsel %vm5249, %v5252, %v5254
    %v5256 = vsel %vm5248, %v5235, %v5238
    %v5257 = vsel %vm5251, %v5244, 920167782
    %v5258 = vsel %vm5250, %v5241, %v5257
    %v5259 = vsel %vm5249, %v5256, %v5258
    %v5260 = vsel %vm5248, %v5238, %v5241
    %v5261 = vsel %vm5251, %v5247, 1326507024
    %v5262 = vsel %vm5250, %v5244, %v5261
    %v5263 = vsel %vm5249, %v5260, %v5262
    %v5264 = vshll.u32 %v5224, 8
    %v5265 = vmul.u32.u64.compose %v5264, %v5263
    %v5266 = vextract.low.u32 %v5265
    %v5267 = vextract.high.u32 %v5265
    %v5268 = vmul.u32.u64.compose %v5264, %v5259
    %v5269 = vextract.low.u32 %v5268
    %v5270 = vextract.high.u32 %v5268
    %v5271 = vmul.u32 %v5264, %v5255
    %v5272 = vadd.s32 %v5267, %v5269
    %vm5273 = vc.u32 %v5267, %v5269
    %v5274 = vadd.s32 %v5270, 1
    %v5275 = vsel %vm5273, %v5274, %v5270
    %v5276 = vadd.s32 %v5271, %v5275
    %v5277 = vadd.s32 %v5276, 536870912
    %v5278 = vshrl.u32 %v5277, 30
    %v5279 = vshll.u32 %v5278, 30
    %v5280 = vsub.s32 %v5276, %v5279
    %vm5281 = vcmp.lt.s32.totalorder %v5280, 0
    %v5282 = vsub.s32 0, %v5280
    %v5283 = vsel %vm5281, %v5282, %v5280
    %v5284 = vclz %v5283
    %v5285 = vsub.s32 %v5284, 2
    %vm5286 = vcmp.gt.s32.totalorder 0, %v5285
    %v5287 = vsel %vm5286, 0, %v5285
    %v5288 = vsub.s32 32, %v5287
    %v5289 = vshll.u32 %v5280, %v5287
    %v5290 = vshrl.u32 %v5272, %v5288
    %v5291 = vor.u32 %v5289, %v5290
    %v5292 = vsub.s32 4294967266, %v5287
    %v5293 = vadd.s32 %v5292, 127
    %v5294 = vshll.u32 %v5293, 23
    %v5295 = vor.u32 4788187, %v5294
    %v5296 = vand.u32 2147483647, %v5295
    %v5298 = vcvt.s32.f32 %v5291
    %v5299 = vmul.f32 %v5298, %v5296
    %v5300 = vxor.u32 %v5299, 2147483648
    %v5301 = vsel %vm5218, %v5300, %v5299
    %v5302 = vsub.s32 4, %v5278
    %v5303 = vsel %vm5218, %v5302, %v5278
    %v5304 = vsel %vm5217, %v5215, %v5301
    %v5305 = vsel %vm5217, 0, %v5303
    %v5306 = vcosq.f32.pop %v5304
    %v5307 = vsinq.f32.pop %v5304
    %vm5308 = vweird.f32 %v5215
    %v5309 = vand.u32 %v5305, 3
    %vm5310 = vcmp.lt.s32.totalorder %v5309, 2
    %vm5311 = vcmp.eq.s32.totalorder %v5309, 0
    %v5312 = vxor.u32 %v5307, 2147483648
    %v5313 = vsel %vm5311, %v5306, %v5312
    %vm5314 = vcmp.eq.s32.totalorder %v5309, 2
    %v5315 = vxor.u32 %v5306, 2147483648
    %v5316 = vsel %vm5314, %v5315, %v5307
    %v5317 = vsel %vm5310, %v5313, %v5316
    %v5318 = vsel %vm5308, nan, %v5317
    %v5319 = vadd.f32 %v5207, 1e-08
    %v5320 = vrcp.pop %v5319
    %v5321 = vsub.f32 0.0, %v5320
    %v5322 = vmul.f32 %v5209, %v5209
    %5324 = vrot.lane.b32.xlu0 %v5322, 96
    %v5325 = vpop.permute.xlu0 %5324
    %v5327 = vmul.f32 %v5321, %v5325
    %v5328 = vmul.f32 %v5327, 1.442695
    %v5329 = vpow.pop %v5328
    %v5330 = vmul.f32 %v5318, %v5329
    %v5331 = vand.u32 2147483647, %v5330
    %5333 = vrot.lane.b32.xlu0 %v5150, 96
    %v5334 = vpop.permute.xlu0 %5333
    %v5336 = vmul.f32 %v5150, %v5334
    %5338 = vrot.lane.b32.xlu0 %v5152, 64
    %v5339 = vpop.permute.xlu0 %5338
    %v5341 = vmul.f32 %v5336, %v5339
    %v5343 = vrot.slane %v5023, 6
    %v5345 = vmul.f32 %v5341, %v5343
    %v5347 = vrot.slane %v5331, 4
    %v5349 = vmul.f32 %v5158, %v5347
    %5351 = vrot.lane.b32.xlu0 %v5349, 64
    %v5352 = vpop.permute.xlu0 %5351
    %v5354 = vadd.f32 %v5345, %v5352
    %v5355 = vmax.f32 %v5354, -10.0
    %v5356 = vmin.f32 %v5355, 10.0
    %v5357 = vpack.c.bf16 %v5356, %v5356
    %v5359 = vrot.slane %v5357, 2
    %5360 = vrot.lane.b32.xlu0 %v5359, 64
    %v5361 = vpop.permute.xlu0 %5360
    %v5363 = vsel %vm313, %v5361, 0
    %5365 = vmatprep.subr.bf16.mxu0 0
    %5366 = vmatpush1.bf16.msra.mxu0 %v3376
    %5367 = vmatprep.subr.bf16.mxu0 0
    %5368 = vmatpush1.bf16.msra.mxu0 %v3377
    %5369 = vmatprep.subr.bf16.mxu0 0
    %5370 = vmatpush1.bf16.msra.mxu0 0
    %5371 = vmatprep.subr.bf16.mxu0 0
    %5372 = vmatpush1.bf16.msra.mxu0 0
    %5373 = vmatprep.subr.bf16.mxu0 0
    %5374 = vmatpush1.bf16.msra.mxu0 0
    %5375 = vmatprep.subr.bf16.mxu0 0
    %5376 = vmatpush1.bf16.msra.mxu0 0
    %5377 = vmatprep.subr.bf16.mxu0 0
    %5378 = vmatpush1.bf16.msra.mxu0 0
    %5379 = vmatprep.subr.bf16.mxu0 0
    %5380 = vmatpush1.bf16.msra.mxu0 0
    %5381 = vmatprep.subr.bf16.mxu0 0
    %5382 = vmatpush1.bf16.msra.mxu0 0
    %5383 = vmatprep.subr.bf16.mxu0 0
    %5384 = vmatpush1.bf16.msra.mxu0 0
    %5385 = vmatprep.subr.bf16.mxu0 0
    %5386 = vmatpush1.bf16.msra.mxu0 0
    %5387 = vmatprep.subr.bf16.mxu0 0
    %5388 = vmatpush1.bf16.msra.mxu0 0
    %5389 = vmatprep.subr.bf16.mxu0 0
    %5390 = vmatpush1.bf16.msra.mxu0 0
    %5391 = vmatprep.subr.bf16.mxu0 0
    %5392 = vmatpush1.bf16.msra.mxu0 0
    %5393 = vmatprep.subr.bf16.mxu0 0
    %5394 = vmatpush1.bf16.msra.mxu0 0
    %5395 = vmatprep.subr.bf16.mxu0 0
    %5396 = vmatpush1.bf16.msra.mxu0 0
    %5397 = vmatprep.mubr.bf16.mxu0 0
    %5398 = vmatmul.mubr.bf16.gmra.mrb[0].mxu0 %v5363
    %v5399 = vpop.f32.mrb[0].mxu0
    %v5400 = vadd.f32 %v3079, %v5399
    %v5401 = vpop.f32.mrb[0].mxu0
    %v5402 = vpop.f32.mrb[0].mxu0
    %v5403 = vpop.f32.mrb[0].mxu0
    %5404 = vdwg.mxu0
    %v5405 = vtanh.pop %v5400
    %v5407 = vrot.slane %v5405, 4
    %5408 = vrot.lane.b32.xlu0 %v5407, 32
    %v5409 = vpop.permute.xlu0 %5408
    %v5411 = vmul.f32 %v5150, %v5409
    %5413 = vrot.lane.b32.xlu0 %v5411, 96
    %v5414 = vpop.permute.xlu0 %5413
    %5416 = vst.msk [vmem:[#allocation21 + $0x8] sm:$0x30] %vm1316, %v5414
    %v5417 = vpack.c.bf16 %v5411, %v5411
    %v5419 = vrot.slane %v5417, 2
    %5420 = vrot.lane.b32.xlu0 %v5419, 96
    %v5421 = vpop.permute.xlu0 %5420
    %v5423 = vsel %vm313, %v5421, 0
    %5425 = vmatprep.subr.bf16.mxu0 %v3094
    %5426 = vmatpush1.bf16.msra.mxu0 %v3093
    %5427 = vmatprep.subr.bf16.mxu0 %v3096
    %5428 = vmatpush1.bf16.msra.mxu0 %v3095
    %5429 = vmatprep.subr.bf16.mxu0 0
    %5430 = vmatpush1.bf16.msra.mxu0 0
    %5431 = vmatprep.subr.bf16.mxu0 0
    %5432 = vmatpush1.bf16.msra.mxu0 0
    %5433 = vmatprep.subr.bf16.mxu0 0
    %5434 = vmatpush1.bf16.msra.mxu0 0
    %5435 = vmatprep.subr.bf16.mxu0 0
    %5436 = vmatpush1.bf16.msra.mxu0 0
    %5437 = vmatprep.subr.bf16.mxu0 0
    %5438 = vmatpush1.bf16.msra.mxu0 0
    %5439 = vmatprep.subr.bf16.mxu0 0
    %5440 = vmatpush1.bf16.msra.mxu0 0
    %5441 = vmatprep.subr.bf16.mxu0 0
    %5442 = vmatpush1.bf16.msra.mxu0 0
    %5443 = vmatprep.subr.bf16.mxu0 0
    %5444 = vmatpush1.bf16.msra.mxu0 0
    %5445 = vmatprep.subr.bf16.mxu0 0
    %5446 = vmatpush1.bf16.msra.mxu0 0
    %5447 = vmatprep.subr.bf16.mxu0 0
    %5448 = vmatpush1.bf16.msra.mxu0 0
    %5449 = vmatprep.subr.bf16.mxu0 0
    %5450 = vmatpush1.bf16.msra.mxu0 0
    %5451 = vmatprep.subr.bf16.mxu0 0
    %5452 = vmatpush1.bf16.msra.mxu0 0
    %5453 = vmatprep.subr.bf16.mxu0 0
    %5454 = vmatpush1.bf16.msra.mxu0 0
    %5455 = vmatprep.subr.bf16.mxu0 0
    %5456 = vmatpush1.bf16.msra.mxu0 0
    %5457 = vmatprep.mubr.bf16.mxu0 0
    %5458 = vmatmul.mubr.bf16.gmra.mrb[0].mxu0 %v5423
    %v5459 = vpop.f32.mrb[0].mxu0
    %v5460 = vadd.f32 0.0, %v5459
    %v5461 = vpop.f32.mrb[0].mxu0
    %v5462 = vadd.f32 0.0, %v5461
    %v5463 = vpop.f32.mrb[0].mxu0
    %v5464 = vpop.f32.mrb[0].mxu0
    %5465 = vdwg.mxu0
    %v5468 = vrot.slane %v5460, 2
    %v5469 = vrot.slane %v5462, 2
    %v5472 = vadd.f32 %v3051, %v5468
    %v5473 = vadd.f32 %v3053, %v5469
    %v5474 = vxor.u32 %v5472, 2147483648
    %v5475 = vxor.u32 %v5473, 2147483648
    %v5476 = vmul.f32 %v5474, 1.442695
    %v5477 = vpow.pop %v5476
    %v5478 = vmul.f32 %v5475, 1.442695
    %v5479 = vpow.pop %v5478
    %v5480 = vadd.f32 %v5477, 1.0
    %v5481 = vadd.f32 %v5479, 1.0
    %v5482 = vrcp.pop %v5480
    %v5483 = vmul.f32 1.0, %v5482
    %v5484 = vrcp.pop %v5481
    %v5485 = vmul.f32 1.0, %v5484
    %v5486 = vtanh.pop %v5473
    %5488 = vrot.lane.b32.xlu0 %v5486, 96
    %v5489 = vpop.permute.xlu0 %5488
    %v5491 = vmul.f32 %v5483, %v5489
    %v5492 = vpack.c.bf16 %v5491, %v5491
    %v5494 = vrot.slane %v5492, 3
    %v5496 = vsel %vm313, %v5494, 0
    %5498 = vmatprep.subr.bf16.mxu0 0
    %5499 = vmatpush1.bf16.msra.mxu0 %v3171
    %5500 = vmatprep.subr.bf16.mxu0 0
    %5501 = vmatpush1.bf16.msra.mxu0 %v3172
    %5502 = vmatprep.subr.bf16.mxu0 0
    %5503 = vmatpush1.bf16.msra.mxu0 0
    %5504 = vmatprep.subr.bf16.mxu0 0
    %5505 = vmatpush1.bf16.msra.mxu0 0
    %5506 = vmatprep.subr.bf16.mxu0 0
    %5507 = vmatpush1.bf16.msra.mxu0 0
    %5508 = vmatprep.subr.bf16.mxu0 0
    %5509 = vmatpush1.bf16.msra.mxu0 0
    %5510 = vmatprep.subr.bf16.mxu0 0
    %5511 = vmatpush1.bf16.msra.mxu0 0
    %5512 = vmatprep.subr.bf16.mxu0 0
    %5513 = vmatpush1.bf16.msra.mxu0 0
    %5514 = vmatprep.subr.bf16.mxu0 0
    %5515 = vmatpush1.bf16.msra.mxu0 0
    %5516 = vmatprep.subr.bf16.mxu0 0
    %5517 = vmatpush1.bf16.msra.mxu0 0
    %5518 = vmatprep.subr.bf16.mxu0 0
    %5519 = vmatpush1.bf16.msra.mxu0 0
    %5520 = vmatprep.subr.bf16.mxu0 0
    %5521 = vmatpush1.bf16.msra.mxu0 0
    %5522 = vmatprep.subr.bf16.mxu0 0
    %5523 = vmatpush1.bf16.msra.mxu0 0
    %5524 = vmatprep.subr.bf16.mxu0 0
    %5525 = vmatpush1.bf16.msra.mxu0 0
    %5526 = vmatprep.subr.bf16.mxu0 0
    %5527 = vmatpush1.bf16.msra.mxu0 0
    %5528 = vmatprep.subr.bf16.mxu0 0
    %5529 = vmatpush1.bf16.msra.mxu0 0
    %5530 = vmatprep.mubr.bf16.mxu0 0
    %5531 = vmatmul.mubr.bf16.gmra.mrb[0].mxu0 %v5496
    %v5532 = vpop.f32.mrb[0].mxu0
    %v5533 = vadd.f32 %v3072, %v5532
    %v5534 = vpop.f32.mrb[0].mxu0
    %v5535 = vpop.f32.mrb[0].mxu0
    %v5536 = vpop.f32.mrb[0].mxu0
    %5537 = vdwg.mxu0
    %v5538 = vtanh.pop %v5533
    %v5539 = vmax.f32 %v5538, 0.1
    %v5540 = vmin.f32 %v5539, 0.9
    %v5541 = vmax.f32 %v5538, -0.9
    %v5542 = vmin.f32 %v5541, 0.9
    %v5543 = vmul.f32 %v5540, 5.0
    %5545 = vrot.lane.b32.xlu0 %v5542, 96
    %v5546 = vpop.permute.xlu0 %5545
    %v5548 = vmul.f32 %v5543, %v5546
    %v5549 = vand.u32 2147483647, %v5548
    %vm5550 = vcmp.le.f32.partialorder %v5549, 0.7853982
    %vm5551 = vcmp.lt.s32.totalorder %v5548, 0
    %v5552 = vand.u32 %v5548, 2139095040
    %v5553 = vshrl.u32 %v5552, 23
    %v5554 = vsub.s32 %v5553, 127
    %v5555 = vand.u32 2147483647, %v5548
    %v5556 = vand.u32 %v5555, 8388607
    %v5557 = vor.u32 %v5556, 8388608
    %v5558 = vsub.s32 0, %v5557
    %v5559 = vadd.s32 %v5554, 1
    %vm5560 = vcmp.gt.s32.totalorder %v5559, 0
    %v5561 = vsel %vm5560, %v5559, 0
    %v5562 = vshrl.u32 %v5561, 5
    %v5563 = vand.u32 %v5561, 31
    %v5564 = vsub.s32 32, %v5563
    %v5565 = vshrl.u32 683565275, %v5564
    %v5566 = vshll.u32 683565275, %v5563
    %v5567 = vshrl.u32 2475754826, %v5564
    %v5568 = vor.u32 %v5566, %v5567
    %v5569 = vshll.u32 2475754826, %v5563
    %v5570 = vshrl.u32 2131351028, %v5564
    %v5571 = vor.u32 %v5569, %v5570
    %v5572 = vshll.u32 2131351028, %v5563
    %v5573 = vshrl.u32 2102212464, %v5564
    %v5574 = vor.u32 %v5572, %v5573
    %v5575 = vshll.u32 2102212464, %v5563
    %v5576 = vshrl.u32 920167782, %v5564
    %v5577 = vor.u32 %v5575, %v5576
    %v5578 = vshll.u32 920167782, %v5563
    %v5579 = vshrl.u32 1326507024, %v5564
    %v5580 = vor.u32 %v5578, %v5579
    %vm5581 = vcmp.lt.s32.totalorder %v5562, 1
    %vm5582 = vcmp.lt.s32.totalorder %v5562, 2
    %vm5583 = vcmp.lt.s32.totalorder %v5562, 3
    %vm5584 = vcmp.lt.s32.totalorder %v5562, 4
    %v5585 = vsel %vm5581, %v5565, %v5568
    %v5586 = vsel %vm5584, %v5574, 2102212464
    %v5587 = vsel %vm5583, %v5571, %v5586
    %v5588 = vsel %vm5582, %v5585, %v5587
    %v5589 = vsel %vm5581, %v5568, %v5571
    %v5590 = vsel %vm5584, %v5577, 920167782
    %v5591 = vsel %vm5583, %v5574, %v5590
    %v5592 = vsel %vm5582, %v5589, %v5591
    %v5593 = vsel %vm5581, %v5571, %v5574
    %v5594 = vsel %vm5584, %v5580, 1326507024
    %v5595 = vsel %vm5583, %v5577, %v5594
    %v5596 = vsel %vm5582, %v5593, %v5595
    %v5597 = vshll.u32 %v5557, 8
    %v5598 = vmul.u32.u64.compose %v5597, %v5596
    %v5599 = vextract.low.u32 %v5598
    %v5600 = vextract.high.u32 %v5598
    %v5601 = vmul.u32.u64.compose %v5597, %v5592
    %v5602 = vextract.low.u32 %v5601
    %v5603 = vextract.high.u32 %v5601
    %v5604 = vmul.u32 %v5597, %v5588
    %v5605 = vadd.s32 %v5600, %v5602
    %vm5606 = vc.u32 %v5600, %v5602
    %v5607 = vadd.s32 %v5603, 1
    %v5608 = vsel %vm5606, %v5607, %v5603
    %v5609 = vadd.s32 %v5604, %v5608
    %v5610 = vadd.s32 %v5609, 536870912
    %v5611 = vshrl.u32 %v5610, 30
    %v5612 = vshll.u32 %v5611, 30
    %v5613 = vsub.s32 %v5609, %v5612
    %vm5614 = vcmp.lt.s32.totalorder %v5613, 0
    %v5615 = vsub.s32 0, %v5613
    %v5616 = vsel %vm5614, %v5615, %v5613
    %v5617 = vclz %v5616
    %v5618 = vsub.s32 %v5617, 2
    %vm5619 = vcmp.gt.s32.totalorder 0, %v5618
    %v5620 = vsel %vm5619, 0, %v5618
    %v5621 = vsub.s32 32, %v5620
    %v5622 = vshll.u32 %v5613, %v5620
    %v5623 = vshrl.u32 %v5605, %v5621
    %v5624 = vor.u32 %v5622, %v5623
    %v5625 = vsub.s32 4294967266, %v5620
    %v5626 = vadd.s32 %v5625, 127
    %v5627 = vshll.u32 %v5626, 23
    %v5628 = vor.u32 4788187, %v5627
    %v5629 = vand.u32 2147483647, %v5628
    %v5631 = vcvt.s32.f32 %v5624
    %v5632 = vmul.f32 %v5631, %v5629
    %v5633 = vxor.u32 %v5632, 2147483648
    %v5634 = vsel %vm5551, %v5633, %v5632
    %v5635 = vsub.s32 4, %v5611
    %v5636 = vsel %vm5551, %v5635, %v5611
    %v5637 = vsel %vm5550, %v5548, %v5634
    %v5638 = vsel %vm5550, 0, %v5636
    %v5639 = vcosq.f32.pop %v5637
    %v5640 = vsinq.f32.pop %v5637
    %vm5641 = vweird.f32 %v5548
    %v5642 = vand.u32 %v5638, 3
    %vm5643 = vcmp.lt.s32.totalorder %v5642, 2
    %vm5644 = vcmp.eq.s32.totalorder %v5642, 0
    %v5645 = vxor.u32 %v5640, 2147483648
    %v5646 = vsel %vm5644, %v5639, %v5645
    %vm5647 = vcmp.eq.s32.totalorder %v5642, 2
    %v5648 = vxor.u32 %v5639, 2147483648
    %v5649 = vsel %vm5647, %v5648, %v5640
    %v5650 = vsel %vm5643, %v5646, %v5649
    %v5651 = vsel %vm5641, nan, %v5650
    %v5652 = vadd.f32 %v5540, 1e-08
    %v5653 = vrcp.pop %v5652
    %v5654 = vsub.f32 0.0, %v5653
    %v5655 = vmul.f32 %v5542, %v5542
    %5657 = vrot.lane.b32.xlu0 %v5655, 96
    %v5658 = vpop.permute.xlu0 %5657
    %v5660 = vmul.f32 %v5654, %v5658
    %v5661 = vmul.f32 %v5660, 1.442695
    %v5662 = vpow.pop %v5661
    %v5663 = vmul.f32 %v5651, %v5662
    %v5664 = vand.u32 2147483647, %v5663
    %5666 = vrot.lane.b32.xlu0 %v5483, 96
    %v5667 = vpop.permute.xlu0 %5666
    %v5669 = vmul.f32 %v5483, %v5667
    %5671 = vrot.lane.b32.xlu0 %v5485, 64
    %v5672 = vpop.permute.xlu0 %5671
    %v5674 = vmul.f32 %v5669, %v5672
    %v5676 = vrot.slane %v5356, 6
    %v5678 = vmul.f32 %v5674, %v5676
    %v5680 = vrot.slane %v5664, 2
    %v5682 = vmul.f32 %v5491, %v5680
    %5684 = vrot.lane.b32.xlu0 %v5682, 64
    %v5685 = vpop.permute.xlu0 %5684
    %v5687 = vadd.f32 %v5678, %v5685
    %v5688 = vmax.f32 %v5687, -10.0
    %v5689 = vmin.f32 %v5688, 10.0
    %v5690 = vpack.c.bf16 %v5689, %v5689
    %v5692 = vrot.slane %v5690, 3
    %5693 = vrot.lane.b32.xlu0 %v5692, 64
    %v5694 = vpop.permute.xlu0 %5693
    %v5696 = vsel %vm313, %v5694, 0
    %5698 = vmatprep.subr.bf16.mxu0 0
    %5699 = vmatpush1.bf16.msra.mxu0 %v3376
    %5700 = vmatprep.subr.bf16.mxu0 0
    %5701 = vmatpush1.bf16.msra.mxu0 %v3377
    %5702 = vmatprep.subr.bf16.mxu0 0
    %5703 = vmatpush1.bf16.msra.mxu0 0
    %5704 = vmatprep.subr.bf16.mxu0 0
    %5705 = vmatpush1.bf16.msra.mxu0 0
    %5706 = vmatprep.subr.bf16.mxu0 0
    %5707 = vmatpush1.bf16.msra.mxu0 0
    %5708 = vmatprep.subr.bf16.mxu0 0
    %5709 = vmatpush1.bf16.msra.mxu0 0
    %5710 = vmatprep.subr.bf16.mxu0 0
    %5711 = vmatpush1.bf16.msra.mxu0 0
    %5712 = vmatprep.subr.bf16.mxu0 0
    %5713 = vmatpush1.bf16.msra.mxu0 0
    %5714 = vmatprep.subr.bf16.mxu0 0
    %5715 = vmatpush1.bf16.msra.mxu0 0
    %5716 = vmatprep.subr.bf16.mxu0 0
    %5717 = vmatpush1.bf16.msra.mxu0 0
    %5718 = vmatprep.subr.bf16.mxu0 0
    %5719 = vmatpush1.bf16.msra.mxu0 0
    %5720 = vmatprep.subr.bf16.mxu0 0
    %5721 = vmatpush1.bf16.msra.mxu0 0
    %5722 = vmatprep.subr.bf16.mxu0 0
    %5723 = vmatpush1.bf16.msra.mxu0 0
    %5724 = vmatprep.subr.bf16.mxu0 0
    %5725 = vmatpush1.bf16.msra.mxu0 0
    %5726 = vmatprep.subr.bf16.mxu0 0
    %5727 = vmatpush1.bf16.msra.mxu0 0
    %5728 = vmatprep.subr.bf16.mxu0 0
    %5729 = vmatpush1.bf16.msra.mxu0 0
    %5730 = vmatprep.mubr.bf16.mxu0 0
    %5731 = vmatmul.mubr.bf16.gmra.mrb[0].mxu0 %v5696
    %v5732 = vpop.f32.mrb[0].mxu0
    %v5733 = vadd.f32 %v3079, %v5732
    %v5734 = vpop.f32.mrb[0].mxu0
    %v5735 = vpop.f32.mrb[0].mxu0
    %v5736 = vpop.f32.mrb[0].mxu0
    %5737 = vdwg.mxu0
    %v5738 = vtanh.pop %v5733
    %v5740 = vrot.slane %v5738, 2
    %5741 = vrot.lane.b32.xlu0 %v5740, 32
    %v5742 = vpop.permute.xlu0 %5741
    %v5744 = vmul.f32 %v5483, %v5742
    %5746 = vrot.lane.b32.xlu0 %v5744, 96
    %v5747 = vpop.permute.xlu0 %5746
    %5749 = vst.msk [vmem:[#allocation21 + $0x8] sm:$0xc0] %vm1650, %v5747
    // Predicated region
    $region106: #{tpu_custom_call.1} parent=1 // pred_check
      _
    $region107: #{tpu_custom_call.1} parent=1 // pred_check_branch
      %5751 = sbr.rel (0) target = $region109
    $region108: #{tpu_custom_call.1} parent=1 // pred_region
      %s5753 = ssub.s32 256, 256
      %5754 = vsyncadd [#allocation5], %s5753
      %s5755 = sshll.u32 [#allocation21], 4
      %s5756 = int_to_ptr.vmem [resolvable:$true] %s5755
      %5761 = dma.vmem_to_hbm [thread:$0]  %s5756, 256, %s15, [#allocation5], 128, 128, 8
    $region109: #{tpu_custom_call.1} parent=1 // pred_fallthru
      _
    // Predicated region
    $region110: #{tpu_custom_call.1} parent=1 // pred_check
      _
    $region111: #{tpu_custom_call.1} parent=1 // pred_check_branch
      %5763 = sbr.rel (0) target = $region113
    $region112: #{tpu_custom_call.1} parent=1 // pred_region
      %5764 = dma.done [#allocation5], 256
    $region113: #{tpu_custom_call.1} parent=1 // pred_fallthru
      _
    %5765 = vsyncpa [#allocation4], 1
    %5766 = vsyncpa [#allocation7], 1
    %5767 = vsyncpa [#allocation10], 1
    %5768 = vsyncpa [#allocation13], 1
    %5769 = vsyncpa [#allocation16], 1
    %5770 = vsyncpa [#allocation19], 1
    %5771 = vsyncpa [#allocation5], 1

</llo_original>
